<compile_context>
chip_gen: v7x
topology: tpu7x:2x2x1
jax: 0.10.0
libtpu: 0.0.40
codegen_flags: <defaults>
</compile_context>

<pallas_src>
import functools

import numpy as np
import jax
import jax.numpy as jnp
from jax import lax
from jax.experimental import pallas as pl
from jax.experimental.pallas import tpu as pltpu


# ============================================================================
# Phase (sub-pixel) decomposition of ConvTranspose2d(k=4, stride=2, padding=1).
# For padded-slice offset a in {0,1,2} (input offset delta = a-1) the valid
# (output phase r, kernel tap ky) pairs are:
# ============================================================================
_DECONV_TAPS = {0: ((0, 3),), 1: ((0, 1), (1, 2)), 2: ((1, 0),)}


def _deconv_phase_weights(w_iokk, bias):
    """PyTorch ConvTranspose2d weight (C_in, C_out, 4, 4) -> (3, 3, C_in, 4*C_out) phase GEMM
    weight over the 1-padded input, plus (1, 4*C_out) bias.  Phase p = 2*r + s."""
    w = np.asarray(w_iokk, np.float32)
    cin, cout = w.shape[0], w.shape[1]
    wc = np.zeros((3, 3, cin, 4 * cout), np.float32)
    for a in range(3):
        for b in range(3):
            for (r, ky) in _DECONV_TAPS[a]:
                for (s, kx) in _DECONV_TAPS[b]:
                    p = 2 * r + s
                    wc[a, b, :, p * cout:(p + 1) * cout] = w[:, :, ky, kx]
    bc = np.tile(np.asarray(bias, np.float32).reshape(1, cout), (1, 4))
    return jnp.asarray(wc), jnp.asarray(bc)


def _fused_deconv2_phase_weights(w_iokk, bias):
    """ConvTranspose2d(k=4,s=2,p=1) applied directly to a stride-2 *phase tensor*.

    Input: phase tensor P (B, h, w, 4*C1), channel layout p1*C1 + ci with p1 = 2*r1 + s1,
    P[b,i,j,p1,ci] = img[b, 2i+r1, 2j+s1, ci]  (img = ReLU(ConvT-1 output), 2h x 2w).
    Output: 16-phase tensor (B*h*w, 16*C2), column q*C2 + c with q = 4*qy + qx giving final
    pixel (4i+qy, 4j+qx).  Returns the 3x3-im2col GEMM weight (9*4*C1, 16*C2) over the
    1-padded phase tensor and the (1, 16*C2) bias.  Entries with no contribution are zero
    (the ~4x MAC inflation is negligible at MXU rates and removes the pixel-shuffle)."""
    w = np.asarray(w_iokk, np.float32)
    c1, c2 = w.shape[0], w.shape[1]
    wf = np.zeros((3, 3, 4 * c1, 16 * c2), np.float32)
    for r1y in range(2):
        for a2 in range(3):
            for (r2, ky2) in _DECONV_TAPS[a2]:
                t = r1y + a2 - 1
                di, r1 = t // 2, t % 2                       # floor div / mod (t may be -1)
                qy = 2 * r1y + r2
                for s1x in range(2):
                    for b2 in range(3):
                        for (s2, kx2) in _DECONV_TAPS[b2]:
                            u = s1x + b2 - 1
                            dj, s1 = u // 2, u % 2
                            qx = 2 * s1x + s2
                            p1 = 2 * r1 + s1
                            q = 4 * qy + qx
                            wf[di + 1, dj + 1,
                               p1 * c1:(p1 + 1) * c1,
                               q * c2:(q + 1) * c2] += w[:, :, ky2, kx2]
    bf = np.tile(np.asarray(bias, np.float32).reshape(1, c2), (1, 16))
    return jnp.asarray(wf.reshape(9 * 4 * c1, 16 * c2)), jnp.asarray(bf)


# ----------------------------------------------------------------------------
# The single fused kernel: quantizer + conv_1 + residual stack + ConvT-1 + ConvT-2.
# ----------------------------------------------------------------------------
def _codec_kernel(*refs, commitment_cost, has_noise):
    if has_noise:
        (x_ref, e_ref, w1_ref, b1_ref, wr3_ref, wr1_ref, wt1_ref, bt1_ref,
         wt2_ref, bt2_ref, noise_ref, out_ref, pad_in, pad_hid, pad_ph, imcol) = refs
    else:
        (x_ref, e_ref, w1_ref, b1_ref, wr3_ref, wr1_ref, wt1_ref, bt1_ref,
         wt2_ref, bt2_ref, out_ref, pad_in, pad_hid, pad_ph, imcol) = refs
        noise_ref = None

    f32 = jnp.float32
    bsz = pad_in.shape[0]
    h = pad_in.shape[1] - 2
    w = pad_in.shape[2] - 2
    n_rows, d = x_ref.shape
    k = e_ref.shape[0]
    c_hid = pad_hid.shape[3]
    n1 = pad_ph.shape[3]                       # 4 * C1
    n2 = wt2_ref.shape[1]                      # 16 * C2

    def zero_border(ref):
        b_, hp, wp, c = ref.shape
        ref[:, 0:1, :, :] = jnp.zeros((b_, 1, wp, c), f32)
        ref[:, hp - 1:hp, :, :] = jnp.zeros((b_, 1, wp, c), f32)
        ref[:, :, 0:1, :] = jnp.zeros((b_, hp, 1, c), f32)
        ref[:, :, wp - 1:wp, :] = jnp.zeros((b_, hp, 1, c), f32)

    def conv3x3(pad_ref, w_flat, c_in):
        # In-VMEM im2col -> one deep MXU GEMM (contraction 9*c_in).
        for di in range(3):
            for dj in range(3):
                t = di * 3 + dj
                imcol[:, t * c_in:(t + 1) * c_in] = (
                    pad_ref[:, di:di + h, dj:dj + w, :].reshape(n_rows, c_in))
        lhs = imcol[:, :9 * c_in]
        return jnp.dot(lhs, w_flat, preferred_element_type=f32)

    # ---------------- Quantizer ----------------
    x = x_ref[...]                                                  # (N, D)
    e = e_ref[...]                                                  # (K, D)
    xe = jnp.dot(x, e.T, preferred_element_type=f32)                # (N, K)  MXU
    e2 = jnp.sum(e * e, axis=1, keepdims=True).T                    # (1, K)
    score = e2 - 2.0 * xe                                           # argmin == argmin of full dist
    col = lax.broadcasted_iota(jnp.int32, score.shape, 1)
    mn = jnp.min(score, axis=1, keepdims=True)
    first = jnp.min(jnp.where(score == mn, col, k), axis=1, keepdims=True)
    enc = (col == first).astype(f32)                                # (N, K) one-hot
    q = jnp.dot(enc, e, preferred_element_type=f32)                 # (N, D) lookup

    diff = q - x                                                    # loss on pre-noise q
    sse = jnp.sum(jnp.sum(diff * diff, axis=1, keepdims=True), axis=0, keepdims=True)
    loss = (1.0 + commitment_cost) * sse / float(n_rows * d)        # (1, 1)
    avg = jnp.sum(enc, axis=0, keepdims=True) / float(n_rows)       # (1, K)
    ent = jnp.sum(avg * jnp.log(avg + 1e-10), axis=1, keepdims=True)
    perp = jnp.exp(-ent)                                            # (1, 1)

    if noise_ref is not None:        # decoder and the returned `quantized` see the noise
        q = q + noise_ref[...]

    # ---------------- conv_1: 3x3, pad 1, D -> C_hid ----------------
    zero_border(pad_in)
    pad_in[:, 1:1 + h, 1:1 + w, :] = q.reshape(bsz, h, w, d)
    xh = conv3x3(pad_in, w1_ref[...], d) + b1_ref[...]              # (N, C_hid)

    # ---------------- residual stack: x += Conv1x1(ReLU(Conv3x3(ReLU(x)))) ----------------
    zero_border(pad_hid)
    for layer in range(wr3_ref.shape[0]):
        pad_hid[:, 1:1 + h, 1:1 + w, :] = jnp.maximum(xh, 0.0).reshape(bsz, h, w, c_hid)
        r = jnp.maximum(conv3x3(pad_hid, wr3_ref[layer], c_hid), 0.0)
        xh = xh + jnp.dot(r, wr1_ref[layer], preferred_element_type=f32)

    # ---------------- F.relu -> ConvTranspose-1 (phase form) -> ReLU ----------------
    pad_hid[:, 1:1 + h, 1:1 + w, :] = jnp.maximum(xh, 0.0).reshape(bsz, h, w, c_hid)
    y1 = jnp.maximum(conv3x3(pad_hid, wt1_ref[...], c_hid) + bt1_ref[...], 0.0)   # (N, 4*C1)

    # ---------------- ConvTranspose-2 fused over the phase tensor ----------------
    zero_border(pad_ph)
    pad_ph[:, 1:1 + h, 1:1 + w, :] = y1.reshape(bsz, h, w, n1)
    rec = conv3x3(pad_ph, wt2_ref[...], n1) + bt2_ref[...]          # (N, 16*C2)

    # ---------------- single lane-dense output slab ----------------
    out_ref[:, 0:d] = q
    out_ref[:, d:d + k] = enc
    out_ref[:, d + k:d + k + n2] = rec
    out_ref[:, d + k + n2:d + k + n2 + 1] = jnp.broadcast_to(loss, (n_rows, 1))
    out_ref[:, d + k + n2 + 1:d + k + n2 + 2] = jnp.broadcast_to(perp, (n_rows, 1))
    used = d + k + n2 + 2
    if out_ref.shape[1] > used:
        out_ref[:, used:] = jnp.zeros((n_rows, out_ref.shape[1] - used), f32)


def _codec_pallas(x_flat, pp, noise, *, bsz, h, w, commitment_cost):
    n_rows, d = x_flat.shape
    k = pp["embedding"].shape[0]
    c_hid = pp["w1f"].shape[1]
    n1 = pp["wt1f"].shape[1]
    n2 = pp["wt2f"].shape[1]
    ncols = ((d + k + n2 + 2 + 127) // 128) * 128
    max_c = max(d, c_hid, n1)

    has_noise = noise is not None
    args = [x_flat, pp["embedding"], pp["w1f"], pp["b1"], pp["wr3f"], pp["wr1"],
            pp["wt1f"], pp["bt1"], pp["wt2f"], pp["bt2f"]] + ([noise] if has_noise else [])
    kernel = functools.partial(_codec_kernel, commitment_cost=commitment_cost,
                               has_noise=has_noise)
    return pl.pallas_call(
        kernel,
        out_shape=jax.ShapeDtypeStruct((n_rows, ncols), jnp.float32),
        scratch_shapes=[
            pltpu.VMEM((bsz, h + 2, w + 2, d), jnp.float32),      # padded conv_1 input
            pltpu.VMEM((bsz, h + 2, w + 2, c_hid), jnp.float32),  # padded hidden activations
            pltpu.VMEM((bsz, h + 2, w + 2, n1), jnp.float32),     # padded ConvT-1 phase tensor
            pltpu.VMEM((n_rows, 9 * max_c), jnp.float32),         # reused im2col buffer
        ],
        compiler_params=pltpu.CompilerParams(vmem_limit_bytes=32 * 1024 * 1024),
    )(*args)


# ----------------------------------------------------------------------------
# Parameters (PyTorch layouts) and one-time conversion to kernel GEMM layouts.
# ----------------------------------------------------------------------------
def init_codec_params(key, embedding_dim, num_embeddings, num_hiddens,
                      num_residual_layers, num_residual_hiddens):
    ks = jax.random.split(key, 8 + 2 * num_residual_layers)
    p = {}
    p["embedding"] = jax.random.uniform(
        ks[0], (num_embeddings, embedding_dim), jnp.float32,
        minval=-1.0 / num_embeddings, maxval=1.0 / num_embeddings)
    p["w_conv1"] = 0.1 * jax.random.normal(ks[1], (num_hiddens, embedding_dim, 3, 3), jnp.float32)
    p["b_conv1"] = 0.01 * jax.random.normal(ks[2], (num_hiddens,), jnp.float32)
    p["res"] = []
    for i in range(num_residual_layers):
        w3 = 0.1 * jax.random.normal(ks[3 + 2 * i], (num_residual_hiddens, num_hiddens, 3, 3), jnp.float32)
        w1 = 0.1 * jax.random.normal(ks[4 + 2 * i], (num_hiddens, num_residual_hiddens, 1, 1), jnp.float32)
        p["res"].append((w3, w1))
    off = 3 + 2 * num_residual_layers
    p["w_ct1"] = 0.1 * jax.random.normal(ks[off + 0], (num_hiddens, num_hiddens // 2, 4, 4), jnp.float32)
    p["b_ct1"] = 0.01 * jax.random.normal(ks[off + 1], (num_hiddens // 2,), jnp.float32)
    p["w_ct2"] = 0.1 * jax.random.normal(ks[off + 2], (num_hiddens // 2, 3, 4, 4), jnp.float32)
    p["b_ct2"] = 0.01 * jax.random.normal(ks[off + 3], (3,), jnp.float32)
    return p


def prepare_params(p):
    """One-time conversion of PyTorch-layout weights into kernel-ready GEMM layouts."""
    d = p["embedding"].shape[1]
    c_hid = p["w_conv1"].shape[0]
    pp = {"embedding": jnp.asarray(p["embedding"], jnp.float32)}
    pp["w1f"] = jnp.transpose(p["w_conv1"], (2, 3, 1, 0)).reshape(9 * d, c_hid).astype(jnp.float32)
    pp["b1"] = p["b_conv1"].reshape(1, -1).astype(jnp.float32)
    pp["wr3f"] = jnp.stack(
        [jnp.transpose(w3, (2, 3, 1, 0)).reshape(9 * c_hid, -1) for (w3, _) in p["res"]]
    ).astype(jnp.float32)
    pp["wr1"] = jnp.stack([w1[:, :, 0, 0].T for (_, w1) in p["res"]]).astype(jnp.float32)
    wt1c, bt1 = _deconv_phase_weights(p["w_ct1"], p["b_ct1"])
    pp["wt1f"] = wt1c.reshape(9 * c_hid, -1)                         # (9*C_hid, 4*C1)
    pp["bt1"] = bt1
    pp["wt2f"], pp["bt2f"] = _fused_deconv2_phase_weights(p["w_ct2"], p["b_ct2"])  # (576, 48)
    return pp


# ----------------------------------------------------------------------------
# Public forward (mirrors Codec.forward).
# ----------------------------------------------------------------------------
def codec_forward(prepped, x_nchw, add_noise=False, noise_key=None, noise_alpha=5,
                  commitment_cost=0.25):
    bsz, d, h, w = x_nchw.shape
    k = prepped["embedding"].shape[0]
    n2 = prepped["wt2f"].shape[1]
    c2 = n2 // 16
    x_flat = jnp.transpose(x_nchw, (0, 2, 3, 1)).reshape(bsz * h * w, d).astype(jnp.float32)

    noise = None
    if add_noise:
        mag_norm = noise_alpha / (k * d)
        noise = jax.random.uniform(noise_key, x_flat.shape, jnp.float32,
                                   minval=-mag_norm, maxval=mag_norm)

    slab = _codec_pallas(x_flat, prepped, noise, bsz=bsz, h=h, w=w,
                         commitment_cost=commitment_cost)

    off = d + k
    q_flat = slab[:, :d]
    encodings = slab[:, d:off]
    rec_ph = slab[:, off:off + n2]
    vq_loss = slab[0, off + n2]
    perplexity = slab[0, off + n2 + 1]

    quantized = jnp.transpose(q_flat.reshape(bsz, h, w, d), (0, 3, 1, 2))        # NCHW
    x_recon = (rec_ph.reshape(bsz, h, w, 4, 4, c2)
               .transpose(0, 5, 1, 3, 2, 4)
               .reshape(bsz, c2, 4 * h, 4 * w))                                  # NCHW
    return x_recon, (vq_loss, perplexity, quantized, encodings)


# ----------------------------------------------------------------------------
# Independent pure-JAX reference decoder (dilate + im2col) for correctness checks.
# ----------------------------------------------------------------------------
def _ref_conv2d(x, w_oikk, b=None, pad=0):
    kk = w_oikk.shape[-1]
    cin = w_oikk.shape[1]
    xp = jnp.pad(x, ((0, 0), (pad, pad), (pad, pad), (0, 0)))
    ho = x.shape[1] + 2 * pad - kk + 1
    wo = x.shape[2] + 2 * pad - kk + 1
    cols = [xp[:, di:di + ho, dj:dj + wo, :] for di in range(kk) for dj in range(kk)]
    patches = jnp.concatenate(cols, axis=-1).reshape(-1, kk * kk * cin)
    wmat = jnp.transpose(w_oikk, (2, 3, 1, 0)).reshape(kk * kk * cin, w_oikk.shape[0])
    y = jnp.dot(patches, wmat, precision=lax.Precision.HIGHEST)
    if b is not None:
        y = y + b
    return y.reshape(x.shape[0], ho, wo, w_oikk.shape[0])


def _ref_deconv(x, w_iokk, b, stride=2, padding=1):
    bsz, h, w, c = x.shape
    kk = w_iokk.shape[-1]
    xd = jnp.zeros((bsz, (h - 1) * stride + 1, (w - 1) * stride + 1, c), x.dtype)
    xd = xd.at[:, ::stride, ::stride, :].set(x)
    w_conv = jnp.transpose(jnp.flip(w_iokk, axis=(2, 3)), (1, 0, 2, 3))
    return _ref_conv2d(xd, w_conv, b, pad=kk - 1 - padding)


def _ref_decoder(params, q_nhwc):
    y = _ref_conv2d(q_nhwc, params["w_conv1"], params["b_conv1"], pad=1)
    for (w3, w1) in params["res"]:
        t = _ref_conv2d(jnp.maximum(y, 0.0), w3, None, pad=1)
        t = _ref_conv2d(jnp.maximum(t, 0.0), w1, None, pad=0)
        y = y + t
    y = jnp.maximum(y, 0.0)
    y = jnp.maximum(_ref_deconv(y, params["w_ct1"], params["b_ct1"]), 0.0)
    return _ref_deconv(y, params["w_ct2"], params["b_ct2"])


# ----------------------------------------------------------------------------
if __name__ == "__main__":
    embedding_dim = 16
    num_embeddings = 32
    num_hiddens = 32
    num_residual_layers = 2
    num_residual_hiddens = 8
    B, H, W = 2, 8, 8

    key = jax.random.PRNGKey(0)
    kp, kx = jax.random.split(key)
    params = init_codec_params(kp, embedding_dim, num_embeddings, num_hiddens,
                               num_residual_layers, num_residual_hiddens)
    prepped = prepare_params(params)
    x = jax.random.normal(kx, (B, embedding_dim, H, W), jnp.float32)

    fwd = jax.jit(functools.partial(codec_forward, add_noise=False))
    x_recon, (vq_loss, perplexity, quantized, encodings) = fwd(prepped, x)
    jax.block_until_ready((x_recon, vq_loss, perplexity, quantized, encodings))

    # shape / sanity checks
    assert x_recon.shape == (B, 3, 4 * H, 4 * W), x_recon.shape
    assert quantized.shape == (B, embedding_dim, H, W), quantized.shape
    assert encodings.shape == (B * H * W, num_embeddings), encodings.shape
    assert bool(jnp.all(jnp.isfinite(x_recon)))
    assert bool(jnp.isfinite(vq_loss)) and bool(jnp.isfinite(perplexity))

    # quantizer consistency: rows of `quantized` are near-optimal codebook rows
    q_flat = jnp.transpose(quantized, (0, 2, 3, 1)).reshape(B * H * W, embedding_dim)
    x_flat = jnp.transpose(x, (0, 2, 3, 1)).reshape(B * H * W, embedding_dim)
    idx = jnp.argmax(encodings, axis=1)
    assert bool(jnp.allclose(q_flat, params["embedding"][idx], atol=1e-3))
    dist = jnp.sum((x_flat[:, None, :] - params["embedding"][None, :, :]) ** 2, axis=-1)
    d_chosen = jnp.take_along_axis(dist, idx[:, None], axis=1)[:, 0]
    assert bool(jnp.all(d_chosen <= jnp.min(dist, axis=1) + 1e-2))
    assert bool(jnp.allclose(vq_loss, 1.25 * jnp.mean((q_flat - x_flat) ** 2),
                             rtol=1e-3, atol=1e-5))
    avg_p = jnp.mean(encodings, axis=0)
    assert bool(jnp.allclose(perplexity,
                             jnp.exp(-jnp.sum(avg_p * jnp.log(avg_p + 1e-10))), rtol=1e-3))

    # decoder cross-check against an independent pure-JAX (dilate + im2col) reference
    ref_recon = jnp.transpose(
        _ref_decoder(params, jnp.transpose(quantized, (0, 2, 3, 1))), (0, 3, 1, 2))
    assert bool(jnp.allclose(x_recon, ref_recon, atol=2e-3)), \
        float(jnp.max(jnp.abs(x_recon - ref_recon)))

    # exercise the add_noise branch once
    fwd_n = jax.jit(functools.partial(codec_forward, add_noise=True))
    rec_n, (l_n, p_n, q_n, e_n) = fwd_n(prepped, x, noise_key=jax.random.PRNGKey(1))
    jax.block_until_ready((rec_n, l_n, p_n, q_n, e_n))
    assert bool(jnp.all(jnp.isfinite(rec_n))) and bool(jnp.isfinite(l_n))

    print("KERNEL_OK")
</pallas_src>

<mosaic_0001>
module attributes {stable_mosaic.version = 11 : i64} {
  func.func @_codec_kernel(%arg0: memref<128x16xf32, #tpu.memory_space<vmem>>, %arg1: memref<32x16xf32, #tpu.memory_space<vmem>>, %arg2: memref<144x32xf32, #tpu.memory_space<vmem>>, %arg3: memref<1x32xf32, #tpu.memory_space<vmem>>, %arg4: memref<2x288x8xf32, #tpu.memory_space<vmem>>, %arg5: memref<2x8x32xf32, #tpu.memory_space<vmem>>, %arg6: memref<288x64xf32, #tpu.memory_space<vmem>>, %arg7: memref<1x64xf32, #tpu.memory_space<vmem>>, %arg8: memref<576x48xf32, #tpu.memory_space<vmem>>, %arg9: memref<1x48xf32, #tpu.memory_space<vmem>>, %arg10: memref<128x128xf32, #tpu.memory_space<vmem>>, %arg11: memref<2x10x10x16xf32, #tpu.memory_space<vmem>>, %arg12: memref<2x10x10x32xf32, #tpu.memory_space<vmem>>, %arg13: memref<2x10x10x64xf32, #tpu.memory_space<vmem>>, %arg14: memref<128x576xf32, #tpu.memory_space<vmem>>) attributes {dimension_semantics = [], scalar_prefetch = 0 : i64, scratch_operands = 4 : i64, tpu.core_type = #tpu.core_type<tc>} {
    %c0 = arith.constant 0 : index
    %c0_0 = arith.constant 0 : index
    %0 = vector.load %arg0[%c0, %c0_0] : memref<128x16xf32, #tpu.memory_space<vmem>>, vector<128x16xf32>
    %c0_1 = arith.constant 0 : index
    %c0_2 = arith.constant 0 : index
    %1 = vector.load %arg1[%c0_1, %c0_2] : memref<32x16xf32, #tpu.memory_space<vmem>>, vector<32x16xf32>
    %2 = tpu.transpose %1, [1, 0] : vector<32x16xf32> -> vector<16x32xf32>
    %cst = arith.constant dense<0.000000e+00> : vector<128x32xf32>
    %3 = tpu.matmul %0, %2, %cst {dimension_numbers = #tpu.dot_dimension_numbers<[1], [0], [0], [1], [0, 0, 1, 1], [], []>} : vector<128x16xf32>, vector<16x32xf32>, vector<128x32xf32> -> vector<128x32xf32>
    %4 = arith.mulf %1, %1 : vector<32x16xf32>
    %cst_3 = arith.constant dense<0.000000e+00> : vector<32xf32>
    %5 = vector.multi_reduction <add>, %4, %cst_3 [1] : vector<32x16xf32> to vector<32xf32>
    %6 = vector.shape_cast %5 : vector<32xf32> to vector<32x1xf32>
    %7 = tpu.transpose %6, [1, 0] : vector<32x1xf32> -> vector<1x32xf32>
    %cst_4 = arith.constant 2.000000e+00 : f32
    %8 = vector.broadcast %cst_4 : f32 to vector<128x32xf32>
    %9 = arith.mulf %8, %3 : vector<128x32xf32>
    %10 = vector.broadcast %7 : vector<1x32xf32> to vector<128x32xf32>
    %11 = arith.subf %10, %9 : vector<128x32xf32>
    %12 = tpu.iota {dimensions = array<i32: 1>} : vector<128x32xi32>
    %cst_5 = arith.constant dense<0x7F800000> : vector<128xf32>
    %13 = vector.multi_reduction <minimumf>, %11, %cst_5 [1] : vector<128x32xf32> to vector<128xf32>
    %14 = vector.shape_cast %13 : vector<128xf32> to vector<128x1xf32>
    %15 = vector.broadcast %14 : vector<128x1xf32> to vector<128x32xf32>
    %16 = arith.cmpf oeq, %11, %15 : vector<128x32xf32>
    %c32_i32 = arith.constant 32 : i32
    %17 = vector.broadcast %c32_i32 : i32 to vector<128x32xi32>
    %18 = arith.select %16, %12, %17 : vector<128x32xi1>, vector<128x32xi32>
    %cst_6 = arith.constant dense<2147483647> : vector<128xi32>
    %19 = vector.multi_reduction <minsi>, %18, %cst_6 [1] : vector<128x32xi32> to vector<128xi32>
    %20 = vector.shape_cast %19 : vector<128xi32> to vector<128x1xi32>
    %21 = vector.broadcast %20 : vector<128x1xi32> to vector<128x32xi32>
    %22 = arith.cmpi eq, %12, %21 : vector<128x32xi32>
    %23 = arith.extui %22 : vector<128x32xi1> to vector<128x32xi32>
    %24 = arith.sitofp %23 : vector<128x32xi32> to vector<128x32xf32>
    %cst_7 = arith.constant dense<0.000000e+00> : vector<128x16xf32>
    %25 = tpu.matmul %24, %1, %cst_7 {dimension_numbers = #tpu.dot_dimension_numbers<[1], [0], [0], [1], [0, 0, 1, 1], [], []>} : vector<128x32xf32>, vector<32x16xf32>, vector<128x16xf32> -> vector<128x16xf32>
    %26 = arith.subf %25, %0 : vector<128x16xf32>
    %27 = arith.mulf %26, %26 : vector<128x16xf32>
    %cst_8 = arith.constant dense<0.000000e+00> : vector<128xf32>
    %28 = vector.multi_reduction <add>, %27, %cst_8 [1] : vector<128x16xf32> to vector<128xf32>
    %29 = vector.shape_cast %28 : vector<128xf32> to vector<128x1xf32>
    %cst_9 = arith.constant dense<0.000000e+00> : vector<1xf32>
    %30 = vector.multi_reduction <add>, %29, %cst_9 [0] : vector<128x1xf32> to vector<1xf32>
    %31 = vector.shape_cast %30 : vector<1xf32> to vector<1x1xf32>
    %cst_10 = arith.constant 1.250000e+00 : f32
    %32 = vector.broadcast %cst_10 : f32 to vector<1x1xf32>
    %33 = arith.mulf %32, %31 : vector<1x1xf32>
    %cst_11 = arith.constant 2.048000e+03 : f32
    %34 = vector.broadcast %cst_11 : f32 to vector<1x1xf32>
    %35 = arith.divf %33, %34 : vector<1x1xf32>
    %cst_12 = arith.constant dense<0.000000e+00> : vector<32xf32>
    %36 = vector.multi_reduction <add>, %24, %cst_12 [0] : vector<128x32xf32> to vector<32xf32>
    %37 = vector.shape_cast %36 : vector<32xf32> to vector<1x32xf32>
    %cst_13 = arith.constant 1.280000e+02 : f32
    %38 = vector.broadcast %cst_13 : f32 to vector<1x32xf32>
    %39 = arith.divf %37, %38 : vector<1x32xf32>
    %cst_14 = arith.constant 1.000000e-10 : f32
    %40 = vector.broadcast %cst_14 : f32 to vector<1x32xf32>
    %41 = arith.addf %39, %40 : vector<1x32xf32>
    %42 = math.log %41 : vector<1x32xf32>
    %43 = arith.mulf %39, %42 : vector<1x32xf32>
    %cst_15 = arith.constant dense<0.000000e+00> : vector<1xf32>
    %44 = vector.multi_reduction <add>, %43, %cst_15 [1] : vector<1x32xf32> to vector<1xf32>
    %45 = vector.shape_cast %44 : vector<1xf32> to vector<1x1xf32>
    %cst_16 = arith.constant 0.000000e+00 : f32
    %46 = vector.broadcast %cst_16 : f32 to vector<1x1xf32>
    %47 = arith.subf %46, %45 : vector<1x1xf32>
    %48 = math.exp %47 : vector<1x1xf32>
    %cst_17 = arith.constant 0.000000e+00 : f32
    %49 = vector.broadcast %cst_17 : f32 to vector<2x1x10x16xf32>
    %c0_18 = arith.constant 0 : index
    %c0_19 = arith.constant 0 : index
    %c0_20 = arith.constant 0 : index
    %c0_21 = arith.constant 0 : index
    %50 = vector.load %arg11[%c0_18, %c0_19, %c0_20, %c0_21] : memref<2x10x10x16xf32, #tpu.memory_space<vmem>>, vector<2x1x10x16xf32>
    tpu.vector_store %arg11[%c0_18, %c0_19, %c0_20, %c0_21], %49 {strides = array<i32>} : memref<2x10x10x16xf32, #tpu.memory_space<vmem>>, vector<2x1x10x16xf32>,
    %cst_22 = arith.constant 0.000000e+00 : f32
    %51 = vector.broadcast %cst_22 : f32 to vector<2x1x10x16xf32>
    %c0_23 = arith.constant 0 : index
    %c9 = arith.constant 9 : index
    %c0_24 = arith.constant 0 : index
    %c0_25 = arith.constant 0 : index
    %52 = vector.load %arg11[%c0_23, %c9, %c0_24, %c0_25] : memref<2x10x10x16xf32, #tpu.memory_space<vmem>>, vector<2x1x10x16xf32>
    tpu.vector_store %arg11[%c0_23, %c9, %c0_24, %c0_25], %51 {strides = array<i32>} : memref<2x10x10x16xf32, #tpu.memory_space<vmem>>, vector<2x1x10x16xf32>,
    %cst_26 = arith.constant 0.000000e+00 : f32
    %53 = vector.broadcast %cst_26 : f32 to vector<2x10x1x16xf32>
    %c0_27 = arith.constant 0 : index
    %c0_28 = arith.constant 0 : index
    %c0_29 = arith.constant 0 : index
    %c0_30 = arith.constant 0 : index
    %54 = vector.load %arg11[%c0_27, %c0_28, %c0_29, %c0_30] : memref<2x10x10x16xf32, #tpu.memory_space<vmem>>, vector<2x10x1x16xf32>
    tpu.vector_store %arg11[%c0_27, %c0_28, %c0_29, %c0_30], %53 {strides = array<i32>} : memref<2x10x10x16xf32, #tpu.memory_space<vmem>>, vector<2x10x1x16xf32>,
    %cst_31 = arith.constant 0.000000e+00 : f32
    %55 = vector.broadcast %cst_31 : f32 to vector<2x10x1x16xf32>
    %c0_32 = arith.constant 0 : index
    %c0_33 = arith.constant 0 : index
    %c9_34 = arith.constant 9 : index
    %c0_35 = arith.constant 0 : index
    %56 = vector.load %arg11[%c0_32, %c0_33, %c9_34, %c0_35] : memref<2x10x10x16xf32, #tpu.memory_space<vmem>>, vector<2x10x1x16xf32>
    tpu.vector_store %arg11[%c0_32, %c0_33, %c9_34, %c0_35], %55 {strides = array<i32>} : memref<2x10x10x16xf32, #tpu.memory_space<vmem>>, vector<2x10x1x16xf32>,
    %57 = vector.shape_cast %25 : vector<128x16xf32> to vector<2x8x8x16xf32>
    %c0_36 = arith.constant 0 : index
    %c1 = arith.constant 1 : index
    %c1_37 = arith.constant 1 : index
    %c0_38 = arith.constant 0 : index
    %58 = vector.load %arg11[%c0_36, %c1, %c1_37, %c0_38] : memref<2x10x10x16xf32, #tpu.memory_space<vmem>>, vector<2x8x8x16xf32>
    tpu.vector_store %arg11[%c0_36, %c1, %c1_37, %c0_38], %57 {strides = array<i32>} : memref<2x10x10x16xf32, #tpu.memory_space<vmem>>, vector<2x8x8x16xf32>,
    %c0_39 = arith.constant 0 : index
    %c0_40 = arith.constant 0 : index
    %59 = vector.load %arg2[%c0_39, %c0_40] : memref<144x32xf32, #tpu.memory_space<vmem>>, vector<144x32xf32>
    %c0_41 = arith.constant 0 : index
    %c0_42 = arith.constant 0 : index
    %c0_43 = arith.constant 0 : index
    %c0_44 = arith.constant 0 : index
    %60 = vector.load %arg11[%c0_41, %c0_42, %c0_43, %c0_44] : memref<2x10x10x16xf32, #tpu.memory_space<vmem>>, vector<2x8x8x16xf32>
    %61 = vector.shape_cast %60 : vector<2x8x8x16xf32> to vector<128x16xf32>
    %c0_45 = arith.constant 0 : index
    %c0_46 = arith.constant 0 : index
    %62 = vector.load %arg14[%c0_45, %c0_46] : memref<128x576xf32, #tpu.memory_space<vmem>>, vector<128x16xf32>
    tpu.vector_store %arg14[%c0_45, %c0_46], %61 {strides = array<i32>} : memref<128x576xf32, #tpu.memory_space<vmem>>, vector<128x16xf32>,
    %c0_47 = arith.constant 0 : index
    %c0_48 = arith.constant 0 : index
    %c1_49 = arith.constant 1 : index
    %c0_50 = arith.constant 0 : index
    %63 = vector.load %arg11[%c0_47, %c0_48, %c1_49, %c0_50] : memref<2x10x10x16xf32, #tpu.memory_space<vmem>>, vector<2x8x8x16xf32>
    %64 = vector.shape_cast %63 : vector<2x8x8x16xf32> to vector<128x16xf32>
    %c0_51 = arith.constant 0 : index
    %c16 = arith.constant 16 : index
    %65 = vector.load %arg14[%c0_51, %c16] : memref<128x576xf32, #tpu.memory_space<vmem>>, vector<128x16xf32>
    tpu.vector_store %arg14[%c0_51, %c16], %64 {strides = array<i32>} : memref<128x576xf32, #tpu.memory_space<vmem>>, vector<128x16xf32>,
    %c0_52 = arith.constant 0 : index
    %c0_53 = arith.constant 0 : index
    %c2 = arith.constant 2 : index
    %c0_54 = arith.constant 0 : index
    %66 = vector.load %arg11[%c0_52, %c0_53, %c2, %c0_54] : memref<2x10x10x16xf32, #tpu.memory_space<vmem>>, vector<2x8x8x16xf32>
    %67 = vector.shape_cast %66 : vector<2x8x8x16xf32> to vector<128x16xf32>
    %c0_55 = arith.constant 0 : index
    %c32 = arith.constant 32 : index
    %68 = vector.load %arg14[%c0_55, %c32] : memref<128x576xf32, #tpu.memory_space<vmem>>, vector<128x16xf32>
    tpu.vector_store %arg14[%c0_55, %c32], %67 {strides = array<i32>} : memref<128x576xf32, #tpu.memory_space<vmem>>, vector<128x16xf32>,
    %c0_56 = arith.constant 0 : index
    %c1_57 = arith.constant 1 : index
    %c0_58 = arith.constant 0 : index
    %c0_59 = arith.constant 0 : index
    %69 = vector.load %arg11[%c0_56, %c1_57, %c0_58, %c0_59] : memref<2x10x10x16xf32, #tpu.memory_space<vmem>>, vector<2x8x8x16xf32>
    %70 = vector.shape_cast %69 : vector<2x8x8x16xf32> to vector<128x16xf32>
    %c0_60 = arith.constant 0 : index
    %c48 = arith.constant 48 : index
    %71 = vector.load %arg14[%c0_60, %c48] : memref<128x576xf32, #tpu.memory_space<vmem>>, vector<128x16xf32>
    tpu.vector_store %arg14[%c0_60, %c48], %70 {strides = array<i32>} : memref<128x576xf32, #tpu.memory_space<vmem>>, vector<128x16xf32>,
    %c0_61 = arith.constant 0 : index
    %c1_62 = arith.constant 1 : index
    %c1_63 = arith.constant 1 : index
    %c0_64 = arith.constant 0 : index
    %72 = vector.load %arg11[%c0_61, %c1_62, %c1_63, %c0_64] : memref<2x10x10x16xf32, #tpu.memory_space<vmem>>, vector<2x8x8x16xf32>
    %73 = vector.shape_cast %72 : vector<2x8x8x16xf32> to vector<128x16xf32>
    %c0_65 = arith.constant 0 : index
    %c64 = arith.constant 64 : index
    %74 = vector.load %arg14[%c0_65, %c64] : memref<128x576xf32, #tpu.memory_space<vmem>>, vector<128x16xf32>
    tpu.vector_store %arg14[%c0_65, %c64], %73 {strides = array<i32>} : memref<128x576xf32, #tpu.memory_space<vmem>>, vector<128x16xf32>,
    %c0_66 = arith.constant 0 : index
    %c1_67 = arith.constant 1 : index
    %c2_68 = arith.constant 2 : index
    %c0_69 = arith.constant 0 : index
    %75 = vector.load %arg11[%c0_66, %c1_67, %c2_68, %c0_69] : memref<2x10x10x16xf32, #tpu.memory_space<vmem>>, vector<2x8x8x16xf32>
    %76 = vector.shape_cast %75 : vector<2x8x8x16xf32> to vector<128x16xf32>
    %c0_70 = arith.constant 0 : index
    %c80 = arith.constant 80 : index
    %77 = vector.load %arg14[%c0_70, %c80] : memref<128x576xf32, #tpu.memory_space<vmem>>, vector<128x16xf32>
    tpu.vector_store %arg14[%c0_70, %c80], %76 {strides = array<i32>} : memref<128x576xf32, #tpu.memory_space<vmem>>, vector<128x16xf32>,
    %c0_71 = arith.constant 0 : index
    %c2_72 = arith.constant 2 : index
    %c0_73 = arith.constant 0 : index
    %c0_74 = arith.constant 0 : index
    %78 = vector.load %arg11[%c0_71, %c2_72, %c0_73, %c0_74] : memref<2x10x10x16xf32, #tpu.memory_space<vmem>>, vector<2x8x8x16xf32>
    %79 = vector.shape_cast %78 : vector<2x8x8x16xf32> to vector<128x16xf32>
    %c0_75 = arith.constant 0 : index
    %c96 = arith.constant 96 : index
    %80 = vector.load %arg14[%c0_75, %c96] : memref<128x576xf32, #tpu.memory_space<vmem>>, vector<128x16xf32>
    tpu.vector_store %arg14[%c0_75, %c96], %79 {strides = array<i32>} : memref<128x576xf32, #tpu.memory_space<vmem>>, vector<128x16xf32>,
    %c0_76 = arith.constant 0 : index
    %c2_77 = arith.constant 2 : index
    %c1_78 = arith.constant 1 : index
    %c0_79 = arith.constant 0 : index
    %81 = vector.load %arg11[%c0_76, %c2_77, %c1_78, %c0_79] : memref<2x10x10x16xf32, #tpu.memory_space<vmem>>, vector<2x8x8x16xf32>
    %82 = vector.shape_cast %81 : vector<2x8x8x16xf32> to vector<128x16xf32>
    %c0_80 = arith.constant 0 : index
    %c112 = arith.constant 112 : index
    %83 = vector.load %arg14[%c0_80, %c112] : memref<128x576xf32, #tpu.memory_space<vmem>>, vector<128x16xf32>
    tpu.vector_store %arg14[%c0_80, %c112], %82 {strides = array<i32>} : memref<128x576xf32, #tpu.memory_space<vmem>>, vector<128x16xf32>,
    %c0_81 = arith.constant 0 : index
    %c2_82 = arith.constant 2 : index
    %c2_83 = arith.constant 2 : index
    %c0_84 = arith.constant 0 : index
    %84 = vector.load %arg11[%c0_81, %c2_82, %c2_83, %c0_84] : memref<2x10x10x16xf32, #tpu.memory_space<vmem>>, vector<2x8x8x16xf32>
    %85 = vector.shape_cast %84 : vector<2x8x8x16xf32> to vector<128x16xf32>
    %c0_85 = arith.constant 0 : index
    %c128 = arith.constant 128 : index
    %86 = vector.load %arg14[%c0_85, %c128] : memref<128x576xf32, #tpu.memory_space<vmem>>, vector<128x16xf32>
    tpu.vector_store %arg14[%c0_85, %c128], %85 {strides = array<i32>} : memref<128x576xf32, #tpu.memory_space<vmem>>, vector<128x16xf32>,
    %c0_86 = arith.constant 0 : index
    %c0_87 = arith.constant 0 : index
    %87 = vector.load %arg14[%c0_86, %c0_87] : memref<128x576xf32, #tpu.memory_space<vmem>>, vector<128x144xf32>
    %cst_88 = arith.constant dense<0.000000e+00> : vector<128x32xf32>
    %88 = tpu.matmul %87, %59, %cst_88 {dimension_numbers = #tpu.dot_dimension_numbers<[1], [0], [0], [1], [0, 0, 1, 1], [], []>} : vector<128x144xf32>, vector<144x32xf32>, vector<128x32xf32> -> vector<128x32xf32>
    %c0_89 = arith.constant 0 : index
    %c0_90 = arith.constant 0 : index
    %89 = vector.load %arg3[%c0_89, %c0_90] : memref<1x32xf32, #tpu.memory_space<vmem>>, vector<1x32xf32>
    %90 = vector.broadcast %89 : vector<1x32xf32> to vector<128x32xf32>
    %91 = arith.addf %88, %90 : vector<128x32xf32>
    %cst_91 = arith.constant 0.000000e+00 : f32
    %92 = vector.broadcast %cst_91 : f32 to vector<2x1x10x32xf32>
    %c0_92 = arith.constant 0 : index
    %c0_93 = arith.constant 0 : index
    %c0_94 = arith.constant 0 : index
    %c0_95 = arith.constant 0 : index
    %93 = vector.load %arg12[%c0_92, %c0_93, %c0_94, %c0_95] : memref<2x10x10x32xf32, #tpu.memory_space<vmem>>, vector<2x1x10x32xf32>
    tpu.vector_store %arg12[%c0_92, %c0_93, %c0_94, %c0_95], %92 {strides = array<i32>} : memref<2x10x10x32xf32, #tpu.memory_space<vmem>>, vector<2x1x10x32xf32>,
    %cst_96 = arith.constant 0.000000e+00 : f32
    %94 = vector.broadcast %cst_96 : f32 to vector<2x1x10x32xf32>
    %c0_97 = arith.constant 0 : index
    %c9_98 = arith.constant 9 : index
    %c0_99 = arith.constant 0 : index
    %c0_100 = arith.constant 0 : index
    %95 = vector.load %arg12[%c0_97, %c9_98, %c0_99, %c0_100] : memref<2x10x10x32xf32, #tpu.memory_space<vmem>>, vector<2x1x10x32xf32>
    tpu.vector_store %arg12[%c0_97, %c9_98, %c0_99, %c0_100], %94 {strides = array<i32>} : memref<2x10x10x32xf32, #tpu.memory_space<vmem>>, vector<2x1x10x32xf32>,
    %cst_101 = arith.constant 0.000000e+00 : f32
    %96 = vector.broadcast %cst_101 : f32 to vector<2x10x1x32xf32>
    %c0_102 = arith.constant 0 : index
    %c0_103 = arith.constant 0 : index
    %c0_104 = arith.constant 0 : index
    %c0_105 = arith.constant 0 : index
    %97 = vector.load %arg12[%c0_102, %c0_103, %c0_104, %c0_105] : memref<2x10x10x32xf32, #tpu.memory_space<vmem>>, vector<2x10x1x32xf32>
    tpu.vector_store %arg12[%c0_102, %c0_103, %c0_104, %c0_105], %96 {strides = array<i32>} : memref<2x10x10x32xf32, #tpu.memory_space<vmem>>, vector<2x10x1x32xf32>,
    %cst_106 = arith.constant 0.000000e+00 : f32
    %98 = vector.broadcast %cst_106 : f32 to vector<2x10x1x32xf32>
    %c0_107 = arith.constant 0 : index
    %c0_108 = arith.constant 0 : index
    %c9_109 = arith.constant 9 : index
    %c0_110 = arith.constant 0 : index
    %99 = vector.load %arg12[%c0_107, %c0_108, %c9_109, %c0_110] : memref<2x10x10x32xf32, #tpu.memory_space<vmem>>, vector<2x10x1x32xf32>
    tpu.vector_store %arg12[%c0_107, %c0_108, %c9_109, %c0_110], %98 {strides = array<i32>} : memref<2x10x10x32xf32, #tpu.memory_space<vmem>>, vector<2x10x1x32xf32>,
    %cst_111 = arith.constant 0.000000e+00 : f32
    %100 = vector.broadcast %cst_111 : f32 to vector<128x32xf32>
    %101 = arith.maximumf %91, %100 : vector<128x32xf32>
    %102 = vector.shape_cast %101 : vector<128x32xf32> to vector<2x8x8x32xf32>
    %c0_112 = arith.constant 0 : index
    %c1_113 = arith.constant 1 : index
    %c1_114 = arith.constant 1 : index
    %c0_115 = arith.constant 0 : index
    %103 = vector.load %arg12[%c0_112, %c1_113, %c1_114, %c0_115] : memref<2x10x10x32xf32, #tpu.memory_space<vmem>>, vector<2x8x8x32xf32>
    tpu.vector_store %arg12[%c0_112, %c1_113, %c1_114, %c0_115], %102 {strides = array<i32>} : memref<2x10x10x32xf32, #tpu.memory_space<vmem>>, vector<2x8x8x32xf32>,
    %c0_116 = arith.constant 0 : index
    %c0_117 = arith.constant 0 : index
    %c0_118 = arith.constant 0 : index
    %104 = vector.load %arg4[%c0_116, %c0_117, %c0_118] : memref<2x288x8xf32, #tpu.memory_space<vmem>>, vector<1x288x8xf32>
    %105 = vector.shape_cast %104 : vector<1x288x8xf32> to vector<288x8xf32>
    %c0_119 = arith.constant 0 : index
    %c0_120 = arith.constant 0 : index
    %c0_121 = arith.constant 0 : index
    %c0_122 = arith.constant 0 : index
    %106 = vector.load %arg12[%c0_119, %c0_120, %c0_121, %c0_122] : memref<2x10x10x32xf32, #tpu.memory_space<vmem>>, vector<2x8x8x32xf32>
    %107 = vector.shape_cast %106 : vector<2x8x8x32xf32> to vector<128x32xf32>
    %c0_123 = arith.constant 0 : index
    %c0_124 = arith.constant 0 : index
    %108 = vector.load %arg14[%c0_123, %c0_124] : memref<128x576xf32, #tpu.memory_space<vmem>>, vector<128x32xf32>
    tpu.vector_store %arg14[%c0_123, %c0_124], %107 {strides = array<i32>} : memref<128x576xf32, #tpu.memory_space<vmem>>, vector<128x32xf32>,
    %c0_125 = arith.constant 0 : index
    %c0_126 = arith.constant 0 : index
    %c1_127 = arith.constant 1 : index
    %c0_128 = arith.constant 0 : index
    %109 = vector.load %arg12[%c0_125, %c0_126, %c1_127, %c0_128] : memref<2x10x10x32xf32, #tpu.memory_space<vmem>>, vector<2x8x8x32xf32>
    %110 = vector.shape_cast %109 : vector<2x8x8x32xf32> to vector<128x32xf32>
    %c0_129 = arith.constant 0 : index
    %c32_130 = arith.constant 32 : index
    %111 = vector.load %arg14[%c0_129, %c32_130] : memref<128x576xf32, #tpu.memory_space<vmem>>, vector<128x32xf32>
    tpu.vector_store %arg14[%c0_129, %c32_130], %110 {strides = array<i32>} : memref<128x576xf32, #tpu.memory_space<vmem>>, vector<128x32xf32>,
    %c0_131 = arith.constant 0 : index
    %c0_132 = arith.constant 0 : index
    %c2_133 = arith.constant 2 : index
    %c0_134 = arith.constant 0 : index
    %112 = vector.load %arg12[%c0_131, %c0_132, %c2_133, %c0_134] : memref<2x10x10x32xf32, #tpu.memory_space<vmem>>, vector<2x8x8x32xf32>
    %113 = vector.shape_cast %112 : vector<2x8x8x32xf32> to vector<128x32xf32>
    %c0_135 = arith.constant 0 : index
    %c64_136 = arith.constant 64 : index
    %114 = vector.load %arg14[%c0_135, %c64_136] : memref<128x576xf32, #tpu.memory_space<vmem>>, vector<128x32xf32>
    tpu.vector_store %arg14[%c0_135, %c64_136], %113 {strides = array<i32>} : memref<128x576xf32, #tpu.memory_space<vmem>>, vector<128x32xf32>,
    %c0_137 = arith.constant 0 : index
    %c1_138 = arith.constant 1 : index
    %c0_139 = arith.constant 0 : index
    %c0_140 = arith.constant 0 : index
    %115 = vector.load %arg12[%c0_137, %c1_138, %c0_139, %c0_140] : memref<2x10x10x32xf32, #tpu.memory_space<vmem>>, vector<2x8x8x32xf32>
    %116 = vector.shape_cast %115 : vector<2x8x8x32xf32> to vector<128x32xf32>
    %c0_141 = arith.constant 0 : index
    %c96_142 = arith.constant 96 : index
    %117 = vector.load %arg14[%c0_141, %c96_142] : memref<128x576xf32, #tpu.memory_space<vmem>>, vector<128x32xf32>
    tpu.vector_store %arg14[%c0_141, %c96_142], %116 {strides = array<i32>} : memref<128x576xf32, #tpu.memory_space<vmem>>, vector<128x32xf32>,
    %c0_143 = arith.constant 0 : index
    %c1_144 = arith.constant 1 : index
    %c1_145 = arith.constant 1 : index
    %c0_146 = arith.constant 0 : index
    %118 = vector.load %arg12[%c0_143, %c1_144, %c1_145, %c0_146] : memref<2x10x10x32xf32, #tpu.memory_space<vmem>>, vector<2x8x8x32xf32>
    %119 = vector.shape_cast %118 : vector<2x8x8x32xf32> to vector<128x32xf32>
    %c0_147 = arith.constant 0 : index
    %c128_148 = arith.constant 128 : index
    %120 = vector.load %arg14[%c0_147, %c128_148] : memref<128x576xf32, #tpu.memory_space<vmem>>, vector<128x32xf32>
    tpu.vector_store %arg14[%c0_147, %c128_148], %119 {strides = array<i32>} : memref<128x576xf32, #tpu.memory_space<vmem>>, vector<128x32xf32>,
    %c0_149 = arith.constant 0 : index
    %c1_150 = arith.constant 1 : index
    %c2_151 = arith.constant 2 : index
    %c0_152 = arith.constant 0 : index
    %121 = vector.load %arg12[%c0_149, %c1_150, %c2_151, %c0_152] : memref<2x10x10x32xf32, #tpu.memory_space<vmem>>, vector<2x8x8x32xf32>
    %122 = vector.shape_cast %121 : vector<2x8x8x32xf32> to vector<128x32xf32>
    %c0_153 = arith.constant 0 : index
    %c160 = arith.constant 160 : index
    %123 = vector.load %arg14[%c0_153, %c160] : memref<128x576xf32, #tpu.memory_space<vmem>>, vector<128x32xf32>
    tpu.vector_store %arg14[%c0_153, %c160], %122 {strides = array<i32>} : memref<128x576xf32, #tpu.memory_space<vmem>>, vector<128x32xf32>,
    %c0_154 = arith.constant 0 : index
    %c2_155 = arith.constant 2 : index
    %c0_156 = arith.constant 0 : index
    %c0_157 = arith.constant 0 : index
    %124 = vector.load %arg12[%c0_154, %c2_155, %c0_156, %c0_157] : memref<2x10x10x32xf32, #tpu.memory_space<vmem>>, vector<2x8x8x32xf32>
    %125 = vector.shape_cast %124 : vector<2x8x8x32xf32> to vector<128x32xf32>
    %c0_158 = arith.constant 0 : index
    %c192 = arith.constant 192 : index
    %126 = vector.load %arg14[%c0_158, %c192] : memref<128x576xf32, #tpu.memory_space<vmem>>, vector<128x32xf32>
    tpu.vector_store %arg14[%c0_158, %c192], %125 {strides = array<i32>} : memref<128x576xf32, #tpu.memory_space<vmem>>, vector<128x32xf32>,
    %c0_159 = arith.constant 0 : index
    %c2_160 = arith.constant 2 : index
    %c1_161 = arith.constant 1 : index
    %c0_162 = arith.constant 0 : index
    %127 = vector.load %arg12[%c0_159, %c2_160, %c1_161, %c0_162] : memref<2x10x10x32xf32, #tpu.memory_space<vmem>>, vector<2x8x8x32xf32>
    %128 = vector.shape_cast %127 : vector<2x8x8x32xf32> to vector<128x32xf32>
    %c0_163 = arith.constant 0 : index
    %c224 = arith.constant 224 : index
    %129 = vector.load %arg14[%c0_163, %c224] : memref<128x576xf32, #tpu.memory_space<vmem>>, vector<128x32xf32>
    tpu.vector_store %arg14[%c0_163, %c224], %128 {strides = array<i32>} : memref<128x576xf32, #tpu.memory_space<vmem>>, vector<128x32xf32>,
    %c0_164 = arith.constant 0 : index
    %c2_165 = arith.constant 2 : index
    %c2_166 = arith.constant 2 : index
    %c0_167 = arith.constant 0 : index
    %130 = vector.load %arg12[%c0_164, %c2_165, %c2_166, %c0_167] : memref<2x10x10x32xf32, #tpu.memory_space<vmem>>, vector<2x8x8x32xf32>
    %131 = vector.shape_cast %130 : vector<2x8x8x32xf32> to vector<128x32xf32>
    %c0_168 = arith.constant 0 : index
    %c256 = arith.constant 256 : index
    %132 = vector.load %arg14[%c0_168, %c256] : memref<128x576xf32, #tpu.memory_space<vmem>>, vector<128x32xf32>
    tpu.vector_store %arg14[%c0_168, %c256], %131 {strides = array<i32>} : memref<128x576xf32, #tpu.memory_space<vmem>>, vector<128x32xf32>,
    %c0_169 = arith.constant 0 : index
    %c0_170 = arith.constant 0 : index
    %133 = vector.load %arg14[%c0_169, %c0_170] : memref<128x576xf32, #tpu.memory_space<vmem>>, vector<128x288xf32>
    %cst_171 = arith.constant dense<0.000000e+00> : vector<128x8xf32>
    %134 = tpu.matmul %133, %105, %cst_171 {dimension_numbers = #tpu.dot_dimension_numbers<[1], [0], [0], [1], [0, 0, 1, 1], [], []>} : vector<128x288xf32>, vector<288x8xf32>, vector<128x8xf32> -> vector<128x8xf32>
    %cst_172 = arith.constant 0.000000e+00 : f32
    %135 = vector.broadcast %cst_172 : f32 to vector<128x8xf32>
    %136 = arith.maximumf %134, %135 : vector<128x8xf32>
    %c0_173 = arith.constant 0 : index
    %c0_174 = arith.constant 0 : index
    %c0_175 = arith.constant 0 : index
    %137 = vector.load %arg5[%c0_173, %c0_174, %c0_175] : memref<2x8x32xf32, #tpu.memory_space<vmem>>, vector<1x8x32xf32>
    %138 = vector.shape_cast %137 : vector<1x8x32xf32> to vector<8x32xf32>
    %cst_176 = arith.constant dense<0.000000e+00> : vector<128x32xf32>
    %139 = tpu.matmul %136, %138, %cst_176 {dimension_numbers = #tpu.dot_dimension_numbers<[1], [0], [0], [1], [0, 0, 1, 1], [], []>} : vector<128x8xf32>, vector<8x32xf32>, vector<128x32xf32> -> vector<128x32xf32>
    %140 = arith.addf %91, %139 : vector<128x32xf32>
    %cst_177 = arith.constant 0.000000e+00 : f32
    %141 = vector.broadcast %cst_177 : f32 to vector<128x32xf32>
    %142 = arith.maximumf %140, %141 : vector<128x32xf32>
    %143 = vector.shape_cast %142 : vector<128x32xf32> to vector<2x8x8x32xf32>
    %c0_178 = arith.constant 0 : index
    %c1_179 = arith.constant 1 : index
    %c1_180 = arith.constant 1 : index
    %c0_181 = arith.constant 0 : index
    %144 = vector.load %arg12[%c0_178, %c1_179, %c1_180, %c0_181] : memref<2x10x10x32xf32, #tpu.memory_space<vmem>>, vector<2x8x8x32xf32>
    tpu.vector_store %arg12[%c0_178, %c1_179, %c1_180, %c0_181], %143 {strides = array<i32>} : memref<2x10x10x32xf32, #tpu.memory_space<vmem>>, vector<2x8x8x32xf32>,
    %c1_182 = arith.constant 1 : index
    %c0_183 = arith.constant 0 : index
    %c0_184 = arith.constant 0 : index
    %145 = vector.load %arg4[%c1_182, %c0_183, %c0_184] : memref<2x288x8xf32, #tpu.memory_space<vmem>>, vector<1x288x8xf32>
    %146 = vector.shape_cast %145 : vector<1x288x8xf32> to vector<288x8xf32>
    %c0_185 = arith.constant 0 : index
    %c0_186 = arith.constant 0 : index
    %c0_187 = arith.constant 0 : index
    %c0_188 = arith.constant 0 : index
    %147 = vector.load %arg12[%c0_185, %c0_186, %c0_187, %c0_188] : memref<2x10x10x32xf32, #tpu.memory_space<vmem>>, vector<2x8x8x32xf32>
    %148 = vector.shape_cast %147 : vector<2x8x8x32xf32> to vector<128x32xf32>
    %c0_189 = arith.constant 0 : index
    %c0_190 = arith.constant 0 : index
    %149 = vector.load %arg14[%c0_189, %c0_190] : memref<128x576xf32, #tpu.memory_space<vmem>>, vector<128x32xf32>
    tpu.vector_store %arg14[%c0_189, %c0_190], %148 {strides = array<i32>} : memref<128x576xf32, #tpu.memory_space<vmem>>, vector<128x32xf32>,
    %c0_191 = arith.constant 0 : index
    %c0_192 = arith.constant 0 : index
    %c1_193 = arith.constant 1 : index
    %c0_194 = arith.constant 0 : index
    %150 = vector.load %arg12[%c0_191, %c0_192, %c1_193, %c0_194] : memref<2x10x10x32xf32, #tpu.memory_space<vmem>>, vector<2x8x8x32xf32>
    %151 = vector.shape_cast %150 : vector<2x8x8x32xf32> to vector<128x32xf32>
    %c0_195 = arith.constant 0 : index
    %c32_196 = arith.constant 32 : index
    %152 = vector.load %arg14[%c0_195, %c32_196] : memref<128x576xf32, #tpu.memory_space<vmem>>, vector<128x32xf32>
    tpu.vector_store %arg14[%c0_195, %c32_196], %151 {strides = array<i32>} : memref<128x576xf32, #tpu.memory_space<vmem>>, vector<128x32xf32>,
    %c0_197 = arith.constant 0 : index
    %c0_198 = arith.constant 0 : index
    %c2_199 = arith.constant 2 : index
    %c0_200 = arith.constant 0 : index
    %153 = vector.load %arg12[%c0_197, %c0_198, %c2_199, %c0_200] : memref<2x10x10x32xf32, #tpu.memory_space<vmem>>, vector<2x8x8x32xf32>
    %154 = vector.shape_cast %153 : vector<2x8x8x32xf32> to vector<128x32xf32>
    %c0_201 = arith.constant 0 : index
    %c64_202 = arith.constant 64 : index
    %155 = vector.load %arg14[%c0_201, %c64_202] : memref<128x576xf32, #tpu.memory_space<vmem>>, vector<128x32xf32>
    tpu.vector_store %arg14[%c0_201, %c64_202], %154 {strides = array<i32>} : memref<128x576xf32, #tpu.memory_space<vmem>>, vector<128x32xf32>,
    %c0_203 = arith.constant 0 : index
    %c1_204 = arith.constant 1 : index
    %c0_205 = arith.constant 0 : index
    %c0_206 = arith.constant 0 : index
    %156 = vector.load %arg12[%c0_203, %c1_204, %c0_205, %c0_206] : memref<2x10x10x32xf32, #tpu.memory_space<vmem>>, vector<2x8x8x32xf32>
    %157 = vector.shape_cast %156 : vector<2x8x8x32xf32> to vector<128x32xf32>
    %c0_207 = arith.constant 0 : index
    %c96_208 = arith.constant 96 : index
    %158 = vector.load %arg14[%c0_207, %c96_208] : memref<128x576xf32, #tpu.memory_space<vmem>>, vector<128x32xf32>
    tpu.vector_store %arg14[%c0_207, %c96_208], %157 {strides = array<i32>} : memref<128x576xf32, #tpu.memory_space<vmem>>, vector<128x32xf32>,
    %c0_209 = arith.constant 0 : index
    %c1_210 = arith.constant 1 : index
    %c1_211 = arith.constant 1 : index
    %c0_212 = arith.constant 0 : index
    %159 = vector.load %arg12[%c0_209, %c1_210, %c1_211, %c0_212] : memref<2x10x10x32xf32, #tpu.memory_space<vmem>>, vector<2x8x8x32xf32>
    %160 = vector.shape_cast %159 : vector<2x8x8x32xf32> to vector<128x32xf32>
    %c0_213 = arith.constant 0 : index
    %c128_214 = arith.constant 128 : index
    %161 = vector.load %arg14[%c0_213, %c128_214] : memref<128x576xf32, #tpu.memory_space<vmem>>, vector<128x32xf32>
    tpu.vector_store %arg14[%c0_213, %c128_214], %160 {strides = array<i32>} : memref<128x576xf32, #tpu.memory_space<vmem>>, vector<128x32xf32>,
    %c0_215 = arith.constant 0 : index
    %c1_216 = arith.constant 1 : index
    %c2_217 = arith.constant 2 : index
    %c0_218 = arith.constant 0 : index
    %162 = vector.load %arg12[%c0_215, %c1_216, %c2_217, %c0_218] : memref<2x10x10x32xf32, #tpu.memory_space<vmem>>, vector<2x8x8x32xf32>
    %163 = vector.shape_cast %162 : vector<2x8x8x32xf32> to vector<128x32xf32>
    %c0_219 = arith.constant 0 : index
    %c160_220 = arith.constant 160 : index
    %164 = vector.load %arg14[%c0_219, %c160_220] : memref<128x576xf32, #tpu.memory_space<vmem>>, vector<128x32xf32>
    tpu.vector_store %arg14[%c0_219, %c160_220], %163 {strides = array<i32>} : memref<128x576xf32, #tpu.memory_space<vmem>>, vector<128x32xf32>,
    %c0_221 = arith.constant 0 : index
    %c2_222 = arith.constant 2 : index
    %c0_223 = arith.constant 0 : index
    %c0_224 = arith.constant 0 : index
    %165 = vector.load %arg12[%c0_221, %c2_222, %c0_223, %c0_224] : memref<2x10x10x32xf32, #tpu.memory_space<vmem>>, vector<2x8x8x32xf32>
    %166 = vector.shape_cast %165 : vector<2x8x8x32xf32> to vector<128x32xf32>
    %c0_225 = arith.constant 0 : index
    %c192_226 = arith.constant 192 : index
    %167 = vector.load %arg14[%c0_225, %c192_226] : memref<128x576xf32, #tpu.memory_space<vmem>>, vector<128x32xf32>
    tpu.vector_store %arg14[%c0_225, %c192_226], %166 {strides = array<i32>} : memref<128x576xf32, #tpu.memory_space<vmem>>, vector<128x32xf32>,
    %c0_227 = arith.constant 0 : index
    %c2_228 = arith.constant 2 : index
    %c1_229 = arith.constant 1 : index
    %c0_230 = arith.constant 0 : index
    %168 = vector.load %arg12[%c0_227, %c2_228, %c1_229, %c0_230] : memref<2x10x10x32xf32, #tpu.memory_space<vmem>>, vector<2x8x8x32xf32>
    %169 = vector.shape_cast %168 : vector<2x8x8x32xf32> to vector<128x32xf32>
    %c0_231 = arith.constant 0 : index
    %c224_232 = arith.constant 224 : index
    %170 = vector.load %arg14[%c0_231, %c224_232] : memref<128x576xf32, #tpu.memory_space<vmem>>, vector<128x32xf32>
    tpu.vector_store %arg14[%c0_231, %c224_232], %169 {strides = array<i32>} : memref<128x576xf32, #tpu.memory_space<vmem>>, vector<128x32xf32>,
    %c0_233 = arith.constant 0 : index
    %c2_234 = arith.constant 2 : index
    %c2_235 = arith.constant 2 : index
    %c0_236 = arith.constant 0 : index
    %171 = vector.load %arg12[%c0_233, %c2_234, %c2_235, %c0_236] : memref<2x10x10x32xf32, #tpu.memory_space<vmem>>, vector<2x8x8x32xf32>
    %172 = vector.shape_cast %171 : vector<2x8x8x32xf32> to vector<128x32xf32>
    %c0_237 = arith.constant 0 : index
    %c256_238 = arith.constant 256 : index
    %173 = vector.load %arg14[%c0_237, %c256_238] : memref<128x576xf32, #tpu.memory_space<vmem>>, vector<128x32xf32>
    tpu.vector_store %arg14[%c0_237, %c256_238], %172 {strides = array<i32>} : memref<128x576xf32, #tpu.memory_space<vmem>>, vector<128x32xf32>,
    %c0_239 = arith.constant 0 : index
    %c0_240 = arith.constant 0 : index
    %174 = vector.load %arg14[%c0_239, %c0_240] : memref<128x576xf32, #tpu.memory_space<vmem>>, vector<128x288xf32>
    %cst_241 = arith.constant dense<0.000000e+00> : vector<128x8xf32>
    %175 = tpu.matmul %174, %146, %cst_241 {dimension_numbers = #tpu.dot_dimension_numbers<[1], [0], [0], [1], [0, 0, 1, 1], [], []>} : vector<128x288xf32>, vector<288x8xf32>, vector<128x8xf32> -> vector<128x8xf32>
    %cst_242 = arith.constant 0.000000e+00 : f32
    %176 = vector.broadcast %cst_242 : f32 to vector<128x8xf32>
    %177 = arith.maximumf %175, %176 : vector<128x8xf32>
    %c1_243 = arith.constant 1 : index
    %c0_244 = arith.constant 0 : index
    %c0_245 = arith.constant 0 : index
    %178 = vector.load %arg5[%c1_243, %c0_244, %c0_245] : memref<2x8x32xf32, #tpu.memory_space<vmem>>, vector<1x8x32xf32>
    %179 = vector.shape_cast %178 : vector<1x8x32xf32> to vector<8x32xf32>
    %cst_246 = arith.constant dense<0.000000e+00> : vector<128x32xf32>
    %180 = tpu.matmul %177, %179, %cst_246 {dimension_numbers = #tpu.dot_dimension_numbers<[1], [0], [0], [1], [0, 0, 1, 1], [], []>} : vector<128x8xf32>, vector<8x32xf32>, vector<128x32xf32> -> vector<128x32xf32>
    %181 = arith.addf %140, %180 : vector<128x32xf32>
    %cst_247 = arith.constant 0.000000e+00 : f32
    %182 = vector.broadcast %cst_247 : f32 to vector<128x32xf32>
    %183 = arith.maximumf %181, %182 : vector<128x32xf32>
    %184 = vector.shape_cast %183 : vector<128x32xf32> to vector<2x8x8x32xf32>
    %c0_248 = arith.constant 0 : index
    %c1_249 = arith.constant 1 : index
    %c1_250 = arith.constant 1 : index
    %c0_251 = arith.constant 0 : index
    %185 = vector.load %arg12[%c0_248, %c1_249, %c1_250, %c0_251] : memref<2x10x10x32xf32, #tpu.memory_space<vmem>>, vector<2x8x8x32xf32>
    tpu.vector_store %arg12[%c0_248, %c1_249, %c1_250, %c0_251], %184 {strides = array<i32>} : memref<2x10x10x32xf32, #tpu.memory_space<vmem>>, vector<2x8x8x32xf32>,
    %c0_252 = arith.constant 0 : index
    %c0_253 = arith.constant 0 : index
    %186 = vector.load %arg6[%c0_252, %c0_253] : memref<288x64xf32, #tpu.memory_space<vmem>>, vector<288x64xf32>
    %c0_254 = arith.constant 0 : index
    %c0_255 = arith.constant 0 : index
    %c0_256 = arith.constant 0 : index
    %c0_257 = arith.constant 0 : index
    %187 = vector.load %arg12[%c0_254, %c0_255, %c0_256, %c0_257] : memref<2x10x10x32xf32, #tpu.memory_space<vmem>>, vector<2x8x8x32xf32>
    %188 = vector.shape_cast %187 : vector<2x8x8x32xf32> to vector<128x32xf32>
    %c0_258 = arith.constant 0 : index
    %c0_259 = arith.constant 0 : index
    %189 = vector.load %arg14[%c0_258, %c0_259] : memref<128x576xf32, #tpu.memory_space<vmem>>, vector<128x32xf32>
    tpu.vector_store %arg14[%c0_258, %c0_259], %188 {strides = array<i32>} : memref<128x576xf32, #tpu.memory_space<vmem>>, vector<128x32xf32>,
    %c0_260 = arith.constant 0 : index
    %c0_261 = arith.constant 0 : index
    %c1_262 = arith.constant 1 : index
    %c0_263 = arith.constant 0 : index
    %190 = vector.load %arg12[%c0_260, %c0_261, %c1_262, %c0_263] : memref<2x10x10x32xf32, #tpu.memory_space<vmem>>, vector<2x8x8x32xf32>
    %191 = vector.shape_cast %190 : vector<2x8x8x32xf32> to vector<128x32xf32>
    %c0_264 = arith.constant 0 : index
    %c32_265 = arith.constant 32 : index
    %192 = vector.load %arg14[%c0_264, %c32_265] : memref<128x576xf32, #tpu.memory_space<vmem>>, vector<128x32xf32>
    tpu.vector_store %arg14[%c0_264, %c32_265], %191 {strides = array<i32>} : memref<128x576xf32, #tpu.memory_space<vmem>>, vector<128x32xf32>,
    %c0_266 = arith.constant 0 : index
    %c0_267 = arith.constant 0 : index
    %c2_268 = arith.constant 2 : index
    %c0_269 = arith.constant 0 : index
    %193 = vector.load %arg12[%c0_266, %c0_267, %c2_268, %c0_269] : memref<2x10x10x32xf32, #tpu.memory_space<vmem>>, vector<2x8x8x32xf32>
    %194 = vector.shape_cast %193 : vector<2x8x8x32xf32> to vector<128x32xf32>
    %c0_270 = arith.constant 0 : index
    %c64_271 = arith.constant 64 : index
    %195 = vector.load %arg14[%c0_270, %c64_271] : memref<128x576xf32, #tpu.memory_space<vmem>>, vector<128x32xf32>
    tpu.vector_store %arg14[%c0_270, %c64_271], %194 {strides = array<i32>} : memref<128x576xf32, #tpu.memory_space<vmem>>, vector<128x32xf32>,
    %c0_272 = arith.constant 0 : index
    %c1_273 = arith.constant 1 : index
    %c0_274 = arith.constant 0 : index
    %c0_275 = arith.constant 0 : index
    %196 = vector.load %arg12[%c0_272, %c1_273, %c0_274, %c0_275] : memref<2x10x10x32xf32, #tpu.memory_space<vmem>>, vector<2x8x8x32xf32>
    %197 = vector.shape_cast %196 : vector<2x8x8x32xf32> to vector<128x32xf32>
    %c0_276 = arith.constant 0 : index
    %c96_277 = arith.constant 96 : index
    %198 = vector.load %arg14[%c0_276, %c96_277] : memref<128x576xf32, #tpu.memory_space<vmem>>, vector<128x32xf32>
    tpu.vector_store %arg14[%c0_276, %c96_277], %197 {strides = array<i32>} : memref<128x576xf32, #tpu.memory_space<vmem>>, vector<128x32xf32>,
    %c0_278 = arith.constant 0 : index
    %c1_279 = arith.constant 1 : index
    %c1_280 = arith.constant 1 : index
    %c0_281 = arith.constant 0 : index
    %199 = vector.load %arg12[%c0_278, %c1_279, %c1_280, %c0_281] : memref<2x10x10x32xf32, #tpu.memory_space<vmem>>, vector<2x8x8x32xf32>
    %200 = vector.shape_cast %199 : vector<2x8x8x32xf32> to vector<128x32xf32>
    %c0_282 = arith.constant 0 : index
    %c128_283 = arith.constant 128 : index
    %201 = vector.load %arg14[%c0_282, %c128_283] : memref<128x576xf32, #tpu.memory_space<vmem>>, vector<128x32xf32>
    tpu.vector_store %arg14[%c0_282, %c128_283], %200 {strides = array<i32>} : memref<128x576xf32, #tpu.memory_space<vmem>>, vector<128x32xf32>,
    %c0_284 = arith.constant 0 : index
    %c1_285 = arith.constant 1 : index
    %c2_286 = arith.constant 2 : index
    %c0_287 = arith.constant 0 : index
    %202 = vector.load %arg12[%c0_284, %c1_285, %c2_286, %c0_287] : memref<2x10x10x32xf32, #tpu.memory_space<vmem>>, vector<2x8x8x32xf32>
    %203 = vector.shape_cast %202 : vector<2x8x8x32xf32> to vector<128x32xf32>
    %c0_288 = arith.constant 0 : index
    %c160_289 = arith.constant 160 : index
    %204 = vector.load %arg14[%c0_288, %c160_289] : memref<128x576xf32, #tpu.memory_space<vmem>>, vector<128x32xf32>
    tpu.vector_store %arg14[%c0_288, %c160_289], %203 {strides = array<i32>} : memref<128x576xf32, #tpu.memory_space<vmem>>, vector<128x32xf32>,
    %c0_290 = arith.constant 0 : index
    %c2_291 = arith.constant 2 : index
    %c0_292 = arith.constant 0 : index
    %c0_293 = arith.constant 0 : index
    %205 = vector.load %arg12[%c0_290, %c2_291, %c0_292, %c0_293] : memref<2x10x10x32xf32, #tpu.memory_space<vmem>>, vector<2x8x8x32xf32>
    %206 = vector.shape_cast %205 : vector<2x8x8x32xf32> to vector<128x32xf32>
    %c0_294 = arith.constant 0 : index
    %c192_295 = arith.constant 192 : index
    %207 = vector.load %arg14[%c0_294, %c192_295] : memref<128x576xf32, #tpu.memory_space<vmem>>, vector<128x32xf32>
    tpu.vector_store %arg14[%c0_294, %c192_295], %206 {strides = array<i32>} : memref<128x576xf32, #tpu.memory_space<vmem>>, vector<128x32xf32>,
    %c0_296 = arith.constant 0 : index
    %c2_297 = arith.constant 2 : index
    %c1_298 = arith.constant 1 : index
    %c0_299 = arith.constant 0 : index
    %208 = vector.load %arg12[%c0_296, %c2_297, %c1_298, %c0_299] : memref<2x10x10x32xf32, #tpu.memory_space<vmem>>, vector<2x8x8x32xf32>
    %209 = vector.shape_cast %208 : vector<2x8x8x32xf32> to vector<128x32xf32>
    %c0_300 = arith.constant 0 : index
    %c224_301 = arith.constant 224 : index
    %210 = vector.load %arg14[%c0_300, %c224_301] : memref<128x576xf32, #tpu.memory_space<vmem>>, vector<128x32xf32>
    tpu.vector_store %arg14[%c0_300, %c224_301], %209 {strides = array<i32>} : memref<128x576xf32, #tpu.memory_space<vmem>>, vector<128x32xf32>,
    %c0_302 = arith.constant 0 : index
    %c2_303 = arith.constant 2 : index
    %c2_304 = arith.constant 2 : index
    %c0_305 = arith.constant 0 : index
    %211 = vector.load %arg12[%c0_302, %c2_303, %c2_304, %c0_305] : memref<2x10x10x32xf32, #tpu.memory_space<vmem>>, vector<2x8x8x32xf32>
    %212 = vector.shape_cast %211 : vector<2x8x8x32xf32> to vector<128x32xf32>
    %c0_306 = arith.constant 0 : index
    %c256_307 = arith.constant 256 : index
    %213 = vector.load %arg14[%c0_306, %c256_307] : memref<128x576xf32, #tpu.memory_space<vmem>>, vector<128x32xf32>
    tpu.vector_store %arg14[%c0_306, %c256_307], %212 {strides = array<i32>} : memref<128x576xf32, #tpu.memory_space<vmem>>, vector<128x32xf32>,
    %c0_308 = arith.constant 0 : index
    %c0_309 = arith.constant 0 : index
    %214 = vector.load %arg14[%c0_308, %c0_309] : memref<128x576xf32, #tpu.memory_space<vmem>>, vector<128x288xf32>
    %cst_310 = arith.constant dense<0.000000e+00> : vector<128x64xf32>
    %215 = tpu.matmul %214, %186, %cst_310 {dimension_numbers = #tpu.dot_dimension_numbers<[1], [0], [0], [1], [0, 0, 1, 1], [], []>} : vector<128x288xf32>, vector<288x64xf32>, vector<128x64xf32> -> vector<128x64xf32>
    %c0_311 = arith.constant 0 : index
    %c0_312 = arith.constant 0 : index
    %216 = vector.load %arg7[%c0_311, %c0_312] : memref<1x64xf32, #tpu.memory_space<vmem>>, vector<1x64xf32>
    %217 = vector.broadcast %216 : vector<1x64xf32> to vector<128x64xf32>
    %218 = arith.addf %215, %217 : vector<128x64xf32>
    %cst_313 = arith.constant 0.000000e+00 : f32
    %219 = vector.broadcast %cst_313 : f32 to vector<128x64xf32>
    %220 = arith.maximumf %218, %219 : vector<128x64xf32>
    %cst_314 = arith.constant 0.000000e+00 : f32
    %221 = vector.broadcast %cst_314 : f32 to vector<2x1x10x64xf32>
    %c0_315 = arith.constant 0 : index
    %c0_316 = arith.constant 0 : index
    %c0_317 = arith.constant 0 : index
    %c0_318 = arith.constant 0 : index
    %222 = vector.load %arg13[%c0_315, %c0_316, %c0_317, %c0_318] : memref<2x10x10x64xf32, #tpu.memory_space<vmem>>, vector<2x1x10x64xf32>
    tpu.vector_store %arg13[%c0_315, %c0_316, %c0_317, %c0_318], %221 {strides = array<i32>} : memref<2x10x10x64xf32, #tpu.memory_space<vmem>>, vector<2x1x10x64xf32>,
    %cst_319 = arith.constant 0.000000e+00 : f32
    %223 = vector.broadcast %cst_319 : f32 to vector<2x1x10x64xf32>
    %c0_320 = arith.constant 0 : index
    %c9_321 = arith.constant 9 : index
    %c0_322 = arith.constant 0 : index
    %c0_323 = arith.constant 0 : index
    %224 = vector.load %arg13[%c0_320, %c9_321, %c0_322, %c0_323] : memref<2x10x10x64xf32, #tpu.memory_space<vmem>>, vector<2x1x10x64xf32>
    tpu.vector_store %arg13[%c0_320, %c9_321, %c0_322, %c0_323], %223 {strides = array<i32>} : memref<2x10x10x64xf32, #tpu.memory_space<vmem>>, vector<2x1x10x64xf32>,
    %cst_324 = arith.constant 0.000000e+00 : f32
    %225 = vector.broadcast %cst_324 : f32 to vector<2x10x1x64xf32>
    %c0_325 = arith.constant 0 : index
    %c0_326 = arith.constant 0 : index
    %c0_327 = arith.constant 0 : index
    %c0_328 = arith.constant 0 : index
    %226 = vector.load %arg13[%c0_325, %c0_326, %c0_327, %c0_328] : memref<2x10x10x64xf32, #tpu.memory_space<vmem>>, vector<2x10x1x64xf32>
    tpu.vector_store %arg13[%c0_325, %c0_326, %c0_327, %c0_328], %225 {strides = array<i32>} : memref<2x10x10x64xf32, #tpu.memory_space<vmem>>, vector<2x10x1x64xf32>,
    %cst_329 = arith.constant 0.000000e+00 : f32
    %227 = vector.broadcast %cst_329 : f32 to vector<2x10x1x64xf32>
    %c0_330 = arith.constant 0 : index
    %c0_331 = arith.constant 0 : index
    %c9_332 = arith.constant 9 : index
    %c0_333 = arith.constant 0 : index
    %228 = vector.load %arg13[%c0_330, %c0_331, %c9_332, %c0_333] : memref<2x10x10x64xf32, #tpu.memory_space<vmem>>, vector<2x10x1x64xf32>
    tpu.vector_store %arg13[%c0_330, %c0_331, %c9_332, %c0_333], %227 {strides = array<i32>} : memref<2x10x10x64xf32, #tpu.memory_space<vmem>>, vector<2x10x1x64xf32>,
    %229 = vector.shape_cast %220 : vector<128x64xf32> to vector<2x8x8x64xf32>
    %c0_334 = arith.constant 0 : index
    %c1_335 = arith.constant 1 : index
    %c1_336 = arith.constant 1 : index
    %c0_337 = arith.constant 0 : index
    %230 = vector.load %arg13[%c0_334, %c1_335, %c1_336, %c0_337] : memref<2x10x10x64xf32, #tpu.memory_space<vmem>>, vector<2x8x8x64xf32>
    tpu.vector_store %arg13[%c0_334, %c1_335, %c1_336, %c0_337], %229 {strides = array<i32>} : memref<2x10x10x64xf32, #tpu.memory_space<vmem>>, vector<2x8x8x64xf32>,
    %c0_338 = arith.constant 0 : index
    %c0_339 = arith.constant 0 : index
    %231 = vector.load %arg8[%c0_338, %c0_339] : memref<576x48xf32, #tpu.memory_space<vmem>>, vector<576x48xf32>
    %c0_340 = arith.constant 0 : index
    %c0_341 = arith.constant 0 : index
    %c0_342 = arith.constant 0 : index
    %c0_343 = arith.constant 0 : index
    %232 = vector.load %arg13[%c0_340, %c0_341, %c0_342, %c0_343] : memref<2x10x10x64xf32, #tpu.memory_space<vmem>>, vector<2x8x8x64xf32>
    %233 = vector.shape_cast %232 : vector<2x8x8x64xf32> to vector<128x64xf32>
    %c0_344 = arith.constant 0 : index
    %c0_345 = arith.constant 0 : index
    %234 = vector.load %arg14[%c0_344, %c0_345] : memref<128x576xf32, #tpu.memory_space<vmem>>, vector<128x64xf32>
    tpu.vector_store %arg14[%c0_344, %c0_345], %233 {strides = array<i32>} : memref<128x576xf32, #tpu.memory_space<vmem>>, vector<128x64xf32>,
    %c0_346 = arith.constant 0 : index
    %c0_347 = arith.constant 0 : index
    %c1_348 = arith.constant 1 : index
    %c0_349 = arith.constant 0 : index
    %235 = vector.load %arg13[%c0_346, %c0_347, %c1_348, %c0_349] : memref<2x10x10x64xf32, #tpu.memory_space<vmem>>, vector<2x8x8x64xf32>
    %236 = vector.shape_cast %235 : vector<2x8x8x64xf32> to vector<128x64xf32>
    %c0_350 = arith.constant 0 : index
    %c64_351 = arith.constant 64 : index
    %237 = vector.load %arg14[%c0_350, %c64_351] : memref<128x576xf32, #tpu.memory_space<vmem>>, vector<128x64xf32>
    tpu.vector_store %arg14[%c0_350, %c64_351], %236 {strides = array<i32>} : memref<128x576xf32, #tpu.memory_space<vmem>>, vector<128x64xf32>,
    %c0_352 = arith.constant 0 : index
    %c0_353 = arith.constant 0 : index
    %c2_354 = arith.constant 2 : index
    %c0_355 = arith.constant 0 : index
    %238 = vector.load %arg13[%c0_352, %c0_353, %c2_354, %c0_355] : memref<2x10x10x64xf32, #tpu.memory_space<vmem>>, vector<2x8x8x64xf32>
    %239 = vector.shape_cast %238 : vector<2x8x8x64xf32> to vector<128x64xf32>
    %c0_356 = arith.constant 0 : index
    %c128_357 = arith.constant 128 : index
    %240 = vector.load %arg14[%c0_356, %c128_357] : memref<128x576xf32, #tpu.memory_space<vmem>>, vector<128x64xf32>
    tpu.vector_store %arg14[%c0_356, %c128_357], %239 {strides = array<i32>} : memref<128x576xf32, #tpu.memory_space<vmem>>, vector<128x64xf32>,
    %c0_358 = arith.constant 0 : index
    %c1_359 = arith.constant 1 : index
    %c0_360 = arith.constant 0 : index
    %c0_361 = arith.constant 0 : index
    %241 = vector.load %arg13[%c0_358, %c1_359, %c0_360, %c0_361] : memref<2x10x10x64xf32, #tpu.memory_space<vmem>>, vector<2x8x8x64xf32>
    %242 = vector.shape_cast %241 : vector<2x8x8x64xf32> to vector<128x64xf32>
    %c0_362 = arith.constant 0 : index
    %c192_363 = arith.constant 192 : index
    %243 = vector.load %arg14[%c0_362, %c192_363] : memref<128x576xf32, #tpu.memory_space<vmem>>, vector<128x64xf32>
    tpu.vector_store %arg14[%c0_362, %c192_363], %242 {strides = array<i32>} : memref<128x576xf32, #tpu.memory_space<vmem>>, vector<128x64xf32>,
    %c0_364 = arith.constant 0 : index
    %c1_365 = arith.constant 1 : index
    %c1_366 = arith.constant 1 : index
    %c0_367 = arith.constant 0 : index
    %244 = vector.load %arg13[%c0_364, %c1_365, %c1_366, %c0_367] : memref<2x10x10x64xf32, #tpu.memory_space<vmem>>, vector<2x8x8x64xf32>
    %245 = vector.shape_cast %244 : vector<2x8x8x64xf32> to vector<128x64xf32>
    %c0_368 = arith.constant 0 : index
    %c256_369 = arith.constant 256 : index
    %246 = vector.load %arg14[%c0_368, %c256_369] : memref<128x576xf32, #tpu.memory_space<vmem>>, vector<128x64xf32>
    tpu.vector_store %arg14[%c0_368, %c256_369], %245 {strides = array<i32>} : memref<128x576xf32, #tpu.memory_space<vmem>>, vector<128x64xf32>,
    %c0_370 = arith.constant 0 : index
    %c1_371 = arith.constant 1 : index
    %c2_372 = arith.constant 2 : index
    %c0_373 = arith.constant 0 : index
    %247 = vector.load %arg13[%c0_370, %c1_371, %c2_372, %c0_373] : memref<2x10x10x64xf32, #tpu.memory_space<vmem>>, vector<2x8x8x64xf32>
    %248 = vector.shape_cast %247 : vector<2x8x8x64xf32> to vector<128x64xf32>
    %c0_374 = arith.constant 0 : index
    %c320 = arith.constant 320 : index
    %249 = vector.load %arg14[%c0_374, %c320] : memref<128x576xf32, #tpu.memory_space<vmem>>, vector<128x64xf32>
    tpu.vector_store %arg14[%c0_374, %c320], %248 {strides = array<i32>} : memref<128x576xf32, #tpu.memory_space<vmem>>, vector<128x64xf32>,
    %c0_375 = arith.constant 0 : index
    %c2_376 = arith.constant 2 : index
    %c0_377 = arith.constant 0 : index
    %c0_378 = arith.constant 0 : index
    %250 = vector.load %arg13[%c0_375, %c2_376, %c0_377, %c0_378] : memref<2x10x10x64xf32, #tpu.memory_space<vmem>>, vector<2x8x8x64xf32>
    %251 = vector.shape_cast %250 : vector<2x8x8x64xf32> to vector<128x64xf32>
    %c0_379 = arith.constant 0 : index
    %c384 = arith.constant 384 : index
    %252 = vector.load %arg14[%c0_379, %c384] : memref<128x576xf32, #tpu.memory_space<vmem>>, vector<128x64xf32>
    tpu.vector_store %arg14[%c0_379, %c384], %251 {strides = array<i32>} : memref<128x576xf32, #tpu.memory_space<vmem>>, vector<128x64xf32>,
    %c0_380 = arith.constant 0 : index
    %c2_381 = arith.constant 2 : index
    %c1_382 = arith.constant 1 : index
    %c0_383 = arith.constant 0 : index
    %253 = vector.load %arg13[%c0_380, %c2_381, %c1_382, %c0_383] : memref<2x10x10x64xf32, #tpu.memory_space<vmem>>, vector<2x8x8x64xf32>
    %254 = vector.shape_cast %253 : vector<2x8x8x64xf32> to vector<128x64xf32>
    %c0_384 = arith.constant 0 : index
    %c448 = arith.constant 448 : index
    %255 = vector.load %arg14[%c0_384, %c448] : memref<128x576xf32, #tpu.memory_space<vmem>>, vector<128x64xf32>
    tpu.vector_store %arg14[%c0_384, %c448], %254 {strides = array<i32>} : memref<128x576xf32, #tpu.memory_space<vmem>>, vector<128x64xf32>,
    %c0_385 = arith.constant 0 : index
    %c2_386 = arith.constant 2 : index
    %c2_387 = arith.constant 2 : index
    %c0_388 = arith.constant 0 : index
    %256 = vector.load %arg13[%c0_385, %c2_386, %c2_387, %c0_388] : memref<2x10x10x64xf32, #tpu.memory_space<vmem>>, vector<2x8x8x64xf32>
    %257 = vector.shape_cast %256 : vector<2x8x8x64xf32> to vector<128x64xf32>
    %c0_389 = arith.constant 0 : index
    %c512 = arith.constant 512 : index
    %258 = vector.load %arg14[%c0_389, %c512] : memref<128x576xf32, #tpu.memory_space<vmem>>, vector<128x64xf32>
    tpu.vector_store %arg14[%c0_389, %c512], %257 {strides = array<i32>} : memref<128x576xf32, #tpu.memory_space<vmem>>, vector<128x64xf32>,
    %c0_390 = arith.constant 0 : index
    %c0_391 = arith.constant 0 : index
    %259 = vector.load %arg14[%c0_390, %c0_391] : memref<128x576xf32, #tpu.memory_space<vmem>>, vector<128x576xf32>
    %cst_392 = arith.constant dense<0.000000e+00> : vector<128x48xf32>
    %260 = tpu.matmul %259, %231, %cst_392 {dimension_numbers = #tpu.dot_dimension_numbers<[1], [0], [0], [1], [0, 0, 1, 1], [], []>} : vector<128x576xf32>, vector<576x48xf32>, vector<128x48xf32> -> vector<128x48xf32>
    %c0_393 = arith.constant 0 : index
    %c0_394 = arith.constant 0 : index
    %261 = vector.load %arg9[%c0_393, %c0_394] : memref<1x48xf32, #tpu.memory_space<vmem>>, vector<1x48xf32>
    %262 = vector.broadcast %261 : vector<1x48xf32> to vector<128x48xf32>
    %263 = arith.addf %260, %262 : vector<128x48xf32>
    %c0_395 = arith.constant 0 : index
    %c0_396 = arith.constant 0 : index
    %264 = vector.load %arg10[%c0_395, %c0_396] : memref<128x128xf32, #tpu.memory_space<vmem>>, vector<128x16xf32>
    tpu.vector_store %arg10[%c0_395, %c0_396], %25 {strides = array<i32>} : memref<128x128xf32, #tpu.memory_space<vmem>>, vector<128x16xf32>,
    %c0_397 = arith.constant 0 : index
    %c16_398 = arith.constant 16 : index
    %265 = vector.load %arg10[%c0_397, %c16_398] : memref<128x128xf32, #tpu.memory_space<vmem>>, vector<128x32xf32>
    tpu.vector_store %arg10[%c0_397, %c16_398], %24 {strides = array<i32>} : memref<128x128xf32, #tpu.memory_space<vmem>>, vector<128x32xf32>,
    %c0_399 = arith.constant 0 : index
    %c48_400 = arith.constant 48 : index
    %266 = vector.load %arg10[%c0_399, %c48_400] : memref<128x128xf32, #tpu.memory_space<vmem>>, vector<128x48xf32>
    tpu.vector_store %arg10[%c0_399, %c48_400], %263 {strides = array<i32>} : memref<128x128xf32, #tpu.memory_space<vmem>>, vector<128x48xf32>,
    %267 = vector.shape_cast %35 : vector<1x1xf32> to vector<1x1xf32>
    %268 = vector.broadcast %267 : vector<1x1xf32> to vector<128x1xf32>
    %c0_401 = arith.constant 0 : index
    %c96_402 = arith.constant 96 : index
    %269 = vector.load %arg10[%c0_401, %c96_402] : memref<128x128xf32, #tpu.memory_space<vmem>>, vector<128x1xf32>
    tpu.vector_store %arg10[%c0_401, %c96_402], %268 {strides = array<i32>} : memref<128x128xf32, #tpu.memory_space<vmem>>, vector<128x1xf32>,
    %270 = vector.shape_cast %48 : vector<1x1xf32> to vector<1x1xf32>
    %271 = vector.broadcast %270 : vector<1x1xf32> to vector<128x1xf32>
    %c0_403 = arith.constant 0 : index
    %c97 = arith.constant 97 : index
    %272 = vector.load %arg10[%c0_403, %c97] : memref<128x128xf32, #tpu.memory_space<vmem>>, vector<128x1xf32>
    tpu.vector_store %arg10[%c0_403, %c97], %271 {strides = array<i32>} : memref<128x128xf32, #tpu.memory_space<vmem>>, vector<128x1xf32>,
    %cst_404 = arith.constant 0.000000e+00 : f32
    %273 = vector.broadcast %cst_404 : f32 to vector<128x30xf32>
    %c0_405 = arith.constant 0 : index
    %c98 = arith.constant 98 : index
    %274 = vector.load %arg10[%c0_405, %c98] : memref<128x128xf32, #tpu.memory_space<vmem>>, vector<128x30xf32>
    tpu.vector_store %arg10[%c0_405, %c98], %273 {strides = array<i32>} : memref<128x128xf32, #tpu.memory_space<vmem>>, vector<128x30xf32>,
    return
  }
}

</mosaic_0001>

<llo_original>
// kernel: codec_forward.1
$region0: #{codec_forward.1}
  #allocation0 [shape = 'u32[]', space=smem, size = 0x4, offset = 0x4, fixed_abs, tag = 'smem constant byte address 0x4 - core index']
  #allocation1 [shape = 'u32[144,128]{1,0:T(1,128)}', space=vmem, size = 0x12000, scoped, tag = 'internal scratch']
  #allocation2 [shape = 'f32[2,10,10,16]{3,2,1,0:T(8,128)}', space=vmem, size = 0x28000, scoped, tag = 'scratch operand']
  #allocation3 [shape = 'f32[2,10,10,32]{3,2,1,0:T(8,128)}', space=vmem, size = 0x28000, scoped, tag = 'scratch operand']
  #allocation4 [shape = 'f32[2,10,10,64]{3,2,1,0:T(8,128)}', space=vmem, size = 0x28000, scoped, tag = 'scratch operand']
  #allocation5 [shape = 'f32[128,576]{1,0:T(8,128)}', space=vmem, size = 0x50000, scoped, tag = 'scratch operand']
  %s0 = inlined_call_operand.vmem [shape: f32[128,16], index: 0, kind: input, shape index: {}]
  %s1 = inlined_call_operand.vmem [shape: f32[32,16], index: 1, kind: input, shape index: {}]
  %s2 = inlined_call_operand.vmem [shape: f32[144,32], index: 2, kind: input, shape index: {}]
  %s3 = inlined_call_operand.vmem [shape: f32[1,32], index: 3, kind: input, shape index: {}]
  %s4 = inlined_call_operand.vmem [shape: f32[2,288,8], index: 4, kind: input, shape index: {}]
  %s5 = inlined_call_operand.vmem [shape: f32[2,8,32], index: 5, kind: input, shape index: {}]
  %s6 = inlined_call_operand.vmem [shape: f32[288,64], index: 6, kind: input, shape index: {}]
  %s7 = inlined_call_operand.vmem [shape: f32[1,64], index: 7, kind: input, shape index: {}]
  %s8 = inlined_call_operand.vmem [shape: f32[576,48], index: 8, kind: input, shape index: {}]
  %s9 = inlined_call_operand.vmem [shape: f32[1,48], index: 9, kind: input, shape index: {}]
  %s10 = inlined_call_operand.vmem [shape: f32[128,128], index: 10, kind: output, shape index: {}]
  %s11 = sld [smem:[#allocation0]]
  $region50: #{codec_forward.1} parent=0
    _
  %s13 = ssub.s32 1, %s11
  %s14 = scalar_select 0, %s13, %s11
  // Predicated region
  $region2: #{codec_forward.1} parent=0 // pred_check
    _
  $region3: #{codec_forward.1} parent=0 // pred_check_branch
    %16 = sbr.rel (0) target = $region5
  $region4: #{codec_forward.1} parent=0 // pred_region
    _
  $region5: #{codec_forward.1} parent=0 // pred_fallthru
    _
  // Predicated region
  $region6: #{codec_forward.1} parent=0 // pred_check
    _
  $region7: #{codec_forward.1} parent=0 // pred_check_branch
    %18 = sbr.rel (0) target = $region9
  $region8: #{codec_forward.1} parent=0 // pred_region
    _
  $region9: #{codec_forward.1} parent=0 // pred_fallthru
    _
  // Predicated region
  $region10: #{codec_forward.1} parent=0 // pred_check
    _
  $region11: #{codec_forward.1} parent=0 // pred_check_branch
    %20 = sbr.rel (0) target = $region13
  $region12: #{codec_forward.1} parent=0 // pred_region
    _
  $region13: #{codec_forward.1} parent=0 // pred_fallthru
    _
  // Predicated region
  $region14: #{codec_forward.1} parent=0 // pred_check
    _
  $region15: #{codec_forward.1} parent=0 // pred_check_branch
    %22 = sbr.rel (0) target = $region17
  $region16: #{codec_forward.1} parent=0 // pred_region
    _
  $region17: #{codec_forward.1} parent=0 // pred_fallthru
    _
  // Predicated region
  $region18: #{codec_forward.1} parent=0 // pred_check
    _
  $region19: #{codec_forward.1} parent=0 // pred_check_branch
    %24 = sbr.rel (0) target = $region21
  $region20: #{codec_forward.1} parent=0 // pred_region
    _
  $region21: #{codec_forward.1} parent=0 // pred_fallthru
    _
  // Predicated region
  $region22: #{codec_forward.1} parent=0 // pred_check
    _
  $region23: #{codec_forward.1} parent=0 // pred_check_branch
    %26 = sbr.rel (0) target = $region25
  $region24: #{codec_forward.1} parent=0 // pred_region
    _
  $region25: #{codec_forward.1} parent=0 // pred_fallthru
    _
  // Predicated region
  $region26: #{codec_forward.1} parent=0 // pred_check
    _
  $region27: #{codec_forward.1} parent=0 // pred_check_branch
    %28 = sbr.rel (0) target = $region29
  $region28: #{codec_forward.1} parent=0 // pred_region
    _
  $region29: #{codec_forward.1} parent=0 // pred_fallthru
    _
  // Predicated region
  $region30: #{codec_forward.1} parent=0 // pred_check
    _
  $region31: #{codec_forward.1} parent=0 // pred_check_branch
    %30 = sbr.rel (0) target = $region33
  $region32: #{codec_forward.1} parent=0 // pred_region
    _
  $region33: #{codec_forward.1} parent=0 // pred_fallthru
    _
  // Predicated region
  $region34: #{codec_forward.1} parent=0 // pred_check
    _
  $region35: #{codec_forward.1} parent=0 // pred_check_branch
    %32 = sbr.rel (0) target = $region37
  $region36: #{codec_forward.1} parent=0 // pred_region
    _
  $region37: #{codec_forward.1} parent=0 // pred_fallthru
    _
  // Predicated region
  $region38: #{codec_forward.1} parent=0 // pred_check
    _
  $region39: #{codec_forward.1} parent=0 // pred_check_branch
    %34 = sbr.rel (0) target = $region41
  $region40: #{codec_forward.1} parent=0 // pred_region
    _
  $region41: #{codec_forward.1} parent=0 // pred_fallthru
    _
  %v35 = vld [vmem:[%s0] sm:$0xff]
  %v36 = vld [vmem:[%s0 + $0x8] sm:$0xff]
  %v37 = vld [vmem:[%s0 + $0x10] sm:$0xff]
  %v38 = vld [vmem:[%s0 + $0x18] sm:$0xff]
  %v39 = vld [vmem:[%s0 + $0x20] sm:$0xff]
  %v40 = vld [vmem:[%s0 + $0x28] sm:$0xff]
  %v41 = vld [vmem:[%s0 + $0x30] sm:$0xff]
  %v42 = vld [vmem:[%s0 + $0x38] sm:$0xff]
  %v43 = vld [vmem:[%s0 + $0x40] sm:$0xff]
  %v44 = vld [vmem:[%s0 + $0x48] sm:$0xff]
  %v45 = vld [vmem:[%s0 + $0x50] sm:$0xff]
  %v46 = vld [vmem:[%s0 + $0x58] sm:$0xff]
  %v47 = vld [vmem:[%s0 + $0x60] sm:$0xff]
  %v48 = vld [vmem:[%s0 + $0x68] sm:$0xff]
  %v49 = vld [vmem:[%s0 + $0x70] sm:$0xff]
  %v50 = vld [vmem:[%s0 + $0x78] sm:$0xff]
  %v51 = vld [vmem:[%s1] sm:$0xff]
  %v52 = vld [vmem:[%s1 + $0x8] sm:$0xff]
  %v53 = vld [vmem:[%s1 + $0x10] sm:$0xff]
  %v54 = vld [vmem:[%s1 + $0x18] sm:$0xff]
  %vm55 = vcmask 130048
  %v57 = vsel %vm55, %v35, 0
  %v60 = vsel %vm55, %v36, 0
  %v63 = vsel %vm55, %v37, 0
  %v66 = vsel %vm55, %v38, 0
  %v69 = vsel %vm55, %v39, 0
  %v72 = vsel %vm55, %v40, 0
  %v75 = vsel %vm55, %v41, 0
  %v78 = vsel %vm55, %v42, 0
  %v81 = vsel %vm55, %v43, 0
  %v84 = vsel %vm55, %v44, 0
  %v87 = vsel %vm55, %v45, 0
  %v90 = vsel %vm55, %v46, 0
  %v93 = vsel %vm55, %v47, 0
  %v96 = vsel %vm55, %v48, 0
  %v99 = vsel %vm55, %v49, 0
  %v102 = vsel %vm55, %v50, 0
  %v105 = vsel %vm55, %v51, 0
  %v108 = vsel %vm55, %v52, 0
  %v111 = vsel %vm55, %v53, 0
  %v114 = vsel %vm55, %v54, 0
  %116 = vmatprep.subr.mxu0 0.0
  %117 = vmatpush1.xpose.msra.mxu0 %v105
  %118 = vmatprep.subr.mxu0 0.0
  %119 = vmatpush1.xpose.msra.mxu0 %v108
  %120 = vmatprep.subr.mxu0 0.0
  %121 = vmatpush1.xpose.msra.mxu0 %v111
  %122 = vmatprep.subr.mxu0 0.0
  %123 = vmatpush1.xpose.msra.mxu0 %v114
  %124 = vmatprep.subr.mxu0 0.0
  %125 = vmatpush1.xpose.msra.mxu0 0.0
  %126 = vmatprep.subr.mxu0 0.0
  %127 = vmatpush1.xpose.msra.mxu0 0.0
  %128 = vmatprep.subr.mxu0 0.0
  %129 = vmatpush1.xpose.msra.mxu0 0.0
  %130 = vmatprep.subr.mxu0 0.0
  %131 = vmatpush1.xpose.msra.mxu0 0.0
  %132 = vmatprep.subr.mxu0 0.0
  %133 = vmatpush1.xpose.msra.mxu0 0.0
  %134 = vmatprep.subr.mxu0 0.0
  %135 = vmatpush1.xpose.msra.mxu0 0.0
  %136 = vmatprep.subr.mxu0 0.0
  %137 = vmatpush1.xpose.msra.mxu0 0.0
  %138 = vmatprep.subr.mxu0 0.0
  %139 = vmatpush1.xpose.msra.mxu0 0.0
  %140 = vmatprep.subr.mxu0 0.0
  %141 = vmatpush1.xpose.msra.mxu0 0.0
  %142 = vmatprep.subr.mxu0 0.0
  %143 = vmatpush1.xpose.msra.mxu0 0.0
  %144 = vmatprep.subr.mxu0 0.0
  %145 = vmatpush1.xpose.msra.mxu0 0.0
  %146 = vmatprep.subr.mxu0 0.0
  %147 = vmatpush1.xpose.msra.mxu0 0.0
  %148 = vmatprep.subr.mxu0 0.0
  %149 = vmatpush1.xpose.msra.mxu0 0.0
  %150 = vmatprep.subr.mxu0 0.0
  %151 = vmatpush1.xpose.msra.mxu0 0.0
  %152 = vmatprep.subr.mxu0 0.0
  %153 = vmatpush1.xpose.msra.mxu0 0.0
  %154 = vmatprep.subr.mxu0 0.0
  %155 = vmatpush1.xpose.msra.mxu0 0.0
  %156 = vmatprep.subr.mxu0 0.0
  %157 = vmatpush1.xpose.msra.mxu0 0.0
  %158 = vmatprep.subr.mxu0 0.0
  %159 = vmatpush1.xpose.msra.mxu0 0.0
  %160 = vmatprep.subr.mxu0 0.0
  %161 = vmatpush1.xpose.msra.mxu0 0.0
  %162 = vmatprep.subr.mxu0 0.0
  %163 = vmatpush1.xpose.msra.mxu0 0.0
  %164 = vmatprep.subr.mxu0 0.0
  %165 = vmatpush1.xpose.msra.mxu0 0.0
  %166 = vmatprep.subr.mxu0 0.0
  %167 = vmatpush1.xpose.msra.mxu0 0.0
  %168 = vmatprep.subr.mxu0 0.0
  %169 = vmatpush1.xpose.msra.mxu0 0.0
  %170 = vmatprep.subr.mxu0 0.0
  %171 = vmatpush1.xpose.msra.mxu0 0.0
  %172 = vmatprep.subr.mxu0 0.0
  %173 = vmatpush1.xpose.msra.mxu0 0.0
  %174 = vmatprep.subr.mxu0 0.0
  %175 = vmatpush1.xpose.msra.mxu0 0.0
  %176 = vmatprep.subr.mxu0 0.0
  %177 = vmatpush1.xpose.msra.mxu0 0.0
  %178 = vmatprep.subr.mxu0 0.0
  %179 = vmatpush1.xpose.msra.mxu0 0.0
  %180 = vmatprep.mubr.f32.mxu0 0.0
  %181 = vmatmul.mubr.f32.gmra.mrb[0].mxu0 %v57
  %v182 = vpop.f32.mrb[0].mxu0
  %v183 = vadd.f32 0.0, %v182
  %v184 = vpop.f32.mrb[0].mxu0
  %185 = vmatprep.mubr.f32.mxu0 0.0
  %186 = vmatmul.mubr.f32.gmra.mrb[0].mxu0 %v60
  %v187 = vpop.f32.mrb[0].mxu0
  %v188 = vadd.f32 0.0, %v187
  %v189 = vpop.f32.mrb[0].mxu0
  %190 = vmatprep.mubr.f32.mxu0 0.0
  %191 = vmatmul.mubr.f32.gmra.mrb[0].mxu0 %v63
  %v192 = vpop.f32.mrb[0].mxu0
  %v193 = vadd.f32 0.0, %v192
  %v194 = vpop.f32.mrb[0].mxu0
  %195 = vmatprep.mubr.f32.mxu0 0.0
  %196 = vmatmul.mubr.f32.gmra.mrb[0].mxu0 %v66
  %v197 = vpop.f32.mrb[0].mxu0
  %v198 = vadd.f32 0.0, %v197
  %v199 = vpop.f32.mrb[0].mxu0
  %200 = vmatprep.mubr.f32.mxu0 0.0
  %201 = vmatmul.mubr.f32.gmra.mrb[0].mxu0 %v69
  %v202 = vpop.f32.mrb[0].mxu0
  %v203 = vadd.f32 0.0, %v202
  %v204 = vpop.f32.mrb[0].mxu0
  %205 = vmatprep.mubr.f32.mxu0 0.0
  %206 = vmatmul.mubr.f32.gmra.mrb[0].mxu0 %v72
  %v207 = vpop.f32.mrb[0].mxu0
  %v208 = vadd.f32 0.0, %v207
  %v209 = vpop.f32.mrb[0].mxu0
  %210 = vmatprep.mubr.f32.mxu0 0.0
  %211 = vmatmul.mubr.f32.gmra.mrb[0].mxu0 %v75
  %v212 = vpop.f32.mrb[0].mxu0
  %v213 = vadd.f32 0.0, %v212
  %v214 = vpop.f32.mrb[0].mxu0
  %215 = vmatprep.mubr.f32.mxu0 0.0
  %216 = vmatmul.mubr.f32.gmra.mrb[0].mxu0 %v78
  %v217 = vpop.f32.mrb[0].mxu0
  %v218 = vadd.f32 0.0, %v217
  %v219 = vpop.f32.mrb[0].mxu0
  %220 = vmatprep.mubr.f32.mxu0 0.0
  %221 = vmatmul.mubr.f32.gmra.mrb[0].mxu0 %v81
  %v222 = vpop.f32.mrb[0].mxu0
  %v223 = vadd.f32 0.0, %v222
  %v224 = vpop.f32.mrb[0].mxu0
  %225 = vmatprep.mubr.f32.mxu0 0.0
  %226 = vmatmul.mubr.f32.gmra.mrb[0].mxu0 %v84
  %v227 = vpop.f32.mrb[0].mxu0
  %v228 = vadd.f32 0.0, %v227
  %v229 = vpop.f32.mrb[0].mxu0
  %230 = vmatprep.mubr.f32.mxu0 0.0
  %231 = vmatmul.mubr.f32.gmra.mrb[0].mxu0 %v87
  %v232 = vpop.f32.mrb[0].mxu0
  %v233 = vadd.f32 0.0, %v232
  %v234 = vpop.f32.mrb[0].mxu0
  %235 = vmatprep.mubr.f32.mxu0 0.0
  %236 = vmatmul.mubr.f32.gmra.mrb[0].mxu0 %v90
  %v237 = vpop.f32.mrb[0].mxu0
  %v238 = vadd.f32 0.0, %v237
  %v239 = vpop.f32.mrb[0].mxu0
  %240 = vmatprep.mubr.f32.mxu0 0.0
  %241 = vmatmul.mubr.f32.gmra.mrb[0].mxu0 %v93
  %v242 = vpop.f32.mrb[0].mxu0
  %v243 = vadd.f32 0.0, %v242
  %v244 = vpop.f32.mrb[0].mxu0
  %245 = vmatprep.mubr.f32.mxu0 0.0
  %246 = vmatmul.mubr.f32.gmra.mrb[0].mxu0 %v96
  %v247 = vpop.f32.mrb[0].mxu0
  %v248 = vadd.f32 0.0, %v247
  %v249 = vpop.f32.mrb[0].mxu0
  %250 = vmatprep.mubr.f32.mxu0 0.0
  %251 = vmatmul.mubr.f32.gmra.mrb[0].mxu0 %v99
  %v252 = vpop.f32.mrb[0].mxu0
  %v253 = vadd.f32 0.0, %v252
  %v254 = vpop.f32.mrb[0].mxu0
  %255 = vmatprep.mubr.f32.mxu0 0.0
  %256 = vmatmul.mubr.f32.gmra.mrb[0].mxu0 %v102
  %v257 = vpop.f32.mrb[0].mxu0
  %v258 = vadd.f32 0.0, %v257
  %v259 = vpop.f32.mrb[0].mxu0
  %260 = vdwg.mxu0
  %v261 = vmul.f32 %v51, %v51
  %v262 = vmul.f32 %v52, %v52
  %v263 = vmul.f32 %v53, %v53
  %v264 = vmul.f32 %v54, %v54
  %v265 = vsel %vm55, %v261, 0.0
  %266 = vadd.xlane.f32.xlu0 %v265
  %v267 = vpop.xlane.xlu0 %266
  %v268 = vsel %vm55, %v262, 0.0
  %269 = vadd.xlane.f32.xlu0 %v268
  %v270 = vpop.xlane.xlu0 %269
  %v271 = vsel %vm55, %v263, 0.0
  %272 = vadd.xlane.f32.xlu0 %v271
  %v273 = vpop.xlane.xlu0 %272
  %v274 = vsel %vm55, %v264, 0.0
  %275 = vadd.xlane.f32.xlu0 %v274
  %v276 = vpop.xlane.xlu0 %275
  %277 = vxpose.xlu0.b32.start [1/16] %v267, 128
  %278 = vxpose.xlu0.b32.cont [2/16] %v270, 128
  %279 = vxpose.xlu0.b32.cont [3/16] %v273, 128
  %280 = vxpose.xlu0.b32.cont [4/16] %v276, 128
  %281 = vxpose.xlu0.b32.cont [5/16] 0.0, 128
  %282 = vxpose.xlu0.b32.cont [6/16] 0.0, 128
  %283 = vxpose.xlu0.b32.cont [7/16] 0.0, 128
  %284 = vxpose.xlu0.b32.cont [8/16] 0.0, 128
  %285 = vxpose.xlu0.b32.cont [9/16] 0.0, 128
  %286 = vxpose.xlu0.b32.cont [10/16] 0.0, 128
  %287 = vxpose.xlu0.b32.cont [11/16] 0.0, 128
  %288 = vxpose.xlu0.b32.cont [12/16] 0.0, 128
  %289 = vxpose.xlu0.b32.cont [13/16] 0.0, 128
  %290 = vxpose.xlu0.b32.cont [14/16] 0.0, 128
  %291 = vxpose.xlu0.b32.cont [15/16] 0.0, 128
  %292 = vxpose.xlu0.b32.end [16/16] 0.0, 128
  %v293 = vpop.trf.xlu0
  %v294 = vpop.trf.xlu0
  %v295 = vpop.trf.xlu0
  %v296 = vpop.trf.xlu0
  %v297 = vpop.trf.xlu0
  %v298 = vpop.trf.xlu0
  %v299 = vpop.trf.xlu0
  %v300 = vpop.trf.xlu0
  %v301 = vpop.trf.xlu0
  %v302 = vpop.trf.xlu0
  %v303 = vpop.trf.xlu0
  %v304 = vpop.trf.xlu0
  %v305 = vpop.trf.xlu0
  %v306 = vpop.trf.xlu0
  %v307 = vpop.trf.xlu0
  %v308 = vpop.trf.xlu0
  %v309 = vmul.f32 %v183, 2.0
  %v310 = vmul.f32 %v188, 2.0
  %v311 = vmul.f32 %v193, 2.0
  %v312 = vmul.f32 %v198, 2.0
  %v313 = vmul.f32 %v203, 2.0
  %v314 = vmul.f32 %v208, 2.0
  %v315 = vmul.f32 %v213, 2.0
  %v316 = vmul.f32 %v218, 2.0
  %v317 = vmul.f32 %v223, 2.0
  %v318 = vmul.f32 %v228, 2.0
  %v319 = vmul.f32 %v233, 2.0
  %v320 = vmul.f32 %v238, 2.0
  %v321 = vmul.f32 %v243, 2.0
  %v322 = vmul.f32 %v248, 2.0
  %v323 = vmul.f32 %v253, 2.0
  %v324 = vmul.f32 %v258, 2.0
  %v325 = vlaneseq
  %v326 = vshrl.u32 %v325, 7
  %v327 = vsub.s32 0, %v326
  %v328 = vrot.slane %v293, %v327
  %v329 = vsub.f32 %v328, %v309
  %v330 = vsub.f32 %v328, %v310
  %v331 = vsub.f32 %v328, %v311
  %v332 = vsub.f32 %v328, %v312
  %v333 = vsub.f32 %v328, %v313
  %v334 = vsub.f32 %v328, %v314
  %v335 = vsub.f32 %v328, %v315
  %v336 = vsub.f32 %v328, %v316
  %v337 = vsub.f32 %v328, %v317
  %v338 = vsub.f32 %v328, %v318
  %v339 = vsub.f32 %v328, %v319
  %v340 = vsub.f32 %v328, %v320
  %v341 = vsub.f32 %v328, %v321
  %v342 = vsub.f32 %v328, %v322
  %v343 = vsub.f32 %v328, %v323
  %v344 = vsub.f32 %v328, %v324
  %v345 = vlaneseq
  %v346 = vand.u32 %v345, 127
  %vm347 = vcmask 261120
  %v348 = vsel %vm347, %v329, inf
  %349 = vmin.xlane.f32.xlu0 %v348
  %v350 = vpop.xlane.xlu0 %349
  %v351 = vsel %vm347, %v330, inf
  %352 = vmin.xlane.f32.xlu0 %v351
  %v353 = vpop.xlane.xlu0 %352
  %v354 = vsel %vm347, %v331, inf
  %355 = vmin.xlane.f32.xlu0 %v354
  %v356 = vpop.xlane.xlu0 %355
  %v357 = vsel %vm347, %v332, inf
  %358 = vmin.xlane.f32.xlu0 %v357
  %v359 = vpop.xlane.xlu0 %358
  %v360 = vsel %vm347, %v333, inf
  %361 = vmin.xlane.f32.xlu0 %v360
  %v362 = vpop.xlane.xlu0 %361
  %v363 = vsel %vm347, %v334, inf
  %364 = vmin.xlane.f32.xlu0 %v363
  %v365 = vpop.xlane.xlu0 %364
  %v366 = vsel %vm347, %v335, inf
  %367 = vmin.xlane.f32.xlu0 %v366
  %v368 = vpop.xlane.xlu0 %367
  %v369 = vsel %vm347, %v336, inf
  %370 = vmin.xlane.f32.xlu0 %v369
  %v371 = vpop.xlane.xlu0 %370
  %v372 = vsel %vm347, %v337, inf
  %373 = vmin.xlane.f32.xlu0 %v372
  %v374 = vpop.xlane.xlu0 %373
  %v375 = vsel %vm347, %v338, inf
  %376 = vmin.xlane.f32.xlu0 %v375
  %v377 = vpop.xlane.xlu0 %376
  %v378 = vsel %vm347, %v339, inf
  %379 = vmin.xlane.f32.xlu0 %v378
  %v380 = vpop.xlane.xlu0 %379
  %v381 = vsel %vm347, %v340, inf
  %382 = vmin.xlane.f32.xlu0 %v381
  %v383 = vpop.xlane.xlu0 %382
  %v384 = vsel %vm347, %v341, inf
  %385 = vmin.xlane.f32.xlu0 %v384
  %v386 = vpop.xlane.xlu0 %385
  %v387 = vsel %vm347, %v342, inf
  %388 = vmin.xlane.f32.xlu0 %v387
  %v389 = vpop.xlane.xlu0 %388
  %v390 = vsel %vm347, %v343, inf
  %391 = vmin.xlane.f32.xlu0 %v390
  %v392 = vpop.xlane.xlu0 %391
  %v393 = vsel %vm347, %v344, inf
  %394 = vmin.xlane.f32.xlu0 %v393
  %v395 = vpop.xlane.xlu0 %394
  %vm396 = vcmp.eq.f32.partialorder %v329, %v350
  %vm397 = vcmp.eq.f32.partialorder %v330, %v353
  %vm398 = vcmp.eq.f32.partialorder %v331, %v356
  %vm399 = vcmp.eq.f32.partialorder %v332, %v359
  %vm400 = vcmp.eq.f32.partialorder %v333, %v362
  %vm401 = vcmp.eq.f32.partialorder %v334, %v365
  %vm402 = vcmp.eq.f32.partialorder %v335, %v368
  %vm403 = vcmp.eq.f32.partialorder %v336, %v371
  %vm404 = vcmp.eq.f32.partialorder %v337, %v374
  %vm405 = vcmp.eq.f32.partialorder %v338, %v377
  %vm406 = vcmp.eq.f32.partialorder %v339, %v380
  %vm407 = vcmp.eq.f32.partialorder %v340, %v383
  %vm408 = vcmp.eq.f32.partialorder %v341, %v386
  %vm409 = vcmp.eq.f32.partialorder %v342, %v389
  %vm410 = vcmp.eq.f32.partialorder %v343, %v392
  %vm411 = vcmp.eq.f32.partialorder %v344, %v395
  %v412 = vsel %vm396, %v346, 32
  %v413 = vsel %vm397, %v346, 32
  %v414 = vsel %vm398, %v346, 32
  %v415 = vsel %vm399, %v346, 32
  %v416 = vsel %vm400, %v346, 32
  %v417 = vsel %vm401, %v346, 32
  %v418 = vsel %vm402, %v346, 32
  %v419 = vsel %vm403, %v346, 32
  %v420 = vsel %vm404, %v346, 32
  %v421 = vsel %vm405, %v346, 32
  %v422 = vsel %vm406, %v346, 32
  %v423 = vsel %vm407, %v346, 32
  %v424 = vsel %vm408, %v346, 32
  %v425 = vsel %vm409, %v346, 32
  %v426 = vsel %vm410, %v346, 32
  %v427 = vsel %vm411, %v346, 32
  %v428 = vsel %vm347, %v412, 2147483647
  %v429 = vand.u32 %v428, 65535
  %v430 = vshra.s32 %v428, 16
  %v431 = vcvt.s32.f32 %v429
  %v432 = vcvt.s32.f32 %v430
  %433 = vmin.xlane.f32.xlu0 %v432
  %v434 = vpop.xlane.xlu0 %433
  %vm435 = vcmp.eq.f32.partialorder %v432, %v434
  %v436 = vsel %vm435, %v431, inf
  %437 = vmin.xlane.f32.xlu0 %v436
  %v438 = vpop.xlane.xlu0 %437
  %v439 = vcvt.f32.s32 %v438
  %v440 = vcvt.f32.s32 %v434
  %v441 = vshll.u32 %v440, 16
  %v442 = vadd.s32 %v441, %v439
  %v443 = vsel %vm347, %v413, 2147483647
  %v444 = vand.u32 %v443, 65535
  %v445 = vshra.s32 %v443, 16
  %v446 = vcvt.s32.f32 %v444
  %v447 = vcvt.s32.f32 %v445
  %448 = vmin.xlane.f32.xlu0 %v447
  %v449 = vpop.xlane.xlu0 %448
  %vm450 = vcmp.eq.f32.partialorder %v447, %v449
  %v451 = vsel %vm450, %v446, inf
  %452 = vmin.xlane.f32.xlu0 %v451
  %v453 = vpop.xlane.xlu0 %452
  %v454 = vcvt.f32.s32 %v453
  %v455 = vcvt.f32.s32 %v449
  %v456 = vshll.u32 %v455, 16
  %v457 = vadd.s32 %v456, %v454
  %v458 = vsel %vm347, %v414, 2147483647
  %v459 = vand.u32 %v458, 65535
  %v460 = vshra.s32 %v458, 16
  %v461 = vcvt.s32.f32 %v459
  %v462 = vcvt.s32.f32 %v460
  %463 = vmin.xlane.f32.xlu0 %v462
  %v464 = vpop.xlane.xlu0 %463
  %vm465 = vcmp.eq.f32.partialorder %v462, %v464
  %v466 = vsel %vm465, %v461, inf
  %467 = vmin.xlane.f32.xlu0 %v466
  %v468 = vpop.xlane.xlu0 %467
  %v469 = vcvt.f32.s32 %v468
  %v470 = vcvt.f32.s32 %v464
  %v471 = vshll.u32 %v470, 16
  %v472 = vadd.s32 %v471, %v469
  %v473 = vsel %vm347, %v415, 2147483647
  %v474 = vand.u32 %v473, 65535
  %v475 = vshra.s32 %v473, 16
  %v476 = vcvt.s32.f32 %v474
  %v477 = vcvt.s32.f32 %v475
  %478 = vmin.xlane.f32.xlu0 %v477
  %v479 = vpop.xlane.xlu0 %478
  %vm480 = vcmp.eq.f32.partialorder %v477, %v479
  %v481 = vsel %vm480, %v476, inf
  %482 = vmin.xlane.f32.xlu0 %v481
  %v483 = vpop.xlane.xlu0 %482
  %v484 = vcvt.f32.s32 %v483
  %v485 = vcvt.f32.s32 %v479
  %v486 = vshll.u32 %v485, 16
  %v487 = vadd.s32 %v486, %v484
  %v488 = vsel %vm347, %v416, 2147483647
  %v489 = vand.u32 %v488, 65535
  %v490 = vshra.s32 %v488, 16
  %v491 = vcvt.s32.f32 %v489
  %v492 = vcvt.s32.f32 %v490
  %493 = vmin.xlane.f32.xlu0 %v492
  %v494 = vpop.xlane.xlu0 %493
  %vm495 = vcmp.eq.f32.partialorder %v492, %v494
  %v496 = vsel %vm495, %v491, inf
  %497 = vmin.xlane.f32.xlu0 %v496
  %v498 = vpop.xlane.xlu0 %497
  %v499 = vcvt.f32.s32 %v498
  %v500 = vcvt.f32.s32 %v494
  %v501 = vshll.u32 %v500, 16
  %v502 = vadd.s32 %v501, %v499
  %v503 = vsel %vm347, %v417, 2147483647
  %v504 = vand.u32 %v503, 65535
  %v505 = vshra.s32 %v503, 16
  %v506 = vcvt.s32.f32 %v504
  %v507 = vcvt.s32.f32 %v505
  %508 = vmin.xlane.f32.xlu0 %v507
  %v509 = vpop.xlane.xlu0 %508
  %vm510 = vcmp.eq.f32.partialorder %v507, %v509
  %v511 = vsel %vm510, %v506, inf
  %512 = vmin.xlane.f32.xlu0 %v511
  %v513 = vpop.xlane.xlu0 %512
  %v514 = vcvt.f32.s32 %v513
  %v515 = vcvt.f32.s32 %v509
  %v516 = vshll.u32 %v515, 16
  %v517 = vadd.s32 %v516, %v514
  %v518 = vsel %vm347, %v418, 2147483647
  %v519 = vand.u32 %v518, 65535
  %v520 = vshra.s32 %v518, 16
  %v521 = vcvt.s32.f32 %v519
  %v522 = vcvt.s32.f32 %v520
  %523 = vmin.xlane.f32.xlu0 %v522
  %v524 = vpop.xlane.xlu0 %523
  %vm525 = vcmp.eq.f32.partialorder %v522, %v524
  %v526 = vsel %vm525, %v521, inf
  %527 = vmin.xlane.f32.xlu0 %v526
  %v528 = vpop.xlane.xlu0 %527
  %v529 = vcvt.f32.s32 %v528
  %v530 = vcvt.f32.s32 %v524
  %v531 = vshll.u32 %v530, 16
  %v532 = vadd.s32 %v531, %v529
  %v533 = vsel %vm347, %v419, 2147483647
  %v534 = vand.u32 %v533, 65535
  %v535 = vshra.s32 %v533, 16
  %v536 = vcvt.s32.f32 %v534
  %v537 = vcvt.s32.f32 %v535
  %538 = vmin.xlane.f32.xlu0 %v537
  %v539 = vpop.xlane.xlu0 %538
  %vm540 = vcmp.eq.f32.partialorder %v537, %v539
  %v541 = vsel %vm540, %v536, inf
  %542 = vmin.xlane.f32.xlu0 %v541
  %v543 = vpop.xlane.xlu0 %542
  %v544 = vcvt.f32.s32 %v543
  %v545 = vcvt.f32.s32 %v539
  %v546 = vshll.u32 %v545, 16
  %v547 = vadd.s32 %v546, %v544
  %v548 = vsel %vm347, %v420, 2147483647
  %v549 = vand.u32 %v548, 65535
  %v550 = vshra.s32 %v548, 16
  %v551 = vcvt.s32.f32 %v549
  %v552 = vcvt.s32.f32 %v550
  %553 = vmin.xlane.f32.xlu0 %v552
  %v554 = vpop.xlane.xlu0 %553
  %vm555 = vcmp.eq.f32.partialorder %v552, %v554
  %v556 = vsel %vm555, %v551, inf
  %557 = vmin.xlane.f32.xlu0 %v556
  %v558 = vpop.xlane.xlu0 %557
  %v559 = vcvt.f32.s32 %v558
  %v560 = vcvt.f32.s32 %v554
  %v561 = vshll.u32 %v560, 16
  %v562 = vadd.s32 %v561, %v559
  %v563 = vsel %vm347, %v421, 2147483647
  %v564 = vand.u32 %v563, 65535
  %v565 = vshra.s32 %v563, 16
  %v566 = vcvt.s32.f32 %v564
  %v567 = vcvt.s32.f32 %v565
  %568 = vmin.xlane.f32.xlu0 %v567
  %v569 = vpop.xlane.xlu0 %568
  %vm570 = vcmp.eq.f32.partialorder %v567, %v569
  %v571 = vsel %vm570, %v566, inf
  %572 = vmin.xlane.f32.xlu0 %v571
  %v573 = vpop.xlane.xlu0 %572
  %v574 = vcvt.f32.s32 %v573
  %v575 = vcvt.f32.s32 %v569
  %v576 = vshll.u32 %v575, 16
  %v577 = vadd.s32 %v576, %v574
  %v578 = vsel %vm347, %v422, 2147483647
  %v579 = vand.u32 %v578, 65535
  %v580 = vshra.s32 %v578, 16
  %v581 = vcvt.s32.f32 %v579
  %v582 = vcvt.s32.f32 %v580
  %583 = vmin.xlane.f32.xlu0 %v582
  %v584 = vpop.xlane.xlu0 %583
  %vm585 = vcmp.eq.f32.partialorder %v582, %v584
  %v586 = vsel %vm585, %v581, inf
  %587 = vmin.xlane.f32.xlu0 %v586
  %v588 = vpop.xlane.xlu0 %587
  %v589 = vcvt.f32.s32 %v588
  %v590 = vcvt.f32.s32 %v584
  %v591 = vshll.u32 %v590, 16
  %v592 = vadd.s32 %v591, %v589
  %v593 = vsel %vm347, %v423, 2147483647
  %v594 = vand.u32 %v593, 65535
  %v595 = vshra.s32 %v593, 16
  %v596 = vcvt.s32.f32 %v594
  %v597 = vcvt.s32.f32 %v595
  %598 = vmin.xlane.f32.xlu0 %v597
  %v599 = vpop.xlane.xlu0 %598
  %vm600 = vcmp.eq.f32.partialorder %v597, %v599
  %v601 = vsel %vm600, %v596, inf
  %602 = vmin.xlane.f32.xlu0 %v601
  %v603 = vpop.xlane.xlu0 %602
  %v604 = vcvt.f32.s32 %v603
  %v605 = vcvt.f32.s32 %v599
  %v606 = vshll.u32 %v605, 16
  %v607 = vadd.s32 %v606, %v604
  %v608 = vsel %vm347, %v424, 2147483647
  %v609 = vand.u32 %v608, 65535
  %v610 = vshra.s32 %v608, 16
  %v611 = vcvt.s32.f32 %v609
  %v612 = vcvt.s32.f32 %v610
  %613 = vmin.xlane.f32.xlu0 %v612
  %v614 = vpop.xlane.xlu0 %613
  %vm615 = vcmp.eq.f32.partialorder %v612, %v614
  %v616 = vsel %vm615, %v611, inf
  %617 = vmin.xlane.f32.xlu0 %v616
  %v618 = vpop.xlane.xlu0 %617
  %v619 = vcvt.f32.s32 %v618
  %v620 = vcvt.f32.s32 %v614
  %v621 = vshll.u32 %v620, 16
  %v622 = vadd.s32 %v621, %v619
  %v623 = vsel %vm347, %v425, 2147483647
  %v624 = vand.u32 %v623, 65535
  %v625 = vshra.s32 %v623, 16
  %v626 = vcvt.s32.f32 %v624
  %v627 = vcvt.s32.f32 %v625
  %628 = vmin.xlane.f32.xlu0 %v627
  %v629 = vpop.xlane.xlu0 %628
  %vm630 = vcmp.eq.f32.partialorder %v627, %v629
  %v631 = vsel %vm630, %v626, inf
  %632 = vmin.xlane.f32.xlu0 %v631
  %v633 = vpop.xlane.xlu0 %632
  %v634 = vcvt.f32.s32 %v633
  %v635 = vcvt.f32.s32 %v629
  %v636 = vshll.u32 %v635, 16
  %v637 = vadd.s32 %v636, %v634
  %v638 = vsel %vm347, %v426, 2147483647
  %v639 = vand.u32 %v638, 65535
  %v640 = vshra.s32 %v638, 16
  %v641 = vcvt.s32.f32 %v639
  %v642 = vcvt.s32.f32 %v640
  %643 = vmin.xlane.f32.xlu0 %v642
  %v644 = vpop.xlane.xlu0 %643
  %vm645 = vcmp.eq.f32.partialorder %v642, %v644
  %v646 = vsel %vm645, %v641, inf
  %647 = vmin.xlane.f32.xlu0 %v646
  %v648 = vpop.xlane.xlu0 %647
  %v649 = vcvt.f32.s32 %v648
  %v650 = vcvt.f32.s32 %v644
  %v651 = vshll.u32 %v650, 16
  %v652 = vadd.s32 %v651, %v649
  %v653 = vsel %vm347, %v427, 2147483647
  %v654 = vand.u32 %v653, 65535
  %v655 = vshra.s32 %v653, 16
  %v656 = vcvt.s32.f32 %v654
  %v657 = vcvt.s32.f32 %v655
  %658 = vmin.xlane.f32.xlu0 %v657
  %v659 = vpop.xlane.xlu0 %658
  %vm660 = vcmp.eq.f32.partialorder %v657, %v659
  %v661 = vsel %vm660, %v656, inf
  %662 = vmin.xlane.f32.xlu0 %v661
  %v663 = vpop.xlane.xlu0 %662
  %v664 = vcvt.f32.s32 %v663
  %v665 = vcvt.f32.s32 %v659
  %v666 = vshll.u32 %v665, 16
  %v667 = vadd.s32 %v666, %v664
  %vm668 = vcmp.eq.s32.totalorder %v346, %v442
  %vm669 = vcmp.eq.s32.totalorder %v346, %v457
  %vm670 = vcmp.eq.s32.totalorder %v346, %v472
  %vm671 = vcmp.eq.s32.totalorder %v346, %v487
  %vm672 = vcmp.eq.s32.totalorder %v346, %v502
  %vm673 = vcmp.eq.s32.totalorder %v346, %v517
  %vm674 = vcmp.eq.s32.totalorder %v346, %v532
  %vm675 = vcmp.eq.s32.totalorder %v346, %v547
  %vm676 = vcmp.eq.s32.totalorder %v346, %v562
  %vm677 = vcmp.eq.s32.totalorder %v346, %v577
  %vm678 = vcmp.eq.s32.totalorder %v346, %v592
  %vm679 = vcmp.eq.s32.totalorder %v346, %v607
  %vm680 = vcmp.eq.s32.totalorder %v346, %v622
  %vm681 = vcmp.eq.s32.totalorder %v346, %v637
  %vm682 = vcmp.eq.s32.totalorder %v346, %v652
  %vm683 = vcmp.eq.s32.totalorder %v346, %v667
  %v684 = vsel %vm668, 1, 0
  %v685 = vsel %vm669, 1, 0
  %v686 = vsel %vm670, 1, 0
  %v687 = vsel %vm671, 1, 0
  %v688 = vsel %vm672, 1, 0
  %v689 = vsel %vm673, 1, 0
  %v690 = vsel %vm674, 1, 0
  %v691 = vsel %vm675, 1, 0
  %v692 = vsel %vm676, 1, 0
  %v693 = vsel %vm677, 1, 0
  %v694 = vsel %vm678, 1, 0
  %v695 = vsel %vm679, 1, 0
  %v696 = vsel %vm680, 1, 0
  %v697 = vsel %vm681, 1, 0
  %v698 = vsel %vm682, 1, 0
  %v699 = vsel %vm683, 1, 0
  %v700 = vcvt.s32.f32 %v684
  %v701 = vcvt.s32.f32 %v685
  %v702 = vcvt.s32.f32 %v686
  %v703 = vcvt.s32.f32 %v687
  %v704 = vcvt.s32.f32 %v688
  %v705 = vcvt.s32.f32 %v689
  %v706 = vcvt.s32.f32 %v690
  %v707 = vcvt.s32.f32 %v691
  %v708 = vcvt.s32.f32 %v692
  %v709 = vcvt.s32.f32 %v693
  %v710 = vcvt.s32.f32 %v694
  %v711 = vcvt.s32.f32 %v695
  %v712 = vcvt.s32.f32 %v696
  %v713 = vcvt.s32.f32 %v697
  %v714 = vcvt.s32.f32 %v698
  %v715 = vcvt.s32.f32 %v699
  %v717 = vsel %vm347, %v700, 0
  %v720 = vsel %vm347, %v701, 0
  %v723 = vsel %vm347, %v702, 0
  %v726 = vsel %vm347, %v703, 0
  %v729 = vsel %vm347, %v704, 0
  %v732 = vsel %vm347, %v705, 0
  %v735 = vsel %vm347, %v706, 0
  %v738 = vsel %vm347, %v707, 0
  %v741 = vsel %vm347, %v708, 0
  %v744 = vsel %vm347, %v709, 0
  %v747 = vsel %vm347, %v710, 0
  %v750 = vsel %vm347, %v711, 0
  %v753 = vsel %vm347, %v712, 0
  %v756 = vsel %vm347, %v713, 0
  %v759 = vsel %vm347, %v714, 0
  %v762 = vsel %vm347, %v715, 0
  %764 = vmatprep.subr.mxu0 0.0
  %765 = vmatpush1.msra.mxu0 %v51
  %766 = vmatprep.subr.mxu0 0.0
  %767 = vmatpush1.msra.mxu0 %v52
  %768 = vmatprep.subr.mxu0 0.0
  %769 = vmatpush1.msra.mxu0 %v53
  %770 = vmatprep.subr.mxu0 0.0
  %771 = vmatpush1.msra.mxu0 %v54
  %772 = vmatprep.subr.mxu0 0.0
  %773 = vmatpush1.msra.mxu0 0.0
  %774 = vmatprep.subr.mxu0 0.0
  %775 = vmatpush1.msra.mxu0 0.0
  %776 = vmatprep.subr.mxu0 0.0
  %777 = vmatpush1.msra.mxu0 0.0
  %778 = vmatprep.subr.mxu0 0.0
  %779 = vmatpush1.msra.mxu0 0.0
  %780 = vmatprep.subr.mxu0 0.0
  %781 = vmatpush1.msra.mxu0 0.0
  %782 = vmatprep.subr.mxu0 0.0
  %783 = vmatpush1.msra.mxu0 0.0
  %784 = vmatprep.subr.mxu0 0.0
  %785 = vmatpush1.msra.mxu0 0.0
  %786 = vmatprep.subr.mxu0 0.0
  %787 = vmatpush1.msra.mxu0 0.0
  %788 = vmatprep.subr.mxu0 0.0
  %789 = vmatpush1.msra.mxu0 0.0
  %790 = vmatprep.subr.mxu0 0.0
  %791 = vmatpush1.msra.mxu0 0.0
  %792 = vmatprep.subr.mxu0 0.0
  %793 = vmatpush1.msra.mxu0 0.0
  %794 = vmatprep.subr.mxu0 0.0
  %795 = vmatpush1.msra.mxu0 0.0
  %796 = vmatprep.subr.mxu0 0.0
  %797 = vmatpush1.msra.mxu0 0.0
  %798 = vmatprep.subr.mxu0 0.0
  %799 = vmatpush1.msra.mxu0 0.0
  %800 = vmatprep.subr.mxu0 0.0
  %801 = vmatpush1.msra.mxu0 0.0
  %802 = vmatprep.subr.mxu0 0.0
  %803 = vmatpush1.msra.mxu0 0.0
  %804 = vmatprep.subr.mxu0 0.0
  %805 = vmatpush1.msra.mxu0 0.0
  %806 = vmatprep.subr.mxu0 0.0
  %807 = vmatpush1.msra.mxu0 0.0
  %808 = vmatprep.subr.mxu0 0.0
  %809 = vmatpush1.msra.mxu0 0.0
  %810 = vmatprep.subr.mxu0 0.0
  %811 = vmatpush1.msra.mxu0 0.0
  %812 = vmatprep.subr.mxu0 0.0
  %813 = vmatpush1.msra.mxu0 0.0
  %814 = vmatprep.subr.mxu0 0.0
  %815 = vmatpush1.msra.mxu0 0.0
  %816 = vmatprep.subr.mxu0 0.0
  %817 = vmatpush1.msra.mxu0 0.0
  %818 = vmatprep.subr.mxu0 0.0
  %819 = vmatpush1.msra.mxu0 0.0
  %820 = vmatprep.subr.mxu0 0.0
  %821 = vmatpush1.msra.mxu0 0.0
  %822 = vmatprep.subr.mxu0 0.0
  %823 = vmatpush1.msra.mxu0 0.0
  %824 = vmatprep.subr.mxu0 0.0
  %825 = vmatpush1.msra.mxu0 0.0
  %826 = vmatprep.subr.mxu0 0.0
  %827 = vmatpush1.msra.mxu0 0.0
  %828 = vmatprep.mubr.f32.mxu0 0.0
  %829 = vmatmul.mubr.f32.gmra.mrb[0].mxu0 %v717
  %v830 = vpop.f32.mrb[0].mxu0
  %v831 = vadd.f32 0.0, %v830
  %v832 = vpop.f32.mrb[0].mxu0
  %833 = vmatprep.mubr.f32.mxu0 0.0
  %834 = vmatmul.mubr.f32.gmra.mrb[0].mxu0 %v720
  %v835 = vpop.f32.mrb[0].mxu0
  %v836 = vadd.f32 0.0, %v835
  %v837 = vpop.f32.mrb[0].mxu0
  %838 = vmatprep.mubr.f32.mxu0 0.0
  %839 = vmatmul.mubr.f32.gmra.mrb[0].mxu0 %v723
  %v840 = vpop.f32.mrb[0].mxu0
  %v841 = vadd.f32 0.0, %v840
  %v842 = vpop.f32.mrb[0].mxu0
  %843 = vmatprep.mubr.f32.mxu0 0.0
  %844 = vmatmul.mubr.f32.gmra.mrb[0].mxu0 %v726
  %v845 = vpop.f32.mrb[0].mxu0
  %v846 = vadd.f32 0.0, %v845
  %v847 = vpop.f32.mrb[0].mxu0
  %848 = vmatprep.mubr.f32.mxu0 0.0
  %849 = vmatmul.mubr.f32.gmra.mrb[0].mxu0 %v729
  %v850 = vpop.f32.mrb[0].mxu0
  %v851 = vadd.f32 0.0, %v850
  %v852 = vpop.f32.mrb[0].mxu0
  %853 = vmatprep.mubr.f32.mxu0 0.0
  %854 = vmatmul.mubr.f32.gmra.mrb[0].mxu0 %v732
  %v855 = vpop.f32.mrb[0].mxu0
  %v856 = vadd.f32 0.0, %v855
  %v857 = vpop.f32.mrb[0].mxu0
  %858 = vmatprep.mubr.f32.mxu0 0.0
  %859 = vmatmul.mubr.f32.gmra.mrb[0].mxu0 %v735
  %v860 = vpop.f32.mrb[0].mxu0
  %v861 = vadd.f32 0.0, %v860
  %v862 = vpop.f32.mrb[0].mxu0
  %863 = vmatprep.mubr.f32.mxu0 0.0
  %864 = vmatmul.mubr.f32.gmra.mrb[0].mxu0 %v738
  %v865 = vpop.f32.mrb[0].mxu0
  %v866 = vadd.f32 0.0, %v865
  %v867 = vpop.f32.mrb[0].mxu0
  %868 = vmatprep.mubr.f32.mxu0 0.0
  %869 = vmatmul.mubr.f32.gmra.mrb[0].mxu0 %v741
  %v870 = vpop.f32.mrb[0].mxu0
  %v871 = vadd.f32 0.0, %v870
  %v872 = vpop.f32.mrb[0].mxu0
  %873 = vmatprep.mubr.f32.mxu0 0.0
  %874 = vmatmul.mubr.f32.gmra.mrb[0].mxu0 %v744
  %v875 = vpop.f32.mrb[0].mxu0
  %v876 = vadd.f32 0.0, %v875
  %v877 = vpop.f32.mrb[0].mxu0
  %878 = vmatprep.mubr.f32.mxu0 0.0
  %879 = vmatmul.mubr.f32.gmra.mrb[0].mxu0 %v747
  %v880 = vpop.f32.mrb[0].mxu0
  %v881 = vadd.f32 0.0, %v880
  %v882 = vpop.f32.mrb[0].mxu0
  %883 = vmatprep.mubr.f32.mxu0 0.0
  %884 = vmatmul.mubr.f32.gmra.mrb[0].mxu0 %v750
  %v885 = vpop.f32.mrb[0].mxu0
  %v886 = vadd.f32 0.0, %v885
  %v887 = vpop.f32.mrb[0].mxu0
  %888 = vmatprep.mubr.f32.mxu0 0.0
  %889 = vmatmul.mubr.f32.gmra.mrb[0].mxu0 %v753
  %v890 = vpop.f32.mrb[0].mxu0
  %v891 = vadd.f32 0.0, %v890
  %v892 = vpop.f32.mrb[0].mxu0
  %893 = vmatprep.mubr.f32.mxu0 0.0
  %894 = vmatmul.mubr.f32.gmra.mrb[0].mxu0 %v756
  %v895 = vpop.f32.mrb[0].mxu0
  %v896 = vadd.f32 0.0, %v895
  %v897 = vpop.f32.mrb[0].mxu0
  %898 = vmatprep.mubr.f32.mxu0 0.0
  %899 = vmatmul.mubr.f32.gmra.mrb[0].mxu0 %v759
  %v900 = vpop.f32.mrb[0].mxu0
  %v901 = vadd.f32 0.0, %v900
  %v902 = vpop.f32.mrb[0].mxu0
  %903 = vmatprep.mubr.f32.mxu0 0.0
  %904 = vmatmul.mubr.f32.gmra.mrb[0].mxu0 %v762
  %v905 = vpop.f32.mrb[0].mxu0
  %v906 = vadd.f32 0.0, %v905
  %v907 = vpop.f32.mrb[0].mxu0
  %908 = vdwg.mxu0
  %v909 = vsub.f32 %v831, %v35
  %v910 = vsub.f32 %v836, %v36
  %v911 = vsub.f32 %v841, %v37
  %v912 = vsub.f32 %v846, %v38
  %v913 = vsub.f32 %v851, %v39
  %v914 = vsub.f32 %v856, %v40
  %v915 = vsub.f32 %v861, %v41
  %v916 = vsub.f32 %v866, %v42
  %v917 = vsub.f32 %v871, %v43
  %v918 = vsub.f32 %v876, %v44
  %v919 = vsub.f32 %v881, %v45
  %v920 = vsub.f32 %v886, %v46
  %v921 = vsub.f32 %v891, %v47
  %v922 = vsub.f32 %v896, %v48
  %v923 = vsub.f32 %v901, %v49
  %v924 = vsub.f32 %v906, %v50
  %v925 = vmul.f32 %v909, %v909
  %v926 = vmul.f32 %v910, %v910
  %v927 = vmul.f32 %v911, %v911
  %v928 = vmul.f32 %v912, %v912
  %v929 = vmul.f32 %v913, %v913
  %v930 = vmul.f32 %v914, %v914
  %v931 = vmul.f32 %v915, %v915
  %v932 = vmul.f32 %v916, %v916
  %v933 = vmul.f32 %v917, %v917
  %v934 = vmul.f32 %v918, %v918
  %v935 = vmul.f32 %v919, %v919
  %v936 = vmul.f32 %v920, %v920
  %v937 = vmul.f32 %v921, %v921
  %v938 = vmul.f32 %v922, %v922
  %v939 = vmul.f32 %v923, %v923
  %v940 = vmul.f32 %v924, %v924
  %v941 = vsel %vm55, %v925, 0.0
  %942 = vadd.xlane.f32.xlu0 %v941
  %v943 = vpop.xlane.xlu0 %942
  %v944 = vsel %vm55, %v926, 0.0
  %945 = vadd.xlane.f32.xlu0 %v944
  %v946 = vpop.xlane.xlu0 %945
  %v947 = vsel %vm55, %v927, 0.0
  %948 = vadd.xlane.f32.xlu0 %v947
  %v949 = vpop.xlane.xlu0 %948
  %v950 = vsel %vm55, %v928, 0.0
  %951 = vadd.xlane.f32.xlu0 %v950
  %v952 = vpop.xlane.xlu0 %951
  %v953 = vsel %vm55, %v929, 0.0
  %954 = vadd.xlane.f32.xlu0 %v953
  %v955 = vpop.xlane.xlu0 %954
  %v956 = vsel %vm55, %v930, 0.0
  %957 = vadd.xlane.f32.xlu0 %v956
  %v958 = vpop.xlane.xlu0 %957
  %v959 = vsel %vm55, %v931, 0.0
  %960 = vadd.xlane.f32.xlu0 %v959
  %v961 = vpop.xlane.xlu0 %960
  %v962 = vsel %vm55, %v932, 0.0
  %963 = vadd.xlane.f32.xlu0 %v962
  %v964 = vpop.xlane.xlu0 %963
  %v965 = vsel %vm55, %v933, 0.0
  %966 = vadd.xlane.f32.xlu0 %v965
  %v967 = vpop.xlane.xlu0 %966
  %v968 = vsel %vm55, %v934, 0.0
  %969 = vadd.xlane.f32.xlu0 %v968
  %v970 = vpop.xlane.xlu0 %969
  %v971 = vsel %vm55, %v935, 0.0
  %972 = vadd.xlane.f32.xlu0 %v971
  %v973 = vpop.xlane.xlu0 %972
  %v974 = vsel %vm55, %v936, 0.0
  %975 = vadd.xlane.f32.xlu0 %v974
  %v976 = vpop.xlane.xlu0 %975
  %v977 = vsel %vm55, %v937, 0.0
  %978 = vadd.xlane.f32.xlu0 %v977
  %v979 = vpop.xlane.xlu0 %978
  %v980 = vsel %vm55, %v938, 0.0
  %981 = vadd.xlane.f32.xlu0 %v980
  %v982 = vpop.xlane.xlu0 %981
  %v983 = vsel %vm55, %v939, 0.0
  %984 = vadd.xlane.f32.xlu0 %v983
  %v985 = vpop.xlane.xlu0 %984
  %v986 = vsel %vm55, %v940, 0.0
  %987 = vadd.xlane.f32.xlu0 %v986
  %v988 = vpop.xlane.xlu0 %987
  %v989 = vadd.f32 %v943, %v946
  %v990 = vadd.f32 %v989, %v949
  %v991 = vadd.f32 %v990, %v952
  %v992 = vadd.f32 %v991, %v955
  %v993 = vadd.f32 %v992, %v958
  %v994 = vadd.f32 %v993, %v961
  %v995 = vadd.f32 %v994, %v964
  %v996 = vadd.f32 %v995, %v967
  %v997 = vadd.f32 %v996, %v970
  %v998 = vadd.f32 %v997, %v973
  %v999 = vadd.f32 %v998, %v976
  %v1000 = vadd.f32 %v999, %v979
  %v1001 = vadd.f32 %v1000, %v982
  %v1002 = vadd.f32 %v1001, %v985
  %v1003 = vadd.f32 %v1002, %v988
  %v1004 = vrot.slane %v1003, 4
  %v1005 = vadd.f32 %v1003, %v1004
  %v1006 = vrot.slane %v1005, 2
  %v1007 = vadd.f32 %v1005, %v1006
  %v1008 = vrot.slane %v1007, 1
  %v1009 = vadd.f32 %v1007, %v1008
  %v1010 = vmul.f32 %v1009, 1.25
  %v1011 = vrcp.pop 2048.0
  %v1012 = vmul.f32 %v1010, %v1011
  %v1013 = vsel %vm347, %v700, 0.0
  %v1014 = vsel %vm347, %v701, 0.0
  %v1015 = vadd.f32 %v1013, %v1014
  %v1016 = vsel %vm347, %v702, 0.0
  %v1017 = vadd.f32 %v1015, %v1016
  %v1018 = vsel %vm347, %v703, 0.0
  %v1019 = vadd.f32 %v1017, %v1018
  %v1020 = vsel %vm347, %v704, 0.0
  %v1021 = vadd.f32 %v1019, %v1020
  %v1022 = vsel %vm347, %v705, 0.0
  %v1023 = vadd.f32 %v1021, %v1022
  %v1024 = vsel %vm347, %v706, 0.0
  %v1025 = vadd.f32 %v1023, %v1024
  %v1026 = vsel %vm347, %v707, 0.0
  %v1027 = vadd.f32 %v1025, %v1026
  %v1028 = vsel %vm347, %v708, 0.0
  %v1029 = vadd.f32 %v1027, %v1028
  %v1030 = vsel %vm347, %v709, 0.0
  %v1031 = vadd.f32 %v1029, %v1030
  %v1032 = vsel %vm347, %v710, 0.0
  %v1033 = vadd.f32 %v1031, %v1032
  %v1034 = vsel %vm347, %v711, 0.0
  %v1035 = vadd.f32 %v1033, %v1034
  %v1036 = vsel %vm347, %v712, 0.0
  %v1037 = vadd.f32 %v1035, %v1036
  %v1038 = vsel %vm347, %v713, 0.0
  %v1039 = vadd.f32 %v1037, %v1038
  %v1040 = vsel %vm347, %v714, 0.0
  %v1041 = vadd.f32 %v1039, %v1040
  %v1042 = vsel %vm347, %v715, 0.0
  %v1043 = vadd.f32 %v1041, %v1042
  %v1044 = vrot.slane %v1043, 4
  %v1045 = vadd.f32 %v1043, %v1044
  %v1046 = vrot.slane %v1045, 2
  %v1047 = vadd.f32 %v1045, %v1046
  %v1048 = vrot.slane %v1047, 1
  %v1049 = vadd.f32 %v1047, %v1048
  %v1050 = vrcp.pop 128.0
  %v1051 = vmul.f32 %v1049, %v1050
  %v1052 = vadd.f32 %v1051, 1e-10
  %v1053 = vlog2.pop %v1052
  %v1054 = vmul.f32 %v1053, 0.6931472
  %v1055 = vmul.f32 %v1051, %v1054
  %v1056 = vsel %vm347, %v1055, 0.0
  %1057 = vadd.xlane.f32.xlu0 %v1056
  %v1058 = vpop.xlane.xlu0 %1057
  %v1059 = vsub.f32 0.0, %v1058
  %v1060 = vmul.f32 %v1059, 1.442695
  %v1061 = vpow.pop %v1060
  %1062 = vst.msk [vmem:[#allocation2] sm:$0xff] %vm55, 0.0
  %vm1063 = vcmask 123904
  %1064 = vst.msk [vmem:[#allocation2 + $0x8] sm:$0x3] %vm1063, 0.0
  %1065 = vst.msk [vmem:[#allocation2 + $0xa0] sm:$0xff] %vm55, 0.0
  %1066 = vst.msk [vmem:[#allocation2 + $0xa8] sm:$0x3] %vm1063, 0.0
  %s1067 = scalar_lea.vmem [#allocation2], 144
  %1068 = vst.msk [vmem:[%s1067] sm:$0xff] %vm55, 0.0
  %1069 = vst.msk [vmem:[%s1067 + $0x8] sm:$0x3] %vm1063, 0.0
  %1070 = vst.msk [vmem:[%s1067 + $0xa0] sm:$0xff] %vm55, 0.0
  %1071 = vst.msk [vmem:[%s1067 + $0xa8] sm:$0x3] %vm1063, 0.0
  %vm1072 = vcmask 122880
  %1073 = vst.msk [vmem:[#allocation2] sm:$0x1] %vm1072, 0.0
  %1074 = vst.msk [vmem:[#allocation2 + $0x10] sm:$0x1] %vm1072, 0.0
  %1075 = vst.msk [vmem:[#allocation2 + $0x20] sm:$0x1] %vm1072, 0.0
  %1076 = vst.msk [vmem:[#allocation2 + $0x30] sm:$0x1] %vm1072, 0.0
  %1077 = vst.msk [vmem:[#allocation2 + $0x40] sm:$0x1] %vm1072, 0.0
  %1078 = vst.msk [vmem:[#allocation2 + $0x50] sm:$0x1] %vm1072, 0.0
  %1079 = vst.msk [vmem:[#allocation2 + $0x60] sm:$0x1] %vm1072, 0.0
  %1080 = vst.msk [vmem:[#allocation2 + $0x70] sm:$0x1] %vm1072, 0.0
  %1081 = vst.msk [vmem:[#allocation2 + $0x80] sm:$0x1] %vm1072, 0.0
  %1082 = vst.msk [vmem:[#allocation2 + $0x90] sm:$0x1] %vm1072, 0.0
  %1083 = vst.msk [vmem:[#allocation2 + $0xa0] sm:$0x1] %vm1072, 0.0
  %1084 = vst.msk [vmem:[#allocation2 + $0xb0] sm:$0x1] %vm1072, 0.0
  %1085 = vst.msk [vmem:[#allocation2 + $0xc0] sm:$0x1] %vm1072, 0.0
  %1086 = vst.msk [vmem:[#allocation2 + $0xd0] sm:$0x1] %vm1072, 0.0
  %1087 = vst.msk [vmem:[#allocation2 + $0xe0] sm:$0x1] %vm1072, 0.0
  %1088 = vst.msk [vmem:[#allocation2 + $0xf0] sm:$0x1] %vm1072, 0.0
  %1089 = vst.msk [vmem:[#allocation2 + $0x100] sm:$0x1] %vm1072, 0.0
  %1090 = vst.msk [vmem:[#allocation2 + $0x110] sm:$0x1] %vm1072, 0.0
  %1091 = vst.msk [vmem:[#allocation2 + $0x120] sm:$0x1] %vm1072, 0.0
  %1092 = vst.msk [vmem:[#allocation2 + $0x130] sm:$0x1] %vm1072, 0.0
  %1093 = vst.msk [vmem:[#allocation2 + $0x9] sm:$0x1] %vm1072, 0.0
  %1094 = vst.msk [vmem:[#allocation2 + $0x19] sm:$0x1] %vm1072, 0.0
  %1095 = vst.msk [vmem:[#allocation2 + $0x29] sm:$0x1] %vm1072, 0.0
  %1096 = vst.msk [vmem:[#allocation2 + $0x39] sm:$0x1] %vm1072, 0.0
  %1097 = vst.msk [vmem:[#allocation2 + $0x49] sm:$0x1] %vm1072, 0.0
  %1098 = vst.msk [vmem:[#allocation2 + $0x59] sm:$0x1] %vm1072, 0.0
  %1099 = vst.msk [vmem:[#allocation2 + $0x69] sm:$0x1] %vm1072, 0.0
  %1100 = vst.msk [vmem:[#allocation2 + $0x79] sm:$0x1] %vm1072, 0.0
  %1101 = vst.msk [vmem:[#allocation2 + $0x89] sm:$0x1] %vm1072, 0.0
  %1102 = vst.msk [vmem:[#allocation2 + $0x99] sm:$0x1] %vm1072, 0.0
  %1103 = vst.msk [vmem:[#allocation2 + $0xa9] sm:$0x1] %vm1072, 0.0
  %1104 = vst.msk [vmem:[#allocation2 + $0xb9] sm:$0x1] %vm1072, 0.0
  %1105 = vst.msk [vmem:[#allocation2 + $0xc9] sm:$0x1] %vm1072, 0.0
  %1106 = vst.msk [vmem:[#allocation2 + $0xd9] sm:$0x1] %vm1072, 0.0
  %1107 = vst.msk [vmem:[#allocation2 + $0xe9] sm:$0x1] %vm1072, 0.0
  %1108 = vst.msk [vmem:[#allocation2 + $0xf9] sm:$0x1] %vm1072, 0.0
  %1109 = vst.msk [vmem:[#allocation2 + $0x109] sm:$0x1] %vm1072, 0.0
  %1110 = vst.msk [vmem:[#allocation2 + $0x119] sm:$0x1] %vm1072, 0.0
  %1111 = vst.msk [vmem:[#allocation2 + $0x129] sm:$0x1] %vm1072, 0.0
  %1112 = vst.msk [vmem:[#allocation2 + $0x139] sm:$0x1] %vm1072, 0.0
  %s1113 = scalar_lea.vmem [#allocation2], 16
  %1114 = vst.msk [vmem:[%s1113 + $0x1] sm:$0xff] %vm55, %v831
  %1115 = vst.msk [vmem:[%s1113 + $0x11] sm:$0xff] %vm55, %v836
  %1116 = vst.msk [vmem:[%s1113 + $0x21] sm:$0xff] %vm55, %v841
  %1117 = vst.msk [vmem:[%s1113 + $0x31] sm:$0xff] %vm55, %v846
  %1118 = vst.msk [vmem:[%s1113 + $0x41] sm:$0xff] %vm55, %v851
  %1119 = vst.msk [vmem:[%s1113 + $0x51] sm:$0xff] %vm55, %v856
  %1120 = vst.msk [vmem:[%s1113 + $0x61] sm:$0xff] %vm55, %v861
  %1121 = vst.msk [vmem:[%s1113 + $0x71] sm:$0xff] %vm55, %v866
  %1122 = vst.msk [vmem:[%s1113 + $0xa1] sm:$0xff] %vm55, %v871
  %1123 = vst.msk [vmem:[%s1113 + $0xb1] sm:$0xff] %vm55, %v876
  %1124 = vst.msk [vmem:[%s1113 + $0xc1] sm:$0xff] %vm55, %v881
  %1125 = vst.msk [vmem:[%s1113 + $0xd1] sm:$0xff] %vm55, %v886
  %1126 = vst.msk [vmem:[%s1113 + $0xe1] sm:$0xff] %vm55, %v891
  %1127 = vst.msk [vmem:[%s1113 + $0xf1] sm:$0xff] %vm55, %v896
  %1128 = vst.msk [vmem:[%s1113 + $0x101] sm:$0xff] %vm55, %v901
  %1129 = vst.msk [vmem:[%s1113 + $0x111] sm:$0xff] %vm55, %v906
  %v1130 = vld [vmem:[%s2] sm:$0xff]
  %v1131 = vld [vmem:[%s2 + $0x8] sm:$0xff]
  %v1132 = vld [vmem:[%s2 + $0x10] sm:$0xff]
  %v1133 = vld [vmem:[%s2 + $0x18] sm:$0xff]
  %v1134 = vld [vmem:[%s2 + $0x20] sm:$0xff]
  %v1135 = vld [vmem:[%s2 + $0x28] sm:$0xff]
  %v1136 = vld [vmem:[%s2 + $0x30] sm:$0xff]
  %v1137 = vld [vmem:[%s2 + $0x38] sm:$0xff]
  %v1138 = vld [vmem:[%s2 + $0x40] sm:$0xff]
  %v1139 = vld [vmem:[%s2 + $0x48] sm:$0xff]
  %v1140 = vld [vmem:[%s2 + $0x50] sm:$0xff]
  %v1141 = vld [vmem:[%s2 + $0x58] sm:$0xff]
  %v1142 = vld [vmem:[%s2 + $0x60] sm:$0xff]
  %v1143 = vld [vmem:[%s2 + $0x68] sm:$0xff]
  %v1144 = vld [vmem:[%s2 + $0x70] sm:$0xff]
  %v1145 = vld [vmem:[%s2 + $0x78] sm:$0xff]
  %v1146 = vld [vmem:[%s2 + $0x80] sm:$0xff]
  %v1147 = vld [vmem:[%s2 + $0x88] sm:$0xff]
  %v1148 = vld [vmem:[#allocation2] sm:$0xff]
  %v1149 = vld [vmem:[#allocation2 + $0x10] sm:$0xff]
  %v1150 = vld [vmem:[#allocation2 + $0x20] sm:$0xff]
  %v1151 = vld [vmem:[#allocation2 + $0x30] sm:$0xff]
  %v1152 = vld [vmem:[#allocation2 + $0x40] sm:$0xff]
  %v1153 = vld [vmem:[#allocation2 + $0x50] sm:$0xff]
  %v1154 = vld [vmem:[#allocation2 + $0x60] sm:$0xff]
  %v1155 = vld [vmem:[#allocation2 + $0x70] sm:$0xff]
  %v1156 = vld [vmem:[#allocation2 + $0xa0] sm:$0xff]
  %v1157 = vld [vmem:[#allocation2 + $0xb0] sm:$0xff]
  %v1158 = vld [vmem:[#allocation2 + $0xc0] sm:$0xff]
  %v1159 = vld [vmem:[#allocation2 + $0xd0] sm:$0xff]
  %v1160 = vld [vmem:[#allocation2 + $0xe0] sm:$0xff]
  %v1161 = vld [vmem:[#allocation2 + $0xf0] sm:$0xff]
  %v1162 = vld [vmem:[#allocation2 + $0x100] sm:$0xff]
  %v1163 = vld [vmem:[#allocation2 + $0x110] sm:$0xff]
  %1164 = vst.msk [vmem:[#allocation5] sm:$0xff] %vm55, %v1148
  %1165 = vst.msk [vmem:[#allocation5 + $0x28] sm:$0xff] %vm55, %v1149
  %1166 = vst.msk [vmem:[#allocation5 + $0x50] sm:$0xff] %vm55, %v1150
  %1167 = vst.msk [vmem:[#allocation5 + $0x78] sm:$0xff] %vm55, %v1151
  %1168 = vst.msk [vmem:[#allocation5 + $0xa0] sm:$0xff] %vm55, %v1152
  %1169 = vst.msk [vmem:[#allocation5 + $0xc8] sm:$0xff] %vm55, %v1153
  %1170 = vst.msk [vmem:[#allocation5 + $0xf0] sm:$0xff] %vm55, %v1154
  %1171 = vst.msk [vmem:[#allocation5 + $0x118] sm:$0xff] %vm55, %v1155
  %1172 = vst.msk [vmem:[#allocation5 + $0x140] sm:$0xff] %vm55, %v1156
  %1173 = vst.msk [vmem:[#allocation5 + $0x168] sm:$0xff] %vm55, %v1157
  %1174 = vst.msk [vmem:[#allocation5 + $0x190] sm:$0xff] %vm55, %v1158
  %1175 = vst.msk [vmem:[#allocation5 + $0x1b8] sm:$0xff] %vm55, %v1159
  %1176 = vst.msk [vmem:[#allocation5 + $0x1e0] sm:$0xff] %vm55, %v1160
  %1177 = vst.msk [vmem:[#allocation5 + $0x208] sm:$0xff] %vm55, %v1161
  %1178 = vst.msk [vmem:[#allocation5 + $0x230] sm:$0xff] %vm55, %v1162
  %1179 = vst.msk [vmem:[#allocation5 + $0x258] sm:$0xff] %vm55, %v1163
  %v1180 = vld [vmem:[#allocation2 + $0x1] sm:$0xff]
  %v1181 = vld [vmem:[#allocation2 + $0x11] sm:$0xff]
  %v1182 = vld [vmem:[#allocation2 + $0x21] sm:$0xff]
  %v1183 = vld [vmem:[#allocation2 + $0x31] sm:$0xff]
  %v1184 = vld [vmem:[#allocation2 + $0x41] sm:$0xff]
  %v1185 = vld [vmem:[#allocation2 + $0x51] sm:$0xff]
  %v1186 = vld [vmem:[#allocation2 + $0x61] sm:$0xff]
  %v1187 = vld [vmem:[#allocation2 + $0x71] sm:$0xff]
  %v1188 = vld [vmem:[#allocation2 + $0xa1] sm:$0xff]
  %v1189 = vld [vmem:[#allocation2 + $0xb1] sm:$0xff]
  %v1190 = vld [vmem:[#allocation2 + $0xc1] sm:$0xff]
  %v1191 = vld [vmem:[#allocation2 + $0xd1] sm:$0xff]
  %v1192 = vld [vmem:[#allocation2 + $0xe1] sm:$0xff]
  %v1193 = vld [vmem:[#allocation2 + $0xf1] sm:$0xff]
  %v1194 = vld [vmem:[#allocation2 + $0x101] sm:$0xff]
  %v1195 = vld [vmem:[#allocation2 + $0x111] sm:$0xff]
  %1212 = vrot.lane.b32.xlu0 %v1180, 16
  %v1213 = vpop.permute.xlu0 %1212
  %1214 = vrot.lane.b32.xlu0 %v1181, 16
  %v1215 = vpop.permute.xlu0 %1214
  %1216 = vrot.lane.b32.xlu0 %v1182, 16
  %v1217 = vpop.permute.xlu0 %1216
  %1218 = vrot.lane.b32.xlu0 %v1183, 16
  %v1219 = vpop.permute.xlu0 %1218
  %1220 = vrot.lane.b32.xlu0 %v1184, 16
  %v1221 = vpop.permute.xlu0 %1220
  %1222 = vrot.lane.b32.xlu0 %v1185, 16
  %v1223 = vpop.permute.xlu0 %1222
  %1224 = vrot.lane.b32.xlu0 %v1186, 16
  %v1225 = vpop.permute.xlu0 %1224
  %1226 = vrot.lane.b32.xlu0 %v1187, 16
  %v1227 = vpop.permute.xlu0 %1226
  %1228 = vrot.lane.b32.xlu0 %v1188, 16
  %v1229 = vpop.permute.xlu0 %1228
  %1230 = vrot.lane.b32.xlu0 %v1189, 16
  %v1231 = vpop.permute.xlu0 %1230
  %1232 = vrot.lane.b32.xlu0 %v1190, 16
  %v1233 = vpop.permute.xlu0 %1232
  %1234 = vrot.lane.b32.xlu0 %v1191, 16
  %v1235 = vpop.permute.xlu0 %1234
  %1236 = vrot.lane.b32.xlu0 %v1192, 16
  %v1237 = vpop.permute.xlu0 %1236
  %1238 = vrot.lane.b32.xlu0 %v1193, 16
  %v1239 = vpop.permute.xlu0 %1238
  %1240 = vrot.lane.b32.xlu0 %v1194, 16
  %v1241 = vpop.permute.xlu0 %1240
  %1242 = vrot.lane.b32.xlu0 %v1195, 16
  %v1243 = vpop.permute.xlu0 %1242
  %vm1260 = vcmask 261248
  %1261 = vst.msk [vmem:[#allocation5] sm:$0xff] %vm1260, %v1213
  %1262 = vst.msk [vmem:[#allocation5 + $0x28] sm:$0xff] %vm1260, %v1215
  %1263 = vst.msk [vmem:[#allocation5 + $0x50] sm:$0xff] %vm1260, %v1217
  %1264 = vst.msk [vmem:[#allocation5 + $0x78] sm:$0xff] %vm1260, %v1219
  %1265 = vst.msk [vmem:[#allocation5 + $0xa0] sm:$0xff] %vm1260, %v1221
  %1266 = vst.msk [vmem:[#allocation5 + $0xc8] sm:$0xff] %vm1260, %v1223
  %1267 = vst.msk [vmem:[#allocation5 + $0xf0] sm:$0xff] %vm1260, %v1225
  %1268 = vst.msk [vmem:[#allocation5 + $0x118] sm:$0xff] %vm1260, %v1227
  %1269 = vst.msk [vmem:[#allocation5 + $0x140] sm:$0xff] %vm1260, %v1229
  %1270 = vst.msk [vmem:[#allocation5 + $0x168] sm:$0xff] %vm1260, %v1231
  %1271 = vst.msk [vmem:[#allocation5 + $0x190] sm:$0xff] %vm1260, %v1233
  %1272 = vst.msk [vmem:[#allocation5 + $0x1b8] sm:$0xff] %vm1260, %v1235
  %1273 = vst.msk [vmem:[#allocation5 + $0x1e0] sm:$0xff] %vm1260, %v1237
  %1274 = vst.msk [vmem:[#allocation5 + $0x208] sm:$0xff] %vm1260, %v1239
  %1275 = vst.msk [vmem:[#allocation5 + $0x230] sm:$0xff] %vm1260, %v1241
  %1276 = vst.msk [vmem:[#allocation5 + $0x258] sm:$0xff] %vm1260, %v1243
  %v1277 = vld [vmem:[#allocation2 + $0x2] sm:$0xff]
  %v1278 = vld [vmem:[#allocation2 + $0x12] sm:$0xff]
  %v1279 = vld [vmem:[#allocation2 + $0x22] sm:$0xff]
  %v1280 = vld [vmem:[#allocation2 + $0x32] sm:$0xff]
  %v1281 = vld [vmem:[#allocation2 + $0x42] sm:$0xff]
  %v1282 = vld [vmem:[#allocation2 + $0x52] sm:$0xff]
  %v1283 = vld [vmem:[#allocation2 + $0x62] sm:$0xff]
  %v1284 = vld [vmem:[#allocation2 + $0x72] sm:$0xff]
  %v1285 = vld [vmem:[#allocation2 + $0xa2] sm:$0xff]
  %v1286 = vld [vmem:[#allocation2 + $0xb2] sm:$0xff]
  %v1287 = vld [vmem:[#allocation2 + $0xc2] sm:$0xff]
  %v1288 = vld [vmem:[#allocation2 + $0xd2] sm:$0xff]
  %v1289 = vld [vmem:[#allocation2 + $0xe2] sm:$0xff]
  %v1290 = vld [vmem:[#allocation2 + $0xf2] sm:$0xff]
  %v1291 = vld [vmem:[#allocation2 + $0x102] sm:$0xff]
  %v1292 = vld [vmem:[#allocation2 + $0x112] sm:$0xff]
  %1309 = vrot.lane.b32.xlu0 %v1277, 32
  %v1310 = vpop.permute.xlu0 %1309
  %1311 = vrot.lane.b32.xlu0 %v1278, 32
  %v1312 = vpop.permute.xlu0 %1311
  %1313 = vrot.lane.b32.xlu0 %v1279, 32
  %v1314 = vpop.permute.xlu0 %1313
  %1315 = vrot.lane.b32.xlu0 %v1280, 32
  %v1316 = vpop.permute.xlu0 %1315
  %1317 = vrot.lane.b32.xlu0 %v1281, 32
  %v1318 = vpop.permute.xlu0 %1317
  %1319 = vrot.lane.b32.xlu0 %v1282, 32
  %v1320 = vpop.permute.xlu0 %1319
  %1321 = vrot.lane.b32.xlu0 %v1283, 32
  %v1322 = vpop.permute.xlu0 %1321
  %1323 = vrot.lane.b32.xlu0 %v1284, 32
  %v1324 = vpop.permute.xlu0 %1323
  %1325 = vrot.lane.b32.xlu0 %v1285, 32
  %v1326 = vpop.permute.xlu0 %1325
  %1327 = vrot.lane.b32.xlu0 %v1286, 32
  %v1328 = vpop.permute.xlu0 %1327
  %1329 = vrot.lane.b32.xlu0 %v1287, 32
  %v1330 = vpop.permute.xlu0 %1329
  %1331 = vrot.lane.b32.xlu0 %v1288, 32
  %v1332 = vpop.permute.xlu0 %1331
  %1333 = vrot.lane.b32.xlu0 %v1289, 32
  %v1334 = vpop.permute.xlu0 %1333
  %1335 = vrot.lane.b32.xlu0 %v1290, 32
  %v1336 = vpop.permute.xlu0 %1335
  %1337 = vrot.lane.b32.xlu0 %v1291, 32
  %v1338 = vpop.permute.xlu0 %1337
  %1339 = vrot.lane.b32.xlu0 %v1292, 32
  %v1340 = vpop.permute.xlu0 %1339
  %vm1357 = vcmask 392448
  %1358 = vst.msk [vmem:[#allocation5] sm:$0xff] %vm1357, %v1310
  %1359 = vst.msk [vmem:[#allocation5 + $0x28] sm:$0xff] %vm1357, %v1312
  %1360 = vst.msk [vmem:[#allocation5 + $0x50] sm:$0xff] %vm1357, %v1314
  %1361 = vst.msk [vmem:[#allocation5 + $0x78] sm:$0xff] %vm1357, %v1316
  %1362 = vst.msk [vmem:[#allocation5 + $0xa0] sm:$0xff] %vm1357, %v1318
  %1363 = vst.msk [vmem:[#allocation5 + $0xc8] sm:$0xff] %vm1357, %v1320
  %1364 = vst.msk [vmem:[#allocation5 + $0xf0] sm:$0xff] %vm1357, %v1322
  %1365 = vst.msk [vmem:[#allocation5 + $0x118] sm:$0xff] %vm1357, %v1324
  %1366 = vst.msk [vmem:[#allocation5 + $0x140] sm:$0xff] %vm1357, %v1326
  %1367 = vst.msk [vmem:[#allocation5 + $0x168] sm:$0xff] %vm1357, %v1328
  %1368 = vst.msk [vmem:[#allocation5 + $0x190] sm:$0xff] %vm1357, %v1330
  %1369 = vst.msk [vmem:[#allocation5 + $0x1b8] sm:$0xff] %vm1357, %v1332
  %1370 = vst.msk [vmem:[#allocation5 + $0x1e0] sm:$0xff] %vm1357, %v1334
  %1371 = vst.msk [vmem:[#allocation5 + $0x208] sm:$0xff] %vm1357, %v1336
  %1372 = vst.msk [vmem:[#allocation5 + $0x230] sm:$0xff] %vm1357, %v1338
  %1373 = vst.msk [vmem:[#allocation5 + $0x258] sm:$0xff] %vm1357, %v1340
  %v1374 = vld [vmem:[%s1113] sm:$0xff]
  %v1375 = vld [vmem:[%s1113 + $0x10] sm:$0xff]
  %v1376 = vld [vmem:[%s1113 + $0x20] sm:$0xff]
  %v1377 = vld [vmem:[%s1113 + $0x30] sm:$0xff]
  %v1378 = vld [vmem:[%s1113 + $0x40] sm:$0xff]
  %v1379 = vld [vmem:[%s1113 + $0x50] sm:$0xff]
  %v1380 = vld [vmem:[%s1113 + $0x60] sm:$0xff]
  %v1381 = vld [vmem:[%s1113 + $0x70] sm:$0xff]
  %v1382 = vld [vmem:[%s1113 + $0xa0] sm:$0xff]
  %v1383 = vld [vmem:[%s1113 + $0xb0] sm:$0xff]
  %v1384 = vld [vmem:[%s1113 + $0xc0] sm:$0xff]
  %v1385 = vld [vmem:[%s1113 + $0xd0] sm:$0xff]
  %v1386 = vld [vmem:[%s1113 + $0xe0] sm:$0xff]
  %v1387 = vld [vmem:[%s1113 + $0xf0] sm:$0xff]
  %v1388 = vld [vmem:[%s1113 + $0x100] sm:$0xff]
  %v1389 = vld [vmem:[%s1113 + $0x110] sm:$0xff]
  %1406 = vrot.lane.b32.xlu0 %v1374, 48
  %v1407 = vpop.permute.xlu0 %1406
  %1408 = vrot.lane.b32.xlu0 %v1375, 48
  %v1409 = vpop.permute.xlu0 %1408
  %1410 = vrot.lane.b32.xlu0 %v1376, 48
  %v1411 = vpop.permute.xlu0 %1410
  %1412 = vrot.lane.b32.xlu0 %v1377, 48
  %v1413 = vpop.permute.xlu0 %1412
  %1414 = vrot.lane.b32.xlu0 %v1378, 48
  %v1415 = vpop.permute.xlu0 %1414
  %1416 = vrot.lane.b32.xlu0 %v1379, 48
  %v1417 = vpop.permute.xlu0 %1416
  %1418 = vrot.lane.b32.xlu0 %v1380, 48
  %v1419 = vpop.permute.xlu0 %1418
  %1420 = vrot.lane.b32.xlu0 %v1381, 48
  %v1421 = vpop.permute.xlu0 %1420
  %1422 = vrot.lane.b32.xlu0 %v1382, 48
  %v1423 = vpop.permute.xlu0 %1422
  %1424 = vrot.lane.b32.xlu0 %v1383, 48
  %v1425 = vpop.permute.xlu0 %1424
  %1426 = vrot.lane.b32.xlu0 %v1384, 48
  %v1427 = vpop.permute.xlu0 %1426
  %1428 = vrot.lane.b32.xlu0 %v1385, 48
  %v1429 = vpop.permute.xlu0 %1428
  %1430 = vrot.lane.b32.xlu0 %v1386, 48
  %v1431 = vpop.permute.xlu0 %1430
  %1432 = vrot.lane.b32.xlu0 %v1387, 48
  %v1433 = vpop.permute.xlu0 %1432
  %1434 = vrot.lane.b32.xlu0 %v1388, 48
  %v1435 = vpop.permute.xlu0 %1434
  %1436 = vrot.lane.b32.xlu0 %v1389, 48
  %v1437 = vpop.permute.xlu0 %1436
  %vm1454 = vcmask 523648
  %1455 = vst.msk [vmem:[#allocation5] sm:$0xff] %vm1454, %v1407
  %1456 = vst.msk [vmem:[#allocation5 + $0x28] sm:$0xff] %vm1454, %v1409
  %1457 = vst.msk [vmem:[#allocation5 + $0x50] sm:$0xff] %vm1454, %v1411
  %1458 = vst.msk [vmem:[#allocation5 + $0x78] sm:$0xff] %vm1454, %v1413
  %1459 = vst.msk [vmem:[#allocation5 + $0xa0] sm:$0xff] %vm1454, %v1415
  %1460 = vst.msk [vmem:[#allocation5 + $0xc8] sm:$0xff] %vm1454, %v1417
  %1461 = vst.msk [vmem:[#allocation5 + $0xf0] sm:$0xff] %vm1454, %v1419
  %1462 = vst.msk [vmem:[#allocation5 + $0x118] sm:$0xff] %vm1454, %v1421
  %1463 = vst.msk [vmem:[#allocation5 + $0x140] sm:$0xff] %vm1454, %v1423
  %1464 = vst.msk [vmem:[#allocation5 + $0x168] sm:$0xff] %vm1454, %v1425
  %1465 = vst.msk [vmem:[#allocation5 + $0x190] sm:$0xff] %vm1454, %v1427
  %1466 = vst.msk [vmem:[#allocation5 + $0x1b8] sm:$0xff] %vm1454, %v1429
  %1467 = vst.msk [vmem:[#allocation5 + $0x1e0] sm:$0xff] %vm1454, %v1431
  %1468 = vst.msk [vmem:[#allocation5 + $0x208] sm:$0xff] %vm1454, %v1433
  %1469 = vst.msk [vmem:[#allocation5 + $0x230] sm:$0xff] %vm1454, %v1435
  %1470 = vst.msk [vmem:[#allocation5 + $0x258] sm:$0xff] %vm1454, %v1437
  %v1471 = vld [vmem:[%s1113 + $0x1] sm:$0xff]
  %v1472 = vld [vmem:[%s1113 + $0x11] sm:$0xff]
  %v1473 = vld [vmem:[%s1113 + $0x21] sm:$0xff]
  %v1474 = vld [vmem:[%s1113 + $0x31] sm:$0xff]
  %v1475 = vld [vmem:[%s1113 + $0x41] sm:$0xff]
  %v1476 = vld [vmem:[%s1113 + $0x51] sm:$0xff]
  %v1477 = vld [vmem:[%s1113 + $0x61] sm:$0xff]
  %v1478 = vld [vmem:[%s1113 + $0x71] sm:$0xff]
  %v1479 = vld [vmem:[%s1113 + $0xa1] sm:$0xff]
  %v1480 = vld [vmem:[%s1113 + $0xb1] sm:$0xff]
  %v1481 = vld [vmem:[%s1113 + $0xc1] sm:$0xff]
  %v1482 = vld [vmem:[%s1113 + $0xd1] sm:$0xff]
  %v1483 = vld [vmem:[%s1113 + $0xe1] sm:$0xff]
  %v1484 = vld [vmem:[%s1113 + $0xf1] sm:$0xff]
  %v1485 = vld [vmem:[%s1113 + $0x101] sm:$0xff]
  %v1486 = vld [vmem:[%s1113 + $0x111] sm:$0xff]
  %1503 = vrot.lane.b32.xlu0 %v1471, 64
  %v1504 = vpop.permute.xlu0 %1503
  %1505 = vrot.lane.b32.xlu0 %v1472, 64
  %v1506 = vpop.permute.xlu0 %1505
  %1507 = vrot.lane.b32.xlu0 %v1473, 64
  %v1508 = vpop.permute.xlu0 %1507
  %1509 = vrot.lane.b32.xlu0 %v1474, 64
  %v1510 = vpop.permute.xlu0 %1509
  %1511 = vrot.lane.b32.xlu0 %v1475, 64
  %v1512 = vpop.permute.xlu0 %1511
  %1513 = vrot.lane.b32.xlu0 %v1476, 64
  %v1514 = vpop.permute.xlu0 %1513
  %1515 = vrot.lane.b32.xlu0 %v1477, 64
  %v1516 = vpop.permute.xlu0 %1515
  %1517 = vrot.lane.b32.xlu0 %v1478, 64
  %v1518 = vpop.permute.xlu0 %1517
  %1519 = vrot.lane.b32.xlu0 %v1479, 64
  %v1520 = vpop.permute.xlu0 %1519
  %1521 = vrot.lane.b32.xlu0 %v1480, 64
  %v1522 = vpop.permute.xlu0 %1521
  %1523 = vrot.lane.b32.xlu0 %v1481, 64
  %v1524 = vpop.permute.xlu0 %1523
  %1525 = vrot.lane.b32.xlu0 %v1482, 64
  %v1526 = vpop.permute.xlu0 %1525
  %1527 = vrot.lane.b32.xlu0 %v1483, 64
  %v1528 = vpop.permute.xlu0 %1527
  %1529 = vrot.lane.b32.xlu0 %v1484, 64
  %v1530 = vpop.permute.xlu0 %1529
  %1531 = vrot.lane.b32.xlu0 %v1485, 64
  %v1532 = vpop.permute.xlu0 %1531
  %1533 = vrot.lane.b32.xlu0 %v1486, 64
  %v1534 = vpop.permute.xlu0 %1533
  %vm1551 = vcmask 654848
  %1552 = vst.msk [vmem:[#allocation5] sm:$0xff] %vm1551, %v1504
  %1553 = vst.msk [vmem:[#allocation5 + $0x28] sm:$0xff] %vm1551, %v1506
  %1554 = vst.msk [vmem:[#allocation5 + $0x50] sm:$0xff] %vm1551, %v1508
  %1555 = vst.msk [vmem:[#allocation5 + $0x78] sm:$0xff] %vm1551, %v1510
  %1556 = vst.msk [vmem:[#allocation5 + $0xa0] sm:$0xff] %vm1551, %v1512
  %1557 = vst.msk [vmem:[#allocation5 + $0xc8] sm:$0xff] %vm1551, %v1514
  %1558 = vst.msk [vmem:[#allocation5 + $0xf0] sm:$0xff] %vm1551, %v1516
  %1559 = vst.msk [vmem:[#allocation5 + $0x118] sm:$0xff] %vm1551, %v1518
  %1560 = vst.msk [vmem:[#allocation5 + $0x140] sm:$0xff] %vm1551, %v1520
  %1561 = vst.msk [vmem:[#allocation5 + $0x168] sm:$0xff] %vm1551, %v1522
  %1562 = vst.msk [vmem:[#allocation5 + $0x190] sm:$0xff] %vm1551, %v1524
  %1563 = vst.msk [vmem:[#allocation5 + $0x1b8] sm:$0xff] %vm1551, %v1526
  %1564 = vst.msk [vmem:[#allocation5 + $0x1e0] sm:$0xff] %vm1551, %v1528
  %1565 = vst.msk [vmem:[#allocation5 + $0x208] sm:$0xff] %vm1551, %v1530
  %1566 = vst.msk [vmem:[#allocation5 + $0x230] sm:$0xff] %vm1551, %v1532
  %1567 = vst.msk [vmem:[#allocation5 + $0x258] sm:$0xff] %vm1551, %v1534
  %v1568 = vld [vmem:[%s1113 + $0x2] sm:$0xff]
  %v1569 = vld [vmem:[%s1113 + $0x12] sm:$0xff]
  %v1570 = vld [vmem:[%s1113 + $0x22] sm:$0xff]
  %v1571 = vld [vmem:[%s1113 + $0x32] sm:$0xff]
  %v1572 = vld [vmem:[%s1113 + $0x42] sm:$0xff]
  %v1573 = vld [vmem:[%s1113 + $0x52] sm:$0xff]
  %v1574 = vld [vmem:[%s1113 + $0x62] sm:$0xff]
  %v1575 = vld [vmem:[%s1113 + $0x72] sm:$0xff]
  %v1576 = vld [vmem:[%s1113 + $0xa2] sm:$0xff]
  %v1577 = vld [vmem:[%s1113 + $0xb2] sm:$0xff]
  %v1578 = vld [vmem:[%s1113 + $0xc2] sm:$0xff]
  %v1579 = vld [vmem:[%s1113 + $0xd2] sm:$0xff]
  %v1580 = vld [vmem:[%s1113 + $0xe2] sm:$0xff]
  %v1581 = vld [vmem:[%s1113 + $0xf2] sm:$0xff]
  %v1582 = vld [vmem:[%s1113 + $0x102] sm:$0xff]
  %v1583 = vld [vmem:[%s1113 + $0x112] sm:$0xff]
  %1600 = vrot.lane.b32.xlu0 %v1568, 80
  %v1601 = vpop.permute.xlu0 %1600
  %1602 = vrot.lane.b32.xlu0 %v1569, 80
  %v1603 = vpop.permute.xlu0 %1602
  %1604 = vrot.lane.b32.xlu0 %v1570, 80
  %v1605 = vpop.permute.xlu0 %1604
  %1606 = vrot.lane.b32.xlu0 %v1571, 80
  %v1607 = vpop.permute.xlu0 %1606
  %1608 = vrot.lane.b32.xlu0 %v1572, 80
  %v1609 = vpop.permute.xlu0 %1608
  %1610 = vrot.lane.b32.xlu0 %v1573, 80
  %v1611 = vpop.permute.xlu0 %1610
  %1612 = vrot.lane.b32.xlu0 %v1574, 80
  %v1613 = vpop.permute.xlu0 %1612
  %1614 = vrot.lane.b32.xlu0 %v1575, 80
  %v1615 = vpop.permute.xlu0 %1614
  %1616 = vrot.lane.b32.xlu0 %v1576, 80
  %v1617 = vpop.permute.xlu0 %1616
  %1618 = vrot.lane.b32.xlu0 %v1577, 80
  %v1619 = vpop.permute.xlu0 %1618
  %1620 = vrot.lane.b32.xlu0 %v1578, 80
  %v1621 = vpop.permute.xlu0 %1620
  %1622 = vrot.lane.b32.xlu0 %v1579, 80
  %v1623 = vpop.permute.xlu0 %1622
  %1624 = vrot.lane.b32.xlu0 %v1580, 80
  %v1625 = vpop.permute.xlu0 %1624
  %1626 = vrot.lane.b32.xlu0 %v1581, 80
  %v1627 = vpop.permute.xlu0 %1626
  %1628 = vrot.lane.b32.xlu0 %v1582, 80
  %v1629 = vpop.permute.xlu0 %1628
  %1630 = vrot.lane.b32.xlu0 %v1583, 80
  %v1631 = vpop.permute.xlu0 %1630
  %vm1648 = vcmask 786048
  %1649 = vst.msk [vmem:[#allocation5] sm:$0xff] %vm1648, %v1601
  %1650 = vst.msk [vmem:[#allocation5 + $0x28] sm:$0xff] %vm1648, %v1603
  %1651 = vst.msk [vmem:[#allocation5 + $0x50] sm:$0xff] %vm1648, %v1605
  %1652 = vst.msk [vmem:[#allocation5 + $0x78] sm:$0xff] %vm1648, %v1607
  %1653 = vst.msk [vmem:[#allocation5 + $0xa0] sm:$0xff] %vm1648, %v1609
  %1654 = vst.msk [vmem:[#allocation5 + $0xc8] sm:$0xff] %vm1648, %v1611
  %1655 = vst.msk [vmem:[#allocation5 + $0xf0] sm:$0xff] %vm1648, %v1613
  %1656 = vst.msk [vmem:[#allocation5 + $0x118] sm:$0xff] %vm1648, %v1615
  %1657 = vst.msk [vmem:[#allocation5 + $0x140] sm:$0xff] %vm1648, %v1617
  %1658 = vst.msk [vmem:[#allocation5 + $0x168] sm:$0xff] %vm1648, %v1619
  %1659 = vst.msk [vmem:[#allocation5 + $0x190] sm:$0xff] %vm1648, %v1621
  %1660 = vst.msk [vmem:[#allocation5 + $0x1b8] sm:$0xff] %vm1648, %v1623
  %1661 = vst.msk [vmem:[#allocation5 + $0x1e0] sm:$0xff] %vm1648, %v1625
  %1662 = vst.msk [vmem:[#allocation5 + $0x208] sm:$0xff] %vm1648, %v1627
  %1663 = vst.msk [vmem:[#allocation5 + $0x230] sm:$0xff] %vm1648, %v1629
  %1664 = vst.msk [vmem:[#allocation5 + $0x258] sm:$0xff] %vm1648, %v1631
  %s1665 = scalar_lea.vmem [#allocation2], 32
  %v1666 = vld [vmem:[%s1665] sm:$0xff]
  %v1667 = vld [vmem:[%s1665 + $0x10] sm:$0xff]
  %v1668 = vld [vmem:[%s1665 + $0x20] sm:$0xff]
  %v1669 = vld [vmem:[%s1665 + $0x30] sm:$0xff]
  %v1670 = vld [vmem:[%s1665 + $0x40] sm:$0xff]
  %v1671 = vld [vmem:[%s1665 + $0x50] sm:$0xff]
  %v1672 = vld [vmem:[%s1665 + $0x60] sm:$0xff]
  %v1673 = vld [vmem:[%s1665 + $0x70] sm:$0xff]
  %v1674 = vld [vmem:[%s1665 + $0xa0] sm:$0xff]
  %v1675 = vld [vmem:[%s1665 + $0xb0] sm:$0xff]
  %v1676 = vld [vmem:[%s1665 + $0xc0] sm:$0xff]
  %v1677 = vld [vmem:[%s1665 + $0xd0] sm:$0xff]
  %v1678 = vld [vmem:[%s1665 + $0xe0] sm:$0xff]
  %v1679 = vld [vmem:[%s1665 + $0xf0] sm:$0xff]
  %v1680 = vld [vmem:[%s1665 + $0x100] sm:$0xff]
  %v1681 = vld [vmem:[%s1665 + $0x110] sm:$0xff]
  %1698 = vrot.lane.b32.xlu0 %v1666, 96
  %v1699 = vpop.permute.xlu0 %1698
  %1700 = vrot.lane.b32.xlu0 %v1667, 96
  %v1701 = vpop.permute.xlu0 %1700
  %1702 = vrot.lane.b32.xlu0 %v1668, 96
  %v1703 = vpop.permute.xlu0 %1702
  %1704 = vrot.lane.b32.xlu0 %v1669, 96
  %v1705 = vpop.permute.xlu0 %1704
  %1706 = vrot.lane.b32.xlu0 %v1670, 96
  %v1707 = vpop.permute.xlu0 %1706
  %1708 = vrot.lane.b32.xlu0 %v1671, 96
  %v1709 = vpop.permute.xlu0 %1708
  %1710 = vrot.lane.b32.xlu0 %v1672, 96
  %v1711 = vpop.permute.xlu0 %1710
  %1712 = vrot.lane.b32.xlu0 %v1673, 96
  %v1713 = vpop.permute.xlu0 %1712
  %1714 = vrot.lane.b32.xlu0 %v1674, 96
  %v1715 = vpop.permute.xlu0 %1714
  %1716 = vrot.lane.b32.xlu0 %v1675, 96
  %v1717 = vpop.permute.xlu0 %1716
  %1718 = vrot.lane.b32.xlu0 %v1676, 96
  %v1719 = vpop.permute.xlu0 %1718
  %1720 = vrot.lane.b32.xlu0 %v1677, 96
  %v1721 = vpop.permute.xlu0 %1720
  %1722 = vrot.lane.b32.xlu0 %v1678, 96
  %v1723 = vpop.permute.xlu0 %1722
  %1724 = vrot.lane.b32.xlu0 %v1679, 96
  %v1725 = vpop.permute.xlu0 %1724
  %1726 = vrot.lane.b32.xlu0 %v1680, 96
  %v1727 = vpop.permute.xlu0 %1726
  %1728 = vrot.lane.b32.xlu0 %v1681, 96
  %v1729 = vpop.permute.xlu0 %1728
  %vm1746 = vcmask 917248
  %1747 = vst.msk [vmem:[#allocation5] sm:$0xff] %vm1746, %v1699
  %1748 = vst.msk [vmem:[#allocation5 + $0x28] sm:$0xff] %vm1746, %v1701
  %1749 = vst.msk [vmem:[#allocation5 + $0x50] sm:$0xff] %vm1746, %v1703
  %1750 = vst.msk [vmem:[#allocation5 + $0x78] sm:$0xff] %vm1746, %v1705
  %1751 = vst.msk [vmem:[#allocation5 + $0xa0] sm:$0xff] %vm1746, %v1707
  %1752 = vst.msk [vmem:[#allocation5 + $0xc8] sm:$0xff] %vm1746, %v1709
  %1753 = vst.msk [vmem:[#allocation5 + $0xf0] sm:$0xff] %vm1746, %v1711
  %1754 = vst.msk [vmem:[#allocation5 + $0x118] sm:$0xff] %vm1746, %v1713
  %1755 = vst.msk [vmem:[#allocation5 + $0x140] sm:$0xff] %vm1746, %v1715
  %1756 = vst.msk [vmem:[#allocation5 + $0x168] sm:$0xff] %vm1746, %v1717
  %1757 = vst.msk [vmem:[#allocation5 + $0x190] sm:$0xff] %vm1746, %v1719
  %1758 = vst.msk [vmem:[#allocation5 + $0x1b8] sm:$0xff] %vm1746, %v1721
  %1759 = vst.msk [vmem:[#allocation5 + $0x1e0] sm:$0xff] %vm1746, %v1723
  %1760 = vst.msk [vmem:[#allocation5 + $0x208] sm:$0xff] %vm1746, %v1725
  %1761 = vst.msk [vmem:[#allocation5 + $0x230] sm:$0xff] %vm1746, %v1727
  %1762 = vst.msk [vmem:[#allocation5 + $0x258] sm:$0xff] %vm1746, %v1729
  %v1763 = vld [vmem:[%s1665 + $0x1] sm:$0xff]
  %v1764 = vld [vmem:[%s1665 + $0x11] sm:$0xff]
  %v1765 = vld [vmem:[%s1665 + $0x21] sm:$0xff]
  %v1766 = vld [vmem:[%s1665 + $0x31] sm:$0xff]
  %v1767 = vld [vmem:[%s1665 + $0x41] sm:$0xff]
  %v1768 = vld [vmem:[%s1665 + $0x51] sm:$0xff]
  %v1769 = vld [vmem:[%s1665 + $0x61] sm:$0xff]
  %v1770 = vld [vmem:[%s1665 + $0x71] sm:$0xff]
  %v1771 = vld [vmem:[%s1665 + $0xa1] sm:$0xff]
  %v1772 = vld [vmem:[%s1665 + $0xb1] sm:$0xff]
  %v1773 = vld [vmem:[%s1665 + $0xc1] sm:$0xff]
  %v1774 = vld [vmem:[%s1665 + $0xd1] sm:$0xff]
  %v1775 = vld [vmem:[%s1665 + $0xe1] sm:$0xff]
  %v1776 = vld [vmem:[%s1665 + $0xf1] sm:$0xff]
  %v1777 = vld [vmem:[%s1665 + $0x101] sm:$0xff]
  %v1778 = vld [vmem:[%s1665 + $0x111] sm:$0xff]
  %1795 = vrot.lane.b32.xlu0 %v1763, 112
  %v1796 = vpop.permute.xlu0 %1795
  %1797 = vrot.lane.b32.xlu0 %v1764, 112
  %v1798 = vpop.permute.xlu0 %1797
  %1799 = vrot.lane.b32.xlu0 %v1765, 112
  %v1800 = vpop.permute.xlu0 %1799
  %1801 = vrot.lane.b32.xlu0 %v1766, 112
  %v1802 = vpop.permute.xlu0 %1801
  %1803 = vrot.lane.b32.xlu0 %v1767, 112
  %v1804 = vpop.permute.xlu0 %1803
  %1805 = vrot.lane.b32.xlu0 %v1768, 112
  %v1806 = vpop.permute.xlu0 %1805
  %1807 = vrot.lane.b32.xlu0 %v1769, 112
  %v1808 = vpop.permute.xlu0 %1807
  %1809 = vrot.lane.b32.xlu0 %v1770, 112
  %v1810 = vpop.permute.xlu0 %1809
  %1811 = vrot.lane.b32.xlu0 %v1771, 112
  %v1812 = vpop.permute.xlu0 %1811
  %1813 = vrot.lane.b32.xlu0 %v1772, 112
  %v1814 = vpop.permute.xlu0 %1813
  %1815 = vrot.lane.b32.xlu0 %v1773, 112
  %v1816 = vpop.permute.xlu0 %1815
  %1817 = vrot.lane.b32.xlu0 %v1774, 112
  %v1818 = vpop.permute.xlu0 %1817
  %1819 = vrot.lane.b32.xlu0 %v1775, 112
  %v1820 = vpop.permute.xlu0 %1819
  %1821 = vrot.lane.b32.xlu0 %v1776, 112
  %v1822 = vpop.permute.xlu0 %1821
  %1823 = vrot.lane.b32.xlu0 %v1777, 112
  %v1824 = vpop.permute.xlu0 %1823
  %1825 = vrot.lane.b32.xlu0 %v1778, 112
  %v1826 = vpop.permute.xlu0 %1825
  %vm1843 = vcmask 1048448
  %1844 = vst.msk [vmem:[#allocation5] sm:$0xff] %vm1843, %v1796
  %1845 = vst.msk [vmem:[#allocation5 + $0x28] sm:$0xff] %vm1843, %v1798
  %1846 = vst.msk [vmem:[#allocation5 + $0x50] sm:$0xff] %vm1843, %v1800
  %1847 = vst.msk [vmem:[#allocation5 + $0x78] sm:$0xff] %vm1843, %v1802
  %1848 = vst.msk [vmem:[#allocation5 + $0xa0] sm:$0xff] %vm1843, %v1804
  %1849 = vst.msk [vmem:[#allocation5 + $0xc8] sm:$0xff] %vm1843, %v1806
  %1850 = vst.msk [vmem:[#allocation5 + $0xf0] sm:$0xff] %vm1843, %v1808
  %1851 = vst.msk [vmem:[#allocation5 + $0x118] sm:$0xff] %vm1843, %v1810
  %1852 = vst.msk [vmem:[#allocation5 + $0x140] sm:$0xff] %vm1843, %v1812
  %1853 = vst.msk [vmem:[#allocation5 + $0x168] sm:$0xff] %vm1843, %v1814
  %1854 = vst.msk [vmem:[#allocation5 + $0x190] sm:$0xff] %vm1843, %v1816
  %1855 = vst.msk [vmem:[#allocation5 + $0x1b8] sm:$0xff] %vm1843, %v1818
  %1856 = vst.msk [vmem:[#allocation5 + $0x1e0] sm:$0xff] %vm1843, %v1820
  %1857 = vst.msk [vmem:[#allocation5 + $0x208] sm:$0xff] %vm1843, %v1822
  %1858 = vst.msk [vmem:[#allocation5 + $0x230] sm:$0xff] %vm1843, %v1824
  %1859 = vst.msk [vmem:[#allocation5 + $0x258] sm:$0xff] %vm1843, %v1826
  %v1860 = vld [vmem:[%s1665 + $0x2] sm:$0xff]
  %v1861 = vld [vmem:[%s1665 + $0x12] sm:$0xff]
  %v1862 = vld [vmem:[%s1665 + $0x22] sm:$0xff]
  %v1863 = vld [vmem:[%s1665 + $0x32] sm:$0xff]
  %v1864 = vld [vmem:[%s1665 + $0x42] sm:$0xff]
  %v1865 = vld [vmem:[%s1665 + $0x52] sm:$0xff]
  %v1866 = vld [vmem:[%s1665 + $0x62] sm:$0xff]
  %v1867 = vld [vmem:[%s1665 + $0x72] sm:$0xff]
  %v1868 = vld [vmem:[%s1665 + $0xa2] sm:$0xff]
  %v1869 = vld [vmem:[%s1665 + $0xb2] sm:$0xff]
  %v1870 = vld [vmem:[%s1665 + $0xc2] sm:$0xff]
  %v1871 = vld [vmem:[%s1665 + $0xd2] sm:$0xff]
  %v1872 = vld [vmem:[%s1665 + $0xe2] sm:$0xff]
  %v1873 = vld [vmem:[%s1665 + $0xf2] sm:$0xff]
  %v1874 = vld [vmem:[%s1665 + $0x102] sm:$0xff]
  %v1875 = vld [vmem:[%s1665 + $0x112] sm:$0xff]
  %1876 = vst.msk [vmem:[#allocation5 + $0x8] sm:$0xff] %vm55, %v1860
  %1877 = vst.msk [vmem:[#allocation5 + $0x30] sm:$0xff] %vm55, %v1861
  %1878 = vst.msk [vmem:[#allocation5 + $0x58] sm:$0xff] %vm55, %v1862
  %1879 = vst.msk [vmem:[#allocation5 + $0x80] sm:$0xff] %vm55, %v1863
  %1880 = vst.msk [vmem:[#allocation5 + $0xa8] sm:$0xff] %vm55, %v1864
  %1881 = vst.msk [vmem:[#allocation5 + $0xd0] sm:$0xff] %vm55, %v1865
  %1882 = vst.msk [vmem:[#allocation5 + $0xf8] sm:$0xff] %vm55, %v1866
  %1883 = vst.msk [vmem:[#allocation5 + $0x120] sm:$0xff] %vm55, %v1867
  %1884 = vst.msk [vmem:[#allocation5 + $0x148] sm:$0xff] %vm55, %v1868
  %1885 = vst.msk [vmem:[#allocation5 + $0x170] sm:$0xff] %vm55, %v1869
  %1886 = vst.msk [vmem:[#allocation5 + $0x198] sm:$0xff] %vm55, %v1870
  %1887 = vst.msk [vmem:[#allocation5 + $0x1c0] sm:$0xff] %vm55, %v1871
  %1888 = vst.msk [vmem:[#allocation5 + $0x1e8] sm:$0xff] %vm55, %v1872
  %1889 = vst.msk [vmem:[#allocation5 + $0x210] sm:$0xff] %vm55, %v1873
  %1890 = vst.msk [vmem:[#allocation5 + $0x238] sm:$0xff] %vm55, %v1874
  %1891 = vst.msk [vmem:[#allocation5 + $0x260] sm:$0xff] %vm55, %v1875
  %v1892 = vld [vmem:[#allocation5] sm:$0xff]
  %v1893 = vld [vmem:[#allocation5 + $0x8] sm:$0xff]
  %v1894 = vld [vmem:[#allocation5 + $0x28] sm:$0xff]
  %v1895 = vld [vmem:[#allocation5 + $0x30] sm:$0xff]
  %v1896 = vld [vmem:[#allocation5 + $0x50] sm:$0xff]
  %v1897 = vld [vmem:[#allocation5 + $0x58] sm:$0xff]
  %v1898 = vld [vmem:[#allocation5 + $0x78] sm:$0xff]
  %v1899 = vld [vmem:[#allocation5 + $0x80] sm:$0xff]
  %v1900 = vld [vmem:[#allocation5 + $0xa0] sm:$0xff]
  %v1901 = vld [vmem:[#allocation5 + $0xa8] sm:$0xff]
  %v1902 = vld [vmem:[#allocation5 + $0xc8] sm:$0xff]
  %v1903 = vld [vmem:[#allocation5 + $0xd0] sm:$0xff]
  %v1904 = vld [vmem:[#allocation5 + $0xf0] sm:$0xff]
  %v1905 = vld [vmem:[#allocation5 + $0xf8] sm:$0xff]
  %v1906 = vld [vmem:[#allocation5 + $0x118] sm:$0xff]
  %v1907 = vld [vmem:[#allocation5 + $0x120] sm:$0xff]
  %v1908 = vld [vmem:[#allocation5 + $0x140] sm:$0xff]
  %v1909 = vld [vmem:[#allocation5 + $0x148] sm:$0xff]
  %v1910 = vld [vmem:[#allocation5 + $0x168] sm:$0xff]
  %v1911 = vld [vmem:[#allocation5 + $0x170] sm:$0xff]
  %v1912 = vld [vmem:[#allocation5 + $0x190] sm:$0xff]
  %v1913 = vld [vmem:[#allocation5 + $0x198] sm:$0xff]
  %v1914 = vld [vmem:[#allocation5 + $0x1b8] sm:$0xff]
  %v1915 = vld [vmem:[#allocation5 + $0x1c0] sm:$0xff]
  %v1916 = vld [vmem:[#allocation5 + $0x1e0] sm:$0xff]
  %v1917 = vld [vmem:[#allocation5 + $0x1e8] sm:$0xff]
  %v1918 = vld [vmem:[#allocation5 + $0x208] sm:$0xff]
  %v1919 = vld [vmem:[#allocation5 + $0x210] sm:$0xff]
  %v1920 = vld [vmem:[#allocation5 + $0x230] sm:$0xff]
  %v1921 = vld [vmem:[#allocation5 + $0x238] sm:$0xff]
  %v1922 = vld [vmem:[#allocation5 + $0x258] sm:$0xff]
  %v1923 = vld [vmem:[#allocation5 + $0x260] sm:$0xff]
  %v1924 = vld [vmem:[%s3] sm:$0x1]
  %v1926 = vlaneseq
  %v1927 = vshrl.u32 %v1926, 7
  %v1928 = vsub.s32 0, %v1927
  %v1929 = vrot.slane %v1924, %v1928
  %v1932 = vsel %vm55, %v1893, 0
  %v1935 = vsel %vm55, %v1895, 0
  %v1938 = vsel %vm55, %v1897, 0
  %v1941 = vsel %vm55, %v1899, 0
  %v1944 = vsel %vm55, %v1901, 0
  %v1947 = vsel %vm55, %v1903, 0
  %v1950 = vsel %vm55, %v1905, 0
  %v1953 = vsel %vm55, %v1907, 0
  %v1956 = vsel %vm55, %v1909, 0
  %v1959 = vsel %vm55, %v1911, 0
  %v1962 = vsel %vm55, %v1913, 0
  %v1965 = vsel %vm55, %v1915, 0
  %v1968 = vsel %vm55, %v1917, 0
  %v1971 = vsel %vm55, %v1919, 0
  %v1974 = vsel %vm55, %v1921, 0
  %v1977 = vsel %vm55, %v1923, 0
  %1979 = vmatprep.subr.mxu0 0.0
  %1980 = vmatpush1.msra.mxu0 %v1130
  %1981 = vmatprep.subr.mxu0 0.0
  %1982 = vmatpush1.msra.mxu0 %v1131
  %1983 = vmatprep.subr.mxu0 0.0
  %1984 = vmatpush1.msra.mxu0 %v1132
  %1985 = vmatprep.subr.mxu0 0.0
  %1986 = vmatpush1.msra.mxu0 %v1133
  %1987 = vmatprep.subr.mxu0 0.0
  %1988 = vmatpush1.msra.mxu0 %v1134
  %1989 = vmatprep.subr.mxu0 0.0
  %1990 = vmatpush1.msra.mxu0 %v1135
  %1991 = vmatprep.subr.mxu0 0.0
  %1992 = vmatpush1.msra.mxu0 %v1136
  %1993 = vmatprep.subr.mxu0 0.0
  %1994 = vmatpush1.msra.mxu0 %v1137
  %1995 = vmatprep.subr.mxu0 0.0
  %1996 = vmatpush1.msra.mxu0 %v1138
  %1997 = vmatprep.subr.mxu0 0.0
  %1998 = vmatpush1.msra.mxu0 %v1139
  %1999 = vmatprep.subr.mxu0 0.0
  %2000 = vmatpush1.msra.mxu0 %v1140
  %2001 = vmatprep.subr.mxu0 0.0
  %2002 = vmatpush1.msra.mxu0 %v1141
  %2003 = vmatprep.subr.mxu0 0.0
  %2004 = vmatpush1.msra.mxu0 %v1142
  %2005 = vmatprep.subr.mxu0 0.0
  %2006 = vmatpush1.msra.mxu0 %v1143
  %2007 = vmatprep.subr.mxu0 0.0
  %2008 = vmatpush1.msra.mxu0 %v1144
  %2009 = vmatprep.subr.mxu0 0.0
  %2010 = vmatpush1.msra.mxu0 %v1145
  %2011 = vmatprep.subr.mxu0 0.0
  %2012 = vmatpush1.msra.mxu0 %v1146
  %2013 = vmatprep.subr.mxu0 0.0
  %2014 = vmatpush1.msra.mxu0 %v1147
  %2015 = vmatprep.subr.mxu0 0.0
  %2016 = vmatpush1.msra.mxu0 0.0
  %2017 = vmatprep.subr.mxu0 0.0
  %2018 = vmatpush1.msra.mxu0 0.0
  %2019 = vmatprep.subr.mxu0 0.0
  %2020 = vmatpush1.msra.mxu0 0.0
  %2021 = vmatprep.subr.mxu0 0.0
  %2022 = vmatpush1.msra.mxu0 0.0
  %2023 = vmatprep.subr.mxu0 0.0
  %2024 = vmatpush1.msra.mxu0 0.0
  %2025 = vmatprep.subr.mxu0 0.0
  %2026 = vmatpush1.msra.mxu0 0.0
  %2027 = vmatprep.subr.mxu0 0.0
  %2028 = vmatpush1.msra.mxu0 0.0
  %2029 = vmatprep.subr.mxu0 0.0
  %2030 = vmatpush1.msra.mxu0 0.0
  %2031 = vmatprep.subr.mxu0 0.0
  %2032 = vmatpush1.msra.mxu0 0.0
  %2033 = vmatprep.subr.mxu0 0.0
  %2034 = vmatpush1.msra.mxu0 0.0
  %2035 = vmatprep.subr.mxu0 0.0
  %2036 = vmatpush1.msra.mxu0 0.0
  %2037 = vmatprep.subr.mxu0 0.0
  %2038 = vmatpush1.msra.mxu0 0.0
  %2039 = vmatprep.subr.mxu0 0.0
  %2040 = vmatpush1.msra.mxu0 0.0
  %2041 = vmatprep.subr.mxu0 0.0
  %2042 = vmatpush1.msra.mxu0 0.0
  %2043 = vmatprep.mubr.f32.mxu0 %v1932
  %2044 = vmatmul.mubr.f32.gmra.mrb[0].mxu0 %v1892
  %v2045 = vpop.f32.mrb[0].mxu0
  %v2046 = vadd.f32 %v1929, %v2045
  %v2047 = vpop.f32.mrb[0].mxu0
  %2048 = vmatprep.mubr.f32.mxu0 %v1935
  %2049 = vmatmul.mubr.f32.gmra.mrb[0].mxu0 %v1894
  %v2050 = vpop.f32.mrb[0].mxu0
  %v2051 = vadd.f32 %v1929, %v2050
  %v2052 = vpop.f32.mrb[0].mxu0
  %2053 = vmatprep.mubr.f32.mxu0 %v1938
  %2054 = vmatmul.mubr.f32.gmra.mrb[0].mxu0 %v1896
  %v2055 = vpop.f32.mrb[0].mxu0
  %v2056 = vadd.f32 %v1929, %v2055
  %v2057 = vpop.f32.mrb[0].mxu0
  %2058 = vmatprep.mubr.f32.mxu0 %v1941
  %2059 = vmatmul.mubr.f32.gmra.mrb[0].mxu0 %v1898
  %v2060 = vpop.f32.mrb[0].mxu0
  %v2061 = vadd.f32 %v1929, %v2060
  %v2062 = vpop.f32.mrb[0].mxu0
  %2063 = vmatprep.mubr.f32.mxu0 %v1944
  %2064 = vmatmul.mubr.f32.gmra.mrb[0].mxu0 %v1900
  %v2065 = vpop.f32.mrb[0].mxu0
  %v2066 = vadd.f32 %v1929, %v2065
  %v2067 = vpop.f32.mrb[0].mxu0
  %2068 = vmatprep.mubr.f32.mxu0 %v1947
  %2069 = vmatmul.mubr.f32.gmra.mrb[0].mxu0 %v1902
  %v2070 = vpop.f32.mrb[0].mxu0
  %v2071 = vadd.f32 %v1929, %v2070
  %v2072 = vpop.f32.mrb[0].mxu0
  %2073 = vmatprep.mubr.f32.mxu0 %v1950
  %2074 = vmatmul.mubr.f32.gmra.mrb[0].mxu0 %v1904
  %v2075 = vpop.f32.mrb[0].mxu0
  %v2076 = vadd.f32 %v1929, %v2075
  %v2077 = vpop.f32.mrb[0].mxu0
  %2078 = vmatprep.mubr.f32.mxu0 %v1953
  %2079 = vmatmul.mubr.f32.gmra.mrb[0].mxu0 %v1906
  %v2080 = vpop.f32.mrb[0].mxu0
  %v2081 = vadd.f32 %v1929, %v2080
  %v2082 = vpop.f32.mrb[0].mxu0
  %2083 = vmatprep.mubr.f32.mxu0 %v1956
  %2084 = vmatmul.mubr.f32.gmra.mrb[0].mxu0 %v1908
  %v2085 = vpop.f32.mrb[0].mxu0
  %v2086 = vadd.f32 %v1929, %v2085
  %v2087 = vpop.f32.mrb[0].mxu0
  %2088 = vmatprep.mubr.f32.mxu0 %v1959
  %2089 = vmatmul.mubr.f32.gmra.mrb[0].mxu0 %v1910
  %v2090 = vpop.f32.mrb[0].mxu0
  %v2091 = vadd.f32 %v1929, %v2090
  %v2092 = vpop.f32.mrb[0].mxu0
  %2093 = vmatprep.mubr.f32.mxu0 %v1962
  %2094 = vmatmul.mubr.f32.gmra.mrb[0].mxu0 %v1912
  %v2095 = vpop.f32.mrb[0].mxu0
  %v2096 = vadd.f32 %v1929, %v2095
  %v2097 = vpop.f32.mrb[0].mxu0
  %2098 = vmatprep.mubr.f32.mxu0 %v1965
  %2099 = vmatmul.mubr.f32.gmra.mrb[0].mxu0 %v1914
  %v2100 = vpop.f32.mrb[0].mxu0
  %v2101 = vadd.f32 %v1929, %v2100
  %v2102 = vpop.f32.mrb[0].mxu0
  %2103 = vmatprep.mubr.f32.mxu0 %v1968
  %2104 = vmatmul.mubr.f32.gmra.mrb[0].mxu0 %v1916
  %v2105 = vpop.f32.mrb[0].mxu0
  %v2106 = vadd.f32 %v1929, %v2105
  %v2107 = vpop.f32.mrb[0].mxu0
  %2108 = vmatprep.mubr.f32.mxu0 %v1971
  %2109 = vmatmul.mubr.f32.gmra.mrb[0].mxu0 %v1918
  %v2110 = vpop.f32.mrb[0].mxu0
  %v2111 = vadd.f32 %v1929, %v2110
  %v2112 = vpop.f32.mrb[0].mxu0
  %2113 = vmatprep.mubr.f32.mxu0 %v1974
  %2114 = vmatmul.mubr.f32.gmra.mrb[0].mxu0 %v1920
  %v2115 = vpop.f32.mrb[0].mxu0
  %v2116 = vadd.f32 %v1929, %v2115
  %v2117 = vpop.f32.mrb[0].mxu0
  %2118 = vmatprep.mubr.f32.mxu0 %v1977
  %2119 = vmatmul.mubr.f32.gmra.mrb[0].mxu0 %v1922
  %v2120 = vpop.f32.mrb[0].mxu0
  %v2121 = vadd.f32 %v1929, %v2120
  %v2122 = vpop.f32.mrb[0].mxu0
  %2123 = vdwg.mxu0
  %2124 = vst.msk [vmem:[#allocation3] sm:$0xff] %vm347, 0.0
  %vm2125 = vcmask 254976
  %2126 = vst.msk [vmem:[#allocation3 + $0x8] sm:$0x3] %vm2125, 0.0
  %2127 = vst.msk [vmem:[#allocation3 + $0xa0] sm:$0xff] %vm347, 0.0
  %2128 = vst.msk [vmem:[#allocation3 + $0xa8] sm:$0x3] %vm2125, 0.0
  %s2129 = scalar_lea.vmem [#allocation3], 144
  %2130 = vst.msk [vmem:[%s2129] sm:$0xff] %vm347, 0.0
  %2131 = vst.msk [vmem:[%s2129 + $0x8] sm:$0x3] %vm2125, 0.0
  %2132 = vst.msk [vmem:[%s2129 + $0xa0] sm:$0xff] %vm347, 0.0
  %2133 = vst.msk [vmem:[%s2129 + $0xa8] sm:$0x3] %vm2125, 0.0
  %vm2134 = vcmask 253952
  %2135 = vst.msk [vmem:[#allocation3] sm:$0x1] %vm2134, 0.0
  %2136 = vst.msk [vmem:[#allocation3 + $0x10] sm:$0x1] %vm2134, 0.0
  %2137 = vst.msk [vmem:[#allocation3 + $0x20] sm:$0x1] %vm2134, 0.0
  %2138 = vst.msk [vmem:[#allocation3 + $0x30] sm:$0x1] %vm2134, 0.0
  %2139 = vst.msk [vmem:[#allocation3 + $0x40] sm:$0x1] %vm2134, 0.0
  %2140 = vst.msk [vmem:[#allocation3 + $0x50] sm:$0x1] %vm2134, 0.0
  %2141 = vst.msk [vmem:[#allocation3 + $0x60] sm:$0x1] %vm2134, 0.0
  %2142 = vst.msk [vmem:[#allocation3 + $0x70] sm:$0x1] %vm2134, 0.0
  %2143 = vst.msk [vmem:[#allocation3 + $0x80] sm:$0x1] %vm2134, 0.0
  %2144 = vst.msk [vmem:[#allocation3 + $0x90] sm:$0x1] %vm2134, 0.0
  %2145 = vst.msk [vmem:[#allocation3 + $0xa0] sm:$0x1] %vm2134, 0.0
  %2146 = vst.msk [vmem:[#allocation3 + $0xb0] sm:$0x1] %vm2134, 0.0
  %2147 = vst.msk [vmem:[#allocation3 + $0xc0] sm:$0x1] %vm2134, 0.0
  %2148 = vst.msk [vmem:[#allocation3 + $0xd0] sm:$0x1] %vm2134, 0.0
  %2149 = vst.msk [vmem:[#allocation3 + $0xe0] sm:$0x1] %vm2134, 0.0
  %2150 = vst.msk [vmem:[#allocation3 + $0xf0] sm:$0x1] %vm2134, 0.0
  %2151 = vst.msk [vmem:[#allocation3 + $0x100] sm:$0x1] %vm2134, 0.0
  %2152 = vst.msk [vmem:[#allocation3 + $0x110] sm:$0x1] %vm2134, 0.0
  %2153 = vst.msk [vmem:[#allocation3 + $0x120] sm:$0x1] %vm2134, 0.0
  %2154 = vst.msk [vmem:[#allocation3 + $0x130] sm:$0x1] %vm2134, 0.0
  %2155 = vst.msk [vmem:[#allocation3 + $0x9] sm:$0x1] %vm2134, 0.0
  %2156 = vst.msk [vmem:[#allocation3 + $0x19] sm:$0x1] %vm2134, 0.0
  %2157 = vst.msk [vmem:[#allocation3 + $0x29] sm:$0x1] %vm2134, 0.0
  %2158 = vst.msk [vmem:[#allocation3 + $0x39] sm:$0x1] %vm2134, 0.0
  %2159 = vst.msk [vmem:[#allocation3 + $0x49] sm:$0x1] %vm2134, 0.0
  %2160 = vst.msk [vmem:[#allocation3 + $0x59] sm:$0x1] %vm2134, 0.0
  %2161 = vst.msk [vmem:[#allocation3 + $0x69] sm:$0x1] %vm2134, 0.0
  %2162 = vst.msk [vmem:[#allocation3 + $0x79] sm:$0x1] %vm2134, 0.0
  %2163 = vst.msk [vmem:[#allocation3 + $0x89] sm:$0x1] %vm2134, 0.0
  %2164 = vst.msk [vmem:[#allocation3 + $0x99] sm:$0x1] %vm2134, 0.0
  %2165 = vst.msk [vmem:[#allocation3 + $0xa9] sm:$0x1] %vm2134, 0.0
  %2166 = vst.msk [vmem:[#allocation3 + $0xb9] sm:$0x1] %vm2134, 0.0
  %2167 = vst.msk [vmem:[#allocation3 + $0xc9] sm:$0x1] %vm2134, 0.0
  %2168 = vst.msk [vmem:[#allocation3 + $0xd9] sm:$0x1] %vm2134, 0.0
  %2169 = vst.msk [vmem:[#allocation3 + $0xe9] sm:$0x1] %vm2134, 0.0
  %2170 = vst.msk [vmem:[#allocation3 + $0xf9] sm:$0x1] %vm2134, 0.0
  %2171 = vst.msk [vmem:[#allocation3 + $0x109] sm:$0x1] %vm2134, 0.0
  %2172 = vst.msk [vmem:[#allocation3 + $0x119] sm:$0x1] %vm2134, 0.0
  %2173 = vst.msk [vmem:[#allocation3 + $0x129] sm:$0x1] %vm2134, 0.0
  %2174 = vst.msk [vmem:[#allocation3 + $0x139] sm:$0x1] %vm2134, 0.0
  %v2175 = vmax.f32 %v2046, 0.0
  %v2176 = vmax.f32 %v2051, 0.0
  %v2177 = vmax.f32 %v2056, 0.0
  %v2178 = vmax.f32 %v2061, 0.0
  %v2179 = vmax.f32 %v2066, 0.0
  %v2180 = vmax.f32 %v2071, 0.0
  %v2181 = vmax.f32 %v2076, 0.0
  %v2182 = vmax.f32 %v2081, 0.0
  %v2183 = vmax.f32 %v2086, 0.0
  %v2184 = vmax.f32 %v2091, 0.0
  %v2185 = vmax.f32 %v2096, 0.0
  %v2186 = vmax.f32 %v2101, 0.0
  %v2187 = vmax.f32 %v2106, 0.0
  %v2188 = vmax.f32 %v2111, 0.0
  %v2189 = vmax.f32 %v2116, 0.0
  %v2190 = vmax.f32 %v2121, 0.0
  %s2191 = scalar_lea.vmem [#allocation3], 16
  %2192 = vst.msk [vmem:[%s2191 + $0x1] sm:$0xff] %vm347, %v2175
  %2193 = vst.msk [vmem:[%s2191 + $0x11] sm:$0xff] %vm347, %v2176
  %2194 = vst.msk [vmem:[%s2191 + $0x21] sm:$0xff] %vm347, %v2177
  %2195 = vst.msk [vmem:[%s2191 + $0x31] sm:$0xff] %vm347, %v2178
  %2196 = vst.msk [vmem:[%s2191 + $0x41] sm:$0xff] %vm347, %v2179
  %2197 = vst.msk [vmem:[%s2191 + $0x51] sm:$0xff] %vm347, %v2180
  %2198 = vst.msk [vmem:[%s2191 + $0x61] sm:$0xff] %vm347, %v2181
  %2199 = vst.msk [vmem:[%s2191 + $0x71] sm:$0xff] %vm347, %v2182
  %2200 = vst.msk [vmem:[%s2191 + $0xa1] sm:$0xff] %vm347, %v2183
  %2201 = vst.msk [vmem:[%s2191 + $0xb1] sm:$0xff] %vm347, %v2184
  %2202 = vst.msk [vmem:[%s2191 + $0xc1] sm:$0xff] %vm347, %v2185
  %2203 = vst.msk [vmem:[%s2191 + $0xd1] sm:$0xff] %vm347, %v2186
  %2204 = vst.msk [vmem:[%s2191 + $0xe1] sm:$0xff] %vm347, %v2187
  %2205 = vst.msk [vmem:[%s2191 + $0xf1] sm:$0xff] %vm347, %v2188
  %2206 = vst.msk [vmem:[%s2191 + $0x101] sm:$0xff] %vm347, %v2189
  %2207 = vst.msk [vmem:[%s2191 + $0x111] sm:$0xff] %vm347, %v2190
  %v2208 = vld [vmem:[%s4] sm:$0xff]
  %v2209 = vld [vmem:[%s4 + $0x8] sm:$0xff]
  %v2210 = vld [vmem:[%s4 + $0x10] sm:$0xff]
  %v2211 = vld [vmem:[%s4 + $0x18] sm:$0xff]
  %v2212 = vld [vmem:[%s4 + $0x20] sm:$0xff]
  %v2213 = vld [vmem:[%s4 + $0x28] sm:$0xff]
  %v2214 = vld [vmem:[%s4 + $0x30] sm:$0xff]
  %v2215 = vld [vmem:[%s4 + $0x38] sm:$0xff]
  %v2216 = vld [vmem:[%s4 + $0x40] sm:$0xff]
  %v2217 = vld [vmem:[%s4 + $0x48] sm:$0xff]
  %v2218 = vld [vmem:[%s4 + $0x50] sm:$0xff]
  %v2219 = vld [vmem:[%s4 + $0x58] sm:$0xff]
  %v2220 = vld [vmem:[%s4 + $0x60] sm:$0xff]
  %v2221 = vld [vmem:[%s4 + $0x68] sm:$0xff]
  %v2222 = vld [vmem:[%s4 + $0x70] sm:$0xff]
  %v2223 = vld [vmem:[%s4 + $0x78] sm:$0xff]
  %v2224 = vld [vmem:[%s4 + $0x80] sm:$0xff]
  %v2225 = vld [vmem:[%s4 + $0x88] sm:$0xff]
  %v2226 = vld [vmem:[%s4 + $0x90] sm:$0xff]
  %v2227 = vld [vmem:[%s4 + $0x98] sm:$0xff]
  %v2228 = vld [vmem:[%s4 + $0xa0] sm:$0xff]
  %v2229 = vld [vmem:[%s4 + $0xa8] sm:$0xff]
  %v2230 = vld [vmem:[%s4 + $0xb0] sm:$0xff]
  %v2231 = vld [vmem:[%s4 + $0xb8] sm:$0xff]
  %v2232 = vld [vmem:[%s4 + $0xc0] sm:$0xff]
  %v2233 = vld [vmem:[%s4 + $0xc8] sm:$0xff]
  %v2234 = vld [vmem:[%s4 + $0xd0] sm:$0xff]
  %v2235 = vld [vmem:[%s4 + $0xd8] sm:$0xff]
  %v2236 = vld [vmem:[%s4 + $0xe0] sm:$0xff]
  %v2237 = vld [vmem:[%s4 + $0xe8] sm:$0xff]
  %v2238 = vld [vmem:[%s4 + $0xf0] sm:$0xff]
  %v2239 = vld [vmem:[%s4 + $0xf8] sm:$0xff]
  %v2240 = vld [vmem:[%s4 + $0x100] sm:$0xff]
  %v2241 = vld [vmem:[%s4 + $0x108] sm:$0xff]
  %v2242 = vld [vmem:[%s4 + $0x110] sm:$0xff]
  %v2243 = vld [vmem:[%s4 + $0x118] sm:$0xff]
  %v2244 = vld [vmem:[#allocation3] sm:$0xff]
  %v2245 = vld [vmem:[#allocation3 + $0x10] sm:$0xff]
  %v2246 = vld [vmem:[#allocation3 + $0x20] sm:$0xff]
  %v2247 = vld [vmem:[#allocation3 + $0x30] sm:$0xff]
  %v2248 = vld [vmem:[#allocation3 + $0x40] sm:$0xff]
  %v2249 = vld [vmem:[#allocation3 + $0x50] sm:$0xff]
  %v2250 = vld [vmem:[#allocation3 + $0x60] sm:$0xff]
  %v2251 = vld [vmem:[#allocation3 + $0x70] sm:$0xff]
  %v2252 = vld [vmem:[#allocation3 + $0xa0] sm:$0xff]
  %v2253 = vld [vmem:[#allocation3 + $0xb0] sm:$0xff]
  %v2254 = vld [vmem:[#allocation3 + $0xc0] sm:$0xff]
  %v2255 = vld [vmem:[#allocation3 + $0xd0] sm:$0xff]
  %v2256 = vld [vmem:[#allocation3 + $0xe0] sm:$0xff]
  %v2257 = vld [vmem:[#allocation3 + $0xf0] sm:$0xff]
  %v2258 = vld [vmem:[#allocation3 + $0x100] sm:$0xff]
  %v2259 = vld [vmem:[#allocation3 + $0x110] sm:$0xff]
  %2260 = vst.msk [vmem:[#allocation5] sm:$0xff] %vm347, %v2244
  %2261 = vst.msk [vmem:[#allocation5 + $0x28] sm:$0xff] %vm347, %v2245
  %2262 = vst.msk [vmem:[#allocation5 + $0x50] sm:$0xff] %vm347, %v2246
  %2263 = vst.msk [vmem:[#allocation5 + $0x78] sm:$0xff] %vm347, %v2247
  %2264 = vst.msk [vmem:[#allocation5 + $0xa0] sm:$0xff] %vm347, %v2248
  %2265 = vst.msk [vmem:[#allocation5 + $0xc8] sm:$0xff] %vm347, %v2249
  %2266 = vst.msk [vmem:[#allocation5 + $0xf0] sm:$0xff] %vm347, %v2250
  %2267 = vst.msk [vmem:[#allocation5 + $0x118] sm:$0xff] %vm347, %v2251
  %2268 = vst.msk [vmem:[#allocation5 + $0x140] sm:$0xff] %vm347, %v2252
  %2269 = vst.msk [vmem:[#allocation5 + $0x168] sm:$0xff] %vm347, %v2253
  %2270 = vst.msk [vmem:[#allocation5 + $0x190] sm:$0xff] %vm347, %v2254
  %2271 = vst.msk [vmem:[#allocation5 + $0x1b8] sm:$0xff] %vm347, %v2255
  %2272 = vst.msk [vmem:[#allocation5 + $0x1e0] sm:$0xff] %vm347, %v2256
  %2273 = vst.msk [vmem:[#allocation5 + $0x208] sm:$0xff] %vm347, %v2257
  %2274 = vst.msk [vmem:[#allocation5 + $0x230] sm:$0xff] %vm347, %v2258
  %2275 = vst.msk [vmem:[#allocation5 + $0x258] sm:$0xff] %vm347, %v2259
  %v2276 = vld [vmem:[#allocation3 + $0x1] sm:$0xff]
  %v2277 = vld [vmem:[#allocation3 + $0x11] sm:$0xff]
  %v2278 = vld [vmem:[#allocation3 + $0x21] sm:$0xff]
  %v2279 = vld [vmem:[#allocation3 + $0x31] sm:$0xff]
  %v2280 = vld [vmem:[#allocation3 + $0x41] sm:$0xff]
  %v2281 = vld [vmem:[#allocation3 + $0x51] sm:$0xff]
  %v2282 = vld [vmem:[#allocation3 + $0x61] sm:$0xff]
  %v2283 = vld [vmem:[#allocation3 + $0x71] sm:$0xff]
  %v2284 = vld [vmem:[#allocation3 + $0xa1] sm:$0xff]
  %v2285 = vld [vmem:[#allocation3 + $0xb1] sm:$0xff]
  %v2286 = vld [vmem:[#allocation3 + $0xc1] sm:$0xff]
  %v2287 = vld [vmem:[#allocation3 + $0xd1] sm:$0xff]
  %v2288 = vld [vmem:[#allocation3 + $0xe1] sm:$0xff]
  %v2289 = vld [vmem:[#allocation3 + $0xf1] sm:$0xff]
  %v2290 = vld [vmem:[#allocation3 + $0x101] sm:$0xff]
  %v2291 = vld [vmem:[#allocation3 + $0x111] sm:$0xff]
  %2308 = vrot.lane.b32.xlu0 %v2276, 32
  %v2309 = vpop.permute.xlu0 %2308
  %2310 = vrot.lane.b32.xlu0 %v2277, 32
  %v2311 = vpop.permute.xlu0 %2310
  %2312 = vrot.lane.b32.xlu0 %v2278, 32
  %v2313 = vpop.permute.xlu0 %2312
  %2314 = vrot.lane.b32.xlu0 %v2279, 32
  %v2315 = vpop.permute.xlu0 %2314
  %2316 = vrot.lane.b32.xlu0 %v2280, 32
  %v2317 = vpop.permute.xlu0 %2316
  %2318 = vrot.lane.b32.xlu0 %v2281, 32
  %v2319 = vpop.permute.xlu0 %2318
  %2320 = vrot.lane.b32.xlu0 %v2282, 32
  %v2321 = vpop.permute.xlu0 %2320
  %2322 = vrot.lane.b32.xlu0 %v2283, 32
  %v2323 = vpop.permute.xlu0 %2322
  %2324 = vrot.lane.b32.xlu0 %v2284, 32
  %v2325 = vpop.permute.xlu0 %2324
  %2326 = vrot.lane.b32.xlu0 %v2285, 32
  %v2327 = vpop.permute.xlu0 %2326
  %2328 = vrot.lane.b32.xlu0 %v2286, 32
  %v2329 = vpop.permute.xlu0 %2328
  %2330 = vrot.lane.b32.xlu0 %v2287, 32
  %v2331 = vpop.permute.xlu0 %2330
  %2332 = vrot.lane.b32.xlu0 %v2288, 32
  %v2333 = vpop.permute.xlu0 %2332
  %2334 = vrot.lane.b32.xlu0 %v2289, 32
  %v2335 = vpop.permute.xlu0 %2334
  %2336 = vrot.lane.b32.xlu0 %v2290, 32
  %v2337 = vpop.permute.xlu0 %2336
  %2338 = vrot.lane.b32.xlu0 %v2291, 32
  %v2339 = vpop.permute.xlu0 %2338
  %vm2356 = vcmask 523520
  %2357 = vst.msk [vmem:[#allocation5] sm:$0xff] %vm2356, %v2309
  %2358 = vst.msk [vmem:[#allocation5 + $0x28] sm:$0xff] %vm2356, %v2311
  %2359 = vst.msk [vmem:[#allocation5 + $0x50] sm:$0xff] %vm2356, %v2313
  %2360 = vst.msk [vmem:[#allocation5 + $0x78] sm:$0xff] %vm2356, %v2315
  %2361 = vst.msk [vmem:[#allocation5 + $0xa0] sm:$0xff] %vm2356, %v2317
  %2362 = vst.msk [vmem:[#allocation5 + $0xc8] sm:$0xff] %vm2356, %v2319
  %2363 = vst.msk [vmem:[#allocation5 + $0xf0] sm:$0xff] %vm2356, %v2321
  %2364 = vst.msk [vmem:[#allocation5 + $0x118] sm:$0xff] %vm2356, %v2323
  %2365 = vst.msk [vmem:[#allocation5 + $0x140] sm:$0xff] %vm2356, %v2325
  %2366 = vst.msk [vmem:[#allocation5 + $0x168] sm:$0xff] %vm2356, %v2327
  %2367 = vst.msk [vmem:[#allocation5 + $0x190] sm:$0xff] %vm2356, %v2329
  %2368 = vst.msk [vmem:[#allocation5 + $0x1b8] sm:$0xff] %vm2356, %v2331
  %2369 = vst.msk [vmem:[#allocation5 + $0x1e0] sm:$0xff] %vm2356, %v2333
  %2370 = vst.msk [vmem:[#allocation5 + $0x208] sm:$0xff] %vm2356, %v2335
  %2371 = vst.msk [vmem:[#allocation5 + $0x230] sm:$0xff] %vm2356, %v2337
  %2372 = vst.msk [vmem:[#allocation5 + $0x258] sm:$0xff] %vm2356, %v2339
  %v2373 = vld [vmem:[#allocation3 + $0x2] sm:$0xff]
  %v2374 = vld [vmem:[#allocation3 + $0x12] sm:$0xff]
  %v2375 = vld [vmem:[#allocation3 + $0x22] sm:$0xff]
  %v2376 = vld [vmem:[#allocation3 + $0x32] sm:$0xff]
  %v2377 = vld [vmem:[#allocation3 + $0x42] sm:$0xff]
  %v2378 = vld [vmem:[#allocation3 + $0x52] sm:$0xff]
  %v2379 = vld [vmem:[#allocation3 + $0x62] sm:$0xff]
  %v2380 = vld [vmem:[#allocation3 + $0x72] sm:$0xff]
  %v2381 = vld [vmem:[#allocation3 + $0xa2] sm:$0xff]
  %v2382 = vld [vmem:[#allocation3 + $0xb2] sm:$0xff]
  %v2383 = vld [vmem:[#allocation3 + $0xc2] sm:$0xff]
  %v2384 = vld [vmem:[#allocation3 + $0xd2] sm:$0xff]
  %v2385 = vld [vmem:[#allocation3 + $0xe2] sm:$0xff]
  %v2386 = vld [vmem:[#allocation3 + $0xf2] sm:$0xff]
  %v2387 = vld [vmem:[#allocation3 + $0x102] sm:$0xff]
  %v2388 = vld [vmem:[#allocation3 + $0x112] sm:$0xff]
  %2405 = vrot.lane.b32.xlu0 %v2373, 64
  %v2406 = vpop.permute.xlu0 %2405
  %2407 = vrot.lane.b32.xlu0 %v2374, 64
  %v2408 = vpop.permute.xlu0 %2407
  %2409 = vrot.lane.b32.xlu0 %v2375, 64
  %v2410 = vpop.permute.xlu0 %2409
  %2411 = vrot.lane.b32.xlu0 %v2376, 64
  %v2412 = vpop.permute.xlu0 %2411
  %2413 = vrot.lane.b32.xlu0 %v2377, 64
  %v2414 = vpop.permute.xlu0 %2413
  %2415 = vrot.lane.b32.xlu0 %v2378, 64
  %v2416 = vpop.permute.xlu0 %2415
  %2417 = vrot.lane.b32.xlu0 %v2379, 64
  %v2418 = vpop.permute.xlu0 %2417
  %2419 = vrot.lane.b32.xlu0 %v2380, 64
  %v2420 = vpop.permute.xlu0 %2419
  %2421 = vrot.lane.b32.xlu0 %v2381, 64
  %v2422 = vpop.permute.xlu0 %2421
  %2423 = vrot.lane.b32.xlu0 %v2382, 64
  %v2424 = vpop.permute.xlu0 %2423
  %2425 = vrot.lane.b32.xlu0 %v2383, 64
  %v2426 = vpop.permute.xlu0 %2425
  %2427 = vrot.lane.b32.xlu0 %v2384, 64
  %v2428 = vpop.permute.xlu0 %2427
  %2429 = vrot.lane.b32.xlu0 %v2385, 64
  %v2430 = vpop.permute.xlu0 %2429
  %2431 = vrot.lane.b32.xlu0 %v2386, 64
  %v2432 = vpop.permute.xlu0 %2431
  %2433 = vrot.lane.b32.xlu0 %v2387, 64
  %v2434 = vpop.permute.xlu0 %2433
  %2435 = vrot.lane.b32.xlu0 %v2388, 64
  %v2436 = vpop.permute.xlu0 %2435
  %vm2453 = vcmask 785920
  %2454 = vst.msk [vmem:[#allocation5] sm:$0xff] %vm2453, %v2406
  %2455 = vst.msk [vmem:[#allocation5 + $0x28] sm:$0xff] %vm2453, %v2408
  %2456 = vst.msk [vmem:[#allocation5 + $0x50] sm:$0xff] %vm2453, %v2410
  %2457 = vst.msk [vmem:[#allocation5 + $0x78] sm:$0xff] %vm2453, %v2412
  %2458 = vst.msk [vmem:[#allocation5 + $0xa0] sm:$0xff] %vm2453, %v2414
  %2459 = vst.msk [vmem:[#allocation5 + $0xc8] sm:$0xff] %vm2453, %v2416
  %2460 = vst.msk [vmem:[#allocation5 + $0xf0] sm:$0xff] %vm2453, %v2418
  %2461 = vst.msk [vmem:[#allocation5 + $0x118] sm:$0xff] %vm2453, %v2420
  %2462 = vst.msk [vmem:[#allocation5 + $0x140] sm:$0xff] %vm2453, %v2422
  %2463 = vst.msk [vmem:[#allocation5 + $0x168] sm:$0xff] %vm2453, %v2424
  %2464 = vst.msk [vmem:[#allocation5 + $0x190] sm:$0xff] %vm2453, %v2426
  %2465 = vst.msk [vmem:[#allocation5 + $0x1b8] sm:$0xff] %vm2453, %v2428
  %2466 = vst.msk [vmem:[#allocation5 + $0x1e0] sm:$0xff] %vm2453, %v2430
  %2467 = vst.msk [vmem:[#allocation5 + $0x208] sm:$0xff] %vm2453, %v2432
  %2468 = vst.msk [vmem:[#allocation5 + $0x230] sm:$0xff] %vm2453, %v2434
  %2469 = vst.msk [vmem:[#allocation5 + $0x258] sm:$0xff] %vm2453, %v2436
  %v2470 = vld [vmem:[%s2191] sm:$0xff]
  %v2471 = vld [vmem:[%s2191 + $0x10] sm:$0xff]
  %v2472 = vld [vmem:[%s2191 + $0x20] sm:$0xff]
  %v2473 = vld [vmem:[%s2191 + $0x30] sm:$0xff]
  %v2474 = vld [vmem:[%s2191 + $0x40] sm:$0xff]
  %v2475 = vld [vmem:[%s2191 + $0x50] sm:$0xff]
  %v2476 = vld [vmem:[%s2191 + $0x60] sm:$0xff]
  %v2477 = vld [vmem:[%s2191 + $0x70] sm:$0xff]
  %v2478 = vld [vmem:[%s2191 + $0xa0] sm:$0xff]
  %v2479 = vld [vmem:[%s2191 + $0xb0] sm:$0xff]
  %v2480 = vld [vmem:[%s2191 + $0xc0] sm:$0xff]
  %v2481 = vld [vmem:[%s2191 + $0xd0] sm:$0xff]
  %v2482 = vld [vmem:[%s2191 + $0xe0] sm:$0xff]
  %v2483 = vld [vmem:[%s2191 + $0xf0] sm:$0xff]
  %v2484 = vld [vmem:[%s2191 + $0x100] sm:$0xff]
  %v2485 = vld [vmem:[%s2191 + $0x110] sm:$0xff]
  %2502 = vrot.lane.b32.xlu0 %v2470, 96
  %v2503 = vpop.permute.xlu0 %2502
  %2504 = vrot.lane.b32.xlu0 %v2471, 96
  %v2505 = vpop.permute.xlu0 %2504
  %2506 = vrot.lane.b32.xlu0 %v2472, 96
  %v2507 = vpop.permute.xlu0 %2506
  %2508 = vrot.lane.b32.xlu0 %v2473, 96
  %v2509 = vpop.permute.xlu0 %2508
  %2510 = vrot.lane.b32.xlu0 %v2474, 96
  %v2511 = vpop.permute.xlu0 %2510
  %2512 = vrot.lane.b32.xlu0 %v2475, 96
  %v2513 = vpop.permute.xlu0 %2512
  %2514 = vrot.lane.b32.xlu0 %v2476, 96
  %v2515 = vpop.permute.xlu0 %2514
  %2516 = vrot.lane.b32.xlu0 %v2477, 96
  %v2517 = vpop.permute.xlu0 %2516
  %2518 = vrot.lane.b32.xlu0 %v2478, 96
  %v2519 = vpop.permute.xlu0 %2518
  %2520 = vrot.lane.b32.xlu0 %v2479, 96
  %v2521 = vpop.permute.xlu0 %2520
  %2522 = vrot.lane.b32.xlu0 %v2480, 96
  %v2523 = vpop.permute.xlu0 %2522
  %2524 = vrot.lane.b32.xlu0 %v2481, 96
  %v2525 = vpop.permute.xlu0 %2524
  %2526 = vrot.lane.b32.xlu0 %v2482, 96
  %v2527 = vpop.permute.xlu0 %2526
  %2528 = vrot.lane.b32.xlu0 %v2483, 96
  %v2529 = vpop.permute.xlu0 %2528
  %2530 = vrot.lane.b32.xlu0 %v2484, 96
  %v2531 = vpop.permute.xlu0 %2530
  %2532 = vrot.lane.b32.xlu0 %v2485, 96
  %v2533 = vpop.permute.xlu0 %2532
  %vm2550 = vcmask 1048320
  %2551 = vst.msk [vmem:[#allocation5] sm:$0xff] %vm2550, %v2503
  %2552 = vst.msk [vmem:[#allocation5 + $0x28] sm:$0xff] %vm2550, %v2505
  %2553 = vst.msk [vmem:[#allocation5 + $0x50] sm:$0xff] %vm2550, %v2507
  %2554 = vst.msk [vmem:[#allocation5 + $0x78] sm:$0xff] %vm2550, %v2509
  %2555 = vst.msk [vmem:[#allocation5 + $0xa0] sm:$0xff] %vm2550, %v2511
  %2556 = vst.msk [vmem:[#allocation5 + $0xc8] sm:$0xff] %vm2550, %v2513
  %2557 = vst.msk [vmem:[#allocation5 + $0xf0] sm:$0xff] %vm2550, %v2515
  %2558 = vst.msk [vmem:[#allocation5 + $0x118] sm:$0xff] %vm2550, %v2517
  %2559 = vst.msk [vmem:[#allocation5 + $0x140] sm:$0xff] %vm2550, %v2519
  %2560 = vst.msk [vmem:[#allocation5 + $0x168] sm:$0xff] %vm2550, %v2521
  %2561 = vst.msk [vmem:[#allocation5 + $0x190] sm:$0xff] %vm2550, %v2523
  %2562 = vst.msk [vmem:[#allocation5 + $0x1b8] sm:$0xff] %vm2550, %v2525
  %2563 = vst.msk [vmem:[#allocation5 + $0x1e0] sm:$0xff] %vm2550, %v2527
  %2564 = vst.msk [vmem:[#allocation5 + $0x208] sm:$0xff] %vm2550, %v2529
  %2565 = vst.msk [vmem:[#allocation5 + $0x230] sm:$0xff] %vm2550, %v2531
  %2566 = vst.msk [vmem:[#allocation5 + $0x258] sm:$0xff] %vm2550, %v2533
  %v2567 = vld [vmem:[%s2191 + $0x1] sm:$0xff]
  %v2568 = vld [vmem:[%s2191 + $0x11] sm:$0xff]
  %v2569 = vld [vmem:[%s2191 + $0x21] sm:$0xff]
  %v2570 = vld [vmem:[%s2191 + $0x31] sm:$0xff]
  %v2571 = vld [vmem:[%s2191 + $0x41] sm:$0xff]
  %v2572 = vld [vmem:[%s2191 + $0x51] sm:$0xff]
  %v2573 = vld [vmem:[%s2191 + $0x61] sm:$0xff]
  %v2574 = vld [vmem:[%s2191 + $0x71] sm:$0xff]
  %v2575 = vld [vmem:[%s2191 + $0xa1] sm:$0xff]
  %v2576 = vld [vmem:[%s2191 + $0xb1] sm:$0xff]
  %v2577 = vld [vmem:[%s2191 + $0xc1] sm:$0xff]
  %v2578 = vld [vmem:[%s2191 + $0xd1] sm:$0xff]
  %v2579 = vld [vmem:[%s2191 + $0xe1] sm:$0xff]
  %v2580 = vld [vmem:[%s2191 + $0xf1] sm:$0xff]
  %v2581 = vld [vmem:[%s2191 + $0x101] sm:$0xff]
  %v2582 = vld [vmem:[%s2191 + $0x111] sm:$0xff]
  %2583 = vst.msk [vmem:[#allocation5 + $0x8] sm:$0xff] %vm347, %v2567
  %2584 = vst.msk [vmem:[#allocation5 + $0x30] sm:$0xff] %vm347, %v2568
  %2585 = vst.msk [vmem:[#allocation5 + $0x58] sm:$0xff] %vm347, %v2569
  %2586 = vst.msk [vmem:[#allocation5 + $0x80] sm:$0xff] %vm347, %v2570
  %2587 = vst.msk [vmem:[#allocation5 + $0xa8] sm:$0xff] %vm347, %v2571
  %2588 = vst.msk [vmem:[#allocation5 + $0xd0] sm:$0xff] %vm347, %v2572
  %2589 = vst.msk [vmem:[#allocation5 + $0xf8] sm:$0xff] %vm347, %v2573
  %2590 = vst.msk [vmem:[#allocation5 + $0x120] sm:$0xff] %vm347, %v2574
  %2591 = vst.msk [vmem:[#allocation5 + $0x148] sm:$0xff] %vm347, %v2575
  %2592 = vst.msk [vmem:[#allocation5 + $0x170] sm:$0xff] %vm347, %v2576
  %2593 = vst.msk [vmem:[#allocation5 + $0x198] sm:$0xff] %vm347, %v2577
  %2594 = vst.msk [vmem:[#allocation5 + $0x1c0] sm:$0xff] %vm347, %v2578
  %2595 = vst.msk [vmem:[#allocation5 + $0x1e8] sm:$0xff] %vm347, %v2579
  %2596 = vst.msk [vmem:[#allocation5 + $0x210] sm:$0xff] %vm347, %v2580
  %2597 = vst.msk [vmem:[#allocation5 + $0x238] sm:$0xff] %vm347, %v2581
  %2598 = vst.msk [vmem:[#allocation5 + $0x260] sm:$0xff] %vm347, %v2582
  %v2599 = vld [vmem:[%s2191 + $0x2] sm:$0xff]
  %v2600 = vld [vmem:[%s2191 + $0x12] sm:$0xff]
  %v2601 = vld [vmem:[%s2191 + $0x22] sm:$0xff]
  %v2602 = vld [vmem:[%s2191 + $0x32] sm:$0xff]
  %v2603 = vld [vmem:[%s2191 + $0x42] sm:$0xff]
  %v2604 = vld [vmem:[%s2191 + $0x52] sm:$0xff]
  %v2605 = vld [vmem:[%s2191 + $0x62] sm:$0xff]
  %v2606 = vld [vmem:[%s2191 + $0x72] sm:$0xff]
  %v2607 = vld [vmem:[%s2191 + $0xa2] sm:$0xff]
  %v2608 = vld [vmem:[%s2191 + $0xb2] sm:$0xff]
  %v2609 = vld [vmem:[%s2191 + $0xc2] sm:$0xff]
  %v2610 = vld [vmem:[%s2191 + $0xd2] sm:$0xff]
  %v2611 = vld [vmem:[%s2191 + $0xe2] sm:$0xff]
  %v2612 = vld [vmem:[%s2191 + $0xf2] sm:$0xff]
  %v2613 = vld [vmem:[%s2191 + $0x102] sm:$0xff]
  %v2614 = vld [vmem:[%s2191 + $0x112] sm:$0xff]
  %2631 = vrot.lane.b32.xlu0 %v2599, 32
  %v2632 = vpop.permute.xlu0 %2631
  %2633 = vrot.lane.b32.xlu0 %v2600, 32
  %v2634 = vpop.permute.xlu0 %2633
  %2635 = vrot.lane.b32.xlu0 %v2601, 32
  %v2636 = vpop.permute.xlu0 %2635
  %2637 = vrot.lane.b32.xlu0 %v2602, 32
  %v2638 = vpop.permute.xlu0 %2637
  %2639 = vrot.lane.b32.xlu0 %v2603, 32
  %v2640 = vpop.permute.xlu0 %2639
  %2641 = vrot.lane.b32.xlu0 %v2604, 32
  %v2642 = vpop.permute.xlu0 %2641
  %2643 = vrot.lane.b32.xlu0 %v2605, 32
  %v2644 = vpop.permute.xlu0 %2643
  %2645 = vrot.lane.b32.xlu0 %v2606, 32
  %v2646 = vpop.permute.xlu0 %2645
  %2647 = vrot.lane.b32.xlu0 %v2607, 32
  %v2648 = vpop.permute.xlu0 %2647
  %2649 = vrot.lane.b32.xlu0 %v2608, 32
  %v2650 = vpop.permute.xlu0 %2649
  %2651 = vrot.lane.b32.xlu0 %v2609, 32
  %v2652 = vpop.permute.xlu0 %2651
  %2653 = vrot.lane.b32.xlu0 %v2610, 32
  %v2654 = vpop.permute.xlu0 %2653
  %2655 = vrot.lane.b32.xlu0 %v2611, 32
  %v2656 = vpop.permute.xlu0 %2655
  %2657 = vrot.lane.b32.xlu0 %v2612, 32
  %v2658 = vpop.permute.xlu0 %2657
  %2659 = vrot.lane.b32.xlu0 %v2613, 32
  %v2660 = vpop.permute.xlu0 %2659
  %2661 = vrot.lane.b32.xlu0 %v2614, 32
  %v2662 = vpop.permute.xlu0 %2661
  %2679 = vst.msk [vmem:[#allocation5 + $0x8] sm:$0xff] %vm2356, %v2632
  %2680 = vst.msk [vmem:[#allocation5 + $0x30] sm:$0xff] %vm2356, %v2634
  %2681 = vst.msk [vmem:[#allocation5 + $0x58] sm:$0xff] %vm2356, %v2636
  %2682 = vst.msk [vmem:[#allocation5 + $0x80] sm:$0xff] %vm2356, %v2638
  %2683 = vst.msk [vmem:[#allocation5 + $0xa8] sm:$0xff] %vm2356, %v2640
  %2684 = vst.msk [vmem:[#allocation5 + $0xd0] sm:$0xff] %vm2356, %v2642
  %2685 = vst.msk [vmem:[#allocation5 + $0xf8] sm:$0xff] %vm2356, %v2644
  %2686 = vst.msk [vmem:[#allocation5 + $0x120] sm:$0xff] %vm2356, %v2646
  %2687 = vst.msk [vmem:[#allocation5 + $0x148] sm:$0xff] %vm2356, %v2648
  %2688 = vst.msk [vmem:[#allocation5 + $0x170] sm:$0xff] %vm2356, %v2650
  %2689 = vst.msk [vmem:[#allocation5 + $0x198] sm:$0xff] %vm2356, %v2652
  %2690 = vst.msk [vmem:[#allocation5 + $0x1c0] sm:$0xff] %vm2356, %v2654
  %2691 = vst.msk [vmem:[#allocation5 + $0x1e8] sm:$0xff] %vm2356, %v2656
  %2692 = vst.msk [vmem:[#allocation5 + $0x210] sm:$0xff] %vm2356, %v2658
  %2693 = vst.msk [vmem:[#allocation5 + $0x238] sm:$0xff] %vm2356, %v2660
  %2694 = vst.msk [vmem:[#allocation5 + $0x260] sm:$0xff] %vm2356, %v2662
  %s2695 = scalar_lea.vmem [#allocation3], 32
  %v2696 = vld [vmem:[%s2695] sm:$0xff]
  %v2697 = vld [vmem:[%s2695 + $0x10] sm:$0xff]
  %v2698 = vld [vmem:[%s2695 + $0x20] sm:$0xff]
  %v2699 = vld [vmem:[%s2695 + $0x30] sm:$0xff]
  %v2700 = vld [vmem:[%s2695 + $0x40] sm:$0xff]
  %v2701 = vld [vmem:[%s2695 + $0x50] sm:$0xff]
  %v2702 = vld [vmem:[%s2695 + $0x60] sm:$0xff]
  %v2703 = vld [vmem:[%s2695 + $0x70] sm:$0xff]
  %v2704 = vld [vmem:[%s2695 + $0xa0] sm:$0xff]
  %v2705 = vld [vmem:[%s2695 + $0xb0] sm:$0xff]
  %v2706 = vld [vmem:[%s2695 + $0xc0] sm:$0xff]
  %v2707 = vld [vmem:[%s2695 + $0xd0] sm:$0xff]
  %v2708 = vld [vmem:[%s2695 + $0xe0] sm:$0xff]
  %v2709 = vld [vmem:[%s2695 + $0xf0] sm:$0xff]
  %v2710 = vld [vmem:[%s2695 + $0x100] sm:$0xff]
  %v2711 = vld [vmem:[%s2695 + $0x110] sm:$0xff]
  %2728 = vrot.lane.b32.xlu0 %v2696, 64
  %v2729 = vpop.permute.xlu0 %2728
  %2730 = vrot.lane.b32.xlu0 %v2697, 64
  %v2731 = vpop.permute.xlu0 %2730
  %2732 = vrot.lane.b32.xlu0 %v2698, 64
  %v2733 = vpop.permute.xlu0 %2732
  %2734 = vrot.lane.b32.xlu0 %v2699, 64
  %v2735 = vpop.permute.xlu0 %2734
  %2736 = vrot.lane.b32.xlu0 %v2700, 64
  %v2737 = vpop.permute.xlu0 %2736
  %2738 = vrot.lane.b32.xlu0 %v2701, 64
  %v2739 = vpop.permute.xlu0 %2738
  %2740 = vrot.lane.b32.xlu0 %v2702, 64
  %v2741 = vpop.permute.xlu0 %2740
  %2742 = vrot.lane.b32.xlu0 %v2703, 64
  %v2743 = vpop.permute.xlu0 %2742
  %2744 = vrot.lane.b32.xlu0 %v2704, 64
  %v2745 = vpop.permute.xlu0 %2744
  %2746 = vrot.lane.b32.xlu0 %v2705, 64
  %v2747 = vpop.permute.xlu0 %2746
  %2748 = vrot.lane.b32.xlu0 %v2706, 64
  %v2749 = vpop.permute.xlu0 %2748
  %2750 = vrot.lane.b32.xlu0 %v2707, 64
  %v2751 = vpop.permute.xlu0 %2750
  %2752 = vrot.lane.b32.xlu0 %v2708, 64
  %v2753 = vpop.permute.xlu0 %2752
  %2754 = vrot.lane.b32.xlu0 %v2709, 64
  %v2755 = vpop.permute.xlu0 %2754
  %2756 = vrot.lane.b32.xlu0 %v2710, 64
  %v2757 = vpop.permute.xlu0 %2756
  %2758 = vrot.lane.b32.xlu0 %v2711, 64
  %v2759 = vpop.permute.xlu0 %2758
  %2776 = vst.msk [vmem:[#allocation5 + $0x8] sm:$0xff] %vm2453, %v2729
  %2777 = vst.msk [vmem:[#allocation5 + $0x30] sm:$0xff] %vm2453, %v2731
  %2778 = vst.msk [vmem:[#allocation5 + $0x58] sm:$0xff] %vm2453, %v2733
  %2779 = vst.msk [vmem:[#allocation5 + $0x80] sm:$0xff] %vm2453, %v2735
  %2780 = vst.msk [vmem:[#allocation5 + $0xa8] sm:$0xff] %vm2453, %v2737
  %2781 = vst.msk [vmem:[#allocation5 + $0xd0] sm:$0xff] %vm2453, %v2739
  %2782 = vst.msk [vmem:[#allocation5 + $0xf8] sm:$0xff] %vm2453, %v2741
  %2783 = vst.msk [vmem:[#allocation5 + $0x120] sm:$0xff] %vm2453, %v2743
  %2784 = vst.msk [vmem:[#allocation5 + $0x148] sm:$0xff] %vm2453, %v2745
  %2785 = vst.msk [vmem:[#allocation5 + $0x170] sm:$0xff] %vm2453, %v2747
  %2786 = vst.msk [vmem:[#allocation5 + $0x198] sm:$0xff] %vm2453, %v2749
  %2787 = vst.msk [vmem:[#allocation5 + $0x1c0] sm:$0xff] %vm2453, %v2751
  %2788 = vst.msk [vmem:[#allocation5 + $0x1e8] sm:$0xff] %vm2453, %v2753
  %2789 = vst.msk [vmem:[#allocation5 + $0x210] sm:$0xff] %vm2453, %v2755
  %2790 = vst.msk [vmem:[#allocation5 + $0x238] sm:$0xff] %vm2453, %v2757
  %2791 = vst.msk [vmem:[#allocation5 + $0x260] sm:$0xff] %vm2453, %v2759
  %v2792 = vld [vmem:[%s2695 + $0x1] sm:$0xff]
  %v2793 = vld [vmem:[%s2695 + $0x11] sm:$0xff]
  %v2794 = vld [vmem:[%s2695 + $0x21] sm:$0xff]
  %v2795 = vld [vmem:[%s2695 + $0x31] sm:$0xff]
  %v2796 = vld [vmem:[%s2695 + $0x41] sm:$0xff]
  %v2797 = vld [vmem:[%s2695 + $0x51] sm:$0xff]
  %v2798 = vld [vmem:[%s2695 + $0x61] sm:$0xff]
  %v2799 = vld [vmem:[%s2695 + $0x71] sm:$0xff]
  %v2800 = vld [vmem:[%s2695 + $0xa1] sm:$0xff]
  %v2801 = vld [vmem:[%s2695 + $0xb1] sm:$0xff]
  %v2802 = vld [vmem:[%s2695 + $0xc1] sm:$0xff]
  %v2803 = vld [vmem:[%s2695 + $0xd1] sm:$0xff]
  %v2804 = vld [vmem:[%s2695 + $0xe1] sm:$0xff]
  %v2805 = vld [vmem:[%s2695 + $0xf1] sm:$0xff]
  %v2806 = vld [vmem:[%s2695 + $0x101] sm:$0xff]
  %v2807 = vld [vmem:[%s2695 + $0x111] sm:$0xff]
  %2824 = vrot.lane.b32.xlu0 %v2792, 96
  %v2825 = vpop.permute.xlu0 %2824
  %2826 = vrot.lane.b32.xlu0 %v2793, 96
  %v2827 = vpop.permute.xlu0 %2826
  %2828 = vrot.lane.b32.xlu0 %v2794, 96
  %v2829 = vpop.permute.xlu0 %2828
  %2830 = vrot.lane.b32.xlu0 %v2795, 96
  %v2831 = vpop.permute.xlu0 %2830
  %2832 = vrot.lane.b32.xlu0 %v2796, 96
  %v2833 = vpop.permute.xlu0 %2832
  %2834 = vrot.lane.b32.xlu0 %v2797, 96
  %v2835 = vpop.permute.xlu0 %2834
  %2836 = vrot.lane.b32.xlu0 %v2798, 96
  %v2837 = vpop.permute.xlu0 %2836
  %2838 = vrot.lane.b32.xlu0 %v2799, 96
  %v2839 = vpop.permute.xlu0 %2838
  %2840 = vrot.lane.b32.xlu0 %v2800, 96
  %v2841 = vpop.permute.xlu0 %2840
  %2842 = vrot.lane.b32.xlu0 %v2801, 96
  %v2843 = vpop.permute.xlu0 %2842
  %2844 = vrot.lane.b32.xlu0 %v2802, 96
  %v2845 = vpop.permute.xlu0 %2844
  %2846 = vrot.lane.b32.xlu0 %v2803, 96
  %v2847 = vpop.permute.xlu0 %2846
  %2848 = vrot.lane.b32.xlu0 %v2804, 96
  %v2849 = vpop.permute.xlu0 %2848
  %2850 = vrot.lane.b32.xlu0 %v2805, 96
  %v2851 = vpop.permute.xlu0 %2850
  %2852 = vrot.lane.b32.xlu0 %v2806, 96
  %v2853 = vpop.permute.xlu0 %2852
  %2854 = vrot.lane.b32.xlu0 %v2807, 96
  %v2855 = vpop.permute.xlu0 %2854
  %2872 = vst.msk [vmem:[#allocation5 + $0x8] sm:$0xff] %vm2550, %v2825
  %2873 = vst.msk [vmem:[#allocation5 + $0x30] sm:$0xff] %vm2550, %v2827
  %2874 = vst.msk [vmem:[#allocation5 + $0x58] sm:$0xff] %vm2550, %v2829
  %2875 = vst.msk [vmem:[#allocation5 + $0x80] sm:$0xff] %vm2550, %v2831
  %2876 = vst.msk [vmem:[#allocation5 + $0xa8] sm:$0xff] %vm2550, %v2833
  %2877 = vst.msk [vmem:[#allocation5 + $0xd0] sm:$0xff] %vm2550, %v2835
  %2878 = vst.msk [vmem:[#allocation5 + $0xf8] sm:$0xff] %vm2550, %v2837
  %2879 = vst.msk [vmem:[#allocation5 + $0x120] sm:$0xff] %vm2550, %v2839
  %2880 = vst.msk [vmem:[#allocation5 + $0x148] sm:$0xff] %vm2550, %v2841
  %2881 = vst.msk [vmem:[#allocation5 + $0x170] sm:$0xff] %vm2550, %v2843
  %2882 = vst.msk [vmem:[#allocation5 + $0x198] sm:$0xff] %vm2550, %v2845
  %2883 = vst.msk [vmem:[#allocation5 + $0x1c0] sm:$0xff] %vm2550, %v2847
  %2884 = vst.msk [vmem:[#allocation5 + $0x1e8] sm:$0xff] %vm2550, %v2849
  %2885 = vst.msk [vmem:[#allocation5 + $0x210] sm:$0xff] %vm2550, %v2851
  %2886 = vst.msk [vmem:[#allocation5 + $0x238] sm:$0xff] %vm2550, %v2853
  %2887 = vst.msk [vmem:[#allocation5 + $0x260] sm:$0xff] %vm2550, %v2855
  %v2888 = vld [vmem:[%s2695 + $0x2] sm:$0xff]
  %v2889 = vld [vmem:[%s2695 + $0x12] sm:$0xff]
  %v2890 = vld [vmem:[%s2695 + $0x22] sm:$0xff]
  %v2891 = vld [vmem:[%s2695 + $0x32] sm:$0xff]
  %v2892 = vld [vmem:[%s2695 + $0x42] sm:$0xff]
  %v2893 = vld [vmem:[%s2695 + $0x52] sm:$0xff]
  %v2894 = vld [vmem:[%s2695 + $0x62] sm:$0xff]
  %v2895 = vld [vmem:[%s2695 + $0x72] sm:$0xff]
  %v2896 = vld [vmem:[%s2695 + $0xa2] sm:$0xff]
  %v2897 = vld [vmem:[%s2695 + $0xb2] sm:$0xff]
  %v2898 = vld [vmem:[%s2695 + $0xc2] sm:$0xff]
  %v2899 = vld [vmem:[%s2695 + $0xd2] sm:$0xff]
  %v2900 = vld [vmem:[%s2695 + $0xe2] sm:$0xff]
  %v2901 = vld [vmem:[%s2695 + $0xf2] sm:$0xff]
  %v2902 = vld [vmem:[%s2695 + $0x102] sm:$0xff]
  %v2903 = vld [vmem:[%s2695 + $0x112] sm:$0xff]
  %2904 = vst.msk [vmem:[#allocation5 + $0x10] sm:$0xff] %vm347, %v2888
  %2905 = vst.msk [vmem:[#allocation5 + $0x38] sm:$0xff] %vm347, %v2889
  %2906 = vst.msk [vmem:[#allocation5 + $0x60] sm:$0xff] %vm347, %v2890
  %2907 = vst.msk [vmem:[#allocation5 + $0x88] sm:$0xff] %vm347, %v2891
  %2908 = vst.msk [vmem:[#allocation5 + $0xb0] sm:$0xff] %vm347, %v2892
  %2909 = vst.msk [vmem:[#allocation5 + $0xd8] sm:$0xff] %vm347, %v2893
  %2910 = vst.msk [vmem:[#allocation5 + $0x100] sm:$0xff] %vm347, %v2894
  %2911 = vst.msk [vmem:[#allocation5 + $0x128] sm:$0xff] %vm347, %v2895
  %2912 = vst.msk [vmem:[#allocation5 + $0x150] sm:$0xff] %vm347, %v2896
  %2913 = vst.msk [vmem:[#allocation5 + $0x178] sm:$0xff] %vm347, %v2897
  %2914 = vst.msk [vmem:[#allocation5 + $0x1a0] sm:$0xff] %vm347, %v2898
  %2915 = vst.msk [vmem:[#allocation5 + $0x1c8] sm:$0xff] %vm347, %v2899
  %2916 = vst.msk [vmem:[#allocation5 + $0x1f0] sm:$0xff] %vm347, %v2900
  %2917 = vst.msk [vmem:[#allocation5 + $0x218] sm:$0xff] %vm347, %v2901
  %2918 = vst.msk [vmem:[#allocation5 + $0x240] sm:$0xff] %vm347, %v2902
  %2919 = vst.msk [vmem:[#allocation5 + $0x268] sm:$0xff] %vm347, %v2903
  %v2920 = vld [vmem:[#allocation5] sm:$0xff]
  %v2921 = vld [vmem:[#allocation5 + $0x8] sm:$0xff]
  %v2922 = vld [vmem:[#allocation5 + $0x10] sm:$0xff]
  %v2923 = vld [vmem:[#allocation5 + $0x28] sm:$0xff]
  %v2924 = vld [vmem:[#allocation5 + $0x30] sm:$0xff]
  %v2925 = vld [vmem:[#allocation5 + $0x38] sm:$0xff]
  %v2926 = vld [vmem:[#allocation5 + $0x50] sm:$0xff]
  %v2927 = vld [vmem:[#allocation5 + $0x58] sm:$0xff]
  %v2928 = vld [vmem:[#allocation5 + $0x60] sm:$0xff]
  %v2929 = vld [vmem:[#allocation5 + $0x78] sm:$0xff]
  %v2930 = vld [vmem:[#allocation5 + $0x80] sm:$0xff]
  %v2931 = vld [vmem:[#allocation5 + $0x88] sm:$0xff]
  %v2932 = vld [vmem:[#allocation5 + $0xa0] sm:$0xff]
  %v2933 = vld [vmem:[#allocation5 + $0xa8] sm:$0xff]
  %v2934 = vld [vmem:[#allocation5 + $0xb0] sm:$0xff]
  %v2935 = vld [vmem:[#allocation5 + $0xc8] sm:$0xff]
  %v2936 = vld [vmem:[#allocation5 + $0xd0] sm:$0xff]
  %v2937 = vld [vmem:[#allocation5 + $0xd8] sm:$0xff]
  %v2938 = vld [vmem:[#allocation5 + $0xf0] sm:$0xff]
  %v2939 = vld [vmem:[#allocation5 + $0xf8] sm:$0xff]
  %v2940 = vld [vmem:[#allocation5 + $0x100] sm:$0xff]
  %v2941 = vld [vmem:[#allocation5 + $0x118] sm:$0xff]
  %v2942 = vld [vmem:[#allocation5 + $0x120] sm:$0xff]
  %v2943 = vld [vmem:[#allocation5 + $0x128] sm:$0xff]
  %v2944 = vld [vmem:[#allocation5 + $0x140] sm:$0xff]
  %v2945 = vld [vmem:[#allocation5 + $0x148] sm:$0xff]
  %v2946 = vld [vmem:[#allocation5 + $0x150] sm:$0xff]
  %v2947 = vld [vmem:[#allocation5 + $0x168] sm:$0xff]
  %v2948 = vld [vmem:[#allocation5 + $0x170] sm:$0xff]
  %v2949 = vld [vmem:[#allocation5 + $0x178] sm:$0xff]
  %v2950 = vld [vmem:[#allocation5 + $0x190] sm:$0xff]
  %v2951 = vld [vmem:[#allocation5 + $0x198] sm:$0xff]
  %v2952 = vld [vmem:[#allocation5 + $0x1a0] sm:$0xff]
  %v2953 = vld [vmem:[#allocation5 + $0x1b8] sm:$0xff]
  %v2954 = vld [vmem:[#allocation5 + $0x1c0] sm:$0xff]
  %v2955 = vld [vmem:[#allocation5 + $0x1c8] sm:$0xff]
  %v2956 = vld [vmem:[#allocation5 + $0x1e0] sm:$0xff]
  %v2957 = vld [vmem:[#allocation5 + $0x1e8] sm:$0xff]
  %v2958 = vld [vmem:[#allocation5 + $0x1f0] sm:$0xff]
  %v2959 = vld [vmem:[#allocation5 + $0x208] sm:$0xff]
  %v2960 = vld [vmem:[#allocation5 + $0x210] sm:$0xff]
  %v2961 = vld [vmem:[#allocation5 + $0x218] sm:$0xff]
  %v2962 = vld [vmem:[#allocation5 + $0x230] sm:$0xff]
  %v2963 = vld [vmem:[#allocation5 + $0x238] sm:$0xff]
  %v2964 = vld [vmem:[#allocation5 + $0x240] sm:$0xff]
  %v2965 = vld [vmem:[#allocation5 + $0x258] sm:$0xff]
  %v2966 = vld [vmem:[#allocation5 + $0x260] sm:$0xff]
  %v2967 = vld [vmem:[#allocation5 + $0x268] sm:$0xff]
  %v2969 = vsel %vm347, %v2922, 0
  %v2972 = vsel %vm347, %v2925, 0
  %v2975 = vsel %vm347, %v2928, 0
  %v2978 = vsel %vm347, %v2931, 0
  %v2981 = vsel %vm347, %v2934, 0
  %v2984 = vsel %vm347, %v2937, 0
  %v2987 = vsel %vm347, %v2940, 0
  %v2990 = vsel %vm347, %v2943, 0
  %v2993 = vsel %vm347, %v2946, 0
  %v2996 = vsel %vm347, %v2949, 0
  %v2999 = vsel %vm347, %v2952, 0
  %v3002 = vsel %vm347, %v2955, 0
  %v3005 = vsel %vm347, %v2958, 0
  %v3008 = vsel %vm347, %v2961, 0
  %v3011 = vsel %vm347, %v2964, 0
  %v3014 = vsel %vm347, %v2967, 0
  %3016 = vmatprep.subr.mxu0 0.0
  %3017 = vmatpush1.msra.mxu0 %v2208
  %3018 = vmatprep.subr.mxu0 0.0
  %3019 = vmatpush1.msra.mxu0 %v2209
  %3020 = vmatprep.subr.mxu0 0.0
  %3021 = vmatpush1.msra.mxu0 %v2210
  %3022 = vmatprep.subr.mxu0 0.0
  %3023 = vmatpush1.msra.mxu0 %v2211
  %3024 = vmatprep.subr.mxu0 0.0
  %3025 = vmatpush1.msra.mxu0 %v2212
  %3026 = vmatprep.subr.mxu0 0.0
  %3027 = vmatpush1.msra.mxu0 %v2213
  %3028 = vmatprep.subr.mxu0 0.0
  %3029 = vmatpush1.msra.mxu0 %v2214
  %3030 = vmatprep.subr.mxu0 0.0
  %3031 = vmatpush1.msra.mxu0 %v2215
  %3032 = vmatprep.subr.mxu0 0.0
  %3033 = vmatpush1.msra.mxu0 %v2216
  %3034 = vmatprep.subr.mxu0 0.0
  %3035 = vmatpush1.msra.mxu0 %v2217
  %3036 = vmatprep.subr.mxu0 0.0
  %3037 = vmatpush1.msra.mxu0 %v2218
  %3038 = vmatprep.subr.mxu0 0.0
  %3039 = vmatpush1.msra.mxu0 %v2219
  %3040 = vmatprep.subr.mxu0 0.0
  %3041 = vmatpush1.msra.mxu0 %v2220
  %3042 = vmatprep.subr.mxu0 0.0
  %3043 = vmatpush1.msra.mxu0 %v2221
  %3044 = vmatprep.subr.mxu0 0.0
  %3045 = vmatpush1.msra.mxu0 %v2222
  %3046 = vmatprep.subr.mxu0 0.0
  %3047 = vmatpush1.msra.mxu0 %v2223
  %3048 = vmatprep.subr.mxu0 0.0
  %3049 = vmatpush1.msra.mxu0 %v2224
  %3050 = vmatprep.subr.mxu0 0.0
  %3051 = vmatpush1.msra.mxu0 %v2225
  %3052 = vmatprep.subr.mxu0 0.0
  %3053 = vmatpush1.msra.mxu0 %v2226
  %3054 = vmatprep.subr.mxu0 0.0
  %3055 = vmatpush1.msra.mxu0 %v2227
  %3056 = vmatprep.subr.mxu0 0.0
  %3057 = vmatpush1.msra.mxu0 %v2228
  %3058 = vmatprep.subr.mxu0 0.0
  %3059 = vmatpush1.msra.mxu0 %v2229
  %3060 = vmatprep.subr.mxu0 0.0
  %3061 = vmatpush1.msra.mxu0 %v2230
  %3062 = vmatprep.subr.mxu0 0.0
  %3063 = vmatpush1.msra.mxu0 %v2231
  %3064 = vmatprep.subr.mxu0 0.0
  %3065 = vmatpush1.msra.mxu0 %v2232
  %3066 = vmatprep.subr.mxu0 0.0
  %3067 = vmatpush1.msra.mxu0 %v2233
  %3068 = vmatprep.subr.mxu0 0.0
  %3069 = vmatpush1.msra.mxu0 %v2234
  %3070 = vmatprep.subr.mxu0 0.0
  %3071 = vmatpush1.msra.mxu0 %v2235
  %3072 = vmatprep.subr.mxu0 0.0
  %3073 = vmatpush1.msra.mxu0 %v2236
  %3074 = vmatprep.subr.mxu0 0.0
  %3075 = vmatpush1.msra.mxu0 %v2237
  %3076 = vmatprep.subr.mxu0 0.0
  %3077 = vmatpush1.msra.mxu0 %v2238
  %3078 = vmatprep.subr.mxu0 0.0
  %3079 = vmatpush1.msra.mxu0 %v2239
  %3080 = vmatprep.mubr.f32.mxu0 %v2921
  %3081 = vmatmul.mubr.f32.gmra.mrb[0].mxu0 %v2920
  %v3082 = vpop.f32.mrb[0].mxu0
  %v3083 = vadd.f32 0.0, %v3082
  %v3084 = vpop.f32.mrb[0].mxu0
  %3085 = vmatprep.mubr.f32.mxu0 %v2924
  %3086 = vmatmul.mubr.f32.gmra.mrb[0].mxu0 %v2923
  %v3087 = vpop.f32.mrb[0].mxu0
  %v3088 = vadd.f32 0.0, %v3087
  %v3089 = vpop.f32.mrb[0].mxu0
  %3090 = vmatprep.mubr.f32.mxu0 %v2927
  %3091 = vmatmul.mubr.f32.gmra.mrb[0].mxu0 %v2926
  %v3092 = vpop.f32.mrb[0].mxu0
  %v3093 = vadd.f32 0.0, %v3092
  %v3094 = vpop.f32.mrb[0].mxu0
  %3095 = vmatprep.mubr.f32.mxu0 %v2930
  %3096 = vmatmul.mubr.f32.gmra.mrb[0].mxu0 %v2929
  %v3097 = vpop.f32.mrb[0].mxu0
  %v3098 = vadd.f32 0.0, %v3097
  %v3099 = vpop.f32.mrb[0].mxu0
  %3100 = vmatprep.mubr.f32.mxu0 %v2933
  %3101 = vmatmul.mubr.f32.gmra.mrb[0].mxu0 %v2932
  %v3102 = vpop.f32.mrb[0].mxu0
  %v3103 = vadd.f32 0.0, %v3102
  %v3104 = vpop.f32.mrb[0].mxu0
  %3105 = vmatprep.mubr.f32.mxu0 %v2936
  %3106 = vmatmul.mubr.f32.gmra.mrb[0].mxu0 %v2935
  %v3107 = vpop.f32.mrb[0].mxu0
  %v3108 = vadd.f32 0.0, %v3107
  %v3109 = vpop.f32.mrb[0].mxu0
  %3110 = vmatprep.mubr.f32.mxu0 %v2939
  %3111 = vmatmul.mubr.f32.gmra.mrb[0].mxu0 %v2938
  %v3112 = vpop.f32.mrb[0].mxu0
  %v3113 = vadd.f32 0.0, %v3112
  %v3114 = vpop.f32.mrb[0].mxu0
  %3115 = vmatprep.mubr.f32.mxu0 %v2942
  %3116 = vmatmul.mubr.f32.gmra.mrb[0].mxu0 %v2941
  %v3117 = vpop.f32.mrb[0].mxu0
  %v3118 = vadd.f32 0.0, %v3117
  %v3119 = vpop.f32.mrb[0].mxu0
  %3120 = vmatprep.mubr.f32.mxu0 %v2945
  %3121 = vmatmul.mubr.f32.gmra.mrb[0].mxu0 %v2944
  %v3122 = vpop.f32.mrb[0].mxu0
  %v3123 = vadd.f32 0.0, %v3122
  %v3124 = vpop.f32.mrb[0].mxu0
  %3125 = vmatprep.mubr.f32.mxu0 %v2948
  %3126 = vmatmul.mubr.f32.gmra.mrb[0].mxu0 %v2947
  %v3127 = vpop.f32.mrb[0].mxu0
  %v3128 = vadd.f32 0.0, %v3127
  %v3129 = vpop.f32.mrb[0].mxu0
  %3130 = vmatprep.mubr.f32.mxu0 %v2951
  %3131 = vmatmul.mubr.f32.gmra.mrb[0].mxu0 %v2950
  %v3132 = vpop.f32.mrb[0].mxu0
  %v3133 = vadd.f32 0.0, %v3132
  %v3134 = vpop.f32.mrb[0].mxu0
  %3135 = vmatprep.mubr.f32.mxu0 %v2954
  %3136 = vmatmul.mubr.f32.gmra.mrb[0].mxu0 %v2953
  %v3137 = vpop.f32.mrb[0].mxu0
  %v3138 = vadd.f32 0.0, %v3137
  %v3139 = vpop.f32.mrb[0].mxu0
  %3140 = vmatprep.mubr.f32.mxu0 %v2957
  %3141 = vmatmul.mubr.f32.gmra.mrb[0].mxu0 %v2956
  %v3142 = vpop.f32.mrb[0].mxu0
  %v3143 = vadd.f32 0.0, %v3142
  %v3144 = vpop.f32.mrb[0].mxu0
  %3145 = vmatprep.mubr.f32.mxu0 %v2960
  %3146 = vmatmul.mubr.f32.gmra.mrb[0].mxu0 %v2959
  %v3147 = vpop.f32.mrb[0].mxu0
  %v3148 = vadd.f32 0.0, %v3147
  %v3149 = vpop.f32.mrb[0].mxu0
  %3150 = vmatprep.mubr.f32.mxu0 %v2963
  %3151 = vmatmul.mubr.f32.gmra.mrb[0].mxu0 %v2962
  %v3152 = vpop.f32.mrb[0].mxu0
  %v3153 = vadd.f32 0.0, %v3152
  %v3154 = vpop.f32.mrb[0].mxu0
  %3155 = vmatprep.mubr.f32.mxu0 %v2966
  %3156 = vmatmul.mubr.f32.gmra.mrb[0].mxu0 %v2965
  %v3157 = vpop.f32.mrb[0].mxu0
  %v3158 = vadd.f32 0.0, %v3157
  %v3159 = vpop.f32.mrb[0].mxu0
  %3160 = vdwg.mxu0
  %3161 = vmatprep.subr.mxu0 0.0
  %3162 = vmatpush1.msra.mxu0 %v2240
  %3163 = vmatprep.subr.mxu0 0.0
  %3164 = vmatpush1.msra.mxu0 %v2241
  %3165 = vmatprep.subr.mxu0 0.0
  %3166 = vmatpush1.msra.mxu0 %v2242
  %3167 = vmatprep.subr.mxu0 0.0
  %3168 = vmatpush1.msra.mxu0 %v2243
  %3169 = vmatprep.subr.mxu0 0.0
  %3170 = vmatpush1.msra.mxu0 0.0
  %3171 = vmatprep.subr.mxu0 0.0
  %3172 = vmatpush1.msra.mxu0 0.0
  %3173 = vmatprep.subr.mxu0 0.0
  %3174 = vmatpush1.msra.mxu0 0.0
  %3175 = vmatprep.subr.mxu0 0.0
  %3176 = vmatpush1.msra.mxu0 0.0
  %3177 = vmatprep.subr.mxu0 0.0
  %3178 = vmatpush1.msra.mxu0 0.0
  %3179 = vmatprep.subr.mxu0 0.0
  %3180 = vmatpush1.msra.mxu0 0.0
  %3181 = vmatprep.subr.mxu0 0.0
  %3182 = vmatpush1.msra.mxu0 0.0
  %3183 = vmatprep.subr.mxu0 0.0
  %3184 = vmatpush1.msra.mxu0 0.0
  %3185 = vmatprep.subr.mxu0 0.0
  %3186 = vmatpush1.msra.mxu0 0.0
  %3187 = vmatprep.subr.mxu0 0.0
  %3188 = vmatpush1.msra.mxu0 0.0
  %3189 = vmatprep.subr.mxu0 0.0
  %3190 = vmatpush1.msra.mxu0 0.0
  %3191 = vmatprep.subr.mxu0 0.0
  %3192 = vmatpush1.msra.mxu0 0.0
  %3193 = vmatprep.subr.mxu0 0.0
  %3194 = vmatpush1.msra.mxu0 0.0
  %3195 = vmatprep.subr.mxu0 0.0
  %3196 = vmatpush1.msra.mxu0 0.0
  %3197 = vmatprep.subr.mxu0 0.0
  %3198 = vmatpush1.msra.mxu0 0.0
  %3199 = vmatprep.subr.mxu0 0.0
  %3200 = vmatpush1.msra.mxu0 0.0
  %3201 = vmatprep.subr.mxu0 0.0
  %3202 = vmatpush1.msra.mxu0 0.0
  %3203 = vmatprep.subr.mxu0 0.0
  %3204 = vmatpush1.msra.mxu0 0.0
  %3205 = vmatprep.subr.mxu0 0.0
  %3206 = vmatpush1.msra.mxu0 0.0
  %3207 = vmatprep.subr.mxu0 0.0
  %3208 = vmatpush1.msra.mxu0 0.0
  %3209 = vmatprep.subr.mxu0 0.0
  %3210 = vmatpush1.msra.mxu0 0.0
  %3211 = vmatprep.subr.mxu0 0.0
  %3212 = vmatpush1.msra.mxu0 0.0
  %3213 = vmatprep.subr.mxu0 0.0
  %3214 = vmatpush1.msra.mxu0 0.0
  %3215 = vmatprep.subr.mxu0 0.0
  %3216 = vmatpush1.msra.mxu0 0.0
  %3217 = vmatprep.subr.mxu0 0.0
  %3218 = vmatpush1.msra.mxu0 0.0
  %3219 = vmatprep.subr.mxu0 0.0
  %3220 = vmatpush1.msra.mxu0 0.0
  %3221 = vmatprep.subr.mxu0 0.0
  %3222 = vmatpush1.msra.mxu0 0.0
  %3223 = vmatprep.subr.mxu0 0.0
  %3224 = vmatpush1.msra.mxu0 0.0
  %3225 = vmatprep.mubr.f32.mxu0 0.0
  %3226 = vmatmul.mubr.f32.gmra.mrb[0].mxu0 %v2969
  %v3227 = vpop.f32.mrb[0].mxu0
  %v3228 = vadd.f32 %v3083, %v3227
  %v3229 = vpop.f32.mrb[0].mxu0
  %3230 = vmatprep.mubr.f32.mxu0 0.0
  %3231 = vmatmul.mubr.f32.gmra.mrb[0].mxu0 %v2972
  %v3232 = vpop.f32.mrb[0].mxu0
  %v3233 = vadd.f32 %v3088, %v3232
  %v3234 = vpop.f32.mrb[0].mxu0
  %3235 = vmatprep.mubr.f32.mxu0 0.0
  %3236 = vmatmul.mubr.f32.gmra.mrb[0].mxu0 %v2975
  %v3237 = vpop.f32.mrb[0].mxu0
  %v3238 = vadd.f32 %v3093, %v3237
  %v3239 = vpop.f32.mrb[0].mxu0
  %3240 = vmatprep.mubr.f32.mxu0 0.0
  %3241 = vmatmul.mubr.f32.gmra.mrb[0].mxu0 %v2978
  %v3242 = vpop.f32.mrb[0].mxu0
  %v3243 = vadd.f32 %v3098, %v3242
  %v3244 = vpop.f32.mrb[0].mxu0
  %3245 = vmatprep.mubr.f32.mxu0 0.0
  %3246 = vmatmul.mubr.f32.gmra.mrb[0].mxu0 %v2981
  %v3247 = vpop.f32.mrb[0].mxu0
  %v3248 = vadd.f32 %v3103, %v3247
  %v3249 = vpop.f32.mrb[0].mxu0
  %3250 = vmatprep.mubr.f32.mxu0 0.0
  %3251 = vmatmul.mubr.f32.gmra.mrb[0].mxu0 %v2984
  %v3252 = vpop.f32.mrb[0].mxu0
  %v3253 = vadd.f32 %v3108, %v3252
  %v3254 = vpop.f32.mrb[0].mxu0
  %3255 = vmatprep.mubr.f32.mxu0 0.0
  %3256 = vmatmul.mubr.f32.gmra.mrb[0].mxu0 %v2987
  %v3257 = vpop.f32.mrb[0].mxu0
  %v3258 = vadd.f32 %v3113, %v3257
  %v3259 = vpop.f32.mrb[0].mxu0
  %3260 = vmatprep.mubr.f32.mxu0 0.0
  %3261 = vmatmul.mubr.f32.gmra.mrb[0].mxu0 %v2990
  %v3262 = vpop.f32.mrb[0].mxu0
  %v3263 = vadd.f32 %v3118, %v3262
  %v3264 = vpop.f32.mrb[0].mxu0
  %3265 = vmatprep.mubr.f32.mxu0 0.0
  %3266 = vmatmul.mubr.f32.gmra.mrb[0].mxu0 %v2993
  %v3267 = vpop.f32.mrb[0].mxu0
  %v3268 = vadd.f32 %v3123, %v3267
  %v3269 = vpop.f32.mrb[0].mxu0
  %3270 = vmatprep.mubr.f32.mxu0 0.0
  %3271 = vmatmul.mubr.f32.gmra.mrb[0].mxu0 %v2996
  %v3272 = vpop.f32.mrb[0].mxu0
  %v3273 = vadd.f32 %v3128, %v3272
  %v3274 = vpop.f32.mrb[0].mxu0
  %3275 = vmatprep.mubr.f32.mxu0 0.0
  %3276 = vmatmul.mubr.f32.gmra.mrb[0].mxu0 %v2999
  %v3277 = vpop.f32.mrb[0].mxu0
  %v3278 = vadd.f32 %v3133, %v3277
  %v3279 = vpop.f32.mrb[0].mxu0
  %3280 = vmatprep.mubr.f32.mxu0 0.0
  %3281 = vmatmul.mubr.f32.gmra.mrb[0].mxu0 %v3002
  %v3282 = vpop.f32.mrb[0].mxu0
  %v3283 = vadd.f32 %v3138, %v3282
  %v3284 = vpop.f32.mrb[0].mxu0
  %3285 = vmatprep.mubr.f32.mxu0 0.0
  %3286 = vmatmul.mubr.f32.gmra.mrb[0].mxu0 %v3005
  %v3287 = vpop.f32.mrb[0].mxu0
  %v3288 = vadd.f32 %v3143, %v3287
  %v3289 = vpop.f32.mrb[0].mxu0
  %3290 = vmatprep.mubr.f32.mxu0 0.0
  %3291 = vmatmul.mubr.f32.gmra.mrb[0].mxu0 %v3008
  %v3292 = vpop.f32.mrb[0].mxu0
  %v3293 = vadd.f32 %v3148, %v3292
  %v3294 = vpop.f32.mrb[0].mxu0
  %3295 = vmatprep.mubr.f32.mxu0 0.0
  %3296 = vmatmul.mubr.f32.gmra.mrb[0].mxu0 %v3011
  %v3297 = vpop.f32.mrb[0].mxu0
  %v3298 = vadd.f32 %v3153, %v3297
  %v3299 = vpop.f32.mrb[0].mxu0
  %3300 = vmatprep.mubr.f32.mxu0 0.0
  %3301 = vmatmul.mubr.f32.gmra.mrb[0].mxu0 %v3014
  %v3302 = vpop.f32.mrb[0].mxu0
  %v3303 = vadd.f32 %v3158, %v3302
  %v3304 = vpop.f32.mrb[0].mxu0
  %3305 = vdwg.mxu0
  %v3306 = vmax.f32 %v3228, 0.0
  %v3307 = vmax.f32 %v3233, 0.0
  %v3308 = vmax.f32 %v3238, 0.0
  %v3309 = vmax.f32 %v3243, 0.0
  %v3310 = vmax.f32 %v3248, 0.0
  %v3311 = vmax.f32 %v3253, 0.0
  %v3312 = vmax.f32 %v3258, 0.0
  %v3313 = vmax.f32 %v3263, 0.0
  %v3314 = vmax.f32 %v3268, 0.0
  %v3315 = vmax.f32 %v3273, 0.0
  %v3316 = vmax.f32 %v3278, 0.0
  %v3317 = vmax.f32 %v3283, 0.0
  %v3318 = vmax.f32 %v3288, 0.0
  %v3319 = vmax.f32 %v3293, 0.0
  %v3320 = vmax.f32 %v3298, 0.0
  %v3321 = vmax.f32 %v3303, 0.0
  %v3322 = vld [vmem:[%s5] sm:$0xff]
  %vm3323 = vcmask 64512
  %v3325 = vsel %vm3323, %v3306, 0
  %v3328 = vsel %vm3323, %v3307, 0
  %v3331 = vsel %vm3323, %v3308, 0
  %v3334 = vsel %vm3323, %v3309, 0
  %v3337 = vsel %vm3323, %v3310, 0
  %v3340 = vsel %vm3323, %v3311, 0
  %v3343 = vsel %vm3323, %v3312, 0
  %v3346 = vsel %vm3323, %v3313, 0
  %v3349 = vsel %vm3323, %v3314, 0
  %v3352 = vsel %vm3323, %v3315, 0
  %v3355 = vsel %vm3323, %v3316, 0
  %v3358 = vsel %vm3323, %v3317, 0
  %v3361 = vsel %vm3323, %v3318, 0
  %v3364 = vsel %vm3323, %v3319, 0
  %v3367 = vsel %vm3323, %v3320, 0
  %v3370 = vsel %vm3323, %v3321, 0
  %3372 = vmatprep.subr.mxu0 0.0
  %3373 = vmatpush1.msra.mxu0 %v3322
  %3374 = vmatprep.subr.mxu0 0.0
  %3375 = vmatpush1.msra.mxu0 0.0
  %3376 = vmatprep.subr.mxu0 0.0
  %3377 = vmatpush1.msra.mxu0 0.0
  %3378 = vmatprep.subr.mxu0 0.0
  %3379 = vmatpush1.msra.mxu0 0.0
  %3380 = vmatprep.subr.mxu0 0.0
  %3381 = vmatpush1.msra.mxu0 0.0
  %3382 = vmatprep.subr.mxu0 0.0
  %3383 = vmatpush1.msra.mxu0 0.0
  %3384 = vmatprep.subr.mxu0 0.0
  %3385 = vmatpush1.msra.mxu0 0.0
  %3386 = vmatprep.subr.mxu0 0.0
  %3387 = vmatpush1.msra.mxu0 0.0
  %3388 = vmatprep.subr.mxu0 0.0
  %3389 = vmatpush1.msra.mxu0 0.0
  %3390 = vmatprep.subr.mxu0 0.0
  %3391 = vmatpush1.msra.mxu0 0.0
  %3392 = vmatprep.subr.mxu0 0.0
  %3393 = vmatpush1.msra.mxu0 0.0
  %3394 = vmatprep.subr.mxu0 0.0
  %3395 = vmatpush1.msra.mxu0 0.0
  %3396 = vmatprep.subr.mxu0 0.0
  %3397 = vmatpush1.msra.mxu0 0.0
  %3398 = vmatprep.subr.mxu0 0.0
  %3399 = vmatpush1.msra.mxu0 0.0
  %3400 = vmatprep.subr.mxu0 0.0
  %3401 = vmatpush1.msra.mxu0 0.0
  %3402 = vmatprep.subr.mxu0 0.0
  %3403 = vmatpush1.msra.mxu0 0.0
  %3404 = vmatprep.subr.mxu0 0.0
  %3405 = vmatpush1.msra.mxu0 0.0
  %3406 = vmatprep.subr.mxu0 0.0
  %3407 = vmatpush1.msra.mxu0 0.0
  %3408 = vmatprep.subr.mxu0 0.0
  %3409 = vmatpush1.msra.mxu0 0.0
  %3410 = vmatprep.subr.mxu0 0.0
  %3411 = vmatpush1.msra.mxu0 0.0
  %3412 = vmatprep.subr.mxu0 0.0
  %3413 = vmatpush1.msra.mxu0 0.0
  %3414 = vmatprep.subr.mxu0 0.0
  %3415 = vmatpush1.msra.mxu0 0.0
  %3416 = vmatprep.subr.mxu0 0.0
  %3417 = vmatpush1.msra.mxu0 0.0
  %3418 = vmatprep.subr.mxu0 0.0
  %3419 = vmatpush1.msra.mxu0 0.0
  %3420 = vmatprep.subr.mxu0 0.0
  %3421 = vmatpush1.msra.mxu0 0.0
  %3422 = vmatprep.subr.mxu0 0.0
  %3423 = vmatpush1.msra.mxu0 0.0
  %3424 = vmatprep.subr.mxu0 0.0
  %3425 = vmatpush1.msra.mxu0 0.0
  %3426 = vmatprep.subr.mxu0 0.0
  %3427 = vmatpush1.msra.mxu0 0.0
  %3428 = vmatprep.subr.mxu0 0.0
  %3429 = vmatpush1.msra.mxu0 0.0
  %3430 = vmatprep.subr.mxu0 0.0
  %3431 = vmatpush1.msra.mxu0 0.0
  %3432 = vmatprep.subr.mxu0 0.0
  %3433 = vmatpush1.msra.mxu0 0.0
  %3434 = vmatprep.subr.mxu0 0.0
  %3435 = vmatpush1.msra.mxu0 0.0
  %3436 = vmatprep.mubr.f32.mxu0 0.0
  %3437 = vmatmul.mubr.f32.gmra.mrb[0].mxu0 %v3325
  %v3438 = vpop.f32.mrb[0].mxu0
  %v3439 = vadd.f32 0.0, %v3438
  %v3440 = vpop.f32.mrb[0].mxu0
  %3441 = vmatprep.mubr.f32.mxu0 0.0
  %3442 = vmatmul.mubr.f32.gmra.mrb[0].mxu0 %v3328
  %v3443 = vpop.f32.mrb[0].mxu0
  %v3444 = vadd.f32 0.0, %v3443
  %v3445 = vpop.f32.mrb[0].mxu0
  %3446 = vmatprep.mubr.f32.mxu0 0.0
  %3447 = vmatmul.mubr.f32.gmra.mrb[0].mxu0 %v3331
  %v3448 = vpop.f32.mrb[0].mxu0
  %v3449 = vadd.f32 0.0, %v3448
  %v3450 = vpop.f32.mrb[0].mxu0
  %3451 = vmatprep.mubr.f32.mxu0 0.0
  %3452 = vmatmul.mubr.f32.gmra.mrb[0].mxu0 %v3334
  %v3453 = vpop.f32.mrb[0].mxu0
  %v3454 = vadd.f32 0.0, %v3453
  %v3455 = vpop.f32.mrb[0].mxu0
  %3456 = vmatprep.mubr.f32.mxu0 0.0
  %3457 = vmatmul.mubr.f32.gmra.mrb[0].mxu0 %v3337
  %v3458 = vpop.f32.mrb[0].mxu0
  %v3459 = vadd.f32 0.0, %v3458
  %v3460 = vpop.f32.mrb[0].mxu0
  %3461 = vmatprep.mubr.f32.mxu0 0.0
  %3462 = vmatmul.mubr.f32.gmra.mrb[0].mxu0 %v3340
  %v3463 = vpop.f32.mrb[0].mxu0
  %v3464 = vadd.f32 0.0, %v3463
  %v3465 = vpop.f32.mrb[0].mxu0
  %3466 = vmatprep.mubr.f32.mxu0 0.0
  %3467 = vmatmul.mubr.f32.gmra.mrb[0].mxu0 %v3343
  %v3468 = vpop.f32.mrb[0].mxu0
  %v3469 = vadd.f32 0.0, %v3468
  %v3470 = vpop.f32.mrb[0].mxu0
  %3471 = vmatprep.mubr.f32.mxu0 0.0
  %3472 = vmatmul.mubr.f32.gmra.mrb[0].mxu0 %v3346
  %v3473 = vpop.f32.mrb[0].mxu0
  %v3474 = vadd.f32 0.0, %v3473
  %v3475 = vpop.f32.mrb[0].mxu0
  %3476 = vmatprep.mubr.f32.mxu0 0.0
  %3477 = vmatmul.mubr.f32.gmra.mrb[0].mxu0 %v3349
  %v3478 = vpop.f32.mrb[0].mxu0
  %v3479 = vadd.f32 0.0, %v3478
  %v3480 = vpop.f32.mrb[0].mxu0
  %3481 = vmatprep.mubr.f32.mxu0 0.0
  %3482 = vmatmul.mubr.f32.gmra.mrb[0].mxu0 %v3352
  %v3483 = vpop.f32.mrb[0].mxu0
  %v3484 = vadd.f32 0.0, %v3483
  %v3485 = vpop.f32.mrb[0].mxu0
  %3486 = vmatprep.mubr.f32.mxu0 0.0
  %3487 = vmatmul.mubr.f32.gmra.mrb[0].mxu0 %v3355
  %v3488 = vpop.f32.mrb[0].mxu0
  %v3489 = vadd.f32 0.0, %v3488
  %v3490 = vpop.f32.mrb[0].mxu0
  %3491 = vmatprep.mubr.f32.mxu0 0.0
  %3492 = vmatmul.mubr.f32.gmra.mrb[0].mxu0 %v3358
  %v3493 = vpop.f32.mrb[0].mxu0
  %v3494 = vadd.f32 0.0, %v3493
  %v3495 = vpop.f32.mrb[0].mxu0
  %3496 = vmatprep.mubr.f32.mxu0 0.0
  %3497 = vmatmul.mubr.f32.gmra.mrb[0].mxu0 %v3361
  %v3498 = vpop.f32.mrb[0].mxu0
  %v3499 = vadd.f32 0.0, %v3498
  %v3500 = vpop.f32.mrb[0].mxu0
  %3501 = vmatprep.mubr.f32.mxu0 0.0
  %3502 = vmatmul.mubr.f32.gmra.mrb[0].mxu0 %v3364
  %v3503 = vpop.f32.mrb[0].mxu0
  %v3504 = vadd.f32 0.0, %v3503
  %v3505 = vpop.f32.mrb[0].mxu0
  %3506 = vmatprep.mubr.f32.mxu0 0.0
  %3507 = vmatmul.mubr.f32.gmra.mrb[0].mxu0 %v3367
  %v3508 = vpop.f32.mrb[0].mxu0
  %v3509 = vadd.f32 0.0, %v3508
  %v3510 = vpop.f32.mrb[0].mxu0
  %3511 = vmatprep.mubr.f32.mxu0 0.0
  %3512 = vmatmul.mubr.f32.gmra.mrb[0].mxu0 %v3370
  %v3513 = vpop.f32.mrb[0].mxu0
  %v3514 = vadd.f32 0.0, %v3513
  %v3515 = vpop.f32.mrb[0].mxu0
  %3516 = vdwg.mxu0
  %v3517 = vadd.f32 %v2046, %v3439
  %v3518 = vadd.f32 %v2051, %v3444
  %v3519 = vadd.f32 %v2056, %v3449
  %v3520 = vadd.f32 %v2061, %v3454
  %v3521 = vadd.f32 %v2066, %v3459
  %v3522 = vadd.f32 %v2071, %v3464
  %v3523 = vadd.f32 %v2076, %v3469
  %v3524 = vadd.f32 %v2081, %v3474
  %v3525 = vadd.f32 %v2086, %v3479
  %v3526 = vadd.f32 %v2091, %v3484
  %v3527 = vadd.f32 %v2096, %v3489
  %v3528 = vadd.f32 %v2101, %v3494
  %v3529 = vadd.f32 %v2106, %v3499
  %v3530 = vadd.f32 %v2111, %v3504
  %v3531 = vadd.f32 %v2116, %v3509
  %v3532 = vadd.f32 %v2121, %v3514
  %v3533 = vmax.f32 %v3517, 0.0
  %v3534 = vmax.f32 %v3518, 0.0
  %v3535 = vmax.f32 %v3519, 0.0
  %v3536 = vmax.f32 %v3520, 0.0
  %v3537 = vmax.f32 %v3521, 0.0
  %v3538 = vmax.f32 %v3522, 0.0
  %v3539 = vmax.f32 %v3523, 0.0
  %v3540 = vmax.f32 %v3524, 0.0
  %v3541 = vmax.f32 %v3525, 0.0
  %v3542 = vmax.f32 %v3526, 0.0
  %v3543 = vmax.f32 %v3527, 0.0
  %v3544 = vmax.f32 %v3528, 0.0
  %v3545 = vmax.f32 %v3529, 0.0
  %v3546 = vmax.f32 %v3530, 0.0
  %v3547 = vmax.f32 %v3531, 0.0
  %v3548 = vmax.f32 %v3532, 0.0
  %3549 = vst.msk [vmem:[%s2191 + $0x1] sm:$0xff] %vm347, %v3533
  %3550 = vst.msk [vmem:[%s2191 + $0x11] sm:$0xff] %vm347, %v3534
  %3551 = vst.msk [vmem:[%s2191 + $0x21] sm:$0xff] %vm347, %v3535
  %3552 = vst.msk [vmem:[%s2191 + $0x31] sm:$0xff] %vm347, %v3536
  %3553 = vst.msk [vmem:[%s2191 + $0x41] sm:$0xff] %vm347, %v3537
  %3554 = vst.msk [vmem:[%s2191 + $0x51] sm:$0xff] %vm347, %v3538
  %3555 = vst.msk [vmem:[%s2191 + $0x61] sm:$0xff] %vm347, %v3539
  %3556 = vst.msk [vmem:[%s2191 + $0x71] sm:$0xff] %vm347, %v3540
  %3557 = vst.msk [vmem:[%s2191 + $0xa1] sm:$0xff] %vm347, %v3541
  %3558 = vst.msk [vmem:[%s2191 + $0xb1] sm:$0xff] %vm347, %v3542
  %3559 = vst.msk [vmem:[%s2191 + $0xc1] sm:$0xff] %vm347, %v3543
  %3560 = vst.msk [vmem:[%s2191 + $0xd1] sm:$0xff] %vm347, %v3544
  %3561 = vst.msk [vmem:[%s2191 + $0xe1] sm:$0xff] %vm347, %v3545
  %3562 = vst.msk [vmem:[%s2191 + $0xf1] sm:$0xff] %vm347, %v3546
  %3563 = vst.msk [vmem:[%s2191 + $0x101] sm:$0xff] %vm347, %v3547
  %3564 = vst.msk [vmem:[%s2191 + $0x111] sm:$0xff] %vm347, %v3548
  %s3565 = scalar_lea.vmem %s4, 288
  %v3566 = vld [vmem:[%s3565] sm:$0xff]
  %v3567 = vld [vmem:[%s3565 + $0x8] sm:$0xff]
  %v3568 = vld [vmem:[%s3565 + $0x10] sm:$0xff]
  %v3569 = vld [vmem:[%s3565 + $0x18] sm:$0xff]
  %v3570 = vld [vmem:[%s3565 + $0x20] sm:$0xff]
  %v3571 = vld [vmem:[%s3565 + $0x28] sm:$0xff]
  %v3572 = vld [vmem:[%s3565 + $0x30] sm:$0xff]
  %v3573 = vld [vmem:[%s3565 + $0x38] sm:$0xff]
  %v3574 = vld [vmem:[%s3565 + $0x40] sm:$0xff]
  %v3575 = vld [vmem:[%s3565 + $0x48] sm:$0xff]
  %v3576 = vld [vmem:[%s3565 + $0x50] sm:$0xff]
  %v3577 = vld [vmem:[%s3565 + $0x58] sm:$0xff]
  %v3578 = vld [vmem:[%s3565 + $0x60] sm:$0xff]
  %v3579 = vld [vmem:[%s3565 + $0x68] sm:$0xff]
  %v3580 = vld [vmem:[%s3565 + $0x70] sm:$0xff]
  %v3581 = vld [vmem:[%s3565 + $0x78] sm:$0xff]
  %v3582 = vld [vmem:[%s3565 + $0x80] sm:$0xff]
  %v3583 = vld [vmem:[%s3565 + $0x88] sm:$0xff]
  %v3584 = vld [vmem:[%s3565 + $0x90] sm:$0xff]
  %v3585 = vld [vmem:[%s3565 + $0x98] sm:$0xff]
  %v3586 = vld [vmem:[%s3565 + $0xa0] sm:$0xff]
  %v3587 = vld [vmem:[%s3565 + $0xa8] sm:$0xff]
  %v3588 = vld [vmem:[%s3565 + $0xb0] sm:$0xff]
  %v3589 = vld [vmem:[%s3565 + $0xb8] sm:$0xff]
  %v3590 = vld [vmem:[%s3565 + $0xc0] sm:$0xff]
  %v3591 = vld [vmem:[%s3565 + $0xc8] sm:$0xff]
  %v3592 = vld [vmem:[%s3565 + $0xd0] sm:$0xff]
  %v3593 = vld [vmem:[%s3565 + $0xd8] sm:$0xff]
  %v3594 = vld [vmem:[%s3565 + $0xe0] sm:$0xff]
  %v3595 = vld [vmem:[%s3565 + $0xe8] sm:$0xff]
  %v3596 = vld [vmem:[%s3565 + $0xf0] sm:$0xff]
  %v3597 = vld [vmem:[%s3565 + $0xf8] sm:$0xff]
  %v3598 = vld [vmem:[%s3565 + $0x100] sm:$0xff]
  %v3599 = vld [vmem:[%s3565 + $0x108] sm:$0xff]
  %v3600 = vld [vmem:[%s3565 + $0x110] sm:$0xff]
  %v3601 = vld [vmem:[%s3565 + $0x118] sm:$0xff]
  %v3602 = vld [vmem:[#allocation3] sm:$0xff]
  %v3603 = vld [vmem:[#allocation3 + $0x10] sm:$0xff]
  %v3604 = vld [vmem:[#allocation3 + $0x20] sm:$0xff]
  %v3605 = vld [vmem:[#allocation3 + $0x30] sm:$0xff]
  %v3606 = vld [vmem:[#allocation3 + $0x40] sm:$0xff]
  %v3607 = vld [vmem:[#allocation3 + $0x50] sm:$0xff]
  %v3608 = vld [vmem:[#allocation3 + $0x60] sm:$0xff]
  %v3609 = vld [vmem:[#allocation3 + $0x70] sm:$0xff]
  %v3610 = vld [vmem:[#allocation3 + $0xa0] sm:$0xff]
  %v3611 = vld [vmem:[#allocation3 + $0xb0] sm:$0xff]
  %v3612 = vld [vmem:[#allocation3 + $0xc0] sm:$0xff]
  %v3613 = vld [vmem:[#allocation3 + $0xd0] sm:$0xff]
  %v3614 = vld [vmem:[#allocation3 + $0xe0] sm:$0xff]
  %v3615 = vld [vmem:[#allocation3 + $0xf0] sm:$0xff]
  %v3616 = vld [vmem:[#allocation3 + $0x100] sm:$0xff]
  %v3617 = vld [vmem:[#allocation3 + $0x110] sm:$0xff]
  %3618 = vst.msk [vmem:[#allocation5] sm:$0xff] %vm347, %v3602
  %3619 = vst.msk [vmem:[#allocation5 + $0x28] sm:$0xff] %vm347, %v3603
  %3620 = vst.msk [vmem:[#allocation5 + $0x50] sm:$0xff] %vm347, %v3604
  %3621 = vst.msk [vmem:[#allocation5 + $0x78] sm:$0xff] %vm347, %v3605
  %3622 = vst.msk [vmem:[#allocation5 + $0xa0] sm:$0xff] %vm347, %v3606
  %3623 = vst.msk [vmem:[#allocation5 + $0xc8] sm:$0xff] %vm347, %v3607
  %3624 = vst.msk [vmem:[#allocation5 + $0xf0] sm:$0xff] %vm347, %v3608
  %3625 = vst.msk [vmem:[#allocation5 + $0x118] sm:$0xff] %vm347, %v3609
  %3626 = vst.msk [vmem:[#allocation5 + $0x140] sm:$0xff] %vm347, %v3610
  %3627 = vst.msk [vmem:[#allocation5 + $0x168] sm:$0xff] %vm347, %v3611
  %3628 = vst.msk [vmem:[#allocation5 + $0x190] sm:$0xff] %vm347, %v3612
  %3629 = vst.msk [vmem:[#allocation5 + $0x1b8] sm:$0xff] %vm347, %v3613
  %3630 = vst.msk [vmem:[#allocation5 + $0x1e0] sm:$0xff] %vm347, %v3614
  %3631 = vst.msk [vmem:[#allocation5 + $0x208] sm:$0xff] %vm347, %v3615
  %3632 = vst.msk [vmem:[#allocation5 + $0x230] sm:$0xff] %vm347, %v3616
  %3633 = vst.msk [vmem:[#allocation5 + $0x258] sm:$0xff] %vm347, %v3617
  %v3634 = vld [vmem:[#allocation3 + $0x1] sm:$0xff]
  %v3635 = vld [vmem:[#allocation3 + $0x11] sm:$0xff]
  %v3636 = vld [vmem:[#allocation3 + $0x21] sm:$0xff]
  %v3637 = vld [vmem:[#allocation3 + $0x31] sm:$0xff]
  %v3638 = vld [vmem:[#allocation3 + $0x41] sm:$0xff]
  %v3639 = vld [vmem:[#allocation3 + $0x51] sm:$0xff]
  %v3640 = vld [vmem:[#allocation3 + $0x61] sm:$0xff]
  %v3641 = vld [vmem:[#allocation3 + $0x71] sm:$0xff]
  %v3642 = vld [vmem:[#allocation3 + $0xa1] sm:$0xff]
  %v3643 = vld [vmem:[#allocation3 + $0xb1] sm:$0xff]
  %v3644 = vld [vmem:[#allocation3 + $0xc1] sm:$0xff]
  %v3645 = vld [vmem:[#allocation3 + $0xd1] sm:$0xff]
  %v3646 = vld [vmem:[#allocation3 + $0xe1] sm:$0xff]
  %v3647 = vld [vmem:[#allocation3 + $0xf1] sm:$0xff]
  %v3648 = vld [vmem:[#allocation3 + $0x101] sm:$0xff]
  %v3649 = vld [vmem:[#allocation3 + $0x111] sm:$0xff]
  %3666 = vrot.lane.b32.xlu0 %v3634, 32
  %v3667 = vpop.permute.xlu0 %3666
  %3668 = vrot.lane.b32.xlu0 %v3635, 32
  %v3669 = vpop.permute.xlu0 %3668
  %3670 = vrot.lane.b32.xlu0 %v3636, 32
  %v3671 = vpop.permute.xlu0 %3670
  %3672 = vrot.lane.b32.xlu0 %v3637, 32
  %v3673 = vpop.permute.xlu0 %3672
  %3674 = vrot.lane.b32.xlu0 %v3638, 32
  %v3675 = vpop.permute.xlu0 %3674
  %3676 = vrot.lane.b32.xlu0 %v3639, 32
  %v3677 = vpop.permute.xlu0 %3676
  %3678 = vrot.lane.b32.xlu0 %v3640, 32
  %v3679 = vpop.permute.xlu0 %3678
  %3680 = vrot.lane.b32.xlu0 %v3641, 32
  %v3681 = vpop.permute.xlu0 %3680
  %3682 = vrot.lane.b32.xlu0 %v3642, 32
  %v3683 = vpop.permute.xlu0 %3682
  %3684 = vrot.lane.b32.xlu0 %v3643, 32
  %v3685 = vpop.permute.xlu0 %3684
  %3686 = vrot.lane.b32.xlu0 %v3644, 32
  %v3687 = vpop.permute.xlu0 %3686
  %3688 = vrot.lane.b32.xlu0 %v3645, 32
  %v3689 = vpop.permute.xlu0 %3688
  %3690 = vrot.lane.b32.xlu0 %v3646, 32
  %v3691 = vpop.permute.xlu0 %3690
  %3692 = vrot.lane.b32.xlu0 %v3647, 32
  %v3693 = vpop.permute.xlu0 %3692
  %3694 = vrot.lane.b32.xlu0 %v3648, 32
  %v3695 = vpop.permute.xlu0 %3694
  %3696 = vrot.lane.b32.xlu0 %v3649, 32
  %v3697 = vpop.permute.xlu0 %3696
  %3714 = vst.msk [vmem:[#allocation5] sm:$0xff] %vm2356, %v3667
  %3715 = vst.msk [vmem:[#allocation5 + $0x28] sm:$0xff] %vm2356, %v3669
  %3716 = vst.msk [vmem:[#allocation5 + $0x50] sm:$0xff] %vm2356, %v3671
  %3717 = vst.msk [vmem:[#allocation5 + $0x78] sm:$0xff] %vm2356, %v3673
  %3718 = vst.msk [vmem:[#allocation5 + $0xa0] sm:$0xff] %vm2356, %v3675
  %3719 = vst.msk [vmem:[#allocation5 + $0xc8] sm:$0xff] %vm2356, %v3677
  %3720 = vst.msk [vmem:[#allocation5 + $0xf0] sm:$0xff] %vm2356, %v3679
  %3721 = vst.msk [vmem:[#allocation5 + $0x118] sm:$0xff] %vm2356, %v3681
  %3722 = vst.msk [vmem:[#allocation5 + $0x140] sm:$0xff] %vm2356, %v3683
  %3723 = vst.msk [vmem:[#allocation5 + $0x168] sm:$0xff] %vm2356, %v3685
  %3724 = vst.msk [vmem:[#allocation5 + $0x190] sm:$0xff] %vm2356, %v3687
  %3725 = vst.msk [vmem:[#allocation5 + $0x1b8] sm:$0xff] %vm2356, %v3689
  %3726 = vst.msk [vmem:[#allocation5 + $0x1e0] sm:$0xff] %vm2356, %v3691
  %3727 = vst.msk [vmem:[#allocation5 + $0x208] sm:$0xff] %vm2356, %v3693
  %3728 = vst.msk [vmem:[#allocation5 + $0x230] sm:$0xff] %vm2356, %v3695
  %3729 = vst.msk [vmem:[#allocation5 + $0x258] sm:$0xff] %vm2356, %v3697
  %v3730 = vld [vmem:[#allocation3 + $0x2] sm:$0xff]
  %v3731 = vld [vmem:[#allocation3 + $0x12] sm:$0xff]
  %v3732 = vld [vmem:[#allocation3 + $0x22] sm:$0xff]
  %v3733 = vld [vmem:[#allocation3 + $0x32] sm:$0xff]
  %v3734 = vld [vmem:[#allocation3 + $0x42] sm:$0xff]
  %v3735 = vld [vmem:[#allocation3 + $0x52] sm:$0xff]
  %v3736 = vld [vmem:[#allocation3 + $0x62] sm:$0xff]
  %v3737 = vld [vmem:[#allocation3 + $0x72] sm:$0xff]
  %v3738 = vld [vmem:[#allocation3 + $0xa2] sm:$0xff]
  %v3739 = vld [vmem:[#allocation3 + $0xb2] sm:$0xff]
  %v3740 = vld [vmem:[#allocation3 + $0xc2] sm:$0xff]
  %v3741 = vld [vmem:[#allocation3 + $0xd2] sm:$0xff]
  %v3742 = vld [vmem:[#allocation3 + $0xe2] sm:$0xff]
  %v3743 = vld [vmem:[#allocation3 + $0xf2] sm:$0xff]
  %v3744 = vld [vmem:[#allocation3 + $0x102] sm:$0xff]
  %v3745 = vld [vmem:[#allocation3 + $0x112] sm:$0xff]
  %3762 = vrot.lane.b32.xlu0 %v3730, 64
  %v3763 = vpop.permute.xlu0 %3762
  %3764 = vrot.lane.b32.xlu0 %v3731, 64
  %v3765 = vpop.permute.xlu0 %3764
  %3766 = vrot.lane.b32.xlu0 %v3732, 64
  %v3767 = vpop.permute.xlu0 %3766
  %3768 = vrot.lane.b32.xlu0 %v3733, 64
  %v3769 = vpop.permute.xlu0 %3768
  %3770 = vrot.lane.b32.xlu0 %v3734, 64
  %v3771 = vpop.permute.xlu0 %3770
  %3772 = vrot.lane.b32.xlu0 %v3735, 64
  %v3773 = vpop.permute.xlu0 %3772
  %3774 = vrot.lane.b32.xlu0 %v3736, 64
  %v3775 = vpop.permute.xlu0 %3774
  %3776 = vrot.lane.b32.xlu0 %v3737, 64
  %v3777 = vpop.permute.xlu0 %3776
  %3778 = vrot.lane.b32.xlu0 %v3738, 64
  %v3779 = vpop.permute.xlu0 %3778
  %3780 = vrot.lane.b32.xlu0 %v3739, 64
  %v3781 = vpop.permute.xlu0 %3780
  %3782 = vrot.lane.b32.xlu0 %v3740, 64
  %v3783 = vpop.permute.xlu0 %3782
  %3784 = vrot.lane.b32.xlu0 %v3741, 64
  %v3785 = vpop.permute.xlu0 %3784
  %3786 = vrot.lane.b32.xlu0 %v3742, 64
  %v3787 = vpop.permute.xlu0 %3786
  %3788 = vrot.lane.b32.xlu0 %v3743, 64
  %v3789 = vpop.permute.xlu0 %3788
  %3790 = vrot.lane.b32.xlu0 %v3744, 64
  %v3791 = vpop.permute.xlu0 %3790
  %3792 = vrot.lane.b32.xlu0 %v3745, 64
  %v3793 = vpop.permute.xlu0 %3792
  %3810 = vst.msk [vmem:[#allocation5] sm:$0xff] %vm2453, %v3763
  %3811 = vst.msk [vmem:[#allocation5 + $0x28] sm:$0xff] %vm2453, %v3765
  %3812 = vst.msk [vmem:[#allocation5 + $0x50] sm:$0xff] %vm2453, %v3767
  %3813 = vst.msk [vmem:[#allocation5 + $0x78] sm:$0xff] %vm2453, %v3769
  %3814 = vst.msk [vmem:[#allocation5 + $0xa0] sm:$0xff] %vm2453, %v3771
  %3815 = vst.msk [vmem:[#allocation5 + $0xc8] sm:$0xff] %vm2453, %v3773
  %3816 = vst.msk [vmem:[#allocation5 + $0xf0] sm:$0xff] %vm2453, %v3775
  %3817 = vst.msk [vmem:[#allocation5 + $0x118] sm:$0xff] %vm2453, %v3777
  %3818 = vst.msk [vmem:[#allocation5 + $0x140] sm:$0xff] %vm2453, %v3779
  %3819 = vst.msk [vmem:[#allocation5 + $0x168] sm:$0xff] %vm2453, %v3781
  %3820 = vst.msk [vmem:[#allocation5 + $0x190] sm:$0xff] %vm2453, %v3783
  %3821 = vst.msk [vmem:[#allocation5 + $0x1b8] sm:$0xff] %vm2453, %v3785
  %3822 = vst.msk [vmem:[#allocation5 + $0x1e0] sm:$0xff] %vm2453, %v3787
  %3823 = vst.msk [vmem:[#allocation5 + $0x208] sm:$0xff] %vm2453, %v3789
  %3824 = vst.msk [vmem:[#allocation5 + $0x230] sm:$0xff] %vm2453, %v3791
  %3825 = vst.msk [vmem:[#allocation5 + $0x258] sm:$0xff] %vm2453, %v3793
  %v3826 = vld [vmem:[%s2191] sm:$0xff]
  %v3827 = vld [vmem:[%s2191 + $0x10] sm:$0xff]
  %v3828 = vld [vmem:[%s2191 + $0x20] sm:$0xff]
  %v3829 = vld [vmem:[%s2191 + $0x30] sm:$0xff]
  %v3830 = vld [vmem:[%s2191 + $0x40] sm:$0xff]
  %v3831 = vld [vmem:[%s2191 + $0x50] sm:$0xff]
  %v3832 = vld [vmem:[%s2191 + $0x60] sm:$0xff]
  %v3833 = vld [vmem:[%s2191 + $0x70] sm:$0xff]
  %v3834 = vld [vmem:[%s2191 + $0xa0] sm:$0xff]
  %v3835 = vld [vmem:[%s2191 + $0xb0] sm:$0xff]
  %v3836 = vld [vmem:[%s2191 + $0xc0] sm:$0xff]
  %v3837 = vld [vmem:[%s2191 + $0xd0] sm:$0xff]
  %v3838 = vld [vmem:[%s2191 + $0xe0] sm:$0xff]
  %v3839 = vld [vmem:[%s2191 + $0xf0] sm:$0xff]
  %v3840 = vld [vmem:[%s2191 + $0x100] sm:$0xff]
  %v3841 = vld [vmem:[%s2191 + $0x110] sm:$0xff]
  %3858 = vrot.lane.b32.xlu0 %v3826, 96
  %v3859 = vpop.permute.xlu0 %3858
  %3860 = vrot.lane.b32.xlu0 %v3827, 96
  %v3861 = vpop.permute.xlu0 %3860
  %3862 = vrot.lane.b32.xlu0 %v3828, 96
  %v3863 = vpop.permute.xlu0 %3862
  %3864 = vrot.lane.b32.xlu0 %v3829, 96
  %v3865 = vpop.permute.xlu0 %3864
  %3866 = vrot.lane.b32.xlu0 %v3830, 96
  %v3867 = vpop.permute.xlu0 %3866
  %3868 = vrot.lane.b32.xlu0 %v3831, 96
  %v3869 = vpop.permute.xlu0 %3868
  %3870 = vrot.lane.b32.xlu0 %v3832, 96
  %v3871 = vpop.permute.xlu0 %3870
  %3872 = vrot.lane.b32.xlu0 %v3833, 96
  %v3873 = vpop.permute.xlu0 %3872
  %3874 = vrot.lane.b32.xlu0 %v3834, 96
  %v3875 = vpop.permute.xlu0 %3874
  %3876 = vrot.lane.b32.xlu0 %v3835, 96
  %v3877 = vpop.permute.xlu0 %3876
  %3878 = vrot.lane.b32.xlu0 %v3836, 96
  %v3879 = vpop.permute.xlu0 %3878
  %3880 = vrot.lane.b32.xlu0 %v3837, 96
  %v3881 = vpop.permute.xlu0 %3880
  %3882 = vrot.lane.b32.xlu0 %v3838, 96
  %v3883 = vpop.permute.xlu0 %3882
  %3884 = vrot.lane.b32.xlu0 %v3839, 96
  %v3885 = vpop.permute.xlu0 %3884
  %3886 = vrot.lane.b32.xlu0 %v3840, 96
  %v3887 = vpop.permute.xlu0 %3886
  %3888 = vrot.lane.b32.xlu0 %v3841, 96
  %v3889 = vpop.permute.xlu0 %3888
  %3906 = vst.msk [vmem:[#allocation5] sm:$0xff] %vm2550, %v3859
  %3907 = vst.msk [vmem:[#allocation5 + $0x28] sm:$0xff] %vm2550, %v3861
  %3908 = vst.msk [vmem:[#allocation5 + $0x50] sm:$0xff] %vm2550, %v3863
  %3909 = vst.msk [vmem:[#allocation5 + $0x78] sm:$0xff] %vm2550, %v3865
  %3910 = vst.msk [vmem:[#allocation5 + $0xa0] sm:$0xff] %vm2550, %v3867
  %3911 = vst.msk [vmem:[#allocation5 + $0xc8] sm:$0xff] %vm2550, %v3869
  %3912 = vst.msk [vmem:[#allocation5 + $0xf0] sm:$0xff] %vm2550, %v3871
  %3913 = vst.msk [vmem:[#allocation5 + $0x118] sm:$0xff] %vm2550, %v3873
  %3914 = vst.msk [vmem:[#allocation5 + $0x140] sm:$0xff] %vm2550, %v3875
  %3915 = vst.msk [vmem:[#allocation5 + $0x168] sm:$0xff] %vm2550, %v3877
  %3916 = vst.msk [vmem:[#allocation5 + $0x190] sm:$0xff] %vm2550, %v3879
  %3917 = vst.msk [vmem:[#allocation5 + $0x1b8] sm:$0xff] %vm2550, %v3881
  %3918 = vst.msk [vmem:[#allocation5 + $0x1e0] sm:$0xff] %vm2550, %v3883
  %3919 = vst.msk [vmem:[#allocation5 + $0x208] sm:$0xff] %vm2550, %v3885
  %3920 = vst.msk [vmem:[#allocation5 + $0x230] sm:$0xff] %vm2550, %v3887
  %3921 = vst.msk [vmem:[#allocation5 + $0x258] sm:$0xff] %vm2550, %v3889
  %v3922 = vld [vmem:[%s2191 + $0x1] sm:$0xff]
  %v3923 = vld [vmem:[%s2191 + $0x11] sm:$0xff]
  %v3924 = vld [vmem:[%s2191 + $0x21] sm:$0xff]
  %v3925 = vld [vmem:[%s2191 + $0x31] sm:$0xff]
  %v3926 = vld [vmem:[%s2191 + $0x41] sm:$0xff]
  %v3927 = vld [vmem:[%s2191 + $0x51] sm:$0xff]
  %v3928 = vld [vmem:[%s2191 + $0x61] sm:$0xff]
  %v3929 = vld [vmem:[%s2191 + $0x71] sm:$0xff]
  %v3930 = vld [vmem:[%s2191 + $0xa1] sm:$0xff]
  %v3931 = vld [vmem:[%s2191 + $0xb1] sm:$0xff]
  %v3932 = vld [vmem:[%s2191 + $0xc1] sm:$0xff]
  %v3933 = vld [vmem:[%s2191 + $0xd1] sm:$0xff]
  %v3934 = vld [vmem:[%s2191 + $0xe1] sm:$0xff]
  %v3935 = vld [vmem:[%s2191 + $0xf1] sm:$0xff]
  %v3936 = vld [vmem:[%s2191 + $0x101] sm:$0xff]
  %v3937 = vld [vmem:[%s2191 + $0x111] sm:$0xff]
  %3938 = vst.msk [vmem:[#allocation5 + $0x8] sm:$0xff] %vm347, %v3922
  %3939 = vst.msk [vmem:[#allocation5 + $0x30] sm:$0xff] %vm347, %v3923
  %3940 = vst.msk [vmem:[#allocation5 + $0x58] sm:$0xff] %vm347, %v3924
  %3941 = vst.msk [vmem:[#allocation5 + $0x80] sm:$0xff] %vm347, %v3925
  %3942 = vst.msk [vmem:[#allocation5 + $0xa8] sm:$0xff] %vm347, %v3926
  %3943 = vst.msk [vmem:[#allocation5 + $0xd0] sm:$0xff] %vm347, %v3927
  %3944 = vst.msk [vmem:[#allocation5 + $0xf8] sm:$0xff] %vm347, %v3928
  %3945 = vst.msk [vmem:[#allocation5 + $0x120] sm:$0xff] %vm347, %v3929
  %3946 = vst.msk [vmem:[#allocation5 + $0x148] sm:$0xff] %vm347, %v3930
  %3947 = vst.msk [vmem:[#allocation5 + $0x170] sm:$0xff] %vm347, %v3931
  %3948 = vst.msk [vmem:[#allocation5 + $0x198] sm:$0xff] %vm347, %v3932
  %3949 = vst.msk [vmem:[#allocation5 + $0x1c0] sm:$0xff] %vm347, %v3933
  %3950 = vst.msk [vmem:[#allocation5 + $0x1e8] sm:$0xff] %vm347, %v3934
  %3951 = vst.msk [vmem:[#allocation5 + $0x210] sm:$0xff] %vm347, %v3935
  %3952 = vst.msk [vmem:[#allocation5 + $0x238] sm:$0xff] %vm347, %v3936
  %3953 = vst.msk [vmem:[#allocation5 + $0x260] sm:$0xff] %vm347, %v3937
  %v3954 = vld [vmem:[%s2191 + $0x2] sm:$0xff]
  %v3955 = vld [vmem:[%s2191 + $0x12] sm:$0xff]
  %v3956 = vld [vmem:[%s2191 + $0x22] sm:$0xff]
  %v3957 = vld [vmem:[%s2191 + $0x32] sm:$0xff]
  %v3958 = vld [vmem:[%s2191 + $0x42] sm:$0xff]
  %v3959 = vld [vmem:[%s2191 + $0x52] sm:$0xff]
  %v3960 = vld [vmem:[%s2191 + $0x62] sm:$0xff]
  %v3961 = vld [vmem:[%s2191 + $0x72] sm:$0xff]
  %v3962 = vld [vmem:[%s2191 + $0xa2] sm:$0xff]
  %v3963 = vld [vmem:[%s2191 + $0xb2] sm:$0xff]
  %v3964 = vld [vmem:[%s2191 + $0xc2] sm:$0xff]
  %v3965 = vld [vmem:[%s2191 + $0xd2] sm:$0xff]
  %v3966 = vld [vmem:[%s2191 + $0xe2] sm:$0xff]
  %v3967 = vld [vmem:[%s2191 + $0xf2] sm:$0xff]
  %v3968 = vld [vmem:[%s2191 + $0x102] sm:$0xff]
  %v3969 = vld [vmem:[%s2191 + $0x112] sm:$0xff]
  %3986 = vrot.lane.b32.xlu0 %v3954, 32
  %v3987 = vpop.permute.xlu0 %3986
  %3988 = vrot.lane.b32.xlu0 %v3955, 32
  %v3989 = vpop.permute.xlu0 %3988
  %3990 = vrot.lane.b32.xlu0 %v3956, 32
  %v3991 = vpop.permute.xlu0 %3990
  %3992 = vrot.lane.b32.xlu0 %v3957, 32
  %v3993 = vpop.permute.xlu0 %3992
  %3994 = vrot.lane.b32.xlu0 %v3958, 32
  %v3995 = vpop.permute.xlu0 %3994
  %3996 = vrot.lane.b32.xlu0 %v3959, 32
  %v3997 = vpop.permute.xlu0 %3996
  %3998 = vrot.lane.b32.xlu0 %v3960, 32
  %v3999 = vpop.permute.xlu0 %3998
  %4000 = vrot.lane.b32.xlu0 %v3961, 32
  %v4001 = vpop.permute.xlu0 %4000
  %4002 = vrot.lane.b32.xlu0 %v3962, 32
  %v4003 = vpop.permute.xlu0 %4002
  %4004 = vrot.lane.b32.xlu0 %v3963, 32
  %v4005 = vpop.permute.xlu0 %4004
  %4006 = vrot.lane.b32.xlu0 %v3964, 32
  %v4007 = vpop.permute.xlu0 %4006
  %4008 = vrot.lane.b32.xlu0 %v3965, 32
  %v4009 = vpop.permute.xlu0 %4008
  %4010 = vrot.lane.b32.xlu0 %v3966, 32
  %v4011 = vpop.permute.xlu0 %4010
  %4012 = vrot.lane.b32.xlu0 %v3967, 32
  %v4013 = vpop.permute.xlu0 %4012
  %4014 = vrot.lane.b32.xlu0 %v3968, 32
  %v4015 = vpop.permute.xlu0 %4014
  %4016 = vrot.lane.b32.xlu0 %v3969, 32
  %v4017 = vpop.permute.xlu0 %4016
  %4034 = vst.msk [vmem:[#allocation5 + $0x8] sm:$0xff] %vm2356, %v3987
  %4035 = vst.msk [vmem:[#allocation5 + $0x30] sm:$0xff] %vm2356, %v3989
  %4036 = vst.msk [vmem:[#allocation5 + $0x58] sm:$0xff] %vm2356, %v3991
  %4037 = vst.msk [vmem:[#allocation5 + $0x80] sm:$0xff] %vm2356, %v3993
  %4038 = vst.msk [vmem:[#allocation5 + $0xa8] sm:$0xff] %vm2356, %v3995
  %4039 = vst.msk [vmem:[#allocation5 + $0xd0] sm:$0xff] %vm2356, %v3997
  %4040 = vst.msk [vmem:[#allocation5 + $0xf8] sm:$0xff] %vm2356, %v3999
  %4041 = vst.msk [vmem:[#allocation5 + $0x120] sm:$0xff] %vm2356, %v4001
  %4042 = vst.msk [vmem:[#allocation5 + $0x148] sm:$0xff] %vm2356, %v4003
  %4043 = vst.msk [vmem:[#allocation5 + $0x170] sm:$0xff] %vm2356, %v4005
  %4044 = vst.msk [vmem:[#allocation5 + $0x198] sm:$0xff] %vm2356, %v4007
  %4045 = vst.msk [vmem:[#allocation5 + $0x1c0] sm:$0xff] %vm2356, %v4009
  %4046 = vst.msk [vmem:[#allocation5 + $0x1e8] sm:$0xff] %vm2356, %v4011
  %4047 = vst.msk [vmem:[#allocation5 + $0x210] sm:$0xff] %vm2356, %v4013
  %4048 = vst.msk [vmem:[#allocation5 + $0x238] sm:$0xff] %vm2356, %v4015
  %4049 = vst.msk [vmem:[#allocation5 + $0x260] sm:$0xff] %vm2356, %v4017
  %v4050 = vld [vmem:[%s2695] sm:$0xff]
  %v4051 = vld [vmem:[%s2695 + $0x10] sm:$0xff]
  %v4052 = vld [vmem:[%s2695 + $0x20] sm:$0xff]
  %v4053 = vld [vmem:[%s2695 + $0x30] sm:$0xff]
  %v4054 = vld [vmem:[%s2695 + $0x40] sm:$0xff]
  %v4055 = vld [vmem:[%s2695 + $0x50] sm:$0xff]
  %v4056 = vld [vmem:[%s2695 + $0x60] sm:$0xff]
  %v4057 = vld [vmem:[%s2695 + $0x70] sm:$0xff]
  %v4058 = vld [vmem:[%s2695 + $0xa0] sm:$0xff]
  %v4059 = vld [vmem:[%s2695 + $0xb0] sm:$0xff]
  %v4060 = vld [vmem:[%s2695 + $0xc0] sm:$0xff]
  %v4061 = vld [vmem:[%s2695 + $0xd0] sm:$0xff]
  %v4062 = vld [vmem:[%s2695 + $0xe0] sm:$0xff]
  %v4063 = vld [vmem:[%s2695 + $0xf0] sm:$0xff]
  %v4064 = vld [vmem:[%s2695 + $0x100] sm:$0xff]
  %v4065 = vld [vmem:[%s2695 + $0x110] sm:$0xff]
  %4082 = vrot.lane.b32.xlu0 %v4050, 64
  %v4083 = vpop.permute.xlu0 %4082
  %4084 = vrot.lane.b32.xlu0 %v4051, 64
  %v4085 = vpop.permute.xlu0 %4084
  %4086 = vrot.lane.b32.xlu0 %v4052, 64
  %v4087 = vpop.permute.xlu0 %4086
  %4088 = vrot.lane.b32.xlu0 %v4053, 64
  %v4089 = vpop.permute.xlu0 %4088
  %4090 = vrot.lane.b32.xlu0 %v4054, 64
  %v4091 = vpop.permute.xlu0 %4090
  %4092 = vrot.lane.b32.xlu0 %v4055, 64
  %v4093 = vpop.permute.xlu0 %4092
  %4094 = vrot.lane.b32.xlu0 %v4056, 64
  %v4095 = vpop.permute.xlu0 %4094
  %4096 = vrot.lane.b32.xlu0 %v4057, 64
  %v4097 = vpop.permute.xlu0 %4096
  %4098 = vrot.lane.b32.xlu0 %v4058, 64
  %v4099 = vpop.permute.xlu0 %4098
  %4100 = vrot.lane.b32.xlu0 %v4059, 64
  %v4101 = vpop.permute.xlu0 %4100
  %4102 = vrot.lane.b32.xlu0 %v4060, 64
  %v4103 = vpop.permute.xlu0 %4102
  %4104 = vrot.lane.b32.xlu0 %v4061, 64
  %v4105 = vpop.permute.xlu0 %4104
  %4106 = vrot.lane.b32.xlu0 %v4062, 64
  %v4107 = vpop.permute.xlu0 %4106
  %4108 = vrot.lane.b32.xlu0 %v4063, 64
  %v4109 = vpop.permute.xlu0 %4108
  %4110 = vrot.lane.b32.xlu0 %v4064, 64
  %v4111 = vpop.permute.xlu0 %4110
  %4112 = vrot.lane.b32.xlu0 %v4065, 64
  %v4113 = vpop.permute.xlu0 %4112
  %4130 = vst.msk [vmem:[#allocation5 + $0x8] sm:$0xff] %vm2453, %v4083
  %4131 = vst.msk [vmem:[#allocation5 + $0x30] sm:$0xff] %vm2453, %v4085
  %4132 = vst.msk [vmem:[#allocation5 + $0x58] sm:$0xff] %vm2453, %v4087
  %4133 = vst.msk [vmem:[#allocation5 + $0x80] sm:$0xff] %vm2453, %v4089
  %4134 = vst.msk [vmem:[#allocation5 + $0xa8] sm:$0xff] %vm2453, %v4091
  %4135 = vst.msk [vmem:[#allocation5 + $0xd0] sm:$0xff] %vm2453, %v4093
  %4136 = vst.msk [vmem:[#allocation5 + $0xf8] sm:$0xff] %vm2453, %v4095
  %4137 = vst.msk [vmem:[#allocation5 + $0x120] sm:$0xff] %vm2453, %v4097
  %4138 = vst.msk [vmem:[#allocation5 + $0x148] sm:$0xff] %vm2453, %v4099
  %4139 = vst.msk [vmem:[#allocation5 + $0x170] sm:$0xff] %vm2453, %v4101
  %4140 = vst.msk [vmem:[#allocation5 + $0x198] sm:$0xff] %vm2453, %v4103
  %4141 = vst.msk [vmem:[#allocation5 + $0x1c0] sm:$0xff] %vm2453, %v4105
  %4142 = vst.msk [vmem:[#allocation5 + $0x1e8] sm:$0xff] %vm2453, %v4107
  %4143 = vst.msk [vmem:[#allocation5 + $0x210] sm:$0xff] %vm2453, %v4109
  %4144 = vst.msk [vmem:[#allocation5 + $0x238] sm:$0xff] %vm2453, %v4111
  %4145 = vst.msk [vmem:[#allocation5 + $0x260] sm:$0xff] %vm2453, %v4113
  %v4146 = vld [vmem:[%s2695 + $0x1] sm:$0xff]
  %v4147 = vld [vmem:[%s2695 + $0x11] sm:$0xff]
  %v4148 = vld [vmem:[%s2695 + $0x21] sm:$0xff]
  %v4149 = vld [vmem:[%s2695 + $0x31] sm:$0xff]
  %v4150 = vld [vmem:[%s2695 + $0x41] sm:$0xff]
  %v4151 = vld [vmem:[%s2695 + $0x51] sm:$0xff]
  %v4152 = vld [vmem:[%s2695 + $0x61] sm:$0xff]
  %v4153 = vld [vmem:[%s2695 + $0x71] sm:$0xff]
  %v4154 = vld [vmem:[%s2695 + $0xa1] sm:$0xff]
  %v4155 = vld [vmem:[%s2695 + $0xb1] sm:$0xff]
  %v4156 = vld [vmem:[%s2695 + $0xc1] sm:$0xff]
  %v4157 = vld [vmem:[%s2695 + $0xd1] sm:$0xff]
  %v4158 = vld [vmem:[%s2695 + $0xe1] sm:$0xff]
  %v4159 = vld [vmem:[%s2695 + $0xf1] sm:$0xff]
  %v4160 = vld [vmem:[%s2695 + $0x101] sm:$0xff]
  %v4161 = vld [vmem:[%s2695 + $0x111] sm:$0xff]
  %4178 = vrot.lane.b32.xlu0 %v4146, 96
  %v4179 = vpop.permute.xlu0 %4178
  %4180 = vrot.lane.b32.xlu0 %v4147, 96
  %v4181 = vpop.permute.xlu0 %4180
  %4182 = vrot.lane.b32.xlu0 %v4148, 96
  %v4183 = vpop.permute.xlu0 %4182
  %4184 = vrot.lane.b32.xlu0 %v4149, 96
  %v4185 = vpop.permute.xlu0 %4184
  %4186 = vrot.lane.b32.xlu0 %v4150, 96
  %v4187 = vpop.permute.xlu0 %4186
  %4188 = vrot.lane.b32.xlu0 %v4151, 96
  %v4189 = vpop.permute.xlu0 %4188
  %4190 = vrot.lane.b32.xlu0 %v4152, 96
  %v4191 = vpop.permute.xlu0 %4190
  %4192 = vrot.lane.b32.xlu0 %v4153, 96
  %v4193 = vpop.permute.xlu0 %4192
  %4194 = vrot.lane.b32.xlu0 %v4154, 96
  %v4195 = vpop.permute.xlu0 %4194
  %4196 = vrot.lane.b32.xlu0 %v4155, 96
  %v4197 = vpop.permute.xlu0 %4196
  %4198 = vrot.lane.b32.xlu0 %v4156, 96
  %v4199 = vpop.permute.xlu0 %4198
  %4200 = vrot.lane.b32.xlu0 %v4157, 96
  %v4201 = vpop.permute.xlu0 %4200
  %4202 = vrot.lane.b32.xlu0 %v4158, 96
  %v4203 = vpop.permute.xlu0 %4202
  %4204 = vrot.lane.b32.xlu0 %v4159, 96
  %v4205 = vpop.permute.xlu0 %4204
  %4206 = vrot.lane.b32.xlu0 %v4160, 96
  %v4207 = vpop.permute.xlu0 %4206
  %4208 = vrot.lane.b32.xlu0 %v4161, 96
  %v4209 = vpop.permute.xlu0 %4208
  %4226 = vst.msk [vmem:[#allocation5 + $0x8] sm:$0xff] %vm2550, %v4179
  %4227 = vst.msk [vmem:[#allocation5 + $0x30] sm:$0xff] %vm2550, %v4181
  %4228 = vst.msk [vmem:[#allocation5 + $0x58] sm:$0xff] %vm2550, %v4183
  %4229 = vst.msk [vmem:[#allocation5 + $0x80] sm:$0xff] %vm2550, %v4185
  %4230 = vst.msk [vmem:[#allocation5 + $0xa8] sm:$0xff] %vm2550, %v4187
  %4231 = vst.msk [vmem:[#allocation5 + $0xd0] sm:$0xff] %vm2550, %v4189
  %4232 = vst.msk [vmem:[#allocation5 + $0xf8] sm:$0xff] %vm2550, %v4191
  %4233 = vst.msk [vmem:[#allocation5 + $0x120] sm:$0xff] %vm2550, %v4193
  %4234 = vst.msk [vmem:[#allocation5 + $0x148] sm:$0xff] %vm2550, %v4195
  %4235 = vst.msk [vmem:[#allocation5 + $0x170] sm:$0xff] %vm2550, %v4197
  %4236 = vst.msk [vmem:[#allocation5 + $0x198] sm:$0xff] %vm2550, %v4199
  %4237 = vst.msk [vmem:[#allocation5 + $0x1c0] sm:$0xff] %vm2550, %v4201
  %4238 = vst.msk [vmem:[#allocation5 + $0x1e8] sm:$0xff] %vm2550, %v4203
  %4239 = vst.msk [vmem:[#allocation5 + $0x210] sm:$0xff] %vm2550, %v4205
  %4240 = vst.msk [vmem:[#allocation5 + $0x238] sm:$0xff] %vm2550, %v4207
  %4241 = vst.msk [vmem:[#allocation5 + $0x260] sm:$0xff] %vm2550, %v4209
  %v4242 = vld [vmem:[%s2695 + $0x2] sm:$0xff]
  %v4243 = vld [vmem:[%s2695 + $0x12] sm:$0xff]
  %v4244 = vld [vmem:[%s2695 + $0x22] sm:$0xff]
  %v4245 = vld [vmem:[%s2695 + $0x32] sm:$0xff]
  %v4246 = vld [vmem:[%s2695 + $0x42] sm:$0xff]
  %v4247 = vld [vmem:[%s2695 + $0x52] sm:$0xff]
  %v4248 = vld [vmem:[%s2695 + $0x62] sm:$0xff]
  %v4249 = vld [vmem:[%s2695 + $0x72] sm:$0xff]
  %v4250 = vld [vmem:[%s2695 + $0xa2] sm:$0xff]
  %v4251 = vld [vmem:[%s2695 + $0xb2] sm:$0xff]
  %v4252 = vld [vmem:[%s2695 + $0xc2] sm:$0xff]
  %v4253 = vld [vmem:[%s2695 + $0xd2] sm:$0xff]
  %v4254 = vld [vmem:[%s2695 + $0xe2] sm:$0xff]
  %v4255 = vld [vmem:[%s2695 + $0xf2] sm:$0xff]
  %v4256 = vld [vmem:[%s2695 + $0x102] sm:$0xff]
  %v4257 = vld [vmem:[%s2695 + $0x112] sm:$0xff]
  %4258 = vst.msk [vmem:[#allocation5 + $0x10] sm:$0xff] %vm347, %v4242
  %4259 = vst.msk [vmem:[#allocation5 + $0x38] sm:$0xff] %vm347, %v4243
  %4260 = vst.msk [vmem:[#allocation5 + $0x60] sm:$0xff] %vm347, %v4244
  %4261 = vst.msk [vmem:[#allocation5 + $0x88] sm:$0xff] %vm347, %v4245
  %4262 = vst.msk [vmem:[#allocation5 + $0xb0] sm:$0xff] %vm347, %v4246
  %4263 = vst.msk [vmem:[#allocation5 + $0xd8] sm:$0xff] %vm347, %v4247
  %4264 = vst.msk [vmem:[#allocation5 + $0x100] sm:$0xff] %vm347, %v4248
  %4265 = vst.msk [vmem:[#allocation5 + $0x128] sm:$0xff] %vm347, %v4249
  %4266 = vst.msk [vmem:[#allocation5 + $0x150] sm:$0xff] %vm347, %v4250
  %4267 = vst.msk [vmem:[#allocation5 + $0x178] sm:$0xff] %vm347, %v4251
  %4268 = vst.msk [vmem:[#allocation5 + $0x1a0] sm:$0xff] %vm347, %v4252
  %4269 = vst.msk [vmem:[#allocation5 + $0x1c8] sm:$0xff] %vm347, %v4253
  %4270 = vst.msk [vmem:[#allocation5 + $0x1f0] sm:$0xff] %vm347, %v4254
  %4271 = vst.msk [vmem:[#allocation5 + $0x218] sm:$0xff] %vm347, %v4255
  %4272 = vst.msk [vmem:[#allocation5 + $0x240] sm:$0xff] %vm347, %v4256
  %4273 = vst.msk [vmem:[#allocation5 + $0x268] sm:$0xff] %vm347, %v4257
  %v4274 = vld [vmem:[#allocation5] sm:$0xff]
  %v4275 = vld [vmem:[#allocation5 + $0x8] sm:$0xff]
  %v4276 = vld [vmem:[#allocation5 + $0x10] sm:$0xff]
  %v4277 = vld [vmem:[#allocation5 + $0x28] sm:$0xff]
  %v4278 = vld [vmem:[#allocation5 + $0x30] sm:$0xff]
  %v4279 = vld [vmem:[#allocation5 + $0x38] sm:$0xff]
  %v4280 = vld [vmem:[#allocation5 + $0x50] sm:$0xff]
  %v4281 = vld [vmem:[#allocation5 + $0x58] sm:$0xff]
  %v4282 = vld [vmem:[#allocation5 + $0x60] sm:$0xff]
  %v4283 = vld [vmem:[#allocation5 + $0x78] sm:$0xff]
  %v4284 = vld [vmem:[#allocation5 + $0x80] sm:$0xff]
  %v4285 = vld [vmem:[#allocation5 + $0x88] sm:$0xff]
  %v4286 = vld [vmem:[#allocation5 + $0xa0] sm:$0xff]
  %v4287 = vld [vmem:[#allocation5 + $0xa8] sm:$0xff]
  %v4288 = vld [vmem:[#allocation5 + $0xb0] sm:$0xff]
  %v4289 = vld [vmem:[#allocation5 + $0xc8] sm:$0xff]
  %v4290 = vld [vmem:[#allocation5 + $0xd0] sm:$0xff]
  %v4291 = vld [vmem:[#allocation5 + $0xd8] sm:$0xff]
  %v4292 = vld [vmem:[#allocation5 + $0xf0] sm:$0xff]
  %v4293 = vld [vmem:[#allocation5 + $0xf8] sm:$0xff]
  %v4294 = vld [vmem:[#allocation5 + $0x100] sm:$0xff]
  %v4295 = vld [vmem:[#allocation5 + $0x118] sm:$0xff]
  %v4296 = vld [vmem:[#allocation5 + $0x120] sm:$0xff]
  %v4297 = vld [vmem:[#allocation5 + $0x128] sm:$0xff]
  %v4298 = vld [vmem:[#allocation5 + $0x140] sm:$0xff]
  %v4299 = vld [vmem:[#allocation5 + $0x148] sm:$0xff]
  %v4300 = vld [vmem:[#allocation5 + $0x150] sm:$0xff]
  %v4301 = vld [vmem:[#allocation5 + $0x168] sm:$0xff]
  %v4302 = vld [vmem:[#allocation5 + $0x170] sm:$0xff]
  %v4303 = vld [vmem:[#allocation5 + $0x178] sm:$0xff]
  %v4304 = vld [vmem:[#allocation5 + $0x190] sm:$0xff]
  %v4305 = vld [vmem:[#allocation5 + $0x198] sm:$0xff]
  %v4306 = vld [vmem:[#allocation5 + $0x1a0] sm:$0xff]
  %v4307 = vld [vmem:[#allocation5 + $0x1b8] sm:$0xff]
  %v4308 = vld [vmem:[#allocation5 + $0x1c0] sm:$0xff]
  %v4309 = vld [vmem:[#allocation5 + $0x1c8] sm:$0xff]
  %v4310 = vld [vmem:[#allocation5 + $0x1e0] sm:$0xff]
  %v4311 = vld [vmem:[#allocation5 + $0x1e8] sm:$0xff]
  %v4312 = vld [vmem:[#allocation5 + $0x1f0] sm:$0xff]
  %v4313 = vld [vmem:[#allocation5 + $0x208] sm:$0xff]
  %v4314 = vld [vmem:[#allocation5 + $0x210] sm:$0xff]
  %v4315 = vld [vmem:[#allocation5 + $0x218] sm:$0xff]
  %v4316 = vld [vmem:[#allocation5 + $0x230] sm:$0xff]
  %v4317 = vld [vmem:[#allocation5 + $0x238] sm:$0xff]
  %v4318 = vld [vmem:[#allocation5 + $0x240] sm:$0xff]
  %v4319 = vld [vmem:[#allocation5 + $0x258] sm:$0xff]
  %v4320 = vld [vmem:[#allocation5 + $0x260] sm:$0xff]
  %v4321 = vld [vmem:[#allocation5 + $0x268] sm:$0xff]
  %v4323 = vsel %vm347, %v4276, 0
  %v4326 = vsel %vm347, %v4279, 0
  %v4329 = vsel %vm347, %v4282, 0
  %v4332 = vsel %vm347, %v4285, 0
  %v4335 = vsel %vm347, %v4288, 0
  %v4338 = vsel %vm347, %v4291, 0
  %v4341 = vsel %vm347, %v4294, 0
  %v4344 = vsel %vm347, %v4297, 0
  %v4347 = vsel %vm347, %v4300, 0
  %v4350 = vsel %vm347, %v4303, 0
  %v4353 = vsel %vm347, %v4306, 0
  %v4356 = vsel %vm347, %v4309, 0
  %v4359 = vsel %vm347, %v4312, 0
  %v4362 = vsel %vm347, %v4315, 0
  %v4365 = vsel %vm347, %v4318, 0
  %v4368 = vsel %vm347, %v4321, 0
  %4370 = vmatprep.subr.mxu0 0.0
  %4371 = vmatpush1.msra.mxu0 %v3566
  %4372 = vmatprep.subr.mxu0 0.0
  %4373 = vmatpush1.msra.mxu0 %v3567
  %4374 = vmatprep.subr.mxu0 0.0
  %4375 = vmatpush1.msra.mxu0 %v3568
  %4376 = vmatprep.subr.mxu0 0.0
  %4377 = vmatpush1.msra.mxu0 %v3569
  %4378 = vmatprep.subr.mxu0 0.0
  %4379 = vmatpush1.msra.mxu0 %v3570
  %4380 = vmatprep.subr.mxu0 0.0
  %4381 = vmatpush1.msra.mxu0 %v3571
  %4382 = vmatprep.subr.mxu0 0.0
  %4383 = vmatpush1.msra.mxu0 %v3572
  %4384 = vmatprep.subr.mxu0 0.0
  %4385 = vmatpush1.msra.mxu0 %v3573
  %4386 = vmatprep.subr.mxu0 0.0
  %4387 = vmatpush1.msra.mxu0 %v3574
  %4388 = vmatprep.subr.mxu0 0.0
  %4389 = vmatpush1.msra.mxu0 %v3575
  %4390 = vmatprep.subr.mxu0 0.0
  %4391 = vmatpush1.msra.mxu0 %v3576
  %4392 = vmatprep.subr.mxu0 0.0
  %4393 = vmatpush1.msra.mxu0 %v3577
  %4394 = vmatprep.subr.mxu0 0.0
  %4395 = vmatpush1.msra.mxu0 %v3578
  %4396 = vmatprep.subr.mxu0 0.0
  %4397 = vmatpush1.msra.mxu0 %v3579
  %4398 = vmatprep.subr.mxu0 0.0
  %4399 = vmatpush1.msra.mxu0 %v3580
  %4400 = vmatprep.subr.mxu0 0.0
  %4401 = vmatpush1.msra.mxu0 %v3581
  %4402 = vmatprep.subr.mxu0 0.0
  %4403 = vmatpush1.msra.mxu0 %v3582
  %4404 = vmatprep.subr.mxu0 0.0
  %4405 = vmatpush1.msra.mxu0 %v3583
  %4406 = vmatprep.subr.mxu0 0.0
  %4407 = vmatpush1.msra.mxu0 %v3584
  %4408 = vmatprep.subr.mxu0 0.0
  %4409 = vmatpush1.msra.mxu0 %v3585
  %4410 = vmatprep.subr.mxu0 0.0
  %4411 = vmatpush1.msra.mxu0 %v3586
  %4412 = vmatprep.subr.mxu0 0.0
  %4413 = vmatpush1.msra.mxu0 %v3587
  %4414 = vmatprep.subr.mxu0 0.0
  %4415 = vmatpush1.msra.mxu0 %v3588
  %4416 = vmatprep.subr.mxu0 0.0
  %4417 = vmatpush1.msra.mxu0 %v3589
  %4418 = vmatprep.subr.mxu0 0.0
  %4419 = vmatpush1.msra.mxu0 %v3590
  %4420 = vmatprep.subr.mxu0 0.0
  %4421 = vmatpush1.msra.mxu0 %v3591
  %4422 = vmatprep.subr.mxu0 0.0
  %4423 = vmatpush1.msra.mxu0 %v3592
  %4424 = vmatprep.subr.mxu0 0.0
  %4425 = vmatpush1.msra.mxu0 %v3593
  %4426 = vmatprep.subr.mxu0 0.0
  %4427 = vmatpush1.msra.mxu0 %v3594
  %4428 = vmatprep.subr.mxu0 0.0
  %4429 = vmatpush1.msra.mxu0 %v3595
  %4430 = vmatprep.subr.mxu0 0.0
  %4431 = vmatpush1.msra.mxu0 %v3596
  %4432 = vmatprep.subr.mxu0 0.0
  %4433 = vmatpush1.msra.mxu0 %v3597
  %4434 = vmatprep.mubr.f32.mxu0 %v4275
  %4435 = vmatmul.mubr.f32.gmra.mrb[0].mxu0 %v4274
  %v4436 = vpop.f32.mrb[0].mxu0
  %v4437 = vadd.f32 0.0, %v4436
  %v4438 = vpop.f32.mrb[0].mxu0
  %4439 = vmatprep.mubr.f32.mxu0 %v4278
  %4440 = vmatmul.mubr.f32.gmra.mrb[0].mxu0 %v4277
  %v4441 = vpop.f32.mrb[0].mxu0
  %v4442 = vadd.f32 0.0, %v4441
  %v4443 = vpop.f32.mrb[0].mxu0
  %4444 = vmatprep.mubr.f32.mxu0 %v4281
  %4445 = vmatmul.mubr.f32.gmra.mrb[0].mxu0 %v4280
  %v4446 = vpop.f32.mrb[0].mxu0
  %v4447 = vadd.f32 0.0, %v4446
  %v4448 = vpop.f32.mrb[0].mxu0
  %4449 = vmatprep.mubr.f32.mxu0 %v4284
  %4450 = vmatmul.mubr.f32.gmra.mrb[0].mxu0 %v4283
  %v4451 = vpop.f32.mrb[0].mxu0
  %v4452 = vadd.f32 0.0, %v4451
  %v4453 = vpop.f32.mrb[0].mxu0
  %4454 = vmatprep.mubr.f32.mxu0 %v4287
  %4455 = vmatmul.mubr.f32.gmra.mrb[0].mxu0 %v4286
  %v4456 = vpop.f32.mrb[0].mxu0
  %v4457 = vadd.f32 0.0, %v4456
  %v4458 = vpop.f32.mrb[0].mxu0
  %4459 = vmatprep.mubr.f32.mxu0 %v4290
  %4460 = vmatmul.mubr.f32.gmra.mrb[0].mxu0 %v4289
  %v4461 = vpop.f32.mrb[0].mxu0
  %v4462 = vadd.f32 0.0, %v4461
  %v4463 = vpop.f32.mrb[0].mxu0
  %4464 = vmatprep.mubr.f32.mxu0 %v4293
  %4465 = vmatmul.mubr.f32.gmra.mrb[0].mxu0 %v4292
  %v4466 = vpop.f32.mrb[0].mxu0
  %v4467 = vadd.f32 0.0, %v4466
  %v4468 = vpop.f32.mrb[0].mxu0
  %4469 = vmatprep.mubr.f32.mxu0 %v4296
  %4470 = vmatmul.mubr.f32.gmra.mrb[0].mxu0 %v4295
  %v4471 = vpop.f32.mrb[0].mxu0
  %v4472 = vadd.f32 0.0, %v4471
  %v4473 = vpop.f32.mrb[0].mxu0
  %4474 = vmatprep.mubr.f32.mxu0 %v4299
  %4475 = vmatmul.mubr.f32.gmra.mrb[0].mxu0 %v4298
  %v4476 = vpop.f32.mrb[0].mxu0
  %v4477 = vadd.f32 0.0, %v4476
  %v4478 = vpop.f32.mrb[0].mxu0
  %4479 = vmatprep.mubr.f32.mxu0 %v4302
  %4480 = vmatmul.mubr.f32.gmra.mrb[0].mxu0 %v4301
  %v4481 = vpop.f32.mrb[0].mxu0
  %v4482 = vadd.f32 0.0, %v4481
  %v4483 = vpop.f32.mrb[0].mxu0
  %4484 = vmatprep.mubr.f32.mxu0 %v4305
  %4485 = vmatmul.mubr.f32.gmra.mrb[0].mxu0 %v4304
  %v4486 = vpop.f32.mrb[0].mxu0
  %v4487 = vadd.f32 0.0, %v4486
  %v4488 = vpop.f32.mrb[0].mxu0
  %4489 = vmatprep.mubr.f32.mxu0 %v4308
  %4490 = vmatmul.mubr.f32.gmra.mrb[0].mxu0 %v4307
  %v4491 = vpop.f32.mrb[0].mxu0
  %v4492 = vadd.f32 0.0, %v4491
  %v4493 = vpop.f32.mrb[0].mxu0
  %4494 = vmatprep.mubr.f32.mxu0 %v4311
  %4495 = vmatmul.mubr.f32.gmra.mrb[0].mxu0 %v4310
  %v4496 = vpop.f32.mrb[0].mxu0
  %v4497 = vadd.f32 0.0, %v4496
  %v4498 = vpop.f32.mrb[0].mxu0
  %4499 = vmatprep.mubr.f32.mxu0 %v4314
  %4500 = vmatmul.mubr.f32.gmra.mrb[0].mxu0 %v4313
  %v4501 = vpop.f32.mrb[0].mxu0
  %v4502 = vadd.f32 0.0, %v4501
  %v4503 = vpop.f32.mrb[0].mxu0
  %4504 = vmatprep.mubr.f32.mxu0 %v4317
  %4505 = vmatmul.mubr.f32.gmra.mrb[0].mxu0 %v4316
  %v4506 = vpop.f32.mrb[0].mxu0
  %v4507 = vadd.f32 0.0, %v4506
  %v4508 = vpop.f32.mrb[0].mxu0
  %4509 = vmatprep.mubr.f32.mxu0 %v4320
  %4510 = vmatmul.mubr.f32.gmra.mrb[0].mxu0 %v4319
  %v4511 = vpop.f32.mrb[0].mxu0
  %v4512 = vadd.f32 0.0, %v4511
  %v4513 = vpop.f32.mrb[0].mxu0
  %4514 = vdwg.mxu0
  %4515 = vmatprep.subr.mxu0 0.0
  %4516 = vmatpush1.msra.mxu0 %v3598
  %4517 = vmatprep.subr.mxu0 0.0
  %4518 = vmatpush1.msra.mxu0 %v3599
  %4519 = vmatprep.subr.mxu0 0.0
  %4520 = vmatpush1.msra.mxu0 %v3600
  %4521 = vmatprep.subr.mxu0 0.0
  %4522 = vmatpush1.msra.mxu0 %v3601
  %4523 = vmatprep.subr.mxu0 0.0
  %4524 = vmatpush1.msra.mxu0 0.0
  %4525 = vmatprep.subr.mxu0 0.0
  %4526 = vmatpush1.msra.mxu0 0.0
  %4527 = vmatprep.subr.mxu0 0.0
  %4528 = vmatpush1.msra.mxu0 0.0
  %4529 = vmatprep.subr.mxu0 0.0
  %4530 = vmatpush1.msra.mxu0 0.0
  %4531 = vmatprep.subr.mxu0 0.0
  %4532 = vmatpush1.msra.mxu0 0.0
  %4533 = vmatprep.subr.mxu0 0.0
  %4534 = vmatpush1.msra.mxu0 0.0
  %4535 = vmatprep.subr.mxu0 0.0
  %4536 = vmatpush1.msra.mxu0 0.0
  %4537 = vmatprep.subr.mxu0 0.0
  %4538 = vmatpush1.msra.mxu0 0.0
  %4539 = vmatprep.subr.mxu0 0.0
  %4540 = vmatpush1.msra.mxu0 0.0
  %4541 = vmatprep.subr.mxu0 0.0
  %4542 = vmatpush1.msra.mxu0 0.0
  %4543 = vmatprep.subr.mxu0 0.0
  %4544 = vmatpush1.msra.mxu0 0.0
  %4545 = vmatprep.subr.mxu0 0.0
  %4546 = vmatpush1.msra.mxu0 0.0
  %4547 = vmatprep.subr.mxu0 0.0
  %4548 = vmatpush1.msra.mxu0 0.0
  %4549 = vmatprep.subr.mxu0 0.0
  %4550 = vmatpush1.msra.mxu0 0.0
  %4551 = vmatprep.subr.mxu0 0.0
  %4552 = vmatpush1.msra.mxu0 0.0
  %4553 = vmatprep.subr.mxu0 0.0
  %4554 = vmatpush1.msra.mxu0 0.0
  %4555 = vmatprep.subr.mxu0 0.0
  %4556 = vmatpush1.msra.mxu0 0.0
  %4557 = vmatprep.subr.mxu0 0.0
  %4558 = vmatpush1.msra.mxu0 0.0
  %4559 = vmatprep.subr.mxu0 0.0
  %4560 = vmatpush1.msra.mxu0 0.0
  %4561 = vmatprep.subr.mxu0 0.0
  %4562 = vmatpush1.msra.mxu0 0.0
  %4563 = vmatprep.subr.mxu0 0.0
  %4564 = vmatpush1.msra.mxu0 0.0
  %4565 = vmatprep.subr.mxu0 0.0
  %4566 = vmatpush1.msra.mxu0 0.0
  %4567 = vmatprep.subr.mxu0 0.0
  %4568 = vmatpush1.msra.mxu0 0.0
  %4569 = vmatprep.subr.mxu0 0.0
  %4570 = vmatpush1.msra.mxu0 0.0
  %4571 = vmatprep.subr.mxu0 0.0
  %4572 = vmatpush1.msra.mxu0 0.0
  %4573 = vmatprep.subr.mxu0 0.0
  %4574 = vmatpush1.msra.mxu0 0.0
  %4575 = vmatprep.subr.mxu0 0.0
  %4576 = vmatpush1.msra.mxu0 0.0
  %4577 = vmatprep.subr.mxu0 0.0
  %4578 = vmatpush1.msra.mxu0 0.0
  %4579 = vmatprep.mubr.f32.mxu0 0.0
  %4580 = vmatmul.mubr.f32.gmra.mrb[0].mxu0 %v4323
  %v4581 = vpop.f32.mrb[0].mxu0
  %v4582 = vadd.f32 %v4437, %v4581
  %v4583 = vpop.f32.mrb[0].mxu0
  %4584 = vmatprep.mubr.f32.mxu0 0.0
  %4585 = vmatmul.mubr.f32.gmra.mrb[0].mxu0 %v4326
  %v4586 = vpop.f32.mrb[0].mxu0
  %v4587 = vadd.f32 %v4442, %v4586
  %v4588 = vpop.f32.mrb[0].mxu0
  %4589 = vmatprep.mubr.f32.mxu0 0.0
  %4590 = vmatmul.mubr.f32.gmra.mrb[0].mxu0 %v4329
  %v4591 = vpop.f32.mrb[0].mxu0
  %v4592 = vadd.f32 %v4447, %v4591
  %v4593 = vpop.f32.mrb[0].mxu0
  %4594 = vmatprep.mubr.f32.mxu0 0.0
  %4595 = vmatmul.mubr.f32.gmra.mrb[0].mxu0 %v4332
  %v4596 = vpop.f32.mrb[0].mxu0
  %v4597 = vadd.f32 %v4452, %v4596
  %v4598 = vpop.f32.mrb[0].mxu0
  %4599 = vmatprep.mubr.f32.mxu0 0.0
  %4600 = vmatmul.mubr.f32.gmra.mrb[0].mxu0 %v4335
  %v4601 = vpop.f32.mrb[0].mxu0
  %v4602 = vadd.f32 %v4457, %v4601
  %v4603 = vpop.f32.mrb[0].mxu0
  %4604 = vmatprep.mubr.f32.mxu0 0.0
  %4605 = vmatmul.mubr.f32.gmra.mrb[0].mxu0 %v4338
  %v4606 = vpop.f32.mrb[0].mxu0
  %v4607 = vadd.f32 %v4462, %v4606
  %v4608 = vpop.f32.mrb[0].mxu0
  %4609 = vmatprep.mubr.f32.mxu0 0.0
  %4610 = vmatmul.mubr.f32.gmra.mrb[0].mxu0 %v4341
  %v4611 = vpop.f32.mrb[0].mxu0
  %v4612 = vadd.f32 %v4467, %v4611
  %v4613 = vpop.f32.mrb[0].mxu0
  %4614 = vmatprep.mubr.f32.mxu0 0.0
  %4615 = vmatmul.mubr.f32.gmra.mrb[0].mxu0 %v4344
  %v4616 = vpop.f32.mrb[0].mxu0
  %v4617 = vadd.f32 %v4472, %v4616
  %v4618 = vpop.f32.mrb[0].mxu0
  %4619 = vmatprep.mubr.f32.mxu0 0.0
  %4620 = vmatmul.mubr.f32.gmra.mrb[0].mxu0 %v4347
  %v4621 = vpop.f32.mrb[0].mxu0
  %v4622 = vadd.f32 %v4477, %v4621
  %v4623 = vpop.f32.mrb[0].mxu0
  %4624 = vmatprep.mubr.f32.mxu0 0.0
  %4625 = vmatmul.mubr.f32.gmra.mrb[0].mxu0 %v4350
  %v4626 = vpop.f32.mrb[0].mxu0
  %v4627 = vadd.f32 %v4482, %v4626
  %v4628 = vpop.f32.mrb[0].mxu0
  %4629 = vmatprep.mubr.f32.mxu0 0.0
  %4630 = vmatmul.mubr.f32.gmra.mrb[0].mxu0 %v4353
  %v4631 = vpop.f32.mrb[0].mxu0
  %v4632 = vadd.f32 %v4487, %v4631
  %v4633 = vpop.f32.mrb[0].mxu0
  %4634 = vmatprep.mubr.f32.mxu0 0.0
  %4635 = vmatmul.mubr.f32.gmra.mrb[0].mxu0 %v4356
  %v4636 = vpop.f32.mrb[0].mxu0
  %v4637 = vadd.f32 %v4492, %v4636
  %v4638 = vpop.f32.mrb[0].mxu0
  %4639 = vmatprep.mubr.f32.mxu0 0.0
  %4640 = vmatmul.mubr.f32.gmra.mrb[0].mxu0 %v4359
  %v4641 = vpop.f32.mrb[0].mxu0
  %v4642 = vadd.f32 %v4497, %v4641
  %v4643 = vpop.f32.mrb[0].mxu0
  %4644 = vmatprep.mubr.f32.mxu0 0.0
  %4645 = vmatmul.mubr.f32.gmra.mrb[0].mxu0 %v4362
  %v4646 = vpop.f32.mrb[0].mxu0
  %v4647 = vadd.f32 %v4502, %v4646
  %v4648 = vpop.f32.mrb[0].mxu0
  %4649 = vmatprep.mubr.f32.mxu0 0.0
  %4650 = vmatmul.mubr.f32.gmra.mrb[0].mxu0 %v4365
  %v4651 = vpop.f32.mrb[0].mxu0
  %v4652 = vadd.f32 %v4507, %v4651
  %v4653 = vpop.f32.mrb[0].mxu0
  %4654 = vmatprep.mubr.f32.mxu0 0.0
  %4655 = vmatmul.mubr.f32.gmra.mrb[0].mxu0 %v4368
  %v4656 = vpop.f32.mrb[0].mxu0
  %v4657 = vadd.f32 %v4512, %v4656
  %v4658 = vpop.f32.mrb[0].mxu0
  %4659 = vdwg.mxu0
  %v4660 = vmax.f32 %v4582, 0.0
  %v4661 = vmax.f32 %v4587, 0.0
  %v4662 = vmax.f32 %v4592, 0.0
  %v4663 = vmax.f32 %v4597, 0.0
  %v4664 = vmax.f32 %v4602, 0.0
  %v4665 = vmax.f32 %v4607, 0.0
  %v4666 = vmax.f32 %v4612, 0.0
  %v4667 = vmax.f32 %v4617, 0.0
  %v4668 = vmax.f32 %v4622, 0.0
  %v4669 = vmax.f32 %v4627, 0.0
  %v4670 = vmax.f32 %v4632, 0.0
  %v4671 = vmax.f32 %v4637, 0.0
  %v4672 = vmax.f32 %v4642, 0.0
  %v4673 = vmax.f32 %v4647, 0.0
  %v4674 = vmax.f32 %v4652, 0.0
  %v4675 = vmax.f32 %v4657, 0.0
  %s4676 = scalar_lea.vmem %s5, 8
  %v4677 = vld [vmem:[%s4676] sm:$0xff]
  %v4679 = vsel %vm3323, %v4660, 0
  %v4682 = vsel %vm3323, %v4661, 0
  %v4685 = vsel %vm3323, %v4662, 0
  %v4688 = vsel %vm3323, %v4663, 0
  %v4691 = vsel %vm3323, %v4664, 0
  %v4694 = vsel %vm3323, %v4665, 0
  %v4697 = vsel %vm3323, %v4666, 0
  %v4700 = vsel %vm3323, %v4667, 0
  %v4703 = vsel %vm3323, %v4668, 0
  %v4706 = vsel %vm3323, %v4669, 0
  %v4709 = vsel %vm3323, %v4670, 0
  %v4712 = vsel %vm3323, %v4671, 0
  %v4715 = vsel %vm3323, %v4672, 0
  %v4718 = vsel %vm3323, %v4673, 0
  %v4721 = vsel %vm3323, %v4674, 0
  %v4724 = vsel %vm3323, %v4675, 0
  %4726 = vmatprep.subr.mxu0 0.0
  %4727 = vmatpush1.msra.mxu0 %v4677
  %4728 = vmatprep.subr.mxu0 0.0
  %4729 = vmatpush1.msra.mxu0 0.0
  %4730 = vmatprep.subr.mxu0 0.0
  %4731 = vmatpush1.msra.mxu0 0.0
  %4732 = vmatprep.subr.mxu0 0.0
  %4733 = vmatpush1.msra.mxu0 0.0
  %4734 = vmatprep.subr.mxu0 0.0
  %4735 = vmatpush1.msra.mxu0 0.0
  %4736 = vmatprep.subr.mxu0 0.0
  %4737 = vmatpush1.msra.mxu0 0.0
  %4738 = vmatprep.subr.mxu0 0.0
  %4739 = vmatpush1.msra.mxu0 0.0
  %4740 = vmatprep.subr.mxu0 0.0
  %4741 = vmatpush1.msra.mxu0 0.0
  %4742 = vmatprep.subr.mxu0 0.0
  %4743 = vmatpush1.msra.mxu0 0.0
  %4744 = vmatprep.subr.mxu0 0.0
  %4745 = vmatpush1.msra.mxu0 0.0
  %4746 = vmatprep.subr.mxu0 0.0
  %4747 = vmatpush1.msra.mxu0 0.0
  %4748 = vmatprep.subr.mxu0 0.0
  %4749 = vmatpush1.msra.mxu0 0.0
  %4750 = vmatprep.subr.mxu0 0.0
  %4751 = vmatpush1.msra.mxu0 0.0
  %4752 = vmatprep.subr.mxu0 0.0
  %4753 = vmatpush1.msra.mxu0 0.0
  %4754 = vmatprep.subr.mxu0 0.0
  %4755 = vmatpush1.msra.mxu0 0.0
  %4756 = vmatprep.subr.mxu0 0.0
  %4757 = vmatpush1.msra.mxu0 0.0
  %4758 = vmatprep.subr.mxu0 0.0
  %4759 = vmatpush1.msra.mxu0 0.0
  %4760 = vmatprep.subr.mxu0 0.0
  %4761 = vmatpush1.msra.mxu0 0.0
  %4762 = vmatprep.subr.mxu0 0.0
  %4763 = vmatpush1.msra.mxu0 0.0
  %4764 = vmatprep.subr.mxu0 0.0
  %4765 = vmatpush1.msra.mxu0 0.0
  %4766 = vmatprep.subr.mxu0 0.0
  %4767 = vmatpush1.msra.mxu0 0.0
  %4768 = vmatprep.subr.mxu0 0.0
  %4769 = vmatpush1.msra.mxu0 0.0
  %4770 = vmatprep.subr.mxu0 0.0
  %4771 = vmatpush1.msra.mxu0 0.0
  %4772 = vmatprep.subr.mxu0 0.0
  %4773 = vmatpush1.msra.mxu0 0.0
  %4774 = vmatprep.subr.mxu0 0.0
  %4775 = vmatpush1.msra.mxu0 0.0
  %4776 = vmatprep.subr.mxu0 0.0
  %4777 = vmatpush1.msra.mxu0 0.0
  %4778 = vmatprep.subr.mxu0 0.0
  %4779 = vmatpush1.msra.mxu0 0.0
  %4780 = vmatprep.subr.mxu0 0.0
  %4781 = vmatpush1.msra.mxu0 0.0
  %4782 = vmatprep.subr.mxu0 0.0
  %4783 = vmatpush1.msra.mxu0 0.0
  %4784 = vmatprep.subr.mxu0 0.0
  %4785 = vmatpush1.msra.mxu0 0.0
  %4786 = vmatprep.subr.mxu0 0.0
  %4787 = vmatpush1.msra.mxu0 0.0
  %4788 = vmatprep.subr.mxu0 0.0
  %4789 = vmatpush1.msra.mxu0 0.0
  %4790 = vmatprep.mubr.f32.mxu0 0.0
  %4791 = vmatmul.mubr.f32.gmra.mrb[0].mxu0 %v4679
  %v4792 = vpop.f32.mrb[0].mxu0
  %v4793 = vadd.f32 0.0, %v4792
  %v4794 = vpop.f32.mrb[0].mxu0
  %4795 = vmatprep.mubr.f32.mxu0 0.0
  %4796 = vmatmul.mubr.f32.gmra.mrb[0].mxu0 %v4682
  %v4797 = vpop.f32.mrb[0].mxu0
  %v4798 = vadd.f32 0.0, %v4797
  %v4799 = vpop.f32.mrb[0].mxu0
  %4800 = vmatprep.mubr.f32.mxu0 0.0
  %4801 = vmatmul.mubr.f32.gmra.mrb[0].mxu0 %v4685
  %v4802 = vpop.f32.mrb[0].mxu0
  %v4803 = vadd.f32 0.0, %v4802
  %v4804 = vpop.f32.mrb[0].mxu0
  %4805 = vmatprep.mubr.f32.mxu0 0.0
  %4806 = vmatmul.mubr.f32.gmra.mrb[0].mxu0 %v4688
  %v4807 = vpop.f32.mrb[0].mxu0
  %v4808 = vadd.f32 0.0, %v4807
  %v4809 = vpop.f32.mrb[0].mxu0
  %4810 = vmatprep.mubr.f32.mxu0 0.0
  %4811 = vmatmul.mubr.f32.gmra.mrb[0].mxu0 %v4691
  %v4812 = vpop.f32.mrb[0].mxu0
  %v4813 = vadd.f32 0.0, %v4812
  %v4814 = vpop.f32.mrb[0].mxu0
  %4815 = vmatprep.mubr.f32.mxu0 0.0
  %4816 = vmatmul.mubr.f32.gmra.mrb[0].mxu0 %v4694
  %v4817 = vpop.f32.mrb[0].mxu0
  %v4818 = vadd.f32 0.0, %v4817
  %v4819 = vpop.f32.mrb[0].mxu0
  %4820 = vmatprep.mubr.f32.mxu0 0.0
  %4821 = vmatmul.mubr.f32.gmra.mrb[0].mxu0 %v4697
  %v4822 = vpop.f32.mrb[0].mxu0
  %v4823 = vadd.f32 0.0, %v4822
  %v4824 = vpop.f32.mrb[0].mxu0
  %4825 = vmatprep.mubr.f32.mxu0 0.0
  %4826 = vmatmul.mubr.f32.gmra.mrb[0].mxu0 %v4700
  %v4827 = vpop.f32.mrb[0].mxu0
  %v4828 = vadd.f32 0.0, %v4827
  %v4829 = vpop.f32.mrb[0].mxu0
  %4830 = vmatprep.mubr.f32.mxu0 0.0
  %4831 = vmatmul.mubr.f32.gmra.mrb[0].mxu0 %v4703
  %v4832 = vpop.f32.mrb[0].mxu0
  %v4833 = vadd.f32 0.0, %v4832
  %v4834 = vpop.f32.mrb[0].mxu0
  %4835 = vmatprep.mubr.f32.mxu0 0.0
  %4836 = vmatmul.mubr.f32.gmra.mrb[0].mxu0 %v4706
  %v4837 = vpop.f32.mrb[0].mxu0
  %v4838 = vadd.f32 0.0, %v4837
  %v4839 = vpop.f32.mrb[0].mxu0
  %4840 = vmatprep.mubr.f32.mxu0 0.0
  %4841 = vmatmul.mubr.f32.gmra.mrb[0].mxu0 %v4709
  %v4842 = vpop.f32.mrb[0].mxu0
  %v4843 = vadd.f32 0.0, %v4842
  %v4844 = vpop.f32.mrb[0].mxu0
  %4845 = vmatprep.mubr.f32.mxu0 0.0
  %4846 = vmatmul.mubr.f32.gmra.mrb[0].mxu0 %v4712
  %v4847 = vpop.f32.mrb[0].mxu0
  %v4848 = vadd.f32 0.0, %v4847
  %v4849 = vpop.f32.mrb[0].mxu0
  %4850 = vmatprep.mubr.f32.mxu0 0.0
  %4851 = vmatmul.mubr.f32.gmra.mrb[0].mxu0 %v4715
  %v4852 = vpop.f32.mrb[0].mxu0
  %v4853 = vadd.f32 0.0, %v4852
  %v4854 = vpop.f32.mrb[0].mxu0
  %4855 = vmatprep.mubr.f32.mxu0 0.0
  %4856 = vmatmul.mubr.f32.gmra.mrb[0].mxu0 %v4718
  %v4857 = vpop.f32.mrb[0].mxu0
  %v4858 = vadd.f32 0.0, %v4857
  %v4859 = vpop.f32.mrb[0].mxu0
  %4860 = vmatprep.mubr.f32.mxu0 0.0
  %4861 = vmatmul.mubr.f32.gmra.mrb[0].mxu0 %v4721
  %v4862 = vpop.f32.mrb[0].mxu0
  %v4863 = vadd.f32 0.0, %v4862
  %v4864 = vpop.f32.mrb[0].mxu0
  %4865 = vmatprep.mubr.f32.mxu0 0.0
  %4866 = vmatmul.mubr.f32.gmra.mrb[0].mxu0 %v4724
  %v4867 = vpop.f32.mrb[0].mxu0
  %v4868 = vadd.f32 0.0, %v4867
  %v4869 = vpop.f32.mrb[0].mxu0
  %4870 = vdwg.mxu0
  %v4871 = vadd.f32 %v3517, %v4793
  %v4872 = vadd.f32 %v3518, %v4798
  %v4873 = vadd.f32 %v3519, %v4803
  %v4874 = vadd.f32 %v3520, %v4808
  %v4875 = vadd.f32 %v3521, %v4813
  %v4876 = vadd.f32 %v3522, %v4818
  %v4877 = vadd.f32 %v3523, %v4823
  %v4878 = vadd.f32 %v3524, %v4828
  %v4879 = vadd.f32 %v3525, %v4833
  %v4880 = vadd.f32 %v3526, %v4838
  %v4881 = vadd.f32 %v3527, %v4843
  %v4882 = vadd.f32 %v3528, %v4848
  %v4883 = vadd.f32 %v3529, %v4853
  %v4884 = vadd.f32 %v3530, %v4858
  %v4885 = vadd.f32 %v3531, %v4863
  %v4886 = vadd.f32 %v3532, %v4868
  %v4887 = vmax.f32 %v4871, 0.0
  %v4888 = vmax.f32 %v4872, 0.0
  %v4889 = vmax.f32 %v4873, 0.0
  %v4890 = vmax.f32 %v4874, 0.0
  %v4891 = vmax.f32 %v4875, 0.0
  %v4892 = vmax.f32 %v4876, 0.0
  %v4893 = vmax.f32 %v4877, 0.0
  %v4894 = vmax.f32 %v4878, 0.0
  %v4895 = vmax.f32 %v4879, 0.0
  %v4896 = vmax.f32 %v4880, 0.0
  %v4897 = vmax.f32 %v4881, 0.0
  %v4898 = vmax.f32 %v4882, 0.0
  %v4899 = vmax.f32 %v4883, 0.0
  %v4900 = vmax.f32 %v4884, 0.0
  %v4901 = vmax.f32 %v4885, 0.0
  %v4902 = vmax.f32 %v4886, 0.0
  %4903 = vst.msk [vmem:[%s2191 + $0x1] sm:$0xff] %vm347, %v4887
  %4904 = vst.msk [vmem:[%s2191 + $0x11] sm:$0xff] %vm347, %v4888
  %4905 = vst.msk [vmem:[%s2191 + $0x21] sm:$0xff] %vm347, %v4889
  %4906 = vst.msk [vmem:[%s2191 + $0x31] sm:$0xff] %vm347, %v4890
  %4907 = vst.msk [vmem:[%s2191 + $0x41] sm:$0xff] %vm347, %v4891
  %4908 = vst.msk [vmem:[%s2191 + $0x51] sm:$0xff] %vm347, %v4892
  %4909 = vst.msk [vmem:[%s2191 + $0x61] sm:$0xff] %vm347, %v4893
  %4910 = vst.msk [vmem:[%s2191 + $0x71] sm:$0xff] %vm347, %v4894
  %4911 = vst.msk [vmem:[%s2191 + $0xa1] sm:$0xff] %vm347, %v4895
  %4912 = vst.msk [vmem:[%s2191 + $0xb1] sm:$0xff] %vm347, %v4896
  %4913 = vst.msk [vmem:[%s2191 + $0xc1] sm:$0xff] %vm347, %v4897
  %4914 = vst.msk [vmem:[%s2191 + $0xd1] sm:$0xff] %vm347, %v4898
  %4915 = vst.msk [vmem:[%s2191 + $0xe1] sm:$0xff] %vm347, %v4899
  %4916 = vst.msk [vmem:[%s2191 + $0xf1] sm:$0xff] %vm347, %v4900
  %4917 = vst.msk [vmem:[%s2191 + $0x101] sm:$0xff] %vm347, %v4901
  %4918 = vst.msk [vmem:[%s2191 + $0x111] sm:$0xff] %vm347, %v4902
  %v4919 = vld [vmem:[%s6] sm:$0xff]
  %v4920 = vld [vmem:[%s6 + $0x8] sm:$0xff]
  %v4921 = vld [vmem:[%s6 + $0x10] sm:$0xff]
  %v4922 = vld [vmem:[%s6 + $0x18] sm:$0xff]
  %v4923 = vld [vmem:[%s6 + $0x20] sm:$0xff]
  %v4924 = vld [vmem:[%s6 + $0x28] sm:$0xff]
  %v4925 = vld [vmem:[%s6 + $0x30] sm:$0xff]
  %v4926 = vld [vmem:[%s6 + $0x38] sm:$0xff]
  %v4927 = vld [vmem:[%s6 + $0x40] sm:$0xff]
  %v4928 = vld [vmem:[%s6 + $0x48] sm:$0xff]
  %v4929 = vld [vmem:[%s6 + $0x50] sm:$0xff]
  %v4930 = vld [vmem:[%s6 + $0x58] sm:$0xff]
  %v4931 = vld [vmem:[%s6 + $0x60] sm:$0xff]
  %v4932 = vld [vmem:[%s6 + $0x68] sm:$0xff]
  %v4933 = vld [vmem:[%s6 + $0x70] sm:$0xff]
  %v4934 = vld [vmem:[%s6 + $0x78] sm:$0xff]
  %v4935 = vld [vmem:[%s6 + $0x80] sm:$0xff]
  %v4936 = vld [vmem:[%s6 + $0x88] sm:$0xff]
  %v4937 = vld [vmem:[%s6 + $0x90] sm:$0xff]
  %v4938 = vld [vmem:[%s6 + $0x98] sm:$0xff]
  %v4939 = vld [vmem:[%s6 + $0xa0] sm:$0xff]
  %v4940 = vld [vmem:[%s6 + $0xa8] sm:$0xff]
  %v4941 = vld [vmem:[%s6 + $0xb0] sm:$0xff]
  %v4942 = vld [vmem:[%s6 + $0xb8] sm:$0xff]
  %v4943 = vld [vmem:[%s6 + $0xc0] sm:$0xff]
  %v4944 = vld [vmem:[%s6 + $0xc8] sm:$0xff]
  %v4945 = vld [vmem:[%s6 + $0xd0] sm:$0xff]
  %v4946 = vld [vmem:[%s6 + $0xd8] sm:$0xff]
  %v4947 = vld [vmem:[%s6 + $0xe0] sm:$0xff]
  %v4948 = vld [vmem:[%s6 + $0xe8] sm:$0xff]
  %v4949 = vld [vmem:[%s6 + $0xf0] sm:$0xff]
  %v4950 = vld [vmem:[%s6 + $0xf8] sm:$0xff]
  %v4951 = vld [vmem:[%s6 + $0x100] sm:$0xff]
  %v4952 = vld [vmem:[%s6 + $0x108] sm:$0xff]
  %v4953 = vld [vmem:[%s6 + $0x110] sm:$0xff]
  %v4954 = vld [vmem:[%s6 + $0x118] sm:$0xff]
  %v4955 = vld [vmem:[#allocation3] sm:$0xff]
  %v4956 = vld [vmem:[#allocation3 + $0x10] sm:$0xff]
  %v4957 = vld [vmem:[#allocation3 + $0x20] sm:$0xff]
  %v4958 = vld [vmem:[#allocation3 + $0x30] sm:$0xff]
  %v4959 = vld [vmem:[#allocation3 + $0x40] sm:$0xff]
  %v4960 = vld [vmem:[#allocation3 + $0x50] sm:$0xff]
  %v4961 = vld [vmem:[#allocation3 + $0x60] sm:$0xff]
  %v4962 = vld [vmem:[#allocation3 + $0x70] sm:$0xff]
  %v4963 = vld [vmem:[#allocation3 + $0xa0] sm:$0xff]
  %v4964 = vld [vmem:[#allocation3 + $0xb0] sm:$0xff]
  %v4965 = vld [vmem:[#allocation3 + $0xc0] sm:$0xff]
  %v4966 = vld [vmem:[#allocation3 + $0xd0] sm:$0xff]
  %v4967 = vld [vmem:[#allocation3 + $0xe0] sm:$0xff]
  %v4968 = vld [vmem:[#allocation3 + $0xf0] sm:$0xff]
  %v4969 = vld [vmem:[#allocation3 + $0x100] sm:$0xff]
  %v4970 = vld [vmem:[#allocation3 + $0x110] sm:$0xff]
  %4971 = vst.msk [vmem:[#allocation5] sm:$0xff] %vm347, %v4955
  %4972 = vst.msk [vmem:[#allocation5 + $0x28] sm:$0xff] %vm347, %v4956
  %4973 = vst.msk [vmem:[#allocation5 + $0x50] sm:$0xff] %vm347, %v4957
  %4974 = vst.msk [vmem:[#allocation5 + $0x78] sm:$0xff] %vm347, %v4958
  %4975 = vst.msk [vmem:[#allocation5 + $0xa0] sm:$0xff] %vm347, %v4959
  %4976 = vst.msk [vmem:[#allocation5 + $0xc8] sm:$0xff] %vm347, %v4960
  %4977 = vst.msk [vmem:[#allocation5 + $0xf0] sm:$0xff] %vm347, %v4961
  %4978 = vst.msk [vmem:[#allocation5 + $0x118] sm:$0xff] %vm347, %v4962
  %4979 = vst.msk [vmem:[#allocation5 + $0x140] sm:$0xff] %vm347, %v4963
  %4980 = vst.msk [vmem:[#allocation5 + $0x168] sm:$0xff] %vm347, %v4964
  %4981 = vst.msk [vmem:[#allocation5 + $0x190] sm:$0xff] %vm347, %v4965
  %4982 = vst.msk [vmem:[#allocation5 + $0x1b8] sm:$0xff] %vm347, %v4966
  %4983 = vst.msk [vmem:[#allocation5 + $0x1e0] sm:$0xff] %vm347, %v4967
  %4984 = vst.msk [vmem:[#allocation5 + $0x208] sm:$0xff] %vm347, %v4968
  %4985 = vst.msk [vmem:[#allocation5 + $0x230] sm:$0xff] %vm347, %v4969
  %4986 = vst.msk [vmem:[#allocation5 + $0x258] sm:$0xff] %vm347, %v4970
  %v4987 = vld [vmem:[#allocation3 + $0x1] sm:$0xff]
  %v4988 = vld [vmem:[#allocation3 + $0x11] sm:$0xff]
  %v4989 = vld [vmem:[#allocation3 + $0x21] sm:$0xff]
  %v4990 = vld [vmem:[#allocation3 + $0x31] sm:$0xff]
  %v4991 = vld [vmem:[#allocation3 + $0x41] sm:$0xff]
  %v4992 = vld [vmem:[#allocation3 + $0x51] sm:$0xff]
  %v4993 = vld [vmem:[#allocation3 + $0x61] sm:$0xff]
  %v4994 = vld [vmem:[#allocation3 + $0x71] sm:$0xff]
  %v4995 = vld [vmem:[#allocation3 + $0xa1] sm:$0xff]
  %v4996 = vld [vmem:[#allocation3 + $0xb1] sm:$0xff]
  %v4997 = vld [vmem:[#allocation3 + $0xc1] sm:$0xff]
  %v4998 = vld [vmem:[#allocation3 + $0xd1] sm:$0xff]
  %v4999 = vld [vmem:[#allocation3 + $0xe1] sm:$0xff]
  %v5000 = vld [vmem:[#allocation3 + $0xf1] sm:$0xff]
  %v5001 = vld [vmem:[#allocation3 + $0x101] sm:$0xff]
  %v5002 = vld [vmem:[#allocation3 + $0x111] sm:$0xff]
  %5019 = vrot.lane.b32.xlu0 %v4987, 32
  %v5020 = vpop.permute.xlu0 %5019
  %5021 = vrot.lane.b32.xlu0 %v4988, 32
  %v5022 = vpop.permute.xlu0 %5021
  %5023 = vrot.lane.b32.xlu0 %v4989, 32
  %v5024 = vpop.permute.xlu0 %5023
  %5025 = vrot.lane.b32.xlu0 %v4990, 32
  %v5026 = vpop.permute.xlu0 %5025
  %5027 = vrot.lane.b32.xlu0 %v4991, 32
  %v5028 = vpop.permute.xlu0 %5027
  %5029 = vrot.lane.b32.xlu0 %v4992, 32
  %v5030 = vpop.permute.xlu0 %5029
  %5031 = vrot.lane.b32.xlu0 %v4993, 32
  %v5032 = vpop.permute.xlu0 %5031
  %5033 = vrot.lane.b32.xlu0 %v4994, 32
  %v5034 = vpop.permute.xlu0 %5033
  %5035 = vrot.lane.b32.xlu0 %v4995, 32
  %v5036 = vpop.permute.xlu0 %5035
  %5037 = vrot.lane.b32.xlu0 %v4996, 32
  %v5038 = vpop.permute.xlu0 %5037
  %5039 = vrot.lane.b32.xlu0 %v4997, 32
  %v5040 = vpop.permute.xlu0 %5039
  %5041 = vrot.lane.b32.xlu0 %v4998, 32
  %v5042 = vpop.permute.xlu0 %5041
  %5043 = vrot.lane.b32.xlu0 %v4999, 32
  %v5044 = vpop.permute.xlu0 %5043
  %5045 = vrot.lane.b32.xlu0 %v5000, 32
  %v5046 = vpop.permute.xlu0 %5045
  %5047 = vrot.lane.b32.xlu0 %v5001, 32
  %v5048 = vpop.permute.xlu0 %5047
  %5049 = vrot.lane.b32.xlu0 %v5002, 32
  %v5050 = vpop.permute.xlu0 %5049
  %5067 = vst.msk [vmem:[#allocation5] sm:$0xff] %vm2356, %v5020
  %5068 = vst.msk [vmem:[#allocation5 + $0x28] sm:$0xff] %vm2356, %v5022
  %5069 = vst.msk [vmem:[#allocation5 + $0x50] sm:$0xff] %vm2356, %v5024
  %5070 = vst.msk [vmem:[#allocation5 + $0x78] sm:$0xff] %vm2356, %v5026
  %5071 = vst.msk [vmem:[#allocation5 + $0xa0] sm:$0xff] %vm2356, %v5028
  %5072 = vst.msk [vmem:[#allocation5 + $0xc8] sm:$0xff] %vm2356, %v5030
  %5073 = vst.msk [vmem:[#allocation5 + $0xf0] sm:$0xff] %vm2356, %v5032
  %5074 = vst.msk [vmem:[#allocation5 + $0x118] sm:$0xff] %vm2356, %v5034
  %5075 = vst.msk [vmem:[#allocation5 + $0x140] sm:$0xff] %vm2356, %v5036
  %5076 = vst.msk [vmem:[#allocation5 + $0x168] sm:$0xff] %vm2356, %v5038
  %5077 = vst.msk [vmem:[#allocation5 + $0x190] sm:$0xff] %vm2356, %v5040
  %5078 = vst.msk [vmem:[#allocation5 + $0x1b8] sm:$0xff] %vm2356, %v5042
  %5079 = vst.msk [vmem:[#allocation5 + $0x1e0] sm:$0xff] %vm2356, %v5044
  %5080 = vst.msk [vmem:[#allocation5 + $0x208] sm:$0xff] %vm2356, %v5046
  %5081 = vst.msk [vmem:[#allocation5 + $0x230] sm:$0xff] %vm2356, %v5048
  %5082 = vst.msk [vmem:[#allocation5 + $0x258] sm:$0xff] %vm2356, %v5050
  %v5083 = vld [vmem:[#allocation3 + $0x2] sm:$0xff]
  %v5084 = vld [vmem:[#allocation3 + $0x12] sm:$0xff]
  %v5085 = vld [vmem:[#allocation3 + $0x22] sm:$0xff]
  %v5086 = vld [vmem:[#allocation3 + $0x32] sm:$0xff]
  %v5087 = vld [vmem:[#allocation3 + $0x42] sm:$0xff]
  %v5088 = vld [vmem:[#allocation3 + $0x52] sm:$0xff]
  %v5089 = vld [vmem:[#allocation3 + $0x62] sm:$0xff]
  %v5090 = vld [vmem:[#allocation3 + $0x72] sm:$0xff]
  %v5091 = vld [vmem:[#allocation3 + $0xa2] sm:$0xff]
  %v5092 = vld [vmem:[#allocation3 + $0xb2] sm:$0xff]
  %v5093 = vld [vmem:[#allocation3 + $0xc2] sm:$0xff]
  %v5094 = vld [vmem:[#allocation3 + $0xd2] sm:$0xff]
  %v5095 = vld [vmem:[#allocation3 + $0xe2] sm:$0xff]
  %v5096 = vld [vmem:[#allocation3 + $0xf2] sm:$0xff]
  %v5097 = vld [vmem:[#allocation3 + $0x102] sm:$0xff]
  %v5098 = vld [vmem:[#allocation3 + $0x112] sm:$0xff]
  %5115 = vrot.lane.b32.xlu0 %v5083, 64
  %v5116 = vpop.permute.xlu0 %5115
  %5117 = vrot.lane.b32.xlu0 %v5084, 64
  %v5118 = vpop.permute.xlu0 %5117
  %5119 = vrot.lane.b32.xlu0 %v5085, 64
  %v5120 = vpop.permute.xlu0 %5119
  %5121 = vrot.lane.b32.xlu0 %v5086, 64
  %v5122 = vpop.permute.xlu0 %5121
  %5123 = vrot.lane.b32.xlu0 %v5087, 64
  %v5124 = vpop.permute.xlu0 %5123
  %5125 = vrot.lane.b32.xlu0 %v5088, 64
  %v5126 = vpop.permute.xlu0 %5125
  %5127 = vrot.lane.b32.xlu0 %v5089, 64
  %v5128 = vpop.permute.xlu0 %5127
  %5129 = vrot.lane.b32.xlu0 %v5090, 64
  %v5130 = vpop.permute.xlu0 %5129
  %5131 = vrot.lane.b32.xlu0 %v5091, 64
  %v5132 = vpop.permute.xlu0 %5131
  %5133 = vrot.lane.b32.xlu0 %v5092, 64
  %v5134 = vpop.permute.xlu0 %5133
  %5135 = vrot.lane.b32.xlu0 %v5093, 64
  %v5136 = vpop.permute.xlu0 %5135
  %5137 = vrot.lane.b32.xlu0 %v5094, 64
  %v5138 = vpop.permute.xlu0 %5137
  %5139 = vrot.lane.b32.xlu0 %v5095, 64
  %v5140 = vpop.permute.xlu0 %5139
  %5141 = vrot.lane.b32.xlu0 %v5096, 64
  %v5142 = vpop.permute.xlu0 %5141
  %5143 = vrot.lane.b32.xlu0 %v5097, 64
  %v5144 = vpop.permute.xlu0 %5143
  %5145 = vrot.lane.b32.xlu0 %v5098, 64
  %v5146 = vpop.permute.xlu0 %5145
  %5163 = vst.msk [vmem:[#allocation5] sm:$0xff] %vm2453, %v5116
  %5164 = vst.msk [vmem:[#allocation5 + $0x28] sm:$0xff] %vm2453, %v5118
  %5165 = vst.msk [vmem:[#allocation5 + $0x50] sm:$0xff] %vm2453, %v5120
  %5166 = vst.msk [vmem:[#allocation5 + $0x78] sm:$0xff] %vm2453, %v5122
  %5167 = vst.msk [vmem:[#allocation5 + $0xa0] sm:$0xff] %vm2453, %v5124
  %5168 = vst.msk [vmem:[#allocation5 + $0xc8] sm:$0xff] %vm2453, %v5126
  %5169 = vst.msk [vmem:[#allocation5 + $0xf0] sm:$0xff] %vm2453, %v5128
  %5170 = vst.msk [vmem:[#allocation5 + $0x118] sm:$0xff] %vm2453, %v5130
  %5171 = vst.msk [vmem:[#allocation5 + $0x140] sm:$0xff] %vm2453, %v5132
  %5172 = vst.msk [vmem:[#allocation5 + $0x168] sm:$0xff] %vm2453, %v5134
  %5173 = vst.msk [vmem:[#allocation5 + $0x190] sm:$0xff] %vm2453, %v5136
  %5174 = vst.msk [vmem:[#allocation5 + $0x1b8] sm:$0xff] %vm2453, %v5138
  %5175 = vst.msk [vmem:[#allocation5 + $0x1e0] sm:$0xff] %vm2453, %v5140
  %5176 = vst.msk [vmem:[#allocation5 + $0x208] sm:$0xff] %vm2453, %v5142
  %5177 = vst.msk [vmem:[#allocation5 + $0x230] sm:$0xff] %vm2453, %v5144
  %5178 = vst.msk [vmem:[#allocation5 + $0x258] sm:$0xff] %vm2453, %v5146
  %v5179 = vld [vmem:[%s2191] sm:$0xff]
  %v5180 = vld [vmem:[%s2191 + $0x10] sm:$0xff]
  %v5181 = vld [vmem:[%s2191 + $0x20] sm:$0xff]
  %v5182 = vld [vmem:[%s2191 + $0x30] sm:$0xff]
  %v5183 = vld [vmem:[%s2191 + $0x40] sm:$0xff]
  %v5184 = vld [vmem:[%s2191 + $0x50] sm:$0xff]
  %v5185 = vld [vmem:[%s2191 + $0x60] sm:$0xff]
  %v5186 = vld [vmem:[%s2191 + $0x70] sm:$0xff]
  %v5187 = vld [vmem:[%s2191 + $0xa0] sm:$0xff]
  %v5188 = vld [vmem:[%s2191 + $0xb0] sm:$0xff]
  %v5189 = vld [vmem:[%s2191 + $0xc0] sm:$0xff]
  %v5190 = vld [vmem:[%s2191 + $0xd0] sm:$0xff]
  %v5191 = vld [vmem:[%s2191 + $0xe0] sm:$0xff]
  %v5192 = vld [vmem:[%s2191 + $0xf0] sm:$0xff]
  %v5193 = vld [vmem:[%s2191 + $0x100] sm:$0xff]
  %v5194 = vld [vmem:[%s2191 + $0x110] sm:$0xff]
  %5211 = vrot.lane.b32.xlu0 %v5179, 96
  %v5212 = vpop.permute.xlu0 %5211
  %5213 = vrot.lane.b32.xlu0 %v5180, 96
  %v5214 = vpop.permute.xlu0 %5213
  %5215 = vrot.lane.b32.xlu0 %v5181, 96
  %v5216 = vpop.permute.xlu0 %5215
  %5217 = vrot.lane.b32.xlu0 %v5182, 96
  %v5218 = vpop.permute.xlu0 %5217
  %5219 = vrot.lane.b32.xlu0 %v5183, 96
  %v5220 = vpop.permute.xlu0 %5219
  %5221 = vrot.lane.b32.xlu0 %v5184, 96
  %v5222 = vpop.permute.xlu0 %5221
  %5223 = vrot.lane.b32.xlu0 %v5185, 96
  %v5224 = vpop.permute.xlu0 %5223
  %5225 = vrot.lane.b32.xlu0 %v5186, 96
  %v5226 = vpop.permute.xlu0 %5225
  %5227 = vrot.lane.b32.xlu0 %v5187, 96
  %v5228 = vpop.permute.xlu0 %5227
  %5229 = vrot.lane.b32.xlu0 %v5188, 96
  %v5230 = vpop.permute.xlu0 %5229
  %5231 = vrot.lane.b32.xlu0 %v5189, 96
  %v5232 = vpop.permute.xlu0 %5231
  %5233 = vrot.lane.b32.xlu0 %v5190, 96
  %v5234 = vpop.permute.xlu0 %5233
  %5235 = vrot.lane.b32.xlu0 %v5191, 96
  %v5236 = vpop.permute.xlu0 %5235
  %5237 = vrot.lane.b32.xlu0 %v5192, 96
  %v5238 = vpop.permute.xlu0 %5237
  %5239 = vrot.lane.b32.xlu0 %v5193, 96
  %v5240 = vpop.permute.xlu0 %5239
  %5241 = vrot.lane.b32.xlu0 %v5194, 96
  %v5242 = vpop.permute.xlu0 %5241
  %5259 = vst.msk [vmem:[#allocation5] sm:$0xff] %vm2550, %v5212
  %5260 = vst.msk [vmem:[#allocation5 + $0x28] sm:$0xff] %vm2550, %v5214
  %5261 = vst.msk [vmem:[#allocation5 + $0x50] sm:$0xff] %vm2550, %v5216
  %5262 = vst.msk [vmem:[#allocation5 + $0x78] sm:$0xff] %vm2550, %v5218
  %5263 = vst.msk [vmem:[#allocation5 + $0xa0] sm:$0xff] %vm2550, %v5220
  %5264 = vst.msk [vmem:[#allocation5 + $0xc8] sm:$0xff] %vm2550, %v5222
  %5265 = vst.msk [vmem:[#allocation5 + $0xf0] sm:$0xff] %vm2550, %v5224
  %5266 = vst.msk [vmem:[#allocation5 + $0x118] sm:$0xff] %vm2550, %v5226
  %5267 = vst.msk [vmem:[#allocation5 + $0x140] sm:$0xff] %vm2550, %v5228
  %5268 = vst.msk [vmem:[#allocation5 + $0x168] sm:$0xff] %vm2550, %v5230
  %5269 = vst.msk [vmem:[#allocation5 + $0x190] sm:$0xff] %vm2550, %v5232
  %5270 = vst.msk [vmem:[#allocation5 + $0x1b8] sm:$0xff] %vm2550, %v5234
  %5271 = vst.msk [vmem:[#allocation5 + $0x1e0] sm:$0xff] %vm2550, %v5236
  %5272 = vst.msk [vmem:[#allocation5 + $0x208] sm:$0xff] %vm2550, %v5238
  %5273 = vst.msk [vmem:[#allocation5 + $0x230] sm:$0xff] %vm2550, %v5240
  %5274 = vst.msk [vmem:[#allocation5 + $0x258] sm:$0xff] %vm2550, %v5242
  %v5275 = vld [vmem:[%s2191 + $0x1] sm:$0xff]
  %v5276 = vld [vmem:[%s2191 + $0x11] sm:$0xff]
  %v5277 = vld [vmem:[%s2191 + $0x21] sm:$0xff]
  %v5278 = vld [vmem:[%s2191 + $0x31] sm:$0xff]
  %v5279 = vld [vmem:[%s2191 + $0x41] sm:$0xff]
  %v5280 = vld [vmem:[%s2191 + $0x51] sm:$0xff]
  %v5281 = vld [vmem:[%s2191 + $0x61] sm:$0xff]
  %v5282 = vld [vmem:[%s2191 + $0x71] sm:$0xff]
  %v5283 = vld [vmem:[%s2191 + $0xa1] sm:$0xff]
  %v5284 = vld [vmem:[%s2191 + $0xb1] sm:$0xff]
  %v5285 = vld [vmem:[%s2191 + $0xc1] sm:$0xff]
  %v5286 = vld [vmem:[%s2191 + $0xd1] sm:$0xff]
  %v5287 = vld [vmem:[%s2191 + $0xe1] sm:$0xff]
  %v5288 = vld [vmem:[%s2191 + $0xf1] sm:$0xff]
  %v5289 = vld [vmem:[%s2191 + $0x101] sm:$0xff]
  %v5290 = vld [vmem:[%s2191 + $0x111] sm:$0xff]
  %5291 = vst.msk [vmem:[#allocation5 + $0x8] sm:$0xff] %vm347, %v5275
  %5292 = vst.msk [vmem:[#allocation5 + $0x30] sm:$0xff] %vm347, %v5276
  %5293 = vst.msk [vmem:[#allocation5 + $0x58] sm:$0xff] %vm347, %v5277
  %5294 = vst.msk [vmem:[#allocation5 + $0x80] sm:$0xff] %vm347, %v5278
  %5295 = vst.msk [vmem:[#allocation5 + $0xa8] sm:$0xff] %vm347, %v5279
  %5296 = vst.msk [vmem:[#allocation5 + $0xd0] sm:$0xff] %vm347, %v5280
  %5297 = vst.msk [vmem:[#allocation5 + $0xf8] sm:$0xff] %vm347, %v5281
  %5298 = vst.msk [vmem:[#allocation5 + $0x120] sm:$0xff] %vm347, %v5282
  %5299 = vst.msk [vmem:[#allocation5 + $0x148] sm:$0xff] %vm347, %v5283
  %5300 = vst.msk [vmem:[#allocation5 + $0x170] sm:$0xff] %vm347, %v5284
  %5301 = vst.msk [vmem:[#allocation5 + $0x198] sm:$0xff] %vm347, %v5285
  %5302 = vst.msk [vmem:[#allocation5 + $0x1c0] sm:$0xff] %vm347, %v5286
  %5303 = vst.msk [vmem:[#allocation5 + $0x1e8] sm:$0xff] %vm347, %v5287
  %5304 = vst.msk [vmem:[#allocation5 + $0x210] sm:$0xff] %vm347, %v5288
  %5305 = vst.msk [vmem:[#allocation5 + $0x238] sm:$0xff] %vm347, %v5289
  %5306 = vst.msk [vmem:[#allocation5 + $0x260] sm:$0xff] %vm347, %v5290
  %v5307 = vld [vmem:[%s2191 + $0x2] sm:$0xff]
  %v5308 = vld [vmem:[%s2191 + $0x12] sm:$0xff]
  %v5309 = vld [vmem:[%s2191 + $0x22] sm:$0xff]
  %v5310 = vld [vmem:[%s2191 + $0x32] sm:$0xff]
  %v5311 = vld [vmem:[%s2191 + $0x42] sm:$0xff]
  %v5312 = vld [vmem:[%s2191 + $0x52] sm:$0xff]
  %v5313 = vld [vmem:[%s2191 + $0x62] sm:$0xff]
  %v5314 = vld [vmem:[%s2191 + $0x72] sm:$0xff]
  %v5315 = vld [vmem:[%s2191 + $0xa2] sm:$0xff]
  %v5316 = vld [vmem:[%s2191 + $0xb2] sm:$0xff]
  %v5317 = vld [vmem:[%s2191 + $0xc2] sm:$0xff]
  %v5318 = vld [vmem:[%s2191 + $0xd2] sm:$0xff]
  %v5319 = vld [vmem:[%s2191 + $0xe2] sm:$0xff]
  %v5320 = vld [vmem:[%s2191 + $0xf2] sm:$0xff]
  %v5321 = vld [vmem:[%s2191 + $0x102] sm:$0xff]
  %v5322 = vld [vmem:[%s2191 + $0x112] sm:$0xff]
  %5339 = vrot.lane.b32.xlu0 %v5307, 32
  %v5340 = vpop.permute.xlu0 %5339
  %5341 = vrot.lane.b32.xlu0 %v5308, 32
  %v5342 = vpop.permute.xlu0 %5341
  %5343 = vrot.lane.b32.xlu0 %v5309, 32
  %v5344 = vpop.permute.xlu0 %5343
  %5345 = vrot.lane.b32.xlu0 %v5310, 32
  %v5346 = vpop.permute.xlu0 %5345
  %5347 = vrot.lane.b32.xlu0 %v5311, 32
  %v5348 = vpop.permute.xlu0 %5347
  %5349 = vrot.lane.b32.xlu0 %v5312, 32
  %v5350 = vpop.permute.xlu0 %5349
  %5351 = vrot.lane.b32.xlu0 %v5313, 32
  %v5352 = vpop.permute.xlu0 %5351
  %5353 = vrot.lane.b32.xlu0 %v5314, 32
  %v5354 = vpop.permute.xlu0 %5353
  %5355 = vrot.lane.b32.xlu0 %v5315, 32
  %v5356 = vpop.permute.xlu0 %5355
  %5357 = vrot.lane.b32.xlu0 %v5316, 32
  %v5358 = vpop.permute.xlu0 %5357
  %5359 = vrot.lane.b32.xlu0 %v5317, 32
  %v5360 = vpop.permute.xlu0 %5359
  %5361 = vrot.lane.b32.xlu0 %v5318, 32
  %v5362 = vpop.permute.xlu0 %5361
  %5363 = vrot.lane.b32.xlu0 %v5319, 32
  %v5364 = vpop.permute.xlu0 %5363
  %5365 = vrot.lane.b32.xlu0 %v5320, 32
  %v5366 = vpop.permute.xlu0 %5365
  %5367 = vrot.lane.b32.xlu0 %v5321, 32
  %v5368 = vpop.permute.xlu0 %5367
  %5369 = vrot.lane.b32.xlu0 %v5322, 32
  %v5370 = vpop.permute.xlu0 %5369
  %5387 = vst.msk [vmem:[#allocation5 + $0x8] sm:$0xff] %vm2356, %v5340
  %5388 = vst.msk [vmem:[#allocation5 + $0x30] sm:$0xff] %vm2356, %v5342
  %5389 = vst.msk [vmem:[#allocation5 + $0x58] sm:$0xff] %vm2356, %v5344
  %5390 = vst.msk [vmem:[#allocation5 + $0x80] sm:$0xff] %vm2356, %v5346
  %5391 = vst.msk [vmem:[#allocation5 + $0xa8] sm:$0xff] %vm2356, %v5348
  %5392 = vst.msk [vmem:[#allocation5 + $0xd0] sm:$0xff] %vm2356, %v5350
  %5393 = vst.msk [vmem:[#allocation5 + $0xf8] sm:$0xff] %vm2356, %v5352
  %5394 = vst.msk [vmem:[#allocation5 + $0x120] sm:$0xff] %vm2356, %v5354
  %5395 = vst.msk [vmem:[#allocation5 + $0x148] sm:$0xff] %vm2356, %v5356
  %5396 = vst.msk [vmem:[#allocation5 + $0x170] sm:$0xff] %vm2356, %v5358
  %5397 = vst.msk [vmem:[#allocation5 + $0x198] sm:$0xff] %vm2356, %v5360
  %5398 = vst.msk [vmem:[#allocation5 + $0x1c0] sm:$0xff] %vm2356, %v5362
  %5399 = vst.msk [vmem:[#allocation5 + $0x1e8] sm:$0xff] %vm2356, %v5364
  %5400 = vst.msk [vmem:[#allocation5 + $0x210] sm:$0xff] %vm2356, %v5366
  %5401 = vst.msk [vmem:[#allocation5 + $0x238] sm:$0xff] %vm2356, %v5368
  %5402 = vst.msk [vmem:[#allocation5 + $0x260] sm:$0xff] %vm2356, %v5370
  %v5403 = vld [vmem:[%s2695] sm:$0xff]
  %v5404 = vld [vmem:[%s2695 + $0x10] sm:$0xff]
  %v5405 = vld [vmem:[%s2695 + $0x20] sm:$0xff]
  %v5406 = vld [vmem:[%s2695 + $0x30] sm:$0xff]
  %v5407 = vld [vmem:[%s2695 + $0x40] sm:$0xff]
  %v5408 = vld [vmem:[%s2695 + $0x50] sm:$0xff]
  %v5409 = vld [vmem:[%s2695 + $0x60] sm:$0xff]
  %v5410 = vld [vmem:[%s2695 + $0x70] sm:$0xff]
  %v5411 = vld [vmem:[%s2695 + $0xa0] sm:$0xff]
  %v5412 = vld [vmem:[%s2695 + $0xb0] sm:$0xff]
  %v5413 = vld [vmem:[%s2695 + $0xc0] sm:$0xff]
  %v5414 = vld [vmem:[%s2695 + $0xd0] sm:$0xff]
  %v5415 = vld [vmem:[%s2695 + $0xe0] sm:$0xff]
  %v5416 = vld [vmem:[%s2695 + $0xf0] sm:$0xff]
  %v5417 = vld [vmem:[%s2695 + $0x100] sm:$0xff]
  %v5418 = vld [vmem:[%s2695 + $0x110] sm:$0xff]
  %5435 = vrot.lane.b32.xlu0 %v5403, 64
  %v5436 = vpop.permute.xlu0 %5435
  %5437 = vrot.lane.b32.xlu0 %v5404, 64
  %v5438 = vpop.permute.xlu0 %5437
  %5439 = vrot.lane.b32.xlu0 %v5405, 64
  %v5440 = vpop.permute.xlu0 %5439
  %5441 = vrot.lane.b32.xlu0 %v5406, 64
  %v5442 = vpop.permute.xlu0 %5441
  %5443 = vrot.lane.b32.xlu0 %v5407, 64
  %v5444 = vpop.permute.xlu0 %5443
  %5445 = vrot.lane.b32.xlu0 %v5408, 64
  %v5446 = vpop.permute.xlu0 %5445
  %5447 = vrot.lane.b32.xlu0 %v5409, 64
  %v5448 = vpop.permute.xlu0 %5447
  %5449 = vrot.lane.b32.xlu0 %v5410, 64
  %v5450 = vpop.permute.xlu0 %5449
  %5451 = vrot.lane.b32.xlu0 %v5411, 64
  %v5452 = vpop.permute.xlu0 %5451
  %5453 = vrot.lane.b32.xlu0 %v5412, 64
  %v5454 = vpop.permute.xlu0 %5453
  %5455 = vrot.lane.b32.xlu0 %v5413, 64
  %v5456 = vpop.permute.xlu0 %5455
  %5457 = vrot.lane.b32.xlu0 %v5414, 64
  %v5458 = vpop.permute.xlu0 %5457
  %5459 = vrot.lane.b32.xlu0 %v5415, 64
  %v5460 = vpop.permute.xlu0 %5459
  %5461 = vrot.lane.b32.xlu0 %v5416, 64
  %v5462 = vpop.permute.xlu0 %5461
  %5463 = vrot.lane.b32.xlu0 %v5417, 64
  %v5464 = vpop.permute.xlu0 %5463
  %5465 = vrot.lane.b32.xlu0 %v5418, 64
  %v5466 = vpop.permute.xlu0 %5465
  %5483 = vst.msk [vmem:[#allocation5 + $0x8] sm:$0xff] %vm2453, %v5436
  %5484 = vst.msk [vmem:[#allocation5 + $0x30] sm:$0xff] %vm2453, %v5438
  %5485 = vst.msk [vmem:[#allocation5 + $0x58] sm:$0xff] %vm2453, %v5440
  %5486 = vst.msk [vmem:[#allocation5 + $0x80] sm:$0xff] %vm2453, %v5442
  %5487 = vst.msk [vmem:[#allocation5 + $0xa8] sm:$0xff] %vm2453, %v5444
  %5488 = vst.msk [vmem:[#allocation5 + $0xd0] sm:$0xff] %vm2453, %v5446
  %5489 = vst.msk [vmem:[#allocation5 + $0xf8] sm:$0xff] %vm2453, %v5448
  %5490 = vst.msk [vmem:[#allocation5 + $0x120] sm:$0xff] %vm2453, %v5450
  %5491 = vst.msk [vmem:[#allocation5 + $0x148] sm:$0xff] %vm2453, %v5452
  %5492 = vst.msk [vmem:[#allocation5 + $0x170] sm:$0xff] %vm2453, %v5454
  %5493 = vst.msk [vmem:[#allocation5 + $0x198] sm:$0xff] %vm2453, %v5456
  %5494 = vst.msk [vmem:[#allocation5 + $0x1c0] sm:$0xff] %vm2453, %v5458
  %5495 = vst.msk [vmem:[#allocation5 + $0x1e8] sm:$0xff] %vm2453, %v5460
  %5496 = vst.msk [vmem:[#allocation5 + $0x210] sm:$0xff] %vm2453, %v5462
  %5497 = vst.msk [vmem:[#allocation5 + $0x238] sm:$0xff] %vm2453, %v5464
  %5498 = vst.msk [vmem:[#allocation5 + $0x260] sm:$0xff] %vm2453, %v5466
  %v5499 = vld [vmem:[%s2695 + $0x1] sm:$0xff]
  %v5500 = vld [vmem:[%s2695 + $0x11] sm:$0xff]
  %v5501 = vld [vmem:[%s2695 + $0x21] sm:$0xff]
  %v5502 = vld [vmem:[%s2695 + $0x31] sm:$0xff]
  %v5503 = vld [vmem:[%s2695 + $0x41] sm:$0xff]
  %v5504 = vld [vmem:[%s2695 + $0x51] sm:$0xff]
  %v5505 = vld [vmem:[%s2695 + $0x61] sm:$0xff]
  %v5506 = vld [vmem:[%s2695 + $0x71] sm:$0xff]
  %v5507 = vld [vmem:[%s2695 + $0xa1] sm:$0xff]
  %v5508 = vld [vmem:[%s2695 + $0xb1] sm:$0xff]
  %v5509 = vld [vmem:[%s2695 + $0xc1] sm:$0xff]
  %v5510 = vld [vmem:[%s2695 + $0xd1] sm:$0xff]
  %v5511 = vld [vmem:[%s2695 + $0xe1] sm:$0xff]
  %v5512 = vld [vmem:[%s2695 + $0xf1] sm:$0xff]
  %v5513 = vld [vmem:[%s2695 + $0x101] sm:$0xff]
  %v5514 = vld [vmem:[%s2695 + $0x111] sm:$0xff]
  %5531 = vrot.lane.b32.xlu0 %v5499, 96
  %v5532 = vpop.permute.xlu0 %5531
  %5533 = vrot.lane.b32.xlu0 %v5500, 96
  %v5534 = vpop.permute.xlu0 %5533
  %5535 = vrot.lane.b32.xlu0 %v5501, 96
  %v5536 = vpop.permute.xlu0 %5535
  %5537 = vrot.lane.b32.xlu0 %v5502, 96
  %v5538 = vpop.permute.xlu0 %5537
  %5539 = vrot.lane.b32.xlu0 %v5503, 96
  %v5540 = vpop.permute.xlu0 %5539
  %5541 = vrot.lane.b32.xlu0 %v5504, 96
  %v5542 = vpop.permute.xlu0 %5541
  %5543 = vrot.lane.b32.xlu0 %v5505, 96
  %v5544 = vpop.permute.xlu0 %5543
  %5545 = vrot.lane.b32.xlu0 %v5506, 96
  %v5546 = vpop.permute.xlu0 %5545
  %5547 = vrot.lane.b32.xlu0 %v5507, 96
  %v5548 = vpop.permute.xlu0 %5547
  %5549 = vrot.lane.b32.xlu0 %v5508, 96
  %v5550 = vpop.permute.xlu0 %5549
  %5551 = vrot.lane.b32.xlu0 %v5509, 96
  %v5552 = vpop.permute.xlu0 %5551
  %5553 = vrot.lane.b32.xlu0 %v5510, 96
  %v5554 = vpop.permute.xlu0 %5553
  %5555 = vrot.lane.b32.xlu0 %v5511, 96
  %v5556 = vpop.permute.xlu0 %5555
  %5557 = vrot.lane.b32.xlu0 %v5512, 96
  %v5558 = vpop.permute.xlu0 %5557
  %5559 = vrot.lane.b32.xlu0 %v5513, 96
  %v5560 = vpop.permute.xlu0 %5559
  %5561 = vrot.lane.b32.xlu0 %v5514, 96
  %v5562 = vpop.permute.xlu0 %5561
  %5579 = vst.msk [vmem:[#allocation5 + $0x8] sm:$0xff] %vm2550, %v5532
  %5580 = vst.msk [vmem:[#allocation5 + $0x30] sm:$0xff] %vm2550, %v5534
  %5581 = vst.msk [vmem:[#allocation5 + $0x58] sm:$0xff] %vm2550, %v5536
  %5582 = vst.msk [vmem:[#allocation5 + $0x80] sm:$0xff] %vm2550, %v5538
  %5583 = vst.msk [vmem:[#allocation5 + $0xa8] sm:$0xff] %vm2550, %v5540
  %5584 = vst.msk [vmem:[#allocation5 + $0xd0] sm:$0xff] %vm2550, %v5542
  %5585 = vst.msk [vmem:[#allocation5 + $0xf8] sm:$0xff] %vm2550, %v5544
  %5586 = vst.msk [vmem:[#allocation5 + $0x120] sm:$0xff] %vm2550, %v5546
  %5587 = vst.msk [vmem:[#allocation5 + $0x148] sm:$0xff] %vm2550, %v5548
  %5588 = vst.msk [vmem:[#allocation5 + $0x170] sm:$0xff] %vm2550, %v5550
  %5589 = vst.msk [vmem:[#allocation5 + $0x198] sm:$0xff] %vm2550, %v5552
  %5590 = vst.msk [vmem:[#allocation5 + $0x1c0] sm:$0xff] %vm2550, %v5554
  %5591 = vst.msk [vmem:[#allocation5 + $0x1e8] sm:$0xff] %vm2550, %v5556
  %5592 = vst.msk [vmem:[#allocation5 + $0x210] sm:$0xff] %vm2550, %v5558
  %5593 = vst.msk [vmem:[#allocation5 + $0x238] sm:$0xff] %vm2550, %v5560
  %5594 = vst.msk [vmem:[#allocation5 + $0x260] sm:$0xff] %vm2550, %v5562
  %v5595 = vld [vmem:[%s2695 + $0x2] sm:$0xff]
  %v5596 = vld [vmem:[%s2695 + $0x12] sm:$0xff]
  %v5597 = vld [vmem:[%s2695 + $0x22] sm:$0xff]
  %v5598 = vld [vmem:[%s2695 + $0x32] sm:$0xff]
  %v5599 = vld [vmem:[%s2695 + $0x42] sm:$0xff]
  %v5600 = vld [vmem:[%s2695 + $0x52] sm:$0xff]
  %v5601 = vld [vmem:[%s2695 + $0x62] sm:$0xff]
  %v5602 = vld [vmem:[%s2695 + $0x72] sm:$0xff]
  %v5603 = vld [vmem:[%s2695 + $0xa2] sm:$0xff]
  %v5604 = vld [vmem:[%s2695 + $0xb2] sm:$0xff]
  %v5605 = vld [vmem:[%s2695 + $0xc2] sm:$0xff]
  %v5606 = vld [vmem:[%s2695 + $0xd2] sm:$0xff]
  %v5607 = vld [vmem:[%s2695 + $0xe2] sm:$0xff]
  %v5608 = vld [vmem:[%s2695 + $0xf2] sm:$0xff]
  %v5609 = vld [vmem:[%s2695 + $0x102] sm:$0xff]
  %v5610 = vld [vmem:[%s2695 + $0x112] sm:$0xff]
  %5611 = vst.msk [vmem:[#allocation5 + $0x10] sm:$0xff] %vm347, %v5595
  %5612 = vst.msk [vmem:[#allocation5 + $0x38] sm:$0xff] %vm347, %v5596
  %5613 = vst.msk [vmem:[#allocation5 + $0x60] sm:$0xff] %vm347, %v5597
  %5614 = vst.msk [vmem:[#allocation5 + $0x88] sm:$0xff] %vm347, %v5598
  %5615 = vst.msk [vmem:[#allocation5 + $0xb0] sm:$0xff] %vm347, %v5599
  %5616 = vst.msk [vmem:[#allocation5 + $0xd8] sm:$0xff] %vm347, %v5600
  %5617 = vst.msk [vmem:[#allocation5 + $0x100] sm:$0xff] %vm347, %v5601
  %5618 = vst.msk [vmem:[#allocation5 + $0x128] sm:$0xff] %vm347, %v5602
  %5619 = vst.msk [vmem:[#allocation5 + $0x150] sm:$0xff] %vm347, %v5603
  %5620 = vst.msk [vmem:[#allocation5 + $0x178] sm:$0xff] %vm347, %v5604
  %5621 = vst.msk [vmem:[#allocation5 + $0x1a0] sm:$0xff] %vm347, %v5605
  %5622 = vst.msk [vmem:[#allocation5 + $0x1c8] sm:$0xff] %vm347, %v5606
  %5623 = vst.msk [vmem:[#allocation5 + $0x1f0] sm:$0xff] %vm347, %v5607
  %5624 = vst.msk [vmem:[#allocation5 + $0x218] sm:$0xff] %vm347, %v5608
  %5625 = vst.msk [vmem:[#allocation5 + $0x240] sm:$0xff] %vm347, %v5609
  %5626 = vst.msk [vmem:[#allocation5 + $0x268] sm:$0xff] %vm347, %v5610
  %v5627 = vld [vmem:[#allocation5] sm:$0xff]
  %v5628 = vld [vmem:[#allocation5 + $0x8] sm:$0xff]
  %v5629 = vld [vmem:[#allocation5 + $0x10] sm:$0xff]
  %v5630 = vld [vmem:[#allocation5 + $0x28] sm:$0xff]
  %v5631 = vld [vmem:[#allocation5 + $0x30] sm:$0xff]
  %v5632 = vld [vmem:[#allocation5 + $0x38] sm:$0xff]
  %v5633 = vld [vmem:[#allocation5 + $0x50] sm:$0xff]
  %v5634 = vld [vmem:[#allocation5 + $0x58] sm:$0xff]
  %v5635 = vld [vmem:[#allocation5 + $0x60] sm:$0xff]
  %v5636 = vld [vmem:[#allocation5 + $0x78] sm:$0xff]
  %v5637 = vld [vmem:[#allocation5 + $0x80] sm:$0xff]
  %v5638 = vld [vmem:[#allocation5 + $0x88] sm:$0xff]
  %v5639 = vld [vmem:[#allocation5 + $0xa0] sm:$0xff]
  %v5640 = vld [vmem:[#allocation5 + $0xa8] sm:$0xff]
  %v5641 = vld [vmem:[#allocation5 + $0xb0] sm:$0xff]
  %v5642 = vld [vmem:[#allocation5 + $0xc8] sm:$0xff]
  %v5643 = vld [vmem:[#allocation5 + $0xd0] sm:$0xff]
  %v5644 = vld [vmem:[#allocation5 + $0xd8] sm:$0xff]
  %v5645 = vld [vmem:[#allocation5 + $0xf0] sm:$0xff]
  %v5646 = vld [vmem:[#allocation5 + $0xf8] sm:$0xff]
  %v5647 = vld [vmem:[#allocation5 + $0x100] sm:$0xff]
  %v5648 = vld [vmem:[#allocation5 + $0x118] sm:$0xff]
  %v5649 = vld [vmem:[#allocation5 + $0x120] sm:$0xff]
  %v5650 = vld [vmem:[#allocation5 + $0x128] sm:$0xff]
  %v5651 = vld [vmem:[#allocation5 + $0x140] sm:$0xff]
  %v5652 = vld [vmem:[#allocation5 + $0x148] sm:$0xff]
  %v5653 = vld [vmem:[#allocation5 + $0x150] sm:$0xff]
  %v5654 = vld [vmem:[#allocation5 + $0x168] sm:$0xff]
  %v5655 = vld [vmem:[#allocation5 + $0x170] sm:$0xff]
  %v5656 = vld [vmem:[#allocation5 + $0x178] sm:$0xff]
  %v5657 = vld [vmem:[#allocation5 + $0x190] sm:$0xff]
  %v5658 = vld [vmem:[#allocation5 + $0x198] sm:$0xff]
  %v5659 = vld [vmem:[#allocation5 + $0x1a0] sm:$0xff]
  %v5660 = vld [vmem:[#allocation5 + $0x1b8] sm:$0xff]
  %v5661 = vld [vmem:[#allocation5 + $0x1c0] sm:$0xff]
  %v5662 = vld [vmem:[#allocation5 + $0x1c8] sm:$0xff]
  %v5663 = vld [vmem:[#allocation5 + $0x1e0] sm:$0xff]
  %v5664 = vld [vmem:[#allocation5 + $0x1e8] sm:$0xff]
  %v5665 = vld [vmem:[#allocation5 + $0x1f0] sm:$0xff]
  %v5666 = vld [vmem:[#allocation5 + $0x208] sm:$0xff]
  %v5667 = vld [vmem:[#allocation5 + $0x210] sm:$0xff]
  %v5668 = vld [vmem:[#allocation5 + $0x218] sm:$0xff]
  %v5669 = vld [vmem:[#allocation5 + $0x230] sm:$0xff]
  %v5670 = vld [vmem:[#allocation5 + $0x238] sm:$0xff]
  %v5671 = vld [vmem:[#allocation5 + $0x240] sm:$0xff]
  %v5672 = vld [vmem:[#allocation5 + $0x258] sm:$0xff]
  %v5673 = vld [vmem:[#allocation5 + $0x260] sm:$0xff]
  %v5674 = vld [vmem:[#allocation5 + $0x268] sm:$0xff]
  %v5675 = vld [vmem:[%s7] sm:$0x1]
  %v5677 = vlaneseq
  %v5678 = vshrl.u32 %v5677, 7
  %v5679 = vsub.s32 0, %v5678
  %v5680 = vrot.slane %v5675, %v5679
  %v5683 = vsel %vm347, %v5629, 0
  %v5686 = vsel %vm347, %v5632, 0
  %v5689 = vsel %vm347, %v5635, 0
  %v5692 = vsel %vm347, %v5638, 0
  %v5695 = vsel %vm347, %v5641, 0
  %v5698 = vsel %vm347, %v5644, 0
  %v5701 = vsel %vm347, %v5647, 0
  %v5704 = vsel %vm347, %v5650, 0
  %v5707 = vsel %vm347, %v5653, 0
  %v5710 = vsel %vm347, %v5656, 0
  %v5713 = vsel %vm347, %v5659, 0
  %v5716 = vsel %vm347, %v5662, 0
  %v5719 = vsel %vm347, %v5665, 0
  %v5722 = vsel %vm347, %v5668, 0
  %v5725 = vsel %vm347, %v5671, 0
  %v5728 = vsel %vm347, %v5674, 0
  %5730 = vmatprep.subr.mxu0 0.0
  %5731 = vmatpush1.msra.mxu0 %v4919
  %5732 = vmatprep.subr.mxu0 0.0
  %5733 = vmatpush1.msra.mxu0 %v4920
  %5734 = vmatprep.subr.mxu0 0.0
  %5735 = vmatpush1.msra.mxu0 %v4921
  %5736 = vmatprep.subr.mxu0 0.0
  %5737 = vmatpush1.msra.mxu0 %v4922
  %5738 = vmatprep.subr.mxu0 0.0
  %5739 = vmatpush1.msra.mxu0 %v4923
  %5740 = vmatprep.subr.mxu0 0.0
  %5741 = vmatpush1.msra.mxu0 %v4924
  %5742 = vmatprep.subr.mxu0 0.0
  %5743 = vmatpush1.msra.mxu0 %v4925
  %5744 = vmatprep.subr.mxu0 0.0
  %5745 = vmatpush1.msra.mxu0 %v4926
  %5746 = vmatprep.subr.mxu0 0.0
  %5747 = vmatpush1.msra.mxu0 %v4927
  %5748 = vmatprep.subr.mxu0 0.0
  %5749 = vmatpush1.msra.mxu0 %v4928
  %5750 = vmatprep.subr.mxu0 0.0
  %5751 = vmatpush1.msra.mxu0 %v4929
  %5752 = vmatprep.subr.mxu0 0.0
  %5753 = vmatpush1.msra.mxu0 %v4930
  %5754 = vmatprep.subr.mxu0 0.0
  %5755 = vmatpush1.msra.mxu0 %v4931
  %5756 = vmatprep.subr.mxu0 0.0
  %5757 = vmatpush1.msra.mxu0 %v4932
  %5758 = vmatprep.subr.mxu0 0.0
  %5759 = vmatpush1.msra.mxu0 %v4933
  %5760 = vmatprep.subr.mxu0 0.0
  %5761 = vmatpush1.msra.mxu0 %v4934
  %5762 = vmatprep.subr.mxu0 0.0
  %5763 = vmatpush1.msra.mxu0 %v4935
  %5764 = vmatprep.subr.mxu0 0.0
  %5765 = vmatpush1.msra.mxu0 %v4936
  %5766 = vmatprep.subr.mxu0 0.0
  %5767 = vmatpush1.msra.mxu0 %v4937
  %5768 = vmatprep.subr.mxu0 0.0
  %5769 = vmatpush1.msra.mxu0 %v4938
  %5770 = vmatprep.subr.mxu0 0.0
  %5771 = vmatpush1.msra.mxu0 %v4939
  %5772 = vmatprep.subr.mxu0 0.0
  %5773 = vmatpush1.msra.mxu0 %v4940
  %5774 = vmatprep.subr.mxu0 0.0
  %5775 = vmatpush1.msra.mxu0 %v4941
  %5776 = vmatprep.subr.mxu0 0.0
  %5777 = vmatpush1.msra.mxu0 %v4942
  %5778 = vmatprep.subr.mxu0 0.0
  %5779 = vmatpush1.msra.mxu0 %v4943
  %5780 = vmatprep.subr.mxu0 0.0
  %5781 = vmatpush1.msra.mxu0 %v4944
  %5782 = vmatprep.subr.mxu0 0.0
  %5783 = vmatpush1.msra.mxu0 %v4945
  %5784 = vmatprep.subr.mxu0 0.0
  %5785 = vmatpush1.msra.mxu0 %v4946
  %5786 = vmatprep.subr.mxu0 0.0
  %5787 = vmatpush1.msra.mxu0 %v4947
  %5788 = vmatprep.subr.mxu0 0.0
  %5789 = vmatpush1.msra.mxu0 %v4948
  %5790 = vmatprep.subr.mxu0 0.0
  %5791 = vmatpush1.msra.mxu0 %v4949
  %5792 = vmatprep.subr.mxu0 0.0
  %5793 = vmatpush1.msra.mxu0 %v4950
  %5794 = vmatprep.mubr.f32.mxu0 %v5628
  %5795 = vmatmul.mubr.f32.gmra.mrb[0].mxu0 %v5627
  %v5796 = vpop.f32.mrb[0].mxu0
  %v5797 = vadd.f32 %v5680, %v5796
  %v5798 = vpop.f32.mrb[0].mxu0
  %5799 = vmatprep.mubr.f32.mxu0 %v5631
  %5800 = vmatmul.mubr.f32.gmra.mrb[0].mxu0 %v5630
  %v5801 = vpop.f32.mrb[0].mxu0
  %v5802 = vadd.f32 %v5680, %v5801
  %v5803 = vpop.f32.mrb[0].mxu0
  %5804 = vmatprep.mubr.f32.mxu0 %v5634
  %5805 = vmatmul.mubr.f32.gmra.mrb[0].mxu0 %v5633
  %v5806 = vpop.f32.mrb[0].mxu0
  %v5807 = vadd.f32 %v5680, %v5806
  %v5808 = vpop.f32.mrb[0].mxu0
  %5809 = vmatprep.mubr.f32.mxu0 %v5637
  %5810 = vmatmul.mubr.f32.gmra.mrb[0].mxu0 %v5636
  %v5811 = vpop.f32.mrb[0].mxu0
  %v5812 = vadd.f32 %v5680, %v5811
  %v5813 = vpop.f32.mrb[0].mxu0
  %5814 = vmatprep.mubr.f32.mxu0 %v5640
  %5815 = vmatmul.mubr.f32.gmra.mrb[0].mxu0 %v5639
  %v5816 = vpop.f32.mrb[0].mxu0
  %v5817 = vadd.f32 %v5680, %v5816
  %v5818 = vpop.f32.mrb[0].mxu0
  %5819 = vmatprep.mubr.f32.mxu0 %v5643
  %5820 = vmatmul.mubr.f32.gmra.mrb[0].mxu0 %v5642
  %v5821 = vpop.f32.mrb[0].mxu0
  %v5822 = vadd.f32 %v5680, %v5821
  %v5823 = vpop.f32.mrb[0].mxu0
  %5824 = vmatprep.mubr.f32.mxu0 %v5646
  %5825 = vmatmul.mubr.f32.gmra.mrb[0].mxu0 %v5645
  %v5826 = vpop.f32.mrb[0].mxu0
  %v5827 = vadd.f32 %v5680, %v5826
  %v5828 = vpop.f32.mrb[0].mxu0
  %5829 = vmatprep.mubr.f32.mxu0 %v5649
  %5830 = vmatmul.mubr.f32.gmra.mrb[0].mxu0 %v5648
  %v5831 = vpop.f32.mrb[0].mxu0
  %v5832 = vadd.f32 %v5680, %v5831
  %v5833 = vpop.f32.mrb[0].mxu0
  %5834 = vmatprep.mubr.f32.mxu0 %v5652
  %5835 = vmatmul.mubr.f32.gmra.mrb[0].mxu0 %v5651
  %v5836 = vpop.f32.mrb[0].mxu0
  %v5837 = vadd.f32 %v5680, %v5836
  %v5838 = vpop.f32.mrb[0].mxu0
  %5839 = vmatprep.mubr.f32.mxu0 %v5655
  %5840 = vmatmul.mubr.f32.gmra.mrb[0].mxu0 %v5654
  %v5841 = vpop.f32.mrb[0].mxu0
  %v5842 = vadd.f32 %v5680, %v5841
  %v5843 = vpop.f32.mrb[0].mxu0
  %5844 = vmatprep.mubr.f32.mxu0 %v5658
  %5845 = vmatmul.mubr.f32.gmra.mrb[0].mxu0 %v5657
  %v5846 = vpop.f32.mrb[0].mxu0
  %v5847 = vadd.f32 %v5680, %v5846
  %v5848 = vpop.f32.mrb[0].mxu0
  %5849 = vmatprep.mubr.f32.mxu0 %v5661
  %5850 = vmatmul.mubr.f32.gmra.mrb[0].mxu0 %v5660
  %v5851 = vpop.f32.mrb[0].mxu0
  %v5852 = vadd.f32 %v5680, %v5851
  %v5853 = vpop.f32.mrb[0].mxu0
  %5854 = vmatprep.mubr.f32.mxu0 %v5664
  %5855 = vmatmul.mubr.f32.gmra.mrb[0].mxu0 %v5663
  %v5856 = vpop.f32.mrb[0].mxu0
  %v5857 = vadd.f32 %v5680, %v5856
  %v5858 = vpop.f32.mrb[0].mxu0
  %5859 = vmatprep.mubr.f32.mxu0 %v5667
  %5860 = vmatmul.mubr.f32.gmra.mrb[0].mxu0 %v5666
  %v5861 = vpop.f32.mrb[0].mxu0
  %v5862 = vadd.f32 %v5680, %v5861
  %v5863 = vpop.f32.mrb[0].mxu0
  %5864 = vmatprep.mubr.f32.mxu0 %v5670
  %5865 = vmatmul.mubr.f32.gmra.mrb[0].mxu0 %v5669
  %v5866 = vpop.f32.mrb[0].mxu0
  %v5867 = vadd.f32 %v5680, %v5866
  %v5868 = vpop.f32.mrb[0].mxu0
  %5869 = vmatprep.mubr.f32.mxu0 %v5673
  %5870 = vmatmul.mubr.f32.gmra.mrb[0].mxu0 %v5672
  %v5871 = vpop.f32.mrb[0].mxu0
  %v5872 = vadd.f32 %v5680, %v5871
  %v5873 = vpop.f32.mrb[0].mxu0
  %5874 = vdwg.mxu0
  %5875 = vmatprep.subr.mxu0 0.0
  %5876 = vmatpush1.msra.mxu0 %v4951
  %5877 = vmatprep.subr.mxu0 0.0
  %5878 = vmatpush1.msra.mxu0 %v4952
  %5879 = vmatprep.subr.mxu0 0.0
  %5880 = vmatpush1.msra.mxu0 %v4953
  %5881 = vmatprep.subr.mxu0 0.0
  %5882 = vmatpush1.msra.mxu0 %v4954
  %5883 = vmatprep.subr.mxu0 0.0
  %5884 = vmatpush1.msra.mxu0 0.0
  %5885 = vmatprep.subr.mxu0 0.0
  %5886 = vmatpush1.msra.mxu0 0.0
  %5887 = vmatprep.subr.mxu0 0.0
  %5888 = vmatpush1.msra.mxu0 0.0
  %5889 = vmatprep.subr.mxu0 0.0
  %5890 = vmatpush1.msra.mxu0 0.0
  %5891 = vmatprep.subr.mxu0 0.0
  %5892 = vmatpush1.msra.mxu0 0.0
  %5893 = vmatprep.subr.mxu0 0.0
  %5894 = vmatpush1.msra.mxu0 0.0
  %5895 = vmatprep.subr.mxu0 0.0
  %5896 = vmatpush1.msra.mxu0 0.0
  %5897 = vmatprep.subr.mxu0 0.0
  %5898 = vmatpush1.msra.mxu0 0.0
  %5899 = vmatprep.subr.mxu0 0.0
  %5900 = vmatpush1.msra.mxu0 0.0
  %5901 = vmatprep.subr.mxu0 0.0
  %5902 = vmatpush1.msra.mxu0 0.0
  %5903 = vmatprep.subr.mxu0 0.0
  %5904 = vmatpush1.msra.mxu0 0.0
  %5905 = vmatprep.subr.mxu0 0.0
  %5906 = vmatpush1.msra.mxu0 0.0
  %5907 = vmatprep.subr.mxu0 0.0
  %5908 = vmatpush1.msra.mxu0 0.0
  %5909 = vmatprep.subr.mxu0 0.0
  %5910 = vmatpush1.msra.mxu0 0.0
  %5911 = vmatprep.subr.mxu0 0.0
  %5912 = vmatpush1.msra.mxu0 0.0
  %5913 = vmatprep.subr.mxu0 0.0
  %5914 = vmatpush1.msra.mxu0 0.0
  %5915 = vmatprep.subr.mxu0 0.0
  %5916 = vmatpush1.msra.mxu0 0.0
  %5917 = vmatprep.subr.mxu0 0.0
  %5918 = vmatpush1.msra.mxu0 0.0
  %5919 = vmatprep.subr.mxu0 0.0
  %5920 = vmatpush1.msra.mxu0 0.0
  %5921 = vmatprep.subr.mxu0 0.0
  %5922 = vmatpush1.msra.mxu0 0.0
  %5923 = vmatprep.subr.mxu0 0.0
  %5924 = vmatpush1.msra.mxu0 0.0
  %5925 = vmatprep.subr.mxu0 0.0
  %5926 = vmatpush1.msra.mxu0 0.0
  %5927 = vmatprep.subr.mxu0 0.0
  %5928 = vmatpush1.msra.mxu0 0.0
  %5929 = vmatprep.subr.mxu0 0.0
  %5930 = vmatpush1.msra.mxu0 0.0
  %5931 = vmatprep.subr.mxu0 0.0
  %5932 = vmatpush1.msra.mxu0 0.0
  %5933 = vmatprep.subr.mxu0 0.0
  %5934 = vmatpush1.msra.mxu0 0.0
  %5935 = vmatprep.subr.mxu0 0.0
  %5936 = vmatpush1.msra.mxu0 0.0
  %5937 = vmatprep.subr.mxu0 0.0
  %5938 = vmatpush1.msra.mxu0 0.0
  %5939 = vmatprep.mubr.f32.mxu0 0.0
  %5940 = vmatmul.mubr.f32.gmra.mrb[0].mxu0 %v5683
  %v5941 = vpop.f32.mrb[0].mxu0
  %v5942 = vadd.f32 %v5797, %v5941
  %v5943 = vpop.f32.mrb[0].mxu0
  %5944 = vmatprep.mubr.f32.mxu0 0.0
  %5945 = vmatmul.mubr.f32.gmra.mrb[0].mxu0 %v5686
  %v5946 = vpop.f32.mrb[0].mxu0
  %v5947 = vadd.f32 %v5802, %v5946
  %v5948 = vpop.f32.mrb[0].mxu0
  %5949 = vmatprep.mubr.f32.mxu0 0.0
  %5950 = vmatmul.mubr.f32.gmra.mrb[0].mxu0 %v5689
  %v5951 = vpop.f32.mrb[0].mxu0
  %v5952 = vadd.f32 %v5807, %v5951
  %v5953 = vpop.f32.mrb[0].mxu0
  %5954 = vmatprep.mubr.f32.mxu0 0.0
  %5955 = vmatmul.mubr.f32.gmra.mrb[0].mxu0 %v5692
  %v5956 = vpop.f32.mrb[0].mxu0
  %v5957 = vadd.f32 %v5812, %v5956
  %v5958 = vpop.f32.mrb[0].mxu0
  %5959 = vmatprep.mubr.f32.mxu0 0.0
  %5960 = vmatmul.mubr.f32.gmra.mrb[0].mxu0 %v5695
  %v5961 = vpop.f32.mrb[0].mxu0
  %v5962 = vadd.f32 %v5817, %v5961
  %v5963 = vpop.f32.mrb[0].mxu0
  %5964 = vmatprep.mubr.f32.mxu0 0.0
  %5965 = vmatmul.mubr.f32.gmra.mrb[0].mxu0 %v5698
  %v5966 = vpop.f32.mrb[0].mxu0
  %v5967 = vadd.f32 %v5822, %v5966
  %v5968 = vpop.f32.mrb[0].mxu0
  %5969 = vmatprep.mubr.f32.mxu0 0.0
  %5970 = vmatmul.mubr.f32.gmra.mrb[0].mxu0 %v5701
  %v5971 = vpop.f32.mrb[0].mxu0
  %v5972 = vadd.f32 %v5827, %v5971
  %v5973 = vpop.f32.mrb[0].mxu0
  %5974 = vmatprep.mubr.f32.mxu0 0.0
  %5975 = vmatmul.mubr.f32.gmra.mrb[0].mxu0 %v5704
  %v5976 = vpop.f32.mrb[0].mxu0
  %v5977 = vadd.f32 %v5832, %v5976
  %v5978 = vpop.f32.mrb[0].mxu0
  %5979 = vmatprep.mubr.f32.mxu0 0.0
  %5980 = vmatmul.mubr.f32.gmra.mrb[0].mxu0 %v5707
  %v5981 = vpop.f32.mrb[0].mxu0
  %v5982 = vadd.f32 %v5837, %v5981
  %v5983 = vpop.f32.mrb[0].mxu0
  %5984 = vmatprep.mubr.f32.mxu0 0.0
  %5985 = vmatmul.mubr.f32.gmra.mrb[0].mxu0 %v5710
  %v5986 = vpop.f32.mrb[0].mxu0
  %v5987 = vadd.f32 %v5842, %v5986
  %v5988 = vpop.f32.mrb[0].mxu0
  %5989 = vmatprep.mubr.f32.mxu0 0.0
  %5990 = vmatmul.mubr.f32.gmra.mrb[0].mxu0 %v5713
  %v5991 = vpop.f32.mrb[0].mxu0
  %v5992 = vadd.f32 %v5847, %v5991
  %v5993 = vpop.f32.mrb[0].mxu0
  %5994 = vmatprep.mubr.f32.mxu0 0.0
  %5995 = vmatmul.mubr.f32.gmra.mrb[0].mxu0 %v5716
  %v5996 = vpop.f32.mrb[0].mxu0
  %v5997 = vadd.f32 %v5852, %v5996
  %v5998 = vpop.f32.mrb[0].mxu0
  %5999 = vmatprep.mubr.f32.mxu0 0.0
  %6000 = vmatmul.mubr.f32.gmra.mrb[0].mxu0 %v5719
  %v6001 = vpop.f32.mrb[0].mxu0
  %v6002 = vadd.f32 %v5857, %v6001
  %v6003 = vpop.f32.mrb[0].mxu0
  %6004 = vmatprep.mubr.f32.mxu0 0.0
  %6005 = vmatmul.mubr.f32.gmra.mrb[0].mxu0 %v5722
  %v6006 = vpop.f32.mrb[0].mxu0
  %v6007 = vadd.f32 %v5862, %v6006
  %v6008 = vpop.f32.mrb[0].mxu0
  %6009 = vmatprep.mubr.f32.mxu0 0.0
  %6010 = vmatmul.mubr.f32.gmra.mrb[0].mxu0 %v5725
  %v6011 = vpop.f32.mrb[0].mxu0
  %v6012 = vadd.f32 %v5867, %v6011
  %v6013 = vpop.f32.mrb[0].mxu0
  %6014 = vmatprep.mubr.f32.mxu0 0.0
  %6015 = vmatmul.mubr.f32.gmra.mrb[0].mxu0 %v5728
  %v6016 = vpop.f32.mrb[0].mxu0
  %v6017 = vadd.f32 %v5872, %v6016
  %v6018 = vpop.f32.mrb[0].mxu0
  %6019 = vdwg.mxu0
  %v6020 = vmax.f32 %v5942, 0.0
  %v6021 = vmax.f32 %v5947, 0.0
  %v6022 = vmax.f32 %v5952, 0.0
  %v6023 = vmax.f32 %v5957, 0.0
  %v6024 = vmax.f32 %v5962, 0.0
  %v6025 = vmax.f32 %v5967, 0.0
  %v6026 = vmax.f32 %v5972, 0.0
  %v6027 = vmax.f32 %v5977, 0.0
  %v6028 = vmax.f32 %v5982, 0.0
  %v6029 = vmax.f32 %v5987, 0.0
  %v6030 = vmax.f32 %v5992, 0.0
  %v6031 = vmax.f32 %v5997, 0.0
  %v6032 = vmax.f32 %v6002, 0.0
  %v6033 = vmax.f32 %v6007, 0.0
  %v6034 = vmax.f32 %v6012, 0.0
  %v6035 = vmax.f32 %v6017, 0.0
  %vm6036 = vcmask 523264
  %6037 = vst.msk [vmem:[#allocation4] sm:$0xff] %vm6036, 0.0
  %vm6038 = vcmask 517120
  %6039 = vst.msk [vmem:[#allocation4 + $0x8] sm:$0x3] %vm6038, 0.0
  %6040 = vst.msk [vmem:[#allocation4 + $0xa0] sm:$0xff] %vm6036, 0.0
  %6041 = vst.msk [vmem:[#allocation4 + $0xa8] sm:$0x3] %vm6038, 0.0
  %s6042 = scalar_lea.vmem [#allocation4], 144
  %6043 = vst.msk [vmem:[%s6042] sm:$0xff] %vm6036, 0.0
  %6044 = vst.msk [vmem:[%s6042 + $0x8] sm:$0x3] %vm6038, 0.0
  %6045 = vst.msk [vmem:[%s6042 + $0xa0] sm:$0xff] %vm6036, 0.0
  %6046 = vst.msk [vmem:[%s6042 + $0xa8] sm:$0x3] %vm6038, 0.0
  %vm6047 = vcmask 516096
  %6048 = vst.msk [vmem:[#allocation4] sm:$0x1] %vm6047, 0.0
  %6049 = vst.msk [vmem:[#allocation4 + $0x10] sm:$0x1] %vm6047, 0.0
  %6050 = vst.msk [vmem:[#allocation4 + $0x20] sm:$0x1] %vm6047, 0.0
  %6051 = vst.msk [vmem:[#allocation4 + $0x30] sm:$0x1] %vm6047, 0.0
  %6052 = vst.msk [vmem:[#allocation4 + $0x40] sm:$0x1] %vm6047, 0.0
  %6053 = vst.msk [vmem:[#allocation4 + $0x50] sm:$0x1] %vm6047, 0.0
  %6054 = vst.msk [vmem:[#allocation4 + $0x60] sm:$0x1] %vm6047, 0.0
  %6055 = vst.msk [vmem:[#allocation4 + $0x70] sm:$0x1] %vm6047, 0.0
  %6056 = vst.msk [vmem:[#allocation4 + $0x80] sm:$0x1] %vm6047, 0.0
  %6057 = vst.msk [vmem:[#allocation4 + $0x90] sm:$0x1] %vm6047, 0.0
  %6058 = vst.msk [vmem:[#allocation4 + $0xa0] sm:$0x1] %vm6047, 0.0
  %6059 = vst.msk [vmem:[#allocation4 + $0xb0] sm:$0x1] %vm6047, 0.0
  %6060 = vst.msk [vmem:[#allocation4 + $0xc0] sm:$0x1] %vm6047, 0.0
  %6061 = vst.msk [vmem:[#allocation4 + $0xd0] sm:$0x1] %vm6047, 0.0
  %6062 = vst.msk [vmem:[#allocation4 + $0xe0] sm:$0x1] %vm6047, 0.0
  %6063 = vst.msk [vmem:[#allocation4 + $0xf0] sm:$0x1] %vm6047, 0.0
  %6064 = vst.msk [vmem:[#allocation4 + $0x100] sm:$0x1] %vm6047, 0.0
  %6065 = vst.msk [vmem:[#allocation4 + $0x110] sm:$0x1] %vm6047, 0.0
  %6066 = vst.msk [vmem:[#allocation4 + $0x120] sm:$0x1] %vm6047, 0.0
  %6067 = vst.msk [vmem:[#allocation4 + $0x130] sm:$0x1] %vm6047, 0.0
  %6068 = vst.msk [vmem:[#allocation4 + $0x9] sm:$0x1] %vm6047, 0.0
  %6069 = vst.msk [vmem:[#allocation4 + $0x19] sm:$0x1] %vm6047, 0.0
  %6070 = vst.msk [vmem:[#allocation4 + $0x29] sm:$0x1] %vm6047, 0.0
  %6071 = vst.msk [vmem:[#allocation4 + $0x39] sm:$0x1] %vm6047, 0.0
  %6072 = vst.msk [vmem:[#allocation4 + $0x49] sm:$0x1] %vm6047, 0.0
  %6073 = vst.msk [vmem:[#allocation4 + $0x59] sm:$0x1] %vm6047, 0.0
  %6074 = vst.msk [vmem:[#allocation4 + $0x69] sm:$0x1] %vm6047, 0.0
  %6075 = vst.msk [vmem:[#allocation4 + $0x79] sm:$0x1] %vm6047, 0.0
  %6076 = vst.msk [vmem:[#allocation4 + $0x89] sm:$0x1] %vm6047, 0.0
  %6077 = vst.msk [vmem:[#allocation4 + $0x99] sm:$0x1] %vm6047, 0.0
  %6078 = vst.msk [vmem:[#allocation4 + $0xa9] sm:$0x1] %vm6047, 0.0
  %6079 = vst.msk [vmem:[#allocation4 + $0xb9] sm:$0x1] %vm6047, 0.0
  %6080 = vst.msk [vmem:[#allocation4 + $0xc9] sm:$0x1] %vm6047, 0.0
  %6081 = vst.msk [vmem:[#allocation4 + $0xd9] sm:$0x1] %vm6047, 0.0
  %6082 = vst.msk [vmem:[#allocation4 + $0xe9] sm:$0x1] %vm6047, 0.0
  %6083 = vst.msk [vmem:[#allocation4 + $0xf9] sm:$0x1] %vm6047, 0.0
  %6084 = vst.msk [vmem:[#allocation4 + $0x109] sm:$0x1] %vm6047, 0.0
  %6085 = vst.msk [vmem:[#allocation4 + $0x119] sm:$0x1] %vm6047, 0.0
  %6086 = vst.msk [vmem:[#allocation4 + $0x129] sm:$0x1] %vm6047, 0.0
  %6087 = vst.msk [vmem:[#allocation4 + $0x139] sm:$0x1] %vm6047, 0.0
  %s6088 = scalar_lea.vmem [#allocation4], 16
  %6089 = vst.msk [vmem:[%s6088 + $0x1] sm:$0xff] %vm6036, %v6020
  %6090 = vst.msk [vmem:[%s6088 + $0x11] sm:$0xff] %vm6036, %v6021
  %6091 = vst.msk [vmem:[%s6088 + $0x21] sm:$0xff] %vm6036, %v6022
  %6092 = vst.msk [vmem:[%s6088 + $0x31] sm:$0xff] %vm6036, %v6023
  %6093 = vst.msk [vmem:[%s6088 + $0x41] sm:$0xff] %vm6036, %v6024
  %6094 = vst.msk [vmem:[%s6088 + $0x51] sm:$0xff] %vm6036, %v6025
  %6095 = vst.msk [vmem:[%s6088 + $0x61] sm:$0xff] %vm6036, %v6026
  %6096 = vst.msk [vmem:[%s6088 + $0x71] sm:$0xff] %vm6036, %v6027
  %6097 = vst.msk [vmem:[%s6088 + $0xa1] sm:$0xff] %vm6036, %v6028
  %6098 = vst.msk [vmem:[%s6088 + $0xb1] sm:$0xff] %vm6036, %v6029
  %6099 = vst.msk [vmem:[%s6088 + $0xc1] sm:$0xff] %vm6036, %v6030
  %6100 = vst.msk [vmem:[%s6088 + $0xd1] sm:$0xff] %vm6036, %v6031
  %6101 = vst.msk [vmem:[%s6088 + $0xe1] sm:$0xff] %vm6036, %v6032
  %6102 = vst.msk [vmem:[%s6088 + $0xf1] sm:$0xff] %vm6036, %v6033
  %6103 = vst.msk [vmem:[%s6088 + $0x101] sm:$0xff] %vm6036, %v6034
  %6104 = vst.msk [vmem:[%s6088 + $0x111] sm:$0xff] %vm6036, %v6035
  %v6105 = vld [vmem:[%s8] sm:$0xff]
  %v6106 = vld [vmem:[%s8 + $0x8] sm:$0xff]
  %v6107 = vld [vmem:[%s8 + $0x10] sm:$0xff]
  %v6108 = vld [vmem:[%s8 + $0x18] sm:$0xff]
  %v6109 = vld [vmem:[%s8 + $0x20] sm:$0xff]
  %v6110 = vld [vmem:[%s8 + $0x28] sm:$0xff]
  %v6111 = vld [vmem:[%s8 + $0x30] sm:$0xff]
  %v6112 = vld [vmem:[%s8 + $0x38] sm:$0xff]
  %v6113 = vld [vmem:[%s8 + $0x40] sm:$0xff]
  %v6114 = vld [vmem:[%s8 + $0x48] sm:$0xff]
  %v6115 = vld [vmem:[%s8 + $0x50] sm:$0xff]
  %v6116 = vld [vmem:[%s8 + $0x58] sm:$0xff]
  %v6117 = vld [vmem:[%s8 + $0x60] sm:$0xff]
  %v6118 = vld [vmem:[%s8 + $0x68] sm:$0xff]
  %v6119 = vld [vmem:[%s8 + $0x70] sm:$0xff]
  %v6120 = vld [vmem:[%s8 + $0x78] sm:$0xff]
  %v6121 = vld [vmem:[%s8 + $0x80] sm:$0xff]
  %v6122 = vld [vmem:[%s8 + $0x88] sm:$0xff]
  %v6123 = vld [vmem:[%s8 + $0x90] sm:$0xff]
  %v6124 = vld [vmem:[%s8 + $0x98] sm:$0xff]
  %v6125 = vld [vmem:[%s8 + $0xa0] sm:$0xff]
  %v6126 = vld [vmem:[%s8 + $0xa8] sm:$0xff]
  %v6127 = vld [vmem:[%s8 + $0xb0] sm:$0xff]
  %v6128 = vld [vmem:[%s8 + $0xb8] sm:$0xff]
  %v6129 = vld [vmem:[%s8 + $0xc0] sm:$0xff]
  %v6130 = vld [vmem:[%s8 + $0xc8] sm:$0xff]
  %v6131 = vld [vmem:[%s8 + $0xd0] sm:$0xff]
  %v6132 = vld [vmem:[%s8 + $0xd8] sm:$0xff]
  %v6133 = vld [vmem:[%s8 + $0xe0] sm:$0xff]
  %v6134 = vld [vmem:[%s8 + $0xe8] sm:$0xff]
  %v6135 = vld [vmem:[%s8 + $0xf0] sm:$0xff]
  %v6136 = vld [vmem:[%s8 + $0xf8] sm:$0xff]
  %v6137 = vld [vmem:[%s8 + $0x100] sm:$0xff]
  %v6138 = vld [vmem:[%s8 + $0x108] sm:$0xff]
  %v6139 = vld [vmem:[%s8 + $0x110] sm:$0xff]
  %v6140 = vld [vmem:[%s8 + $0x118] sm:$0xff]
  %v6141 = vld [vmem:[%s8 + $0x120] sm:$0xff]
  %v6142 = vld [vmem:[%s8 + $0x128] sm:$0xff]
  %v6143 = vld [vmem:[%s8 + $0x130] sm:$0xff]
  %v6144 = vld [vmem:[%s8 + $0x138] sm:$0xff]
  %v6145 = vld [vmem:[%s8 + $0x140] sm:$0xff]
  %v6146 = vld [vmem:[%s8 + $0x148] sm:$0xff]
  %v6147 = vld [vmem:[%s8 + $0x150] sm:$0xff]
  %v6148 = vld [vmem:[%s8 + $0x158] sm:$0xff]
  %v6149 = vld [vmem:[%s8 + $0x160] sm:$0xff]
  %v6150 = vld [vmem:[%s8 + $0x168] sm:$0xff]
  %v6151 = vld [vmem:[%s8 + $0x170] sm:$0xff]
  %v6152 = vld [vmem:[%s8 + $0x178] sm:$0xff]
  %v6153 = vld [vmem:[%s8 + $0x180] sm:$0xff]
  %v6154 = vld [vmem:[%s8 + $0x188] sm:$0xff]
  %v6155 = vld [vmem:[%s8 + $0x190] sm:$0xff]
  %v6156 = vld [vmem:[%s8 + $0x198] sm:$0xff]
  %v6157 = vld [vmem:[%s8 + $0x1a0] sm:$0xff]
  %v6158 = vld [vmem:[%s8 + $0x1a8] sm:$0xff]
  %v6159 = vld [vmem:[%s8 + $0x1b0] sm:$0xff]
  %v6160 = vld [vmem:[%s8 + $0x1b8] sm:$0xff]
  %v6161 = vld [vmem:[%s8 + $0x1c0] sm:$0xff]
  %v6162 = vld [vmem:[%s8 + $0x1c8] sm:$0xff]
  %v6163 = vld [vmem:[%s8 + $0x1d0] sm:$0xff]
  %v6164 = vld [vmem:[%s8 + $0x1d8] sm:$0xff]
  %v6165 = vld [vmem:[%s8 + $0x1e0] sm:$0xff]
  %v6166 = vld [vmem:[%s8 + $0x1e8] sm:$0xff]
  %v6167 = vld [vmem:[%s8 + $0x1f0] sm:$0xff]
  %v6168 = vld [vmem:[%s8 + $0x1f8] sm:$0xff]
  %v6169 = vld [vmem:[%s8 + $0x200] sm:$0xff]
  %v6170 = vld [vmem:[%s8 + $0x208] sm:$0xff]
  %v6171 = vld [vmem:[%s8 + $0x210] sm:$0xff]
  %v6172 = vld [vmem:[%s8 + $0x218] sm:$0xff]
  %v6173 = vld [vmem:[%s8 + $0x220] sm:$0xff]
  %v6174 = vld [vmem:[%s8 + $0x228] sm:$0xff]
  %v6175 = vld [vmem:[%s8 + $0x230] sm:$0xff]
  %v6176 = vld [vmem:[%s8 + $0x238] sm:$0xff]
  %v6177 = vld [vmem:[#allocation4] sm:$0xff]
  %v6178 = vld [vmem:[#allocation4 + $0x10] sm:$0xff]
  %v6179 = vld [vmem:[#allocation4 + $0x20] sm:$0xff]
  %v6180 = vld [vmem:[#allocation4 + $0x30] sm:$0xff]
  %v6181 = vld [vmem:[#allocation4 + $0x40] sm:$0xff]
  %v6182 = vld [vmem:[#allocation4 + $0x50] sm:$0xff]
  %v6183 = vld [vmem:[#allocation4 + $0x60] sm:$0xff]
  %v6184 = vld [vmem:[#allocation4 + $0x70] sm:$0xff]
  %v6185 = vld [vmem:[#allocation4 + $0xa0] sm:$0xff]
  %v6186 = vld [vmem:[#allocation4 + $0xb0] sm:$0xff]
  %v6187 = vld [vmem:[#allocation4 + $0xc0] sm:$0xff]
  %v6188 = vld [vmem:[#allocation4 + $0xd0] sm:$0xff]
  %v6189 = vld [vmem:[#allocation4 + $0xe0] sm:$0xff]
  %v6190 = vld [vmem:[#allocation4 + $0xf0] sm:$0xff]
  %v6191 = vld [vmem:[#allocation4 + $0x100] sm:$0xff]
  %v6192 = vld [vmem:[#allocation4 + $0x110] sm:$0xff]
  %6193 = vst.msk [vmem:[#allocation5] sm:$0xff] %vm6036, %v6177
  %6194 = vst.msk [vmem:[#allocation5 + $0x28] sm:$0xff] %vm6036, %v6178
  %6195 = vst.msk [vmem:[#allocation5 + $0x50] sm:$0xff] %vm6036, %v6179
  %6196 = vst.msk [vmem:[#allocation5 + $0x78] sm:$0xff] %vm6036, %v6180
  %6197 = vst.msk [vmem:[#allocation5 + $0xa0] sm:$0xff] %vm6036, %v6181
  %6198 = vst.msk [vmem:[#allocation5 + $0xc8] sm:$0xff] %vm6036, %v6182
  %6199 = vst.msk [vmem:[#allocation5 + $0xf0] sm:$0xff] %vm6036, %v6183
  %6200 = vst.msk [vmem:[#allocation5 + $0x118] sm:$0xff] %vm6036, %v6184
  %6201 = vst.msk [vmem:[#allocation5 + $0x140] sm:$0xff] %vm6036, %v6185
  %6202 = vst.msk [vmem:[#allocation5 + $0x168] sm:$0xff] %vm6036, %v6186
  %6203 = vst.msk [vmem:[#allocation5 + $0x190] sm:$0xff] %vm6036, %v6187
  %6204 = vst.msk [vmem:[#allocation5 + $0x1b8] sm:$0xff] %vm6036, %v6188
  %6205 = vst.msk [vmem:[#allocation5 + $0x1e0] sm:$0xff] %vm6036, %v6189
  %6206 = vst.msk [vmem:[#allocation5 + $0x208] sm:$0xff] %vm6036, %v6190
  %6207 = vst.msk [vmem:[#allocation5 + $0x230] sm:$0xff] %vm6036, %v6191
  %6208 = vst.msk [vmem:[#allocation5 + $0x258] sm:$0xff] %vm6036, %v6192
  %v6209 = vld [vmem:[#allocation4 + $0x1] sm:$0xff]
  %v6210 = vld [vmem:[#allocation4 + $0x11] sm:$0xff]
  %v6211 = vld [vmem:[#allocation4 + $0x21] sm:$0xff]
  %v6212 = vld [vmem:[#allocation4 + $0x31] sm:$0xff]
  %v6213 = vld [vmem:[#allocation4 + $0x41] sm:$0xff]
  %v6214 = vld [vmem:[#allocation4 + $0x51] sm:$0xff]
  %v6215 = vld [vmem:[#allocation4 + $0x61] sm:$0xff]
  %v6216 = vld [vmem:[#allocation4 + $0x71] sm:$0xff]
  %v6217 = vld [vmem:[#allocation4 + $0xa1] sm:$0xff]
  %v6218 = vld [vmem:[#allocation4 + $0xb1] sm:$0xff]
  %v6219 = vld [vmem:[#allocation4 + $0xc1] sm:$0xff]
  %v6220 = vld [vmem:[#allocation4 + $0xd1] sm:$0xff]
  %v6221 = vld [vmem:[#allocation4 + $0xe1] sm:$0xff]
  %v6222 = vld [vmem:[#allocation4 + $0xf1] sm:$0xff]
  %v6223 = vld [vmem:[#allocation4 + $0x101] sm:$0xff]
  %v6224 = vld [vmem:[#allocation4 + $0x111] sm:$0xff]
  %6241 = vrot.lane.b32.xlu0 %v6209, 64
  %v6242 = vpop.permute.xlu0 %6241
  %6243 = vrot.lane.b32.xlu0 %v6210, 64
  %v6244 = vpop.permute.xlu0 %6243
  %6245 = vrot.lane.b32.xlu0 %v6211, 64
  %v6246 = vpop.permute.xlu0 %6245
  %6247 = vrot.lane.b32.xlu0 %v6212, 64
  %v6248 = vpop.permute.xlu0 %6247
  %6249 = vrot.lane.b32.xlu0 %v6213, 64
  %v6250 = vpop.permute.xlu0 %6249
  %6251 = vrot.lane.b32.xlu0 %v6214, 64
  %v6252 = vpop.permute.xlu0 %6251
  %6253 = vrot.lane.b32.xlu0 %v6215, 64
  %v6254 = vpop.permute.xlu0 %6253
  %6255 = vrot.lane.b32.xlu0 %v6216, 64
  %v6256 = vpop.permute.xlu0 %6255
  %6257 = vrot.lane.b32.xlu0 %v6217, 64
  %v6258 = vpop.permute.xlu0 %6257
  %6259 = vrot.lane.b32.xlu0 %v6218, 64
  %v6260 = vpop.permute.xlu0 %6259
  %6261 = vrot.lane.b32.xlu0 %v6219, 64
  %v6262 = vpop.permute.xlu0 %6261
  %6263 = vrot.lane.b32.xlu0 %v6220, 64
  %v6264 = vpop.permute.xlu0 %6263
  %6265 = vrot.lane.b32.xlu0 %v6221, 64
  %v6266 = vpop.permute.xlu0 %6265
  %6267 = vrot.lane.b32.xlu0 %v6222, 64
  %v6268 = vpop.permute.xlu0 %6267
  %6269 = vrot.lane.b32.xlu0 %v6223, 64
  %v6270 = vpop.permute.xlu0 %6269
  %6271 = vrot.lane.b32.xlu0 %v6224, 64
  %v6272 = vpop.permute.xlu0 %6271
  %vm6289 = vcmask 1048064
  %6290 = vst.msk [vmem:[#allocation5] sm:$0xff] %vm6289, %v6242
  %6291 = vst.msk [vmem:[#allocation5 + $0x28] sm:$0xff] %vm6289, %v6244
  %6292 = vst.msk [vmem:[#allocation5 + $0x50] sm:$0xff] %vm6289, %v6246
  %6293 = vst.msk [vmem:[#allocation5 + $0x78] sm:$0xff] %vm6289, %v6248
  %6294 = vst.msk [vmem:[#allocation5 + $0xa0] sm:$0xff] %vm6289, %v6250
  %6295 = vst.msk [vmem:[#allocation5 + $0xc8] sm:$0xff] %vm6289, %v6252
  %6296 = vst.msk [vmem:[#allocation5 + $0xf0] sm:$0xff] %vm6289, %v6254
  %6297 = vst.msk [vmem:[#allocation5 + $0x118] sm:$0xff] %vm6289, %v6256
  %6298 = vst.msk [vmem:[#allocation5 + $0x140] sm:$0xff] %vm6289, %v6258
  %6299 = vst.msk [vmem:[#allocation5 + $0x168] sm:$0xff] %vm6289, %v6260
  %6300 = vst.msk [vmem:[#allocation5 + $0x190] sm:$0xff] %vm6289, %v6262
  %6301 = vst.msk [vmem:[#allocation5 + $0x1b8] sm:$0xff] %vm6289, %v6264
  %6302 = vst.msk [vmem:[#allocation5 + $0x1e0] sm:$0xff] %vm6289, %v6266
  %6303 = vst.msk [vmem:[#allocation5 + $0x208] sm:$0xff] %vm6289, %v6268
  %6304 = vst.msk [vmem:[#allocation5 + $0x230] sm:$0xff] %vm6289, %v6270
  %6305 = vst.msk [vmem:[#allocation5 + $0x258] sm:$0xff] %vm6289, %v6272
  %v6306 = vld [vmem:[#allocation4 + $0x2] sm:$0xff]
  %v6307 = vld [vmem:[#allocation4 + $0x12] sm:$0xff]
  %v6308 = vld [vmem:[#allocation4 + $0x22] sm:$0xff]
  %v6309 = vld [vmem:[#allocation4 + $0x32] sm:$0xff]
  %v6310 = vld [vmem:[#allocation4 + $0x42] sm:$0xff]
  %v6311 = vld [vmem:[#allocation4 + $0x52] sm:$0xff]
  %v6312 = vld [vmem:[#allocation4 + $0x62] sm:$0xff]
  %v6313 = vld [vmem:[#allocation4 + $0x72] sm:$0xff]
  %v6314 = vld [vmem:[#allocation4 + $0xa2] sm:$0xff]
  %v6315 = vld [vmem:[#allocation4 + $0xb2] sm:$0xff]
  %v6316 = vld [vmem:[#allocation4 + $0xc2] sm:$0xff]
  %v6317 = vld [vmem:[#allocation4 + $0xd2] sm:$0xff]
  %v6318 = vld [vmem:[#allocation4 + $0xe2] sm:$0xff]
  %v6319 = vld [vmem:[#allocation4 + $0xf2] sm:$0xff]
  %v6320 = vld [vmem:[#allocation4 + $0x102] sm:$0xff]
  %v6321 = vld [vmem:[#allocation4 + $0x112] sm:$0xff]
  %6322 = vst.msk [vmem:[#allocation5 + $0x8] sm:$0xff] %vm6036, %v6306
  %6323 = vst.msk [vmem:[#allocation5 + $0x30] sm:$0xff] %vm6036, %v6307
  %6324 = vst.msk [vmem:[#allocation5 + $0x58] sm:$0xff] %vm6036, %v6308
  %6325 = vst.msk [vmem:[#allocation5 + $0x80] sm:$0xff] %vm6036, %v6309
  %6326 = vst.msk [vmem:[#allocation5 + $0xa8] sm:$0xff] %vm6036, %v6310
  %6327 = vst.msk [vmem:[#allocation5 + $0xd0] sm:$0xff] %vm6036, %v6311
  %6328 = vst.msk [vmem:[#allocation5 + $0xf8] sm:$0xff] %vm6036, %v6312
  %6329 = vst.msk [vmem:[#allocation5 + $0x120] sm:$0xff] %vm6036, %v6313
  %6330 = vst.msk [vmem:[#allocation5 + $0x148] sm:$0xff] %vm6036, %v6314
  %6331 = vst.msk [vmem:[#allocation5 + $0x170] sm:$0xff] %vm6036, %v6315
  %6332 = vst.msk [vmem:[#allocation5 + $0x198] sm:$0xff] %vm6036, %v6316
  %6333 = vst.msk [vmem:[#allocation5 + $0x1c0] sm:$0xff] %vm6036, %v6317
  %6334 = vst.msk [vmem:[#allocation5 + $0x1e8] sm:$0xff] %vm6036, %v6318
  %6335 = vst.msk [vmem:[#allocation5 + $0x210] sm:$0xff] %vm6036, %v6319
  %6336 = vst.msk [vmem:[#allocation5 + $0x238] sm:$0xff] %vm6036, %v6320
  %6337 = vst.msk [vmem:[#allocation5 + $0x260] sm:$0xff] %vm6036, %v6321
  %v6338 = vld [vmem:[%s6088] sm:$0xff]
  %v6339 = vld [vmem:[%s6088 + $0x10] sm:$0xff]
  %v6340 = vld [vmem:[%s6088 + $0x20] sm:$0xff]
  %v6341 = vld [vmem:[%s6088 + $0x30] sm:$0xff]
  %v6342 = vld [vmem:[%s6088 + $0x40] sm:$0xff]
  %v6343 = vld [vmem:[%s6088 + $0x50] sm:$0xff]
  %v6344 = vld [vmem:[%s6088 + $0x60] sm:$0xff]
  %v6345 = vld [vmem:[%s6088 + $0x70] sm:$0xff]
  %v6346 = vld [vmem:[%s6088 + $0xa0] sm:$0xff]
  %v6347 = vld [vmem:[%s6088 + $0xb0] sm:$0xff]
  %v6348 = vld [vmem:[%s6088 + $0xc0] sm:$0xff]
  %v6349 = vld [vmem:[%s6088 + $0xd0] sm:$0xff]
  %v6350 = vld [vmem:[%s6088 + $0xe0] sm:$0xff]
  %v6351 = vld [vmem:[%s6088 + $0xf0] sm:$0xff]
  %v6352 = vld [vmem:[%s6088 + $0x100] sm:$0xff]
  %v6353 = vld [vmem:[%s6088 + $0x110] sm:$0xff]
  %6370 = vrot.lane.b32.xlu0 %v6338, 64
  %v6371 = vpop.permute.xlu0 %6370
  %6372 = vrot.lane.b32.xlu0 %v6339, 64
  %v6373 = vpop.permute.xlu0 %6372
  %6374 = vrot.lane.b32.xlu0 %v6340, 64
  %v6375 = vpop.permute.xlu0 %6374
  %6376 = vrot.lane.b32.xlu0 %v6341, 64
  %v6377 = vpop.permute.xlu0 %6376
  %6378 = vrot.lane.b32.xlu0 %v6342, 64
  %v6379 = vpop.permute.xlu0 %6378
  %6380 = vrot.lane.b32.xlu0 %v6343, 64
  %v6381 = vpop.permute.xlu0 %6380
  %6382 = vrot.lane.b32.xlu0 %v6344, 64
  %v6383 = vpop.permute.xlu0 %6382
  %6384 = vrot.lane.b32.xlu0 %v6345, 64
  %v6385 = vpop.permute.xlu0 %6384
  %6386 = vrot.lane.b32.xlu0 %v6346, 64
  %v6387 = vpop.permute.xlu0 %6386
  %6388 = vrot.lane.b32.xlu0 %v6347, 64
  %v6389 = vpop.permute.xlu0 %6388
  %6390 = vrot.lane.b32.xlu0 %v6348, 64
  %v6391 = vpop.permute.xlu0 %6390
  %6392 = vrot.lane.b32.xlu0 %v6349, 64
  %v6393 = vpop.permute.xlu0 %6392
  %6394 = vrot.lane.b32.xlu0 %v6350, 64
  %v6395 = vpop.permute.xlu0 %6394
  %6396 = vrot.lane.b32.xlu0 %v6351, 64
  %v6397 = vpop.permute.xlu0 %6396
  %6398 = vrot.lane.b32.xlu0 %v6352, 64
  %v6399 = vpop.permute.xlu0 %6398
  %6400 = vrot.lane.b32.xlu0 %v6353, 64
  %v6401 = vpop.permute.xlu0 %6400
  %6418 = vst.msk [vmem:[#allocation5 + $0x8] sm:$0xff] %vm6289, %v6371
  %6419 = vst.msk [vmem:[#allocation5 + $0x30] sm:$0xff] %vm6289, %v6373
  %6420 = vst.msk [vmem:[#allocation5 + $0x58] sm:$0xff] %vm6289, %v6375
  %6421 = vst.msk [vmem:[#allocation5 + $0x80] sm:$0xff] %vm6289, %v6377
  %6422 = vst.msk [vmem:[#allocation5 + $0xa8] sm:$0xff] %vm6289, %v6379
  %6423 = vst.msk [vmem:[#allocation5 + $0xd0] sm:$0xff] %vm6289, %v6381
  %6424 = vst.msk [vmem:[#allocation5 + $0xf8] sm:$0xff] %vm6289, %v6383
  %6425 = vst.msk [vmem:[#allocation5 + $0x120] sm:$0xff] %vm6289, %v6385
  %6426 = vst.msk [vmem:[#allocation5 + $0x148] sm:$0xff] %vm6289, %v6387
  %6427 = vst.msk [vmem:[#allocation5 + $0x170] sm:$0xff] %vm6289, %v6389
  %6428 = vst.msk [vmem:[#allocation5 + $0x198] sm:$0xff] %vm6289, %v6391
  %6429 = vst.msk [vmem:[#allocation5 + $0x1c0] sm:$0xff] %vm6289, %v6393
  %6430 = vst.msk [vmem:[#allocation5 + $0x1e8] sm:$0xff] %vm6289, %v6395
  %6431 = vst.msk [vmem:[#allocation5 + $0x210] sm:$0xff] %vm6289, %v6397
  %6432 = vst.msk [vmem:[#allocation5 + $0x238] sm:$0xff] %vm6289, %v6399
  %6433 = vst.msk [vmem:[#allocation5 + $0x260] sm:$0xff] %vm6289, %v6401
  %v6434 = vld [vmem:[%s6088 + $0x1] sm:$0xff]
  %v6435 = vld [vmem:[%s6088 + $0x11] sm:$0xff]
  %v6436 = vld [vmem:[%s6088 + $0x21] sm:$0xff]
  %v6437 = vld [vmem:[%s6088 + $0x31] sm:$0xff]
  %v6438 = vld [vmem:[%s6088 + $0x41] sm:$0xff]
  %v6439 = vld [vmem:[%s6088 + $0x51] sm:$0xff]
  %v6440 = vld [vmem:[%s6088 + $0x61] sm:$0xff]
  %v6441 = vld [vmem:[%s6088 + $0x71] sm:$0xff]
  %v6442 = vld [vmem:[%s6088 + $0xa1] sm:$0xff]
  %v6443 = vld [vmem:[%s6088 + $0xb1] sm:$0xff]
  %v6444 = vld [vmem:[%s6088 + $0xc1] sm:$0xff]
  %v6445 = vld [vmem:[%s6088 + $0xd1] sm:$0xff]
  %v6446 = vld [vmem:[%s6088 + $0xe1] sm:$0xff]
  %v6447 = vld [vmem:[%s6088 + $0xf1] sm:$0xff]
  %v6448 = vld [vmem:[%s6088 + $0x101] sm:$0xff]
  %v6449 = vld [vmem:[%s6088 + $0x111] sm:$0xff]
  %6450 = vst.msk [vmem:[#allocation5 + $0x10] sm:$0xff] %vm6036, %v6434
  %6451 = vst.msk [vmem:[#allocation5 + $0x38] sm:$0xff] %vm6036, %v6435
  %6452 = vst.msk [vmem:[#allocation5 + $0x60] sm:$0xff] %vm6036, %v6436
  %6453 = vst.msk [vmem:[#allocation5 + $0x88] sm:$0xff] %vm6036, %v6437
  %6454 = vst.msk [vmem:[#allocation5 + $0xb0] sm:$0xff] %vm6036, %v6438
  %6455 = vst.msk [vmem:[#allocation5 + $0xd8] sm:$0xff] %vm6036, %v6439
  %6456 = vst.msk [vmem:[#allocation5 + $0x100] sm:$0xff] %vm6036, %v6440
  %6457 = vst.msk [vmem:[#allocation5 + $0x128] sm:$0xff] %vm6036, %v6441
  %6458 = vst.msk [vmem:[#allocation5 + $0x150] sm:$0xff] %vm6036, %v6442
  %6459 = vst.msk [vmem:[#allocation5 + $0x178] sm:$0xff] %vm6036, %v6443
  %6460 = vst.msk [vmem:[#allocation5 + $0x1a0] sm:$0xff] %vm6036, %v6444
  %6461 = vst.msk [vmem:[#allocation5 + $0x1c8] sm:$0xff] %vm6036, %v6445
  %6462 = vst.msk [vmem:[#allocation5 + $0x1f0] sm:$0xff] %vm6036, %v6446
  %6463 = vst.msk [vmem:[#allocation5 + $0x218] sm:$0xff] %vm6036, %v6447
  %6464 = vst.msk [vmem:[#allocation5 + $0x240] sm:$0xff] %vm6036, %v6448
  %6465 = vst.msk [vmem:[#allocation5 + $0x268] sm:$0xff] %vm6036, %v6449
  %v6466 = vld [vmem:[%s6088 + $0x2] sm:$0xff]
  %v6467 = vld [vmem:[%s6088 + $0x12] sm:$0xff]
  %v6468 = vld [vmem:[%s6088 + $0x22] sm:$0xff]
  %v6469 = vld [vmem:[%s6088 + $0x32] sm:$0xff]
  %v6470 = vld [vmem:[%s6088 + $0x42] sm:$0xff]
  %v6471 = vld [vmem:[%s6088 + $0x52] sm:$0xff]
  %v6472 = vld [vmem:[%s6088 + $0x62] sm:$0xff]
  %v6473 = vld [vmem:[%s6088 + $0x72] sm:$0xff]
  %v6474 = vld [vmem:[%s6088 + $0xa2] sm:$0xff]
  %v6475 = vld [vmem:[%s6088 + $0xb2] sm:$0xff]
  %v6476 = vld [vmem:[%s6088 + $0xc2] sm:$0xff]
  %v6477 = vld [vmem:[%s6088 + $0xd2] sm:$0xff]
  %v6478 = vld [vmem:[%s6088 + $0xe2] sm:$0xff]
  %v6479 = vld [vmem:[%s6088 + $0xf2] sm:$0xff]
  %v6480 = vld [vmem:[%s6088 + $0x102] sm:$0xff]
  %v6481 = vld [vmem:[%s6088 + $0x112] sm:$0xff]
  %6498 = vrot.lane.b32.xlu0 %v6466, 64
  %v6499 = vpop.permute.xlu0 %6498
  %6500 = vrot.lane.b32.xlu0 %v6467, 64
  %v6501 = vpop.permute.xlu0 %6500
  %6502 = vrot.lane.b32.xlu0 %v6468, 64
  %v6503 = vpop.permute.xlu0 %6502
  %6504 = vrot.lane.b32.xlu0 %v6469, 64
  %v6505 = vpop.permute.xlu0 %6504
  %6506 = vrot.lane.b32.xlu0 %v6470, 64
  %v6507 = vpop.permute.xlu0 %6506
  %6508 = vrot.lane.b32.xlu0 %v6471, 64
  %v6509 = vpop.permute.xlu0 %6508
  %6510 = vrot.lane.b32.xlu0 %v6472, 64
  %v6511 = vpop.permute.xlu0 %6510
  %6512 = vrot.lane.b32.xlu0 %v6473, 64
  %v6513 = vpop.permute.xlu0 %6512
  %6514 = vrot.lane.b32.xlu0 %v6474, 64
  %v6515 = vpop.permute.xlu0 %6514
  %6516 = vrot.lane.b32.xlu0 %v6475, 64
  %v6517 = vpop.permute.xlu0 %6516
  %6518 = vrot.lane.b32.xlu0 %v6476, 64
  %v6519 = vpop.permute.xlu0 %6518
  %6520 = vrot.lane.b32.xlu0 %v6477, 64
  %v6521 = vpop.permute.xlu0 %6520
  %6522 = vrot.lane.b32.xlu0 %v6478, 64
  %v6523 = vpop.permute.xlu0 %6522
  %6524 = vrot.lane.b32.xlu0 %v6479, 64
  %v6525 = vpop.permute.xlu0 %6524
  %6526 = vrot.lane.b32.xlu0 %v6480, 64
  %v6527 = vpop.permute.xlu0 %6526
  %6528 = vrot.lane.b32.xlu0 %v6481, 64
  %v6529 = vpop.permute.xlu0 %6528
  %6546 = vst.msk [vmem:[#allocation5 + $0x10] sm:$0xff] %vm6289, %v6499
  %6547 = vst.msk [vmem:[#allocation5 + $0x38] sm:$0xff] %vm6289, %v6501
  %6548 = vst.msk [vmem:[#allocation5 + $0x60] sm:$0xff] %vm6289, %v6503
  %6549 = vst.msk [vmem:[#allocation5 + $0x88] sm:$0xff] %vm6289, %v6505
  %6550 = vst.msk [vmem:[#allocation5 + $0xb0] sm:$0xff] %vm6289, %v6507
  %6551 = vst.msk [vmem:[#allocation5 + $0xd8] sm:$0xff] %vm6289, %v6509
  %6552 = vst.msk [vmem:[#allocation5 + $0x100] sm:$0xff] %vm6289, %v6511
  %6553 = vst.msk [vmem:[#allocation5 + $0x128] sm:$0xff] %vm6289, %v6513
  %6554 = vst.msk [vmem:[#allocation5 + $0x150] sm:$0xff] %vm6289, %v6515
  %6555 = vst.msk [vmem:[#allocation5 + $0x178] sm:$0xff] %vm6289, %v6517
  %6556 = vst.msk [vmem:[#allocation5 + $0x1a0] sm:$0xff] %vm6289, %v6519
  %6557 = vst.msk [vmem:[#allocation5 + $0x1c8] sm:$0xff] %vm6289, %v6521
  %6558 = vst.msk [vmem:[#allocation5 + $0x1f0] sm:$0xff] %vm6289, %v6523
  %6559 = vst.msk [vmem:[#allocation5 + $0x218] sm:$0xff] %vm6289, %v6525
  %6560 = vst.msk [vmem:[#allocation5 + $0x240] sm:$0xff] %vm6289, %v6527
  %6561 = vst.msk [vmem:[#allocation5 + $0x268] sm:$0xff] %vm6289, %v6529
  %s6562 = scalar_lea.vmem [#allocation4], 32
  %v6563 = vld [vmem:[%s6562] sm:$0xff]
  %v6564 = vld [vmem:[%s6562 + $0x10] sm:$0xff]
  %v6565 = vld [vmem:[%s6562 + $0x20] sm:$0xff]
  %v6566 = vld [vmem:[%s6562 + $0x30] sm:$0xff]
  %v6567 = vld [vmem:[%s6562 + $0x40] sm:$0xff]
  %v6568 = vld [vmem:[%s6562 + $0x50] sm:$0xff]
  %v6569 = vld [vmem:[%s6562 + $0x60] sm:$0xff]
  %v6570 = vld [vmem:[%s6562 + $0x70] sm:$0xff]
  %v6571 = vld [vmem:[%s6562 + $0xa0] sm:$0xff]
  %v6572 = vld [vmem:[%s6562 + $0xb0] sm:$0xff]
  %v6573 = vld [vmem:[%s6562 + $0xc0] sm:$0xff]
  %v6574 = vld [vmem:[%s6562 + $0xd0] sm:$0xff]
  %v6575 = vld [vmem:[%s6562 + $0xe0] sm:$0xff]
  %v6576 = vld [vmem:[%s6562 + $0xf0] sm:$0xff]
  %v6577 = vld [vmem:[%s6562 + $0x100] sm:$0xff]
  %v6578 = vld [vmem:[%s6562 + $0x110] sm:$0xff]
  %6579 = vst.msk [vmem:[#allocation5 + $0x18] sm:$0xff] %vm6036, %v6563
  %6580 = vst.msk [vmem:[#allocation5 + $0x40] sm:$0xff] %vm6036, %v6564
  %6581 = vst.msk [vmem:[#allocation5 + $0x68] sm:$0xff] %vm6036, %v6565
  %6582 = vst.msk [vmem:[#allocation5 + $0x90] sm:$0xff] %vm6036, %v6566
  %6583 = vst.msk [vmem:[#allocation5 + $0xb8] sm:$0xff] %vm6036, %v6567
  %6584 = vst.msk [vmem:[#allocation5 + $0xe0] sm:$0xff] %vm6036, %v6568
  %6585 = vst.msk [vmem:[#allocation5 + $0x108] sm:$0xff] %vm6036, %v6569
  %6586 = vst.msk [vmem:[#allocation5 + $0x130] sm:$0xff] %vm6036, %v6570
  %6587 = vst.msk [vmem:[#allocation5 + $0x158] sm:$0xff] %vm6036, %v6571
  %6588 = vst.msk [vmem:[#allocation5 + $0x180] sm:$0xff] %vm6036, %v6572
  %6589 = vst.msk [vmem:[#allocation5 + $0x1a8] sm:$0xff] %vm6036, %v6573
  %6590 = vst.msk [vmem:[#allocation5 + $0x1d0] sm:$0xff] %vm6036, %v6574
  %6591 = vst.msk [vmem:[#allocation5 + $0x1f8] sm:$0xff] %vm6036, %v6575
  %6592 = vst.msk [vmem:[#allocation5 + $0x220] sm:$0xff] %vm6036, %v6576
  %6593 = vst.msk [vmem:[#allocation5 + $0x248] sm:$0xff] %vm6036, %v6577
  %6594 = vst.msk [vmem:[#allocation5 + $0x270] sm:$0xff] %vm6036, %v6578
  %v6595 = vld [vmem:[%s6562 + $0x1] sm:$0xff]
  %v6596 = vld [vmem:[%s6562 + $0x11] sm:$0xff]
  %v6597 = vld [vmem:[%s6562 + $0x21] sm:$0xff]
  %v6598 = vld [vmem:[%s6562 + $0x31] sm:$0xff]
  %v6599 = vld [vmem:[%s6562 + $0x41] sm:$0xff]
  %v6600 = vld [vmem:[%s6562 + $0x51] sm:$0xff]
  %v6601 = vld [vmem:[%s6562 + $0x61] sm:$0xff]
  %v6602 = vld [vmem:[%s6562 + $0x71] sm:$0xff]
  %v6603 = vld [vmem:[%s6562 + $0xa1] sm:$0xff]
  %v6604 = vld [vmem:[%s6562 + $0xb1] sm:$0xff]
  %v6605 = vld [vmem:[%s6562 + $0xc1] sm:$0xff]
  %v6606 = vld [vmem:[%s6562 + $0xd1] sm:$0xff]
  %v6607 = vld [vmem:[%s6562 + $0xe1] sm:$0xff]
  %v6608 = vld [vmem:[%s6562 + $0xf1] sm:$0xff]
  %v6609 = vld [vmem:[%s6562 + $0x101] sm:$0xff]
  %v6610 = vld [vmem:[%s6562 + $0x111] sm:$0xff]
  %6627 = vrot.lane.b32.xlu0 %v6595, 64
  %v6628 = vpop.permute.xlu0 %6627
  %6629 = vrot.lane.b32.xlu0 %v6596, 64
  %v6630 = vpop.permute.xlu0 %6629
  %6631 = vrot.lane.b32.xlu0 %v6597, 64
  %v6632 = vpop.permute.xlu0 %6631
  %6633 = vrot.lane.b32.xlu0 %v6598, 64
  %v6634 = vpop.permute.xlu0 %6633
  %6635 = vrot.lane.b32.xlu0 %v6599, 64
  %v6636 = vpop.permute.xlu0 %6635
  %6637 = vrot.lane.b32.xlu0 %v6600, 64
  %v6638 = vpop.permute.xlu0 %6637
  %6639 = vrot.lane.b32.xlu0 %v6601, 64
  %v6640 = vpop.permute.xlu0 %6639
  %6641 = vrot.lane.b32.xlu0 %v6602, 64
  %v6642 = vpop.permute.xlu0 %6641
  %6643 = vrot.lane.b32.xlu0 %v6603, 64
  %v6644 = vpop.permute.xlu0 %6643
  %6645 = vrot.lane.b32.xlu0 %v6604, 64
  %v6646 = vpop.permute.xlu0 %6645
  %6647 = vrot.lane.b32.xlu0 %v6605, 64
  %v6648 = vpop.permute.xlu0 %6647
  %6649 = vrot.lane.b32.xlu0 %v6606, 64
  %v6650 = vpop.permute.xlu0 %6649
  %6651 = vrot.lane.b32.xlu0 %v6607, 64
  %v6652 = vpop.permute.xlu0 %6651
  %6653 = vrot.lane.b32.xlu0 %v6608, 64
  %v6654 = vpop.permute.xlu0 %6653
  %6655 = vrot.lane.b32.xlu0 %v6609, 64
  %v6656 = vpop.permute.xlu0 %6655
  %6657 = vrot.lane.b32.xlu0 %v6610, 64
  %v6658 = vpop.permute.xlu0 %6657
  %6675 = vst.msk [vmem:[#allocation5 + $0x18] sm:$0xff] %vm6289, %v6628
  %6676 = vst.msk [vmem:[#allocation5 + $0x40] sm:$0xff] %vm6289, %v6630
  %6677 = vst.msk [vmem:[#allocation5 + $0x68] sm:$0xff] %vm6289, %v6632
  %6678 = vst.msk [vmem:[#allocation5 + $0x90] sm:$0xff] %vm6289, %v6634
  %6679 = vst.msk [vmem:[#allocation5 + $0xb8] sm:$0xff] %vm6289, %v6636
  %6680 = vst.msk [vmem:[#allocation5 + $0xe0] sm:$0xff] %vm6289, %v6638
  %6681 = vst.msk [vmem:[#allocation5 + $0x108] sm:$0xff] %vm6289, %v6640
  %6682 = vst.msk [vmem:[#allocation5 + $0x130] sm:$0xff] %vm6289, %v6642
  %6683 = vst.msk [vmem:[#allocation5 + $0x158] sm:$0xff] %vm6289, %v6644
  %6684 = vst.msk [vmem:[#allocation5 + $0x180] sm:$0xff] %vm6289, %v6646
  %6685 = vst.msk [vmem:[#allocation5 + $0x1a8] sm:$0xff] %vm6289, %v6648
  %6686 = vst.msk [vmem:[#allocation5 + $0x1d0] sm:$0xff] %vm6289, %v6650
  %6687 = vst.msk [vmem:[#allocation5 + $0x1f8] sm:$0xff] %vm6289, %v6652
  %6688 = vst.msk [vmem:[#allocation5 + $0x220] sm:$0xff] %vm6289, %v6654
  %6689 = vst.msk [vmem:[#allocation5 + $0x248] sm:$0xff] %vm6289, %v6656
  %6690 = vst.msk [vmem:[#allocation5 + $0x270] sm:$0xff] %vm6289, %v6658
  %v6691 = vld [vmem:[%s6562 + $0x2] sm:$0xff]
  %v6692 = vld [vmem:[%s6562 + $0x12] sm:$0xff]
  %v6693 = vld [vmem:[%s6562 + $0x22] sm:$0xff]
  %v6694 = vld [vmem:[%s6562 + $0x32] sm:$0xff]
  %v6695 = vld [vmem:[%s6562 + $0x42] sm:$0xff]
  %v6696 = vld [vmem:[%s6562 + $0x52] sm:$0xff]
  %v6697 = vld [vmem:[%s6562 + $0x62] sm:$0xff]
  %v6698 = vld [vmem:[%s6562 + $0x72] sm:$0xff]
  %v6699 = vld [vmem:[%s6562 + $0xa2] sm:$0xff]
  %v6700 = vld [vmem:[%s6562 + $0xb2] sm:$0xff]
  %v6701 = vld [vmem:[%s6562 + $0xc2] sm:$0xff]
  %v6702 = vld [vmem:[%s6562 + $0xd2] sm:$0xff]
  %v6703 = vld [vmem:[%s6562 + $0xe2] sm:$0xff]
  %v6704 = vld [vmem:[%s6562 + $0xf2] sm:$0xff]
  %v6705 = vld [vmem:[%s6562 + $0x102] sm:$0xff]
  %v6706 = vld [vmem:[%s6562 + $0x112] sm:$0xff]
  %6707 = vst.msk [vmem:[#allocation5 + $0x20] sm:$0xff] %vm6036, %v6691
  %6708 = vst.msk [vmem:[#allocation5 + $0x48] sm:$0xff] %vm6036, %v6692
  %6709 = vst.msk [vmem:[#allocation5 + $0x70] sm:$0xff] %vm6036, %v6693
  %6710 = vst.msk [vmem:[#allocation5 + $0x98] sm:$0xff] %vm6036, %v6694
  %6711 = vst.msk [vmem:[#allocation5 + $0xc0] sm:$0xff] %vm6036, %v6695
  %6712 = vst.msk [vmem:[#allocation5 + $0xe8] sm:$0xff] %vm6036, %v6696
  %6713 = vst.msk [vmem:[#allocation5 + $0x110] sm:$0xff] %vm6036, %v6697
  %6714 = vst.msk [vmem:[#allocation5 + $0x138] sm:$0xff] %vm6036, %v6698
  %6715 = vst.msk [vmem:[#allocation5 + $0x160] sm:$0xff] %vm6036, %v6699
  %6716 = vst.msk [vmem:[#allocation5 + $0x188] sm:$0xff] %vm6036, %v6700
  %6717 = vst.msk [vmem:[#allocation5 + $0x1b0] sm:$0xff] %vm6036, %v6701
  %6718 = vst.msk [vmem:[#allocation5 + $0x1d8] sm:$0xff] %vm6036, %v6702
  %6719 = vst.msk [vmem:[#allocation5 + $0x200] sm:$0xff] %vm6036, %v6703
  %6720 = vst.msk [vmem:[#allocation5 + $0x228] sm:$0xff] %vm6036, %v6704
  %6721 = vst.msk [vmem:[#allocation5 + $0x250] sm:$0xff] %vm6036, %v6705
  %6722 = vst.msk [vmem:[#allocation5 + $0x278] sm:$0xff] %vm6036, %v6706
  %v6723 = vld [vmem:[#allocation5] sm:$0xff]
  %v6724 = vld [vmem:[#allocation5 + $0x8] sm:$0xff]
  %v6725 = vld [vmem:[#allocation5 + $0x10] sm:$0xff]
  %v6726 = vld [vmem:[#allocation5 + $0x18] sm:$0xff]
  %v6727 = vld [vmem:[#allocation5 + $0x20] sm:$0xff]
  %v6728 = vld [vmem:[#allocation5 + $0x28] sm:$0xff]
  %v6729 = vld [vmem:[#allocation5 + $0x30] sm:$0xff]
  %v6730 = vld [vmem:[#allocation5 + $0x38] sm:$0xff]
  %v6731 = vld [vmem:[#allocation5 + $0x40] sm:$0xff]
  %v6732 = vld [vmem:[#allocation5 + $0x48] sm:$0xff]
  %v6733 = vld [vmem:[#allocation5 + $0x50] sm:$0xff]
  %v6734 = vld [vmem:[#allocation5 + $0x58] sm:$0xff]
  %v6735 = vld [vmem:[#allocation5 + $0x60] sm:$0xff]
  %v6736 = vld [vmem:[#allocation5 + $0x68] sm:$0xff]
  %v6737 = vld [vmem:[#allocation5 + $0x70] sm:$0xff]
  %v6738 = vld [vmem:[#allocation5 + $0x78] sm:$0xff]
  %v6739 = vld [vmem:[#allocation5 + $0x80] sm:$0xff]
  %v6740 = vld [vmem:[#allocation5 + $0x88] sm:$0xff]
  %v6741 = vld [vmem:[#allocation5 + $0x90] sm:$0xff]
  %v6742 = vld [vmem:[#allocation5 + $0x98] sm:$0xff]
  %v6743 = vld [vmem:[#allocation5 + $0xa0] sm:$0xff]
  %v6744 = vld [vmem:[#allocation5 + $0xa8] sm:$0xff]
  %v6745 = vld [vmem:[#allocation5 + $0xb0] sm:$0xff]
  %v6746 = vld [vmem:[#allocation5 + $0xb8] sm:$0xff]
  %v6747 = vld [vmem:[#allocation5 + $0xc0] sm:$0xff]
  %v6748 = vld [vmem:[#allocation5 + $0xc8] sm:$0xff]
  %v6749 = vld [vmem:[#allocation5 + $0xd0] sm:$0xff]
  %v6750 = vld [vmem:[#allocation5 + $0xd8] sm:$0xff]
  %v6751 = vld [vmem:[#allocation5 + $0xe0] sm:$0xff]
  %v6752 = vld [vmem:[#allocation5 + $0xe8] sm:$0xff]
  %v6753 = vld [vmem:[#allocation5 + $0xf0] sm:$0xff]
  %v6754 = vld [vmem:[#allocation5 + $0xf8] sm:$0xff]
  %v6755 = vld [vmem:[#allocation5 + $0x100] sm:$0xff]
  %v6756 = vld [vmem:[#allocation5 + $0x108] sm:$0xff]
  %v6757 = vld [vmem:[#allocation5 + $0x110] sm:$0xff]
  %v6758 = vld [vmem:[#allocation5 + $0x118] sm:$0xff]
  %v6759 = vld [vmem:[#allocation5 + $0x120] sm:$0xff]
  %v6760 = vld [vmem:[#allocation5 + $0x128] sm:$0xff]
  %v6761 = vld [vmem:[#allocation5 + $0x130] sm:$0xff]
  %v6762 = vld [vmem:[#allocation5 + $0x138] sm:$0xff]
  %v6763 = vld [vmem:[#allocation5 + $0x140] sm:$0xff]
  %v6764 = vld [vmem:[#allocation5 + $0x148] sm:$0xff]
  %v6765 = vld [vmem:[#allocation5 + $0x150] sm:$0xff]
  %v6766 = vld [vmem:[#allocation5 + $0x158] sm:$0xff]
  %v6767 = vld [vmem:[#allocation5 + $0x160] sm:$0xff]
  %v6768 = vld [vmem:[#allocation5 + $0x168] sm:$0xff]
  %v6769 = vld [vmem:[#allocation5 + $0x170] sm:$0xff]
  %v6770 = vld [vmem:[#allocation5 + $0x178] sm:$0xff]
  %v6771 = vld [vmem:[#allocation5 + $0x180] sm:$0xff]
  %v6772 = vld [vmem:[#allocation5 + $0x188] sm:$0xff]
  %v6773 = vld [vmem:[#allocation5 + $0x190] sm:$0xff]
  %v6774 = vld [vmem:[#allocation5 + $0x198] sm:$0xff]
  %v6775 = vld [vmem:[#allocation5 + $0x1a0] sm:$0xff]
  %v6776 = vld [vmem:[#allocation5 + $0x1a8] sm:$0xff]
  %v6777 = vld [vmem:[#allocation5 + $0x1b0] sm:$0xff]
  %v6778 = vld [vmem:[#allocation5 + $0x1b8] sm:$0xff]
  %v6779 = vld [vmem:[#allocation5 + $0x1c0] sm:$0xff]
  %v6780 = vld [vmem:[#allocation5 + $0x1c8] sm:$0xff]
  %v6781 = vld [vmem:[#allocation5 + $0x1d0] sm:$0xff]
  %v6782 = vld [vmem:[#allocation5 + $0x1d8] sm:$0xff]
  %v6783 = vld [vmem:[#allocation5 + $0x1e0] sm:$0xff]
  %v6784 = vld [vmem:[#allocation5 + $0x1e8] sm:$0xff]
  %v6785 = vld [vmem:[#allocation5 + $0x1f0] sm:$0xff]
  %v6786 = vld [vmem:[#allocation5 + $0x1f8] sm:$0xff]
  %v6787 = vld [vmem:[#allocation5 + $0x200] sm:$0xff]
  %v6788 = vld [vmem:[#allocation5 + $0x208] sm:$0xff]
  %v6789 = vld [vmem:[#allocation5 + $0x210] sm:$0xff]
  %v6790 = vld [vmem:[#allocation5 + $0x218] sm:$0xff]
  %v6791 = vld [vmem:[#allocation5 + $0x220] sm:$0xff]
  %v6792 = vld [vmem:[#allocation5 + $0x228] sm:$0xff]
  %v6793 = vld [vmem:[#allocation5 + $0x230] sm:$0xff]
  %v6794 = vld [vmem:[#allocation5 + $0x238] sm:$0xff]
  %v6795 = vld [vmem:[#allocation5 + $0x240] sm:$0xff]
  %v6796 = vld [vmem:[#allocation5 + $0x248] sm:$0xff]
  %v6797 = vld [vmem:[#allocation5 + $0x250] sm:$0xff]
  %v6798 = vld [vmem:[#allocation5 + $0x258] sm:$0xff]
  %v6799 = vld [vmem:[#allocation5 + $0x260] sm:$0xff]
  %v6800 = vld [vmem:[#allocation5 + $0x268] sm:$0xff]
  %v6801 = vld [vmem:[#allocation5 + $0x270] sm:$0xff]
  %v6802 = vld [vmem:[#allocation5 + $0x278] sm:$0xff]
  %v6803 = vld [vmem:[%s9] sm:$0x1]
  %v6805 = vlaneseq
  %v6806 = vshrl.u32 %v6805, 7
  %v6807 = vsub.s32 0, %v6806
  %v6808 = vrot.slane %v6803, %v6807
  %v6811 = vsel %vm6036, %v6727, 0
  %v6814 = vsel %vm6036, %v6732, 0
  %v6817 = vsel %vm6036, %v6737, 0
  %v6820 = vsel %vm6036, %v6742, 0
  %v6823 = vsel %vm6036, %v6747, 0
  %v6826 = vsel %vm6036, %v6752, 0
  %v6829 = vsel %vm6036, %v6757, 0
  %v6832 = vsel %vm6036, %v6762, 0
  %v6835 = vsel %vm6036, %v6767, 0
  %v6838 = vsel %vm6036, %v6772, 0
  %v6841 = vsel %vm6036, %v6777, 0
  %v6844 = vsel %vm6036, %v6782, 0
  %v6847 = vsel %vm6036, %v6787, 0
  %v6850 = vsel %vm6036, %v6792, 0
  %v6853 = vsel %vm6036, %v6797, 0
  %v6856 = vsel %vm6036, %v6802, 0
  %6858 = vmatprep.subr.mxu0 0.0
  %6859 = vmatpush1.msra.mxu0 %v6105
  %6860 = vmatprep.subr.mxu0 0.0
  %6861 = vmatpush1.msra.mxu0 %v6106
  %6862 = vmatprep.subr.mxu0 0.0
  %6863 = vmatpush1.msra.mxu0 %v6107
  %6864 = vmatprep.subr.mxu0 0.0
  %6865 = vmatpush1.msra.mxu0 %v6108
  %6866 = vmatprep.subr.mxu0 0.0
  %6867 = vmatpush1.msra.mxu0 %v6109
  %6868 = vmatprep.subr.mxu0 0.0
  %6869 = vmatpush1.msra.mxu0 %v6110
  %6870 = vmatprep.subr.mxu0 0.0
  %6871 = vmatpush1.msra.mxu0 %v6111
  %6872 = vmatprep.subr.mxu0 0.0
  %6873 = vmatpush1.msra.mxu0 %v6112
  %6874 = vmatprep.subr.mxu0 0.0
  %6875 = vmatpush1.msra.mxu0 %v6113
  %6876 = vmatprep.subr.mxu0 0.0
  %6877 = vmatpush1.msra.mxu0 %v6114
  %6878 = vmatprep.subr.mxu0 0.0
  %6879 = vmatpush1.msra.mxu0 %v6115
  %6880 = vmatprep.subr.mxu0 0.0
  %6881 = vmatpush1.msra.mxu0 %v6116
  %6882 = vmatprep.subr.mxu0 0.0
  %6883 = vmatpush1.msra.mxu0 %v6117
  %6884 = vmatprep.subr.mxu0 0.0
  %6885 = vmatpush1.msra.mxu0 %v6118
  %6886 = vmatprep.subr.mxu0 0.0
  %6887 = vmatpush1.msra.mxu0 %v6119
  %6888 = vmatprep.subr.mxu0 0.0
  %6889 = vmatpush1.msra.mxu0 %v6120
  %6890 = vmatprep.subr.mxu0 0.0
  %6891 = vmatpush1.msra.mxu0 %v6121
  %6892 = vmatprep.subr.mxu0 0.0
  %6893 = vmatpush1.msra.mxu0 %v6122
  %6894 = vmatprep.subr.mxu0 0.0
  %6895 = vmatpush1.msra.mxu0 %v6123
  %6896 = vmatprep.subr.mxu0 0.0
  %6897 = vmatpush1.msra.mxu0 %v6124
  %6898 = vmatprep.subr.mxu0 0.0
  %6899 = vmatpush1.msra.mxu0 %v6125
  %6900 = vmatprep.subr.mxu0 0.0
  %6901 = vmatpush1.msra.mxu0 %v6126
  %6902 = vmatprep.subr.mxu0 0.0
  %6903 = vmatpush1.msra.mxu0 %v6127
  %6904 = vmatprep.subr.mxu0 0.0
  %6905 = vmatpush1.msra.mxu0 %v6128
  %6906 = vmatprep.subr.mxu0 0.0
  %6907 = vmatpush1.msra.mxu0 %v6129
  %6908 = vmatprep.subr.mxu0 0.0
  %6909 = vmatpush1.msra.mxu0 %v6130
  %6910 = vmatprep.subr.mxu0 0.0
  %6911 = vmatpush1.msra.mxu0 %v6131
  %6912 = vmatprep.subr.mxu0 0.0
  %6913 = vmatpush1.msra.mxu0 %v6132
  %6914 = vmatprep.subr.mxu0 0.0
  %6915 = vmatpush1.msra.mxu0 %v6133
  %6916 = vmatprep.subr.mxu0 0.0
  %6917 = vmatpush1.msra.mxu0 %v6134
  %6918 = vmatprep.subr.mxu0 0.0
  %6919 = vmatpush1.msra.mxu0 %v6135
  %6920 = vmatprep.subr.mxu0 0.0
  %6921 = vmatpush1.msra.mxu0 %v6136
  %6922 = vmatprep.mubr.f32.mxu0 %v6724
  %6923 = vmatmul.mubr.f32.gmra.mrb[0].mxu0 %v6723
  %v6924 = vpop.f32.mrb[0].mxu0
  %v6925 = vadd.f32 %v6808, %v6924
  %v6926 = vpop.f32.mrb[0].mxu0
  %6927 = vmatprep.mubr.f32.mxu0 %v6729
  %6928 = vmatmul.mubr.f32.gmra.mrb[0].mxu0 %v6728
  %v6929 = vpop.f32.mrb[0].mxu0
  %v6930 = vadd.f32 %v6808, %v6929
  %v6931 = vpop.f32.mrb[0].mxu0
  %6932 = vmatprep.mubr.f32.mxu0 %v6734
  %6933 = vmatmul.mubr.f32.gmra.mrb[0].mxu0 %v6733
  %v6934 = vpop.f32.mrb[0].mxu0
  %v6935 = vadd.f32 %v6808, %v6934
  %v6936 = vpop.f32.mrb[0].mxu0
  %6937 = vmatprep.mubr.f32.mxu0 %v6739
  %6938 = vmatmul.mubr.f32.gmra.mrb[0].mxu0 %v6738
  %v6939 = vpop.f32.mrb[0].mxu0
  %v6940 = vadd.f32 %v6808, %v6939
  %v6941 = vpop.f32.mrb[0].mxu0
  %6942 = vmatprep.mubr.f32.mxu0 %v6744
  %6943 = vmatmul.mubr.f32.gmra.mrb[0].mxu0 %v6743
  %v6944 = vpop.f32.mrb[0].mxu0
  %v6945 = vadd.f32 %v6808, %v6944
  %v6946 = vpop.f32.mrb[0].mxu0
  %6947 = vmatprep.mubr.f32.mxu0 %v6749
  %6948 = vmatmul.mubr.f32.gmra.mrb[0].mxu0 %v6748
  %v6949 = vpop.f32.mrb[0].mxu0
  %v6950 = vadd.f32 %v6808, %v6949
  %v6951 = vpop.f32.mrb[0].mxu0
  %6952 = vmatprep.mubr.f32.mxu0 %v6754
  %6953 = vmatmul.mubr.f32.gmra.mrb[0].mxu0 %v6753
  %v6954 = vpop.f32.mrb[0].mxu0
  %v6955 = vadd.f32 %v6808, %v6954
  %v6956 = vpop.f32.mrb[0].mxu0
  %6957 = vmatprep.mubr.f32.mxu0 %v6759
  %6958 = vmatmul.mubr.f32.gmra.mrb[0].mxu0 %v6758
  %v6959 = vpop.f32.mrb[0].mxu0
  %v6960 = vadd.f32 %v6808, %v6959
  %v6961 = vpop.f32.mrb[0].mxu0
  %6962 = vmatprep.mubr.f32.mxu0 %v6764
  %6963 = vmatmul.mubr.f32.gmra.mrb[0].mxu0 %v6763
  %v6964 = vpop.f32.mrb[0].mxu0
  %v6965 = vadd.f32 %v6808, %v6964
  %v6966 = vpop.f32.mrb[0].mxu0
  %6967 = vmatprep.mubr.f32.mxu0 %v6769
  %6968 = vmatmul.mubr.f32.gmra.mrb[0].mxu0 %v6768
  %v6969 = vpop.f32.mrb[0].mxu0
  %v6970 = vadd.f32 %v6808, %v6969
  %v6971 = vpop.f32.mrb[0].mxu0
  %6972 = vmatprep.mubr.f32.mxu0 %v6774
  %6973 = vmatmul.mubr.f32.gmra.mrb[0].mxu0 %v6773
  %v6974 = vpop.f32.mrb[0].mxu0
  %v6975 = vadd.f32 %v6808, %v6974
  %v6976 = vpop.f32.mrb[0].mxu0
  %6977 = vmatprep.mubr.f32.mxu0 %v6779
  %6978 = vmatmul.mubr.f32.gmra.mrb[0].mxu0 %v6778
  %v6979 = vpop.f32.mrb[0].mxu0
  %v6980 = vadd.f32 %v6808, %v6979
  %v6981 = vpop.f32.mrb[0].mxu0
  %6982 = vmatprep.mubr.f32.mxu0 %v6784
  %6983 = vmatmul.mubr.f32.gmra.mrb[0].mxu0 %v6783
  %v6984 = vpop.f32.mrb[0].mxu0
  %v6985 = vadd.f32 %v6808, %v6984
  %v6986 = vpop.f32.mrb[0].mxu0
  %6987 = vmatprep.mubr.f32.mxu0 %v6789
  %6988 = vmatmul.mubr.f32.gmra.mrb[0].mxu0 %v6788
  %v6989 = vpop.f32.mrb[0].mxu0
  %v6990 = vadd.f32 %v6808, %v6989
  %v6991 = vpop.f32.mrb[0].mxu0
  %6992 = vmatprep.mubr.f32.mxu0 %v6794
  %6993 = vmatmul.mubr.f32.gmra.mrb[0].mxu0 %v6793
  %v6994 = vpop.f32.mrb[0].mxu0
  %v6995 = vadd.f32 %v6808, %v6994
  %v6996 = vpop.f32.mrb[0].mxu0
  %6997 = vmatprep.mubr.f32.mxu0 %v6799
  %6998 = vmatmul.mubr.f32.gmra.mrb[0].mxu0 %v6798
  %v6999 = vpop.f32.mrb[0].mxu0
  %v7000 = vadd.f32 %v6808, %v6999
  %v7001 = vpop.f32.mrb[0].mxu0
  %7002 = vdwg.mxu0
  %7003 = vmatprep.subr.mxu0 0.0
  %7004 = vmatpush1.msra.mxu0 %v6137
  %7005 = vmatprep.subr.mxu0 0.0
  %7006 = vmatpush1.msra.mxu0 %v6138
  %7007 = vmatprep.subr.mxu0 0.0
  %7008 = vmatpush1.msra.mxu0 %v6139
  %7009 = vmatprep.subr.mxu0 0.0
  %7010 = vmatpush1.msra.mxu0 %v6140
  %7011 = vmatprep.subr.mxu0 0.0
  %7012 = vmatpush1.msra.mxu0 %v6141
  %7013 = vmatprep.subr.mxu0 0.0
  %7014 = vmatpush1.msra.mxu0 %v6142
  %7015 = vmatprep.subr.mxu0 0.0
  %7016 = vmatpush1.msra.mxu0 %v6143
  %7017 = vmatprep.subr.mxu0 0.0
  %7018 = vmatpush1.msra.mxu0 %v6144
  %7019 = vmatprep.subr.mxu0 0.0
  %7020 = vmatpush1.msra.mxu0 %v6145
  %7021 = vmatprep.subr.mxu0 0.0
  %7022 = vmatpush1.msra.mxu0 %v6146
  %7023 = vmatprep.subr.mxu0 0.0
  %7024 = vmatpush1.msra.mxu0 %v6147
  %7025 = vmatprep.subr.mxu0 0.0
  %7026 = vmatpush1.msra.mxu0 %v6148
  %7027 = vmatprep.subr.mxu0 0.0
  %7028 = vmatpush1.msra.mxu0 %v6149
  %7029 = vmatprep.subr.mxu0 0.0
  %7030 = vmatpush1.msra.mxu0 %v6150
  %7031 = vmatprep.subr.mxu0 0.0
  %7032 = vmatpush1.msra.mxu0 %v6151
  %7033 = vmatprep.subr.mxu0 0.0
  %7034 = vmatpush1.msra.mxu0 %v6152
  %7035 = vmatprep.subr.mxu0 0.0
  %7036 = vmatpush1.msra.mxu0 %v6153
  %7037 = vmatprep.subr.mxu0 0.0
  %7038 = vmatpush1.msra.mxu0 %v6154
  %7039 = vmatprep.subr.mxu0 0.0
  %7040 = vmatpush1.msra.mxu0 %v6155
  %7041 = vmatprep.subr.mxu0 0.0
  %7042 = vmatpush1.msra.mxu0 %v6156
  %7043 = vmatprep.subr.mxu0 0.0
  %7044 = vmatpush1.msra.mxu0 %v6157
  %7045 = vmatprep.subr.mxu0 0.0
  %7046 = vmatpush1.msra.mxu0 %v6158
  %7047 = vmatprep.subr.mxu0 0.0
  %7048 = vmatpush1.msra.mxu0 %v6159
  %7049 = vmatprep.subr.mxu0 0.0
  %7050 = vmatpush1.msra.mxu0 %v6160
  %7051 = vmatprep.subr.mxu0 0.0
  %7052 = vmatpush1.msra.mxu0 %v6161
  %7053 = vmatprep.subr.mxu0 0.0
  %7054 = vmatpush1.msra.mxu0 %v6162
  %7055 = vmatprep.subr.mxu0 0.0
  %7056 = vmatpush1.msra.mxu0 %v6163
  %7057 = vmatprep.subr.mxu0 0.0
  %7058 = vmatpush1.msra.mxu0 %v6164
  %7059 = vmatprep.subr.mxu0 0.0
  %7060 = vmatpush1.msra.mxu0 %v6165
  %7061 = vmatprep.subr.mxu0 0.0
  %7062 = vmatpush1.msra.mxu0 %v6166
  %7063 = vmatprep.subr.mxu0 0.0
  %7064 = vmatpush1.msra.mxu0 %v6167
  %7065 = vmatprep.subr.mxu0 0.0
  %7066 = vmatpush1.msra.mxu0 %v6168
  %7067 = vmatprep.mubr.f32.mxu0 %v6726
  %7068 = vmatmul.mubr.f32.gmra.mrb[0].mxu0 %v6725
  %v7069 = vpop.f32.mrb[0].mxu0
  %v7070 = vadd.f32 %v6925, %v7069
  %v7071 = vpop.f32.mrb[0].mxu0
  %7072 = vmatprep.mubr.f32.mxu0 %v6731
  %7073 = vmatmul.mubr.f32.gmra.mrb[0].mxu0 %v6730
  %v7074 = vpop.f32.mrb[0].mxu0
  %v7075 = vadd.f32 %v6930, %v7074
  %v7076 = vpop.f32.mrb[0].mxu0
  %7077 = vmatprep.mubr.f32.mxu0 %v6736
  %7078 = vmatmul.mubr.f32.gmra.mrb[0].mxu0 %v6735
  %v7079 = vpop.f32.mrb[0].mxu0
  %v7080 = vadd.f32 %v6935, %v7079
  %v7081 = vpop.f32.mrb[0].mxu0
  %7082 = vmatprep.mubr.f32.mxu0 %v6741
  %7083 = vmatmul.mubr.f32.gmra.mrb[0].mxu0 %v6740
  %v7084 = vpop.f32.mrb[0].mxu0
  %v7085 = vadd.f32 %v6940, %v7084
  %v7086 = vpop.f32.mrb[0].mxu0
  %7087 = vmatprep.mubr.f32.mxu0 %v6746
  %7088 = vmatmul.mubr.f32.gmra.mrb[0].mxu0 %v6745
  %v7089 = vpop.f32.mrb[0].mxu0
  %v7090 = vadd.f32 %v6945, %v7089
  %v7091 = vpop.f32.mrb[0].mxu0
  %7092 = vmatprep.mubr.f32.mxu0 %v6751
  %7093 = vmatmul.mubr.f32.gmra.mrb[0].mxu0 %v6750
  %v7094 = vpop.f32.mrb[0].mxu0
  %v7095 = vadd.f32 %v6950, %v7094
  %v7096 = vpop.f32.mrb[0].mxu0
  %7097 = vmatprep.mubr.f32.mxu0 %v6756
  %7098 = vmatmul.mubr.f32.gmra.mrb[0].mxu0 %v6755
  %v7099 = vpop.f32.mrb[0].mxu0
  %v7100 = vadd.f32 %v6955, %v7099
  %v7101 = vpop.f32.mrb[0].mxu0
  %7102 = vmatprep.mubr.f32.mxu0 %v6761
  %7103 = vmatmul.mubr.f32.gmra.mrb[0].mxu0 %v6760
  %v7104 = vpop.f32.mrb[0].mxu0
  %v7105 = vadd.f32 %v6960, %v7104
  %v7106 = vpop.f32.mrb[0].mxu0
  %7107 = vmatprep.mubr.f32.mxu0 %v6766
  %7108 = vmatmul.mubr.f32.gmra.mrb[0].mxu0 %v6765
  %v7109 = vpop.f32.mrb[0].mxu0
  %v7110 = vadd.f32 %v6965, %v7109
  %v7111 = vpop.f32.mrb[0].mxu0
  %7112 = vmatprep.mubr.f32.mxu0 %v6771
  %7113 = vmatmul.mubr.f32.gmra.mrb[0].mxu0 %v6770
  %v7114 = vpop.f32.mrb[0].mxu0
  %v7115 = vadd.f32 %v6970, %v7114
  %v7116 = vpop.f32.mrb[0].mxu0
  %7117 = vmatprep.mubr.f32.mxu0 %v6776
  %7118 = vmatmul.mubr.f32.gmra.mrb[0].mxu0 %v6775
  %v7119 = vpop.f32.mrb[0].mxu0
  %v7120 = vadd.f32 %v6975, %v7119
  %v7121 = vpop.f32.mrb[0].mxu0
  %7122 = vmatprep.mubr.f32.mxu0 %v6781
  %7123 = vmatmul.mubr.f32.gmra.mrb[0].mxu0 %v6780
  %v7124 = vpop.f32.mrb[0].mxu0
  %v7125 = vadd.f32 %v6980, %v7124
  %v7126 = vpop.f32.mrb[0].mxu0
  %7127 = vmatprep.mubr.f32.mxu0 %v6786
  %7128 = vmatmul.mubr.f32.gmra.mrb[0].mxu0 %v6785
  %v7129 = vpop.f32.mrb[0].mxu0
  %v7130 = vadd.f32 %v6985, %v7129
  %v7131 = vpop.f32.mrb[0].mxu0
  %7132 = vmatprep.mubr.f32.mxu0 %v6791
  %7133 = vmatmul.mubr.f32.gmra.mrb[0].mxu0 %v6790
  %v7134 = vpop.f32.mrb[0].mxu0
  %v7135 = vadd.f32 %v6990, %v7134
  %v7136 = vpop.f32.mrb[0].mxu0
  %7137 = vmatprep.mubr.f32.mxu0 %v6796
  %7138 = vmatmul.mubr.f32.gmra.mrb[0].mxu0 %v6795
  %v7139 = vpop.f32.mrb[0].mxu0
  %v7140 = vadd.f32 %v6995, %v7139
  %v7141 = vpop.f32.mrb[0].mxu0
  %7142 = vmatprep.mubr.f32.mxu0 %v6801
  %7143 = vmatmul.mubr.f32.gmra.mrb[0].mxu0 %v6800
  %v7144 = vpop.f32.mrb[0].mxu0
  %v7145 = vadd.f32 %v7000, %v7144
  %v7146 = vpop.f32.mrb[0].mxu0
  %7147 = vdwg.mxu0
  %7148 = vmatprep.subr.mxu0 0.0
  %7149 = vmatpush1.msra.mxu0 %v6169
  %7150 = vmatprep.subr.mxu0 0.0
  %7151 = vmatpush1.msra.mxu0 %v6170
  %7152 = vmatprep.subr.mxu0 0.0
  %7153 = vmatpush1.msra.mxu0 %v6171
  %7154 = vmatprep.subr.mxu0 0.0
  %7155 = vmatpush1.msra.mxu0 %v6172
  %7156 = vmatprep.subr.mxu0 0.0
  %7157 = vmatpush1.msra.mxu0 %v6173
  %7158 = vmatprep.subr.mxu0 0.0
  %7159 = vmatpush1.msra.mxu0 %v6174
  %7160 = vmatprep.subr.mxu0 0.0
  %7161 = vmatpush1.msra.mxu0 %v6175
  %7162 = vmatprep.subr.mxu0 0.0
  %7163 = vmatpush1.msra.mxu0 %v6176
  %7164 = vmatprep.subr.mxu0 0.0
  %7165 = vmatpush1.msra.mxu0 0.0
  %7166 = vmatprep.subr.mxu0 0.0
  %7167 = vmatpush1.msra.mxu0 0.0
  %7168 = vmatprep.subr.mxu0 0.0
  %7169 = vmatpush1.msra.mxu0 0.0
  %7170 = vmatprep.subr.mxu0 0.0
  %7171 = vmatpush1.msra.mxu0 0.0
  %7172 = vmatprep.subr.mxu0 0.0
  %7173 = vmatpush1.msra.mxu0 0.0
  %7174 = vmatprep.subr.mxu0 0.0
  %7175 = vmatpush1.msra.mxu0 0.0
  %7176 = vmatprep.subr.mxu0 0.0
  %7177 = vmatpush1.msra.mxu0 0.0
  %7178 = vmatprep.subr.mxu0 0.0
  %7179 = vmatpush1.msra.mxu0 0.0
  %7180 = vmatprep.subr.mxu0 0.0
  %7181 = vmatpush1.msra.mxu0 0.0
  %7182 = vmatprep.subr.mxu0 0.0
  %7183 = vmatpush1.msra.mxu0 0.0
  %7184 = vmatprep.subr.mxu0 0.0
  %7185 = vmatpush1.msra.mxu0 0.0
  %7186 = vmatprep.subr.mxu0 0.0
  %7187 = vmatpush1.msra.mxu0 0.0
  %7188 = vmatprep.subr.mxu0 0.0
  %7189 = vmatpush1.msra.mxu0 0.0
  %7190 = vmatprep.subr.mxu0 0.0
  %7191 = vmatpush1.msra.mxu0 0.0
  %7192 = vmatprep.subr.mxu0 0.0
  %7193 = vmatpush1.msra.mxu0 0.0
  %7194 = vmatprep.subr.mxu0 0.0
  %7195 = vmatpush1.msra.mxu0 0.0
  %7196 = vmatprep.subr.mxu0 0.0
  %7197 = vmatpush1.msra.mxu0 0.0
  %7198 = vmatprep.subr.mxu0 0.0
  %7199 = vmatpush1.msra.mxu0 0.0
  %7200 = vmatprep.subr.mxu0 0.0
  %7201 = vmatpush1.msra.mxu0 0.0
  %7202 = vmatprep.subr.mxu0 0.0
  %7203 = vmatpush1.msra.mxu0 0.0
  %7204 = vmatprep.subr.mxu0 0.0
  %7205 = vmatpush1.msra.mxu0 0.0
  %7206 = vmatprep.subr.mxu0 0.0
  %7207 = vmatpush1.msra.mxu0 0.0
  %7208 = vmatprep.subr.mxu0 0.0
  %7209 = vmatpush1.msra.mxu0 0.0
  %7210 = vmatprep.subr.mxu0 0.0
  %7211 = vmatpush1.msra.mxu0 0.0
  %7212 = vmatprep.mubr.f32.mxu0 0.0
  %7213 = vmatmul.mubr.f32.gmra.mrb[0].mxu0 %v6811
  %v7214 = vpop.f32.mrb[0].mxu0
  %v7215 = vadd.f32 %v7070, %v7214
  %v7216 = vpop.f32.mrb[0].mxu0
  %7217 = vmatprep.mubr.f32.mxu0 0.0
  %7218 = vmatmul.mubr.f32.gmra.mrb[0].mxu0 %v6814
  %v7219 = vpop.f32.mrb[0].mxu0
  %v7220 = vadd.f32 %v7075, %v7219
  %v7221 = vpop.f32.mrb[0].mxu0
  %7222 = vmatprep.mubr.f32.mxu0 0.0
  %7223 = vmatmul.mubr.f32.gmra.mrb[0].mxu0 %v6817
  %v7224 = vpop.f32.mrb[0].mxu0
  %v7225 = vadd.f32 %v7080, %v7224
  %v7226 = vpop.f32.mrb[0].mxu0
  %7227 = vmatprep.mubr.f32.mxu0 0.0
  %7228 = vmatmul.mubr.f32.gmra.mrb[0].mxu0 %v6820
  %v7229 = vpop.f32.mrb[0].mxu0
  %v7230 = vadd.f32 %v7085, %v7229
  %v7231 = vpop.f32.mrb[0].mxu0
  %7232 = vmatprep.mubr.f32.mxu0 0.0
  %7233 = vmatmul.mubr.f32.gmra.mrb[0].mxu0 %v6823
  %v7234 = vpop.f32.mrb[0].mxu0
  %v7235 = vadd.f32 %v7090, %v7234
  %v7236 = vpop.f32.mrb[0].mxu0
  %7237 = vmatprep.mubr.f32.mxu0 0.0
  %7238 = vmatmul.mubr.f32.gmra.mrb[0].mxu0 %v6826
  %v7239 = vpop.f32.mrb[0].mxu0
  %v7240 = vadd.f32 %v7095, %v7239
  %v7241 = vpop.f32.mrb[0].mxu0
  %7242 = vmatprep.mubr.f32.mxu0 0.0
  %7243 = vmatmul.mubr.f32.gmra.mrb[0].mxu0 %v6829
  %v7244 = vpop.f32.mrb[0].mxu0
  %v7245 = vadd.f32 %v7100, %v7244
  %v7246 = vpop.f32.mrb[0].mxu0
  %7247 = vmatprep.mubr.f32.mxu0 0.0
  %7248 = vmatmul.mubr.f32.gmra.mrb[0].mxu0 %v6832
  %v7249 = vpop.f32.mrb[0].mxu0
  %v7250 = vadd.f32 %v7105, %v7249
  %v7251 = vpop.f32.mrb[0].mxu0
  %7252 = vmatprep.mubr.f32.mxu0 0.0
  %7253 = vmatmul.mubr.f32.gmra.mrb[0].mxu0 %v6835
  %v7254 = vpop.f32.mrb[0].mxu0
  %v7255 = vadd.f32 %v7110, %v7254
  %v7256 = vpop.f32.mrb[0].mxu0
  %7257 = vmatprep.mubr.f32.mxu0 0.0
  %7258 = vmatmul.mubr.f32.gmra.mrb[0].mxu0 %v6838
  %v7259 = vpop.f32.mrb[0].mxu0
  %v7260 = vadd.f32 %v7115, %v7259
  %v7261 = vpop.f32.mrb[0].mxu0
  %7262 = vmatprep.mubr.f32.mxu0 0.0
  %7263 = vmatmul.mubr.f32.gmra.mrb[0].mxu0 %v6841
  %v7264 = vpop.f32.mrb[0].mxu0
  %v7265 = vadd.f32 %v7120, %v7264
  %v7266 = vpop.f32.mrb[0].mxu0
  %7267 = vmatprep.mubr.f32.mxu0 0.0
  %7268 = vmatmul.mubr.f32.gmra.mrb[0].mxu0 %v6844
  %v7269 = vpop.f32.mrb[0].mxu0
  %v7270 = vadd.f32 %v7125, %v7269
  %v7271 = vpop.f32.mrb[0].mxu0
  %7272 = vmatprep.mubr.f32.mxu0 0.0
  %7273 = vmatmul.mubr.f32.gmra.mrb[0].mxu0 %v6847
  %v7274 = vpop.f32.mrb[0].mxu0
  %v7275 = vadd.f32 %v7130, %v7274
  %v7276 = vpop.f32.mrb[0].mxu0
  %7277 = vmatprep.mubr.f32.mxu0 0.0
  %7278 = vmatmul.mubr.f32.gmra.mrb[0].mxu0 %v6850
  %v7279 = vpop.f32.mrb[0].mxu0
  %v7280 = vadd.f32 %v7135, %v7279
  %v7281 = vpop.f32.mrb[0].mxu0
  %7282 = vmatprep.mubr.f32.mxu0 0.0
  %7283 = vmatmul.mubr.f32.gmra.mrb[0].mxu0 %v6853
  %v7284 = vpop.f32.mrb[0].mxu0
  %v7285 = vadd.f32 %v7140, %v7284
  %v7286 = vpop.f32.mrb[0].mxu0
  %7287 = vmatprep.mubr.f32.mxu0 0.0
  %7288 = vmatmul.mubr.f32.gmra.mrb[0].mxu0 %v6856
  %v7289 = vpop.f32.mrb[0].mxu0
  %v7290 = vadd.f32 %v7145, %v7289
  %v7291 = vpop.f32.mrb[0].mxu0
  %7292 = vdwg.mxu0
  %7293 = vst.msk [vmem:[%s10] sm:$0xff] %vm55, %v831
  %7294 = vst.msk [vmem:[%s10 + $0x8] sm:$0xff] %vm55, %v836
  %7295 = vst.msk [vmem:[%s10 + $0x10] sm:$0xff] %vm55, %v841
  %7296 = vst.msk [vmem:[%s10 + $0x18] sm:$0xff] %vm55, %v846
  %7297 = vst.msk [vmem:[%s10 + $0x20] sm:$0xff] %vm55, %v851
  %7298 = vst.msk [vmem:[%s10 + $0x28] sm:$0xff] %vm55, %v856
  %7299 = vst.msk [vmem:[%s10 + $0x30] sm:$0xff] %vm55, %v861
  %7300 = vst.msk [vmem:[%s10 + $0x38] sm:$0xff] %vm55, %v866
  %7301 = vst.msk [vmem:[%s10 + $0x40] sm:$0xff] %vm55, %v871
  %7302 = vst.msk [vmem:[%s10 + $0x48] sm:$0xff] %vm55, %v876
  %7303 = vst.msk [vmem:[%s10 + $0x50] sm:$0xff] %vm55, %v881
  %7304 = vst.msk [vmem:[%s10 + $0x58] sm:$0xff] %vm55, %v886
  %7305 = vst.msk [vmem:[%s10 + $0x60] sm:$0xff] %vm55, %v891
  %7306 = vst.msk [vmem:[%s10 + $0x68] sm:$0xff] %vm55, %v896
  %7307 = vst.msk [vmem:[%s10 + $0x70] sm:$0xff] %vm55, %v901
  %7308 = vst.msk [vmem:[%s10 + $0x78] sm:$0xff] %vm55, %v906
  %7309 = vrot.lane.b32.xlu0 %v700, 16
  %v7310 = vpop.permute.xlu0 %7309
  %7311 = vrot.lane.b32.xlu0 %v701, 16
  %v7312 = vpop.permute.xlu0 %7311
  %7313 = vrot.lane.b32.xlu0 %v702, 16
  %v7314 = vpop.permute.xlu0 %7313
  %7315 = vrot.lane.b32.xlu0 %v703, 16
  %v7316 = vpop.permute.xlu0 %7315
  %7317 = vrot.lane.b32.xlu0 %v704, 16
  %v7318 = vpop.permute.xlu0 %7317
  %7319 = vrot.lane.b32.xlu0 %v705, 16
  %v7320 = vpop.permute.xlu0 %7319
  %7321 = vrot.lane.b32.xlu0 %v706, 16
  %v7322 = vpop.permute.xlu0 %7321
  %7323 = vrot.lane.b32.xlu0 %v707, 16
  %v7324 = vpop.permute.xlu0 %7323
  %7325 = vrot.lane.b32.xlu0 %v708, 16
  %v7326 = vpop.permute.xlu0 %7325
  %7327 = vrot.lane.b32.xlu0 %v709, 16
  %v7328 = vpop.permute.xlu0 %7327
  %7329 = vrot.lane.b32.xlu0 %v710, 16
  %v7330 = vpop.permute.xlu0 %7329
  %7331 = vrot.lane.b32.xlu0 %v711, 16
  %v7332 = vpop.permute.xlu0 %7331
  %7333 = vrot.lane.b32.xlu0 %v712, 16
  %v7334 = vpop.permute.xlu0 %7333
  %7335 = vrot.lane.b32.xlu0 %v713, 16
  %v7336 = vpop.permute.xlu0 %7335
  %7337 = vrot.lane.b32.xlu0 %v714, 16
  %v7338 = vpop.permute.xlu0 %7337
  %7339 = vrot.lane.b32.xlu0 %v715, 16
  %v7340 = vpop.permute.xlu0 %7339
  %vm7357 = vcmask 392320
  %7358 = vst.msk [vmem:[%s10] sm:$0xff] %vm7357, %v7310
  %7359 = vst.msk [vmem:[%s10 + $0x8] sm:$0xff] %vm7357, %v7312
  %7360 = vst.msk [vmem:[%s10 + $0x10] sm:$0xff] %vm7357, %v7314
  %7361 = vst.msk [vmem:[%s10 + $0x18] sm:$0xff] %vm7357, %v7316
  %7362 = vst.msk [vmem:[%s10 + $0x20] sm:$0xff] %vm7357, %v7318
  %7363 = vst.msk [vmem:[%s10 + $0x28] sm:$0xff] %vm7357, %v7320
  %7364 = vst.msk [vmem:[%s10 + $0x30] sm:$0xff] %vm7357, %v7322
  %7365 = vst.msk [vmem:[%s10 + $0x38] sm:$0xff] %vm7357, %v7324
  %7366 = vst.msk [vmem:[%s10 + $0x40] sm:$0xff] %vm7357, %v7326
  %7367 = vst.msk [vmem:[%s10 + $0x48] sm:$0xff] %vm7357, %v7328
  %7368 = vst.msk [vmem:[%s10 + $0x50] sm:$0xff] %vm7357, %v7330
  %7369 = vst.msk [vmem:[%s10 + $0x58] sm:$0xff] %vm7357, %v7332
  %7370 = vst.msk [vmem:[%s10 + $0x60] sm:$0xff] %vm7357, %v7334
  %7371 = vst.msk [vmem:[%s10 + $0x68] sm:$0xff] %vm7357, %v7336
  %7372 = vst.msk [vmem:[%s10 + $0x70] sm:$0xff] %vm7357, %v7338
  %7373 = vst.msk [vmem:[%s10 + $0x78] sm:$0xff] %vm7357, %v7340
  %7390 = vrot.lane.b32.xlu0 %v7215, 48
  %v7391 = vpop.permute.xlu0 %7390
  %7392 = vrot.lane.b32.xlu0 %v7220, 48
  %v7393 = vpop.permute.xlu0 %7392
  %7394 = vrot.lane.b32.xlu0 %v7225, 48
  %v7395 = vpop.permute.xlu0 %7394
  %7396 = vrot.lane.b32.xlu0 %v7230, 48
  %v7397 = vpop.permute.xlu0 %7396
  %7398 = vrot.lane.b32.xlu0 %v7235, 48
  %v7399 = vpop.permute.xlu0 %7398
  %7400 = vrot.lane.b32.xlu0 %v7240, 48
  %v7401 = vpop.permute.xlu0 %7400
  %7402 = vrot.lane.b32.xlu0 %v7245, 48
  %v7403 = vpop.permute.xlu0 %7402
  %7404 = vrot.lane.b32.xlu0 %v7250, 48
  %v7405 = vpop.permute.xlu0 %7404
  %7406 = vrot.lane.b32.xlu0 %v7255, 48
  %v7407 = vpop.permute.xlu0 %7406
  %7408 = vrot.lane.b32.xlu0 %v7260, 48
  %v7409 = vpop.permute.xlu0 %7408
  %7410 = vrot.lane.b32.xlu0 %v7265, 48
  %v7411 = vpop.permute.xlu0 %7410
  %7412 = vrot.lane.b32.xlu0 %v7270, 48
  %v7413 = vpop.permute.xlu0 %7412
  %7414 = vrot.lane.b32.xlu0 %v7275, 48
  %v7415 = vpop.permute.xlu0 %7414
  %7416 = vrot.lane.b32.xlu0 %v7280, 48
  %v7417 = vpop.permute.xlu0 %7416
  %7418 = vrot.lane.b32.xlu0 %v7285, 48
  %v7419 = vpop.permute.xlu0 %7418
  %7420 = vrot.lane.b32.xlu0 %v7290, 48
  %v7421 = vpop.permute.xlu0 %7420
  %vm7438 = vcmask 785792
  %7439 = vst.msk [vmem:[%s10] sm:$0xff] %vm7438, %v7391
  %7440 = vst.msk [vmem:[%s10 + $0x8] sm:$0xff] %vm7438, %v7393
  %7441 = vst.msk [vmem:[%s10 + $0x10] sm:$0xff] %vm7438, %v7395
  %7442 = vst.msk [vmem:[%s10 + $0x18] sm:$0xff] %vm7438, %v7397
  %7443 = vst.msk [vmem:[%s10 + $0x20] sm:$0xff] %vm7438, %v7399
  %7444 = vst.msk [vmem:[%s10 + $0x28] sm:$0xff] %vm7438, %v7401
  %7445 = vst.msk [vmem:[%s10 + $0x30] sm:$0xff] %vm7438, %v7403
  %7446 = vst.msk [vmem:[%s10 + $0x38] sm:$0xff] %vm7438, %v7405
  %7447 = vst.msk [vmem:[%s10 + $0x40] sm:$0xff] %vm7438, %v7407
  %7448 = vst.msk [vmem:[%s10 + $0x48] sm:$0xff] %vm7438, %v7409
  %7449 = vst.msk [vmem:[%s10 + $0x50] sm:$0xff] %vm7438, %v7411
  %7450 = vst.msk [vmem:[%s10 + $0x58] sm:$0xff] %vm7438, %v7413
  %7451 = vst.msk [vmem:[%s10 + $0x60] sm:$0xff] %vm7438, %v7415
  %7452 = vst.msk [vmem:[%s10 + $0x68] sm:$0xff] %vm7438, %v7417
  %7453 = vst.msk [vmem:[%s10 + $0x70] sm:$0xff] %vm7438, %v7419
  %7454 = vst.msk [vmem:[%s10 + $0x78] sm:$0xff] %vm7438, %v7421
  %vm7455 = vcmask 794368
  %7456 = vst.msk [vmem:[%s10] sm:$0xff] %vm7455, %v1012
  %7457 = vst.msk [vmem:[%s10 + $0x8] sm:$0xff] %vm7455, %v1012
  %7458 = vst.msk [vmem:[%s10 + $0x10] sm:$0xff] %vm7455, %v1012
  %7459 = vst.msk [vmem:[%s10 + $0x18] sm:$0xff] %vm7455, %v1012
  %7460 = vst.msk [vmem:[%s10 + $0x20] sm:$0xff] %vm7455, %v1012
  %7461 = vst.msk [vmem:[%s10 + $0x28] sm:$0xff] %vm7455, %v1012
  %7462 = vst.msk [vmem:[%s10 + $0x30] sm:$0xff] %vm7455, %v1012
  %7463 = vst.msk [vmem:[%s10 + $0x38] sm:$0xff] %vm7455, %v1012
  %7464 = vst.msk [vmem:[%s10 + $0x40] sm:$0xff] %vm7455, %v1012
  %7465 = vst.msk [vmem:[%s10 + $0x48] sm:$0xff] %vm7455, %v1012
  %7466 = vst.msk [vmem:[%s10 + $0x50] sm:$0xff] %vm7455, %v1012
  %7467 = vst.msk [vmem:[%s10 + $0x58] sm:$0xff] %vm7455, %v1012
  %7468 = vst.msk [vmem:[%s10 + $0x60] sm:$0xff] %vm7455, %v1012
  %7469 = vst.msk [vmem:[%s10 + $0x68] sm:$0xff] %vm7455, %v1012
  %7470 = vst.msk [vmem:[%s10 + $0x70] sm:$0xff] %vm7455, %v1012
  %7471 = vst.msk [vmem:[%s10 + $0x78] sm:$0xff] %vm7455, %v1012
  %vm7472 = vcmask 802568
  %7473 = vst.msk [vmem:[%s10] sm:$0xff] %vm7472, %v1061
  %7474 = vst.msk [vmem:[%s10 + $0x8] sm:$0xff] %vm7472, %v1061
  %7475 = vst.msk [vmem:[%s10 + $0x10] sm:$0xff] %vm7472, %v1061
  %7476 = vst.msk [vmem:[%s10 + $0x18] sm:$0xff] %vm7472, %v1061
  %7477 = vst.msk [vmem:[%s10 + $0x20] sm:$0xff] %vm7472, %v1061
  %7478 = vst.msk [vmem:[%s10 + $0x28] sm:$0xff] %vm7472, %v1061
  %7479 = vst.msk [vmem:[%s10 + $0x30] sm:$0xff] %vm7472, %v1061
  %7480 = vst.msk [vmem:[%s10 + $0x38] sm:$0xff] %vm7472, %v1061
  %7481 = vst.msk [vmem:[%s10 + $0x40] sm:$0xff] %vm7472, %v1061
  %7482 = vst.msk [vmem:[%s10 + $0x48] sm:$0xff] %vm7472, %v1061
  %7483 = vst.msk [vmem:[%s10 + $0x50] sm:$0xff] %vm7472, %v1061
  %7484 = vst.msk [vmem:[%s10 + $0x58] sm:$0xff] %vm7472, %v1061
  %7485 = vst.msk [vmem:[%s10 + $0x60] sm:$0xff] %vm7472, %v1061
  %7486 = vst.msk [vmem:[%s10 + $0x68] sm:$0xff] %vm7472, %v1061
  %7487 = vst.msk [vmem:[%s10 + $0x70] sm:$0xff] %vm7472, %v1061
  %7488 = vst.msk [vmem:[%s10 + $0x78] sm:$0xff] %vm7472, %v1061
  %vm7489 = vcmask 1048336
  %7490 = vst.msk [vmem:[%s10] sm:$0xff] %vm7489, 0.0
  %7491 = vst.msk [vmem:[%s10 + $0x8] sm:$0xff] %vm7489, 0.0
  %7492 = vst.msk [vmem:[%s10 + $0x10] sm:$0xff] %vm7489, 0.0
  %7493 = vst.msk [vmem:[%s10 + $0x18] sm:$0xff] %vm7489, 0.0
  %7494 = vst.msk [vmem:[%s10 + $0x20] sm:$0xff] %vm7489, 0.0
  %7495 = vst.msk [vmem:[%s10 + $0x28] sm:$0xff] %vm7489, 0.0
  %7496 = vst.msk [vmem:[%s10 + $0x30] sm:$0xff] %vm7489, 0.0
  %7497 = vst.msk [vmem:[%s10 + $0x38] sm:$0xff] %vm7489, 0.0
  %7498 = vst.msk [vmem:[%s10 + $0x40] sm:$0xff] %vm7489, 0.0
  %7499 = vst.msk [vmem:[%s10 + $0x48] sm:$0xff] %vm7489, 0.0
  %7500 = vst.msk [vmem:[%s10 + $0x50] sm:$0xff] %vm7489, 0.0
  %7501 = vst.msk [vmem:[%s10 + $0x58] sm:$0xff] %vm7489, 0.0
  %7502 = vst.msk [vmem:[%s10 + $0x60] sm:$0xff] %vm7489, 0.0
  %7503 = vst.msk [vmem:[%s10 + $0x68] sm:$0xff] %vm7489, 0.0
  %7504 = vst.msk [vmem:[%s10 + $0x70] sm:$0xff] %vm7489, 0.0
  %7505 = vst.msk [vmem:[%s10 + $0x78] sm:$0xff] %vm7489, 0.0
  // Predicated region
  $region42: #{codec_forward.1} parent=0 // pred_check
    _
  $region43: #{codec_forward.1} parent=0 // pred_check_branch
    %7507 = sbr.rel (0) target = $region45
  $region44: #{codec_forward.1} parent=0 // pred_region
    _
  $region45: #{codec_forward.1} parent=0 // pred_fallthru
    _
  // Predicated region
  $region46: #{codec_forward.1} parent=0 // pred_check
    _
  $region47: #{codec_forward.1} parent=0 // pred_check_branch
    %7509 = sbr.rel (0) target = $region49
  $region48: #{codec_forward.1} parent=0 // pred_region
    _
  $region49: #{codec_forward.1} parent=0 // pred_fallthru
    _

</llo_original>
